<compile_context>
chip_gen: v6e
topology: v6e:2x2x1
jax: 0.10.0
libtpu: 0.0.40
codegen_flags: <defaults>
</compile_context>

<pallas_src>
import functools
import math

import numpy as np
import jax
import jax.numpy as jnp
from jax.experimental import pallas as pl
from jax.experimental.pallas import tpu as pltpu

# ---------------- configuration (small, TPU-lane-friendly shapes) ----------------
B = 2              # batch
N = 128            # sequence length (multiple of 128 for lane alignment)
DIM = 64           # "dim" of MutualFormer (== C); x has 2*DIM channels
HEADS = 2
HD = DIM // HEADS  # head dim
MLP_HIDDEN = 4 * DIM
ALPHA = 0.6
SCALE = HD ** -0.5
EPS = 1e-5
K_PROJ = HEADS * 7 * HD   # lanes of the fused output-projection LHS


# ---------------- in-kernel helpers ----------------
def _layernorm(v, g, b):
    mu = jnp.mean(v, axis=-1, keepdims=True)
    var = jnp.mean((v - mu) ** 2, axis=-1, keepdims=True)
    return (v - mu) * jax.lax.rsqrt(var + EPS) * g + b


def _softmax(s):
    m = jnp.max(s, axis=-1, keepdims=True)
    e = jnp.exp(s - m)
    return e * pl.reciprocal(jnp.sum(e, axis=-1, keepdims=True), approx=True)


def _dot(a, b):
    return jnp.dot(a, b, preferred_element_type=jnp.float32)


def _dot_nt(a, b):
    # a @ b^T (contract last dims) -- no explicit transpose materialized.
    return jax.lax.dot_general(a, b, (((1,), (1,)), ((), ())),
                               preferred_element_type=jnp.float32)


def _dot_tn(a, b):
    # a^T @ b (contract leading dims) -- no explicit transpose materialized.
    return jax.lax.dot_general(a, b, (((0,), (0,)), ((), ())),
                               preferred_element_type=jnp.float32)


def _bf16(x):
    return x.astype(jnp.bfloat16)


def _gelu_tanh(x):
    # tanh-form GELU: transcendental lands on the EUP slot instead of ~10 VALU ops.
    return 0.5 * x * (1.0 + jnp.tanh(0.7978845608028654 * (x + 0.044715 * x * x * x)))


# ---------------- the fused kernel (nb_blocks batch elements per program) ----------------
def mutualformer_kernel(x_ref, xrd_ref,
                        g1_ref, b1_ref, g1rd_ref, b1rd_ref,
                        wqkvrd_ref, wqkvf_ref, wbig_ref, bbig_ref,
                        g2_ref, b2_ref,
                        wfc1_ref, bfc1_ref, wfc2_ref, bfc2_ref,
                        out_ref, *, nb_blocks):
    x = x_ref[...]        # [R, 2*DIM]   (R = nb_blocks * N)
    xrd = xrd_ref[...]    # [R, DIM]

    # --- norm1 / norm1_rd (stats in f32) ---
    xn = _layernorm(x, g1_ref[...], b1_ref[...])
    xrdn = _layernorm(xrd, g1rd_ref[...], b1rd_ref[...])

    # --- qkv projections (qkv_bias=False); SCALE already folded into q columns ---
    # Fused block-diagonal qkv_r/qkv_d weight -> full K = 2*DIM GEMM, per-head column
    # order [qr|kr|qd|kd|vr|vd] so vrd below is a single contiguous 64-lane slice.
    qkv_rd = _bf16(_dot(_bf16(xn), wqkvrd_ref[...]))    # [R, 6*DIM] bf16
    qkv_f = _bf16(_dot(_bf16(xrdn), wqkvf_ref[...]))    # [R, 3*DIM] bf16

    wbig = wbig_ref[...]                                # [K_PROJ, DIM] bf16
    projs = []
    for nb in range(nb_blocks):
        r0 = nb * N
        blk = qkv_rd[r0:r0 + N]       # [N, 6*DIM]
        blkf = qkv_f[r0:r0 + N]       # [N, 3*DIM]
        pieces = []
        for h in range(HEADS):
            b6 = h * 6 * HD
            qr = blk[:, b6:b6 + HD]
            kr = blk[:, b6 + HD:b6 + 2 * HD]
            qd = blk[:, b6 + 2 * HD:b6 + 3 * HD]
            kd = blk[:, b6 + 3 * HD:b6 + 4 * HD]
            vrd = blk[:, b6 + 4 * HD:b6 + 6 * HD]        # [vr | vd], 64 lanes
            vr = vrd[:, :HD]
            vd = vrd[:, HD:]
            b3 = h * 3 * HD
            qf = blkf[:, b3:b3 + HD]
            kf = blkf[:, b3 + HD:b3 + 2 * HD]
            vf = blkf[:, b3 + 2 * HD:b3 + 3 * HD]

            # softmaxed attention maps (f32 statistics; scale pre-folded into q)
            attn_r = _softmax(_dot_nt(qr, kr))           # [N, N]
            attn_d = _softmax(_dot_nt(qd, kd))
            attn_f = _softmax(_dot_nt(qf, kf))
            ar_b, ad_b, af_b = _bf16(attn_r), _bf16(attn_d), _bf16(attn_f)

            # natural matmul-output slabs (consumed wholesale by the fused projection)
            o_f = _dot(af_b, vf)                         # [N, HD]
            avr = _dot(ar_b, vrd)                        # [N, 2*HD] = attn_r @ [vr|vd]
            avd = _dot(ad_b, vrd)                        # [N, 2*HD] = attn_d @ [vr|vd]

            # S_r @ S_d^T without materializing S_r/S_d or any transpose:
            #   S_r S_d^T = diag(d_r) . (attn_r^T diag(d_r*d_d) attn_d) . diag(d_d),
            # d = rsqrt(rowsum(attn)).  S_d S_r^T is its transpose and is consumed via
            # a leading-axis contraction (A = I folded; single N^3 GEMM per head).
            d_r = jax.lax.rsqrt(jnp.sum(attn_r, axis=-1, keepdims=True))   # [N, 1]
            d_d = jax.lax.rsqrt(jnp.sum(attn_d, axis=-1, keepdims=True))
            core = _dot_tn(_bf16(attn_r * (d_r * d_d)), ad_b)              # [N, N]
            core_b = _bf16(core)
            m_vd = d_r * _dot(core_b, _bf16(d_d * vd))        # (S_r S_d^T) @ vd
            mt_vr = d_d * _dot_tn(core_b, _bf16(d_r * vr))    # (S_d S_r^T) @ vr

            pieces += [_bf16(o_f), _bf16(avr), _bf16(avd), _bf16(m_vd), _bf16(mt_vr)]

        # One fused output-projection GEMM per block; alpha/(1-alpha)*Y blending and
        # proj_r/proj_d/proj/proj_rd composition are folded into wbig's rows.
        lhs = jnp.concatenate(pieces, axis=-1)           # [N, K_PROJ] bf16
        projs.append(_dot(lhs, wbig))                    # [N, DIM] f32

    attn_out = jnp.concatenate(projs, axis=0) + bbig_ref[...]   # [R, DIM]

    # --- residual + MLP block ---
    x1 = xrd + attn_out
    xn2 = _layernorm(x1, g2_ref[...], b2_ref[...])
    h1 = _dot(_bf16(xn2), wfc1_ref[...]) + bfc1_ref[...]
    h1 = _gelu_tanh(h1)
    h2 = _dot(_bf16(h1), wfc2_ref[...]) + bfc2_ref[...]

    # Lane-dense 128-wide store (unmasked vst); wrapper keeps lanes [:DIM].
    res = x1 + h2
    out_ref[...] = jnp.concatenate([res, x1], axis=-1)


# ---------------- wrapper-side parameter fusion / composition ----------------
def _build_fused_params(params):
    (g1, b1, g1rd, b1rd, wqkvr, wqkvd, wqkv, wpr, bpr, wpd, bpd,
     wp, bp, wprd, bprd, g2, b2, wfc1, bfc1, wfc2, bfc2) = params
    f32 = jnp.float32

    # Fused block-diagonal qkv_r/qkv_d weight: [2*DIM, HEADS*6*HD], per-head column
    # order [qr|kr|qd|kd|vr|vd], SCALE folded into the q columns.
    zero = jnp.zeros((DIM, HD), f32)
    cols_rd = []
    for h in range(HEADS):
        sl = slice(h * HD, (h + 1) * HD)
        qr = wqkvr[:, 0 * DIM:1 * DIM][:, sl] * SCALE
        kr = wqkvr[:, 1 * DIM:2 * DIM][:, sl]
        vr = wqkvr[:, 2 * DIM:3 * DIM][:, sl]
        qd = wqkvd[:, 0 * DIM:1 * DIM][:, sl] * SCALE
        kd = wqkvd[:, 1 * DIM:2 * DIM][:, sl]
        vd = wqkvd[:, 2 * DIM:3 * DIM][:, sl]
        cols_rd += [jnp.concatenate([qr, zero], 0), jnp.concatenate([kr, zero], 0),
                    jnp.concatenate([zero, qd], 0), jnp.concatenate([zero, kd], 0),
                    jnp.concatenate([vr, zero], 0), jnp.concatenate([zero, vd], 0)]
    wqkv_rd_f = jnp.concatenate(cols_rd, axis=1)          # [2*DIM, 6*DIM]

    # Fused f-branch qkv weight: per-head [qf|kf|vf], SCALE folded into qf.
    cols_f = []
    for h in range(HEADS):
        sl = slice(h * HD, (h + 1) * HD)
        cols_f += [wqkv[:, 0 * DIM:1 * DIM][:, sl] * SCALE,
                   wqkv[:, 1 * DIM:2 * DIM][:, sl],
                   wqkv[:, 2 * DIM:3 * DIM][:, sl]]
    wqkv_f_f = jnp.concatenate(cols_f, axis=1)            # [DIM, 3*DIM]

    # Compose proj_r/proj_d with proj_rd and fold the (1-alpha)*Y distribution, so
    # attn_out = [o_f|avr|avd|m_vd|mt_vr]_heads @ W_big + b_big  (exact linear algebra).
    wprd_top, wprd_bot = wprd[:DIM], wprd[DIM:]
    W_r = wpr[:DIM] @ wprd_top     # acts on out_r
    W_rd = wpr[DIM:] @ wprd_top    # acts on out_rd
    W_d = wpd[:DIM] @ wprd_bot     # acts on out_d
    W_dr = wpd[DIM:] @ wprd_bot    # acts on out_dr
    one_m_a = 1.0 - ALPHA
    rows = []
    for h in range(HEADS):
        sl = slice(h * HD, (h + 1) * HD)
        rows += [wp[sl],                                   # o_f
                 W_r[sl] + one_m_a * W_dr[sl],             # attn_r @ vr
                 one_m_a * W_rd[sl],                       # attn_r @ vd
                 one_m_a * W_dr[sl],                       # attn_d @ vr
                 W_d[sl] + one_m_a * W_rd[sl],             # attn_d @ vd
                 ALPHA * W_rd[sl],                         # (S_r S_d^T) vd
                 ALPHA * W_dr[sl]]                         # (S_d S_r^T) vr
    w_big = jnp.concatenate(rows, axis=0)                  # [K_PROJ, DIM]
    b_big = bp + bprd + bpr @ wprd_top + bpd @ wprd_bot    # [1, DIM]

    bf = lambda a: a.astype(jnp.bfloat16)
    return (g1, b1, g1rd, b1rd, bf(wqkv_rd_f), bf(wqkv_f_f), bf(w_big), b_big,
            g2, b2, bf(wfc1), bfc1, bf(wfc2), bfc2)


# ---------------- grid strategy ----------------
def _num_tensorcores_per_device():
    try:
        info = pltpu.get_tpu_info()
        for name in ("num_cores", "core_count", "num_tensorcores",
                     "tensorcore_count", "cores_per_chip", "num_cores_per_chip"):
            v = getattr(info, name, None)
            if isinstance(v, int) and v > 0:
                return v
    except Exception:
        pass
    try:
        kind = jax.devices()[0].device_kind.lower()
    except Exception:
        return 2
    single_tc = any(t in kind for t in
                    ("v5e", "v5 lite", "v5lite", "v6e", "v6 lite", "v6lite"))
    return 1 if single_tc else 2


def _batches_per_program(batch):
    """Multi-TC chips (v7x/v4/v5p/...): one batch element per program so the
    'parallel' grid axis shards across cores.  Single-TC chips (v5e/v6e): fold the
    whole batch into one program (bigger GEMM M, no per-grid-step overhead)."""
    if _num_tensorcores_per_device() <= 1:
        nb = batch
    else:
        nb = 1
        # TODO(synk): for batch == 1 on multi-TC chips, add a second "parallel" grid
        # axis (e.g. split heads) so the second TensorCore is not idle.
    return nb if (nb >= 1 and batch % nb == 0) else 1


# ---------------- wrapper ----------------
def mutualformer_forward(x, xrd, params):
    Bn, Nn, C2 = x.shape
    assert C2 == 2 * DIM and Nn == N

    fused = _build_fused_params(params)

    nb = _batches_per_program(Bn)
    R = nb * Nn
    grid = (Bn // nb,)

    # Fold batch into the row dimension; kernel works on 2-D [rows, channels] tiles.
    x2 = x.reshape(Bn * Nn, 2 * DIM)
    xrd2 = xrd.reshape(Bn * Nn, DIM)

    def full_spec(a):
        return pl.BlockSpec(a.shape, lambda i, nd=a.ndim: (0,) * nd)

    in_specs = ([pl.BlockSpec((R, 2 * DIM), lambda i: (i, 0)),
                 pl.BlockSpec((R, DIM), lambda i: (i, 0))]
                + [full_spec(p) for p in fused])
    # 128-lane-dense (padded) output -> unmasked epilogue stores; wrapper slices [:DIM].
    out_specs = pl.BlockSpec((R, 2 * DIM), lambda i: (i, 0))

    out = pl.pallas_call(
        functools.partial(mutualformer_kernel, nb_blocks=nb),
        out_shape=jax.ShapeDtypeStruct((Bn * Nn, 2 * DIM), jnp.float32),
        grid=grid,
        in_specs=in_specs,
        out_specs=out_specs,
        compiler_params=pltpu.CompilerParams(
            dimension_semantics=("parallel",)),
    )(x2, xrd2, *fused)
    return out[:, :DIM].reshape(Bn, Nn, DIM)


# ---------------- plain-JAX reference (mirrors the PyTorch code) ----------------
def reference_forward(x, xrd, params):
    (g1, b1, g1rd, b1rd, wqkvr, wqkvd, wqkv, wpr, bpr, wpd, bpd,
     wp, bp, wprd, bprd, g2, b2, wfc1, bfc1, wfc2, bfc2) = params
    Bn, Nn, _ = x.shape

    def ln(v, g, b):
        mu = v.mean(-1, keepdims=True)
        var = ((v - mu) ** 2).mean(-1, keepdims=True)
        return (v - mu) / jnp.sqrt(var + EPS) * g + b

    xn = ln(x, g1[0], b1[0])
    xrdn = ln(xrd, g1rd[0], b1rd[0])
    xr, xd = xn[..., :DIM], xn[..., DIM:]

    def split_heads(y, W):
        t = (y @ W).reshape(Bn, Nn, 3, HEADS, HD).transpose(2, 0, 3, 1, 4)
        return t[0], t[1], t[2]   # each [B, H, N, HD]

    qr, kr, vr = split_heads(xr, wqkvr)
    qd, kd, vd = split_heads(xd, wqkvd)
    qf, kf, vf = split_heads(xrdn, wqkv)

    sm = lambda s: jax.nn.softmax(s, axis=-1)
    attn_r = sm(jnp.einsum('bhnd,bhmd->bhnm', qr, kr) * SCALE)
    attn_d = sm(jnp.einsum('bhnd,bhmd->bhnm', qd, kd) * SCALE)

    def get_S(W):
        d = jnp.power(W.sum(-1), -0.5)                      # [B, H, N]
        D = d[..., :, None] * jnp.eye(Nn, dtype=W.dtype)    # diag_embed
        return jnp.swapaxes(W @ D, -1, -2) @ D

    S_r, S_d = get_S(attn_r), get_S(attn_d)
    out_r = jnp.einsum('bhnm,bhmd->bhnd', attn_r, vr)
    out_d = jnp.einsum('bhnm,bhmd->bhnd', attn_d, vd)
    Y = attn_r + attn_d
    I = jnp.broadcast_to(jnp.eye(Nn, dtype=x.dtype), (Bn, HEADS, Nn, Nn))
    A_rd = ALPHA * (S_r @ I @ jnp.swapaxes(S_d, -1, -2)) + (1 - ALPHA) * Y
    A_dr = ALPHA * (S_d @ I @ jnp.swapaxes(S_r, -1, -2)) + (1 - ALPHA) * Y
    out_rd = jnp.einsum('bhnm,bhmd->bhnd', A_rd, vd)
    out_dr = jnp.einsum('bhnm,bhmd->bhnd', A_dr, vr)
    attn_f = sm(jnp.einsum('bhnd,bhmd->bhnm', qf, kf) * SCALE)
    out_f = jnp.einsum('bhnm,bhmd->bhnd', attn_f, vf)

    merge = lambda t: t.transpose(0, 2, 1, 3).reshape(Bn, Nn, DIM)
    out_r, out_d, out_rd, out_dr, out_f = map(merge, (out_r, out_d, out_rd, out_dr, out_f))

    lin = lambda y, W, bias: y @ W + bias[0]
    out_r2 = lin(jnp.concatenate([out_r, out_rd], -1), wpr, bpr)
    out_d2 = lin(jnp.concatenate([out_d, out_dr], -1), wpd, bpd)
    attn_out = lin(out_f, wp, bp) + lin(jnp.concatenate([out_r2, out_d2], -1), wprd, bprd)

    x1 = xrd + attn_out
    xn2 = ln(x1, g2[0], b2[0])
    h1 = xn2 @ wfc1 + bfc1[0]
    h1 = 0.5 * h1 * (1.0 + jax.lax.erf(h1 / math.sqrt(2.0)))     # exact nn.GELU
    h2 = h1 @ wfc2 + bfc2[0]
    return x1 + h2


# ---------------- main ----------------
if __name__ == "__main__":
    key = jax.random.PRNGKey(0)
    keys = jax.random.split(key, 25)
    ki = iter(range(25))

    def rnd(shape, scale=0.05):
        return scale * jax.random.normal(keys[next(ki)], shape, jnp.float32)

    x = jax.random.normal(keys[next(ki)], (B, N, 2 * DIM), jnp.float32)
    xrd = jax.random.normal(keys[next(ki)], (B, N, DIM), jnp.float32)

    g1 = 1.0 + rnd((1, 2 * DIM), 0.1)
    b1 = rnd((1, 2 * DIM), 0.1)
    g1rd = 1.0 + rnd((1, DIM), 0.1)
    b1rd = rnd((1, DIM), 0.1)
    wqkvr = rnd((DIM, 3 * DIM))
    wqkvd = rnd((DIM, 3 * DIM))
    wqkv = rnd((DIM, 3 * DIM))
    wpr = rnd((2 * DIM, DIM));  bpr = rnd((1, DIM), 0.02)
    wpd = rnd((2 * DIM, DIM));  bpd = rnd((1, DIM), 0.02)
    wp = rnd((DIM, DIM));       bp = rnd((1, DIM), 0.02)
    wprd = rnd((2 * DIM, DIM)); bprd = rnd((1, DIM), 0.02)
    g2 = 1.0 + rnd((1, DIM), 0.1)
    b2 = rnd((1, DIM), 0.1)
    wfc1 = rnd((DIM, MLP_HIDDEN)); bfc1 = rnd((1, MLP_HIDDEN), 0.02)
    wfc2 = rnd((MLP_HIDDEN, DIM)); bfc2 = rnd((1, DIM), 0.02)

    params = (g1, b1, g1rd, b1rd, wqkvr, wqkvd, wqkv, wpr, bpr, wpd, bpd,
              wp, bp, wprd, bprd, g2, b2, wfc1, bfc1, wfc2, bfc2)

    out = mutualformer_forward(x, xrd, params)
    out = jax.block_until_ready(out)

    # High-precision reference for the correctness check (context only affects the ref).
    with jax.default_matmul_precision("highest"):
        ref = reference_forward(x, xrd, params)
        ref = jax.block_until_ready(ref)

    np.testing.assert_allclose(np.asarray(out), np.asarray(ref), rtol=1e-2, atol=1e-2)

    print("KERNEL_OK")
</pallas_src>

<mosaic_0001>
module attributes {stable_mosaic.version = 11 : i64} {
  func.func @mutualformer_kernel(%arg0: i32, %arg1: memref<128x128xf32, #tpu.memory_space<vmem>>, %arg2: memref<128x64xf32, #tpu.memory_space<vmem>>, %arg3: memref<1x128xf32, #tpu.memory_space<vmem>>, %arg4: memref<1x128xf32, #tpu.memory_space<vmem>>, %arg5: memref<1x64xf32, #tpu.memory_space<vmem>>, %arg6: memref<1x64xf32, #tpu.memory_space<vmem>>, %arg7: memref<128x384xbf16, #tpu.memory_space<vmem>>, %arg8: memref<64x192xbf16, #tpu.memory_space<vmem>>, %arg9: memref<448x64xbf16, #tpu.memory_space<vmem>>, %arg10: memref<1x64xf32, #tpu.memory_space<vmem>>, %arg11: memref<1x64xf32, #tpu.memory_space<vmem>>, %arg12: memref<1x64xf32, #tpu.memory_space<vmem>>, %arg13: memref<64x256xbf16, #tpu.memory_space<vmem>>, %arg14: memref<1x256xf32, #tpu.memory_space<vmem>>, %arg15: memref<256x64xbf16, #tpu.memory_space<vmem>>, %arg16: memref<1x64xf32, #tpu.memory_space<vmem>>, %arg17: memref<128x128xf32, #tpu.memory_space<vmem>>) attributes {dimension_semantics = [#tpu.dimension_semantics<parallel>], iteration_bounds = array<i64: 2>, scalar_prefetch = 0 : i64, scratch_operands = 0 : i64, tpu.core_type = #tpu.core_type<tc>, window_params = [{transform_indices = @transform_0, window_bounds = array<i64: 128, 128>}, {transform_indices = @transform_1, window_bounds = array<i64: 128, 64>}, {pipeline_mode = #tpu.pipeline_mode<synchronous>, transform_indices = @transform_2, window_bounds = array<i64: 1, 128>}, {pipeline_mode = #tpu.pipeline_mode<synchronous>, transform_indices = @transform_3, window_bounds = array<i64: 1, 128>}, {pipeline_mode = #tpu.pipeline_mode<synchronous>, transform_indices = @transform_4, window_bounds = array<i64: 1, 64>}, {pipeline_mode = #tpu.pipeline_mode<synchronous>, transform_indices = @transform_5, window_bounds = array<i64: 1, 64>}, {pipeline_mode = #tpu.pipeline_mode<synchronous>, transform_indices = @transform_6, window_bounds = array<i64: 128, 384>}, {pipeline_mode = #tpu.pipeline_mode<synchronous>, transform_indices = @transform_7, window_bounds = array<i64: 64, 192>}, {pipeline_mode = #tpu.pipeline_mode<synchronous>, transform_indices = @transform_8, window_bounds = array<i64: 448, 64>}, {pipeline_mode = #tpu.pipeline_mode<synchronous>, transform_indices = @transform_9, window_bounds = array<i64: 1, 64>}, {pipeline_mode = #tpu.pipeline_mode<synchronous>, transform_indices = @transform_10, window_bounds = array<i64: 1, 64>}, {pipeline_mode = #tpu.pipeline_mode<synchronous>, transform_indices = @transform_11, window_bounds = array<i64: 1, 64>}, {pipeline_mode = #tpu.pipeline_mode<synchronous>, transform_indices = @transform_12, window_bounds = array<i64: 64, 256>}, {pipeline_mode = #tpu.pipeline_mode<synchronous>, transform_indices = @transform_13, window_bounds = array<i64: 1, 256>}, {pipeline_mode = #tpu.pipeline_mode<synchronous>, transform_indices = @transform_14, window_bounds = array<i64: 256, 64>}, {pipeline_mode = #tpu.pipeline_mode<synchronous>, transform_indices = @transform_15, window_bounds = array<i64: 1, 64>}, {transform_indices = @transform_16, window_bounds = array<i64: 128, 128>}]} {
    %c0 = arith.constant 0 : index
    %c0_0 = arith.constant 0 : index
    %0 = vector.load %arg1[%c0, %c0_0] : memref<128x128xf32, #tpu.memory_space<vmem>>, vector<128x128xf32>
    %c0_1 = arith.constant 0 : index
    %c0_2 = arith.constant 0 : index
    %1 = vector.load %arg2[%c0_1, %c0_2] : memref<128x64xf32, #tpu.memory_space<vmem>>, vector<128x64xf32>
    %c0_3 = arith.constant 0 : index
    %c0_4 = arith.constant 0 : index
    %2 = vector.load %arg3[%c0_3, %c0_4] : memref<1x128xf32, #tpu.memory_space<vmem>>, vector<1x128xf32>
    %c0_5 = arith.constant 0 : index
    %c0_6 = arith.constant 0 : index
    %3 = vector.load %arg4[%c0_5, %c0_6] : memref<1x128xf32, #tpu.memory_space<vmem>>, vector<1x128xf32>
    %cst = arith.constant dense<0.000000e+00> : vector<128xf32>
    %4 = vector.multi_reduction <add>, %0, %cst [1] : vector<128x128xf32> to vector<128xf32>
    %5 = vector.shape_cast %4 : vector<128xf32> to vector<128x1xf32>
    %cst_7 = arith.constant 1.280000e+02 : f32
    %6 = vector.broadcast %cst_7 : f32 to vector<128x1xf32>
    %7 = arith.divf %5, %6 : vector<128x1xf32>
    %8 = vector.broadcast %7 : vector<128x1xf32> to vector<128x128xf32>
    %9 = arith.subf %0, %8 : vector<128x128xf32>
    %10 = arith.mulf %9, %9 : vector<128x128xf32>
    %cst_8 = arith.constant dense<0.000000e+00> : vector<128xf32>
    %11 = vector.multi_reduction <add>, %10, %cst_8 [1] : vector<128x128xf32> to vector<128xf32>
    %12 = vector.shape_cast %11 : vector<128xf32> to vector<128x1xf32>
    %cst_9 = arith.constant 1.280000e+02 : f32
    %13 = vector.broadcast %cst_9 : f32 to vector<128x1xf32>
    %14 = arith.divf %12, %13 : vector<128x1xf32>
    %15 = vector.broadcast %7 : vector<128x1xf32> to vector<128x128xf32>
    %16 = arith.subf %0, %15 : vector<128x128xf32>
    %cst_10 = arith.constant 9.99999974E-6 : f32
    %17 = vector.broadcast %cst_10 : f32 to vector<128x1xf32>
    %18 = arith.addf %14, %17 : vector<128x1xf32>
    %19 = math.rsqrt %18 : vector<128x1xf32>
    %20 = vector.broadcast %19 : vector<128x1xf32> to vector<128x128xf32>
    %21 = arith.mulf %16, %20 : vector<128x128xf32>
    %22 = vector.broadcast %2 : vector<1x128xf32> to vector<128x128xf32>
    %23 = arith.mulf %21, %22 : vector<128x128xf32>
    %24 = vector.broadcast %3 : vector<1x128xf32> to vector<128x128xf32>
    %25 = arith.addf %23, %24 : vector<128x128xf32>
    %c0_11 = arith.constant 0 : index
    %c0_12 = arith.constant 0 : index
    %26 = vector.load %arg5[%c0_11, %c0_12] : memref<1x64xf32, #tpu.memory_space<vmem>>, vector<1x64xf32>
    %c0_13 = arith.constant 0 : index
    %c0_14 = arith.constant 0 : index
    %27 = vector.load %arg6[%c0_13, %c0_14] : memref<1x64xf32, #tpu.memory_space<vmem>>, vector<1x64xf32>
    %cst_15 = arith.constant dense<0.000000e+00> : vector<128xf32>
    %28 = vector.multi_reduction <add>, %1, %cst_15 [1] : vector<128x64xf32> to vector<128xf32>
    %29 = vector.shape_cast %28 : vector<128xf32> to vector<128x1xf32>
    %cst_16 = arith.constant 6.400000e+01 : f32
    %30 = vector.broadcast %cst_16 : f32 to vector<128x1xf32>
    %31 = arith.divf %29, %30 : vector<128x1xf32>
    %32 = vector.broadcast %31 : vector<128x1xf32> to vector<128x64xf32>
    %33 = arith.subf %1, %32 : vector<128x64xf32>
    %34 = arith.mulf %33, %33 : vector<128x64xf32>
    %cst_17 = arith.constant dense<0.000000e+00> : vector<128xf32>
    %35 = vector.multi_reduction <add>, %34, %cst_17 [1] : vector<128x64xf32> to vector<128xf32>
    %36 = vector.shape_cast %35 : vector<128xf32> to vector<128x1xf32>
    %cst_18 = arith.constant 6.400000e+01 : f32
    %37 = vector.broadcast %cst_18 : f32 to vector<128x1xf32>
    %38 = arith.divf %36, %37 : vector<128x1xf32>
    %39 = vector.broadcast %31 : vector<128x1xf32> to vector<128x64xf32>
    %40 = arith.subf %1, %39 : vector<128x64xf32>
    %cst_19 = arith.constant 9.99999974E-6 : f32
    %41 = vector.broadcast %cst_19 : f32 to vector<128x1xf32>
    %42 = arith.addf %38, %41 : vector<128x1xf32>
    %43 = math.rsqrt %42 : vector<128x1xf32>
    %44 = vector.broadcast %43 : vector<128x1xf32> to vector<128x64xf32>
    %45 = arith.mulf %40, %44 : vector<128x64xf32>
    %46 = vector.broadcast %26 : vector<1x64xf32> to vector<128x64xf32>
    %47 = arith.mulf %45, %46 : vector<128x64xf32>
    %48 = vector.broadcast %27 : vector<1x64xf32> to vector<128x64xf32>
    %49 = arith.addf %47, %48 : vector<128x64xf32>
    %50 = arith.truncf %25 : vector<128x128xf32> to vector<128x128xbf16>
    %c0_20 = arith.constant 0 : index
    %c0_21 = arith.constant 0 : index
    %51 = vector.load %arg7[%c0_20, %c0_21] : memref<128x384xbf16, #tpu.memory_space<vmem>>, vector<128x384xbf16>
    %cst_22 = arith.constant dense<0.000000e+00> : vector<128x384xf32>
    %52 = tpu.matmul %50, %51, %cst_22 {dimension_numbers = #tpu.dot_dimension_numbers<[1], [0], [0], [1], [0, 0, 1, 1], [], []>} : vector<128x128xbf16>, vector<128x384xbf16>, vector<128x384xf32> -> vector<128x384xf32>
    %53 = arith.truncf %52 : vector<128x384xf32> to vector<128x384xbf16>
    %54 = arith.truncf %49 : vector<128x64xf32> to vector<128x64xbf16>
    %c0_23 = arith.constant 0 : index
    %c0_24 = arith.constant 0 : index
    %55 = vector.load %arg8[%c0_23, %c0_24] : memref<64x192xbf16, #tpu.memory_space<vmem>>, vector<64x192xbf16>
    %cst_25 = arith.constant dense<0.000000e+00> : vector<128x192xf32>
    %56 = tpu.matmul %54, %55, %cst_25 {dimension_numbers = #tpu.dot_dimension_numbers<[1], [0], [0], [1], [0, 0, 1, 1], [], []>} : vector<128x64xbf16>, vector<64x192xbf16>, vector<128x192xf32> -> vector<128x192xf32>
    %57 = arith.truncf %56 : vector<128x192xf32> to vector<128x192xbf16>
    %c0_26 = arith.constant 0 : index
    %c0_27 = arith.constant 0 : index
    %58 = vector.load %arg9[%c0_26, %c0_27] : memref<448x64xbf16, #tpu.memory_space<vmem>>, vector<448x64xbf16>
    %59 = vector.extract_strided_slice %53 {offsets = [0, 0], sizes = [128, 32], strides = [1, 1]} : vector<128x384xbf16> to vector<128x32xbf16>
    %60 = vector.extract_strided_slice %53 {offsets = [0, 32], sizes = [128, 32], strides = [1, 1]} : vector<128x384xbf16> to vector<128x32xbf16>
    %61 = vector.extract_strided_slice %53 {offsets = [0, 64], sizes = [128, 32], strides = [1, 1]} : vector<128x384xbf16> to vector<128x32xbf16>
    %62 = vector.extract_strided_slice %53 {offsets = [0, 96], sizes = [128, 32], strides = [1, 1]} : vector<128x384xbf16> to vector<128x32xbf16>
    %63 = vector.extract_strided_slice %53 {offsets = [0, 128], sizes = [128, 64], strides = [1, 1]} : vector<128x384xbf16> to vector<128x64xbf16>
    %64 = vector.extract_strided_slice %63 {offsets = [0, 0], sizes = [128, 32], strides = [1, 1]} : vector<128x64xbf16> to vector<128x32xbf16>
    %65 = vector.extract_strided_slice %63 {offsets = [0, 32], sizes = [128, 32], strides = [1, 1]} : vector<128x64xbf16> to vector<128x32xbf16>
    %66 = vector.extract_strided_slice %57 {offsets = [0, 0], sizes = [128, 32], strides = [1, 1]} : vector<128x192xbf16> to vector<128x32xbf16>
    %67 = vector.extract_strided_slice %57 {offsets = [0, 32], sizes = [128, 32], strides = [1, 1]} : vector<128x192xbf16> to vector<128x32xbf16>
    %68 = vector.extract_strided_slice %57 {offsets = [0, 64], sizes = [128, 32], strides = [1, 1]} : vector<128x192xbf16> to vector<128x32xbf16>
    %cst_28 = arith.constant dense<0.000000e+00> : vector<128x128xf32>
    %69 = tpu.matmul %59, %60, %cst_28 {dimension_numbers = #tpu.dot_dimension_numbers<[1], [1], [0], [0], [0, 0, 1, 0], [], []>} : vector<128x32xbf16>, vector<128x32xbf16>, vector<128x128xf32> -> vector<128x128xf32>
    %cst_29 = arith.constant dense<0xFF800000> : vector<128xf32>
    %70 = vector.multi_reduction <maximumf>, %69, %cst_29 [1] : vector<128x128xf32> to vector<128xf32>
    %71 = vector.shape_cast %70 : vector<128xf32> to vector<128x1xf32>
    %72 = vector.broadcast %71 : vector<128x1xf32> to vector<128x128xf32>
    %73 = arith.subf %69, %72 : vector<128x128xf32>
    %74 = math.exp %73 : vector<128x128xf32>
    %cst_30 = arith.constant dense<0.000000e+00> : vector<128xf32>
    %75 = vector.multi_reduction <add>, %74, %cst_30 [1] : vector<128x128xf32> to vector<128xf32>
    %76 = vector.shape_cast %75 : vector<128xf32> to vector<128x1xf32>
    %77 = tpu.reciprocal %76 {approx = true} : vector<128x1xf32> -> vector<128x1xf32>
    %78 = vector.broadcast %77 : vector<128x1xf32> to vector<128x128xf32>
    %79 = arith.mulf %74, %78 : vector<128x128xf32>
    %cst_31 = arith.constant dense<0.000000e+00> : vector<128x128xf32>
    %80 = tpu.matmul %61, %62, %cst_31 {dimension_numbers = #tpu.dot_dimension_numbers<[1], [1], [0], [0], [0, 0, 1, 0], [], []>} : vector<128x32xbf16>, vector<128x32xbf16>, vector<128x128xf32> -> vector<128x128xf32>
    %cst_32 = arith.constant dense<0xFF800000> : vector<128xf32>
    %81 = vector.multi_reduction <maximumf>, %80, %cst_32 [1] : vector<128x128xf32> to vector<128xf32>
    %82 = vector.shape_cast %81 : vector<128xf32> to vector<128x1xf32>
    %83 = vector.broadcast %82 : vector<128x1xf32> to vector<128x128xf32>
    %84 = arith.subf %80, %83 : vector<128x128xf32>
    %85 = math.exp %84 : vector<128x128xf32>
    %cst_33 = arith.constant dense<0.000000e+00> : vector<128xf32>
    %86 = vector.multi_reduction <add>, %85, %cst_33 [1] : vector<128x128xf32> to vector<128xf32>
    %87 = vector.shape_cast %86 : vector<128xf32> to vector<128x1xf32>
    %88 = tpu.reciprocal %87 {approx = true} : vector<128x1xf32> -> vector<128x1xf32>
    %89 = vector.broadcast %88 : vector<128x1xf32> to vector<128x128xf32>
    %90 = arith.mulf %85, %89 : vector<128x128xf32>
    %cst_34 = arith.constant dense<0.000000e+00> : vector<128x128xf32>
    %91 = tpu.matmul %66, %67, %cst_34 {dimension_numbers = #tpu.dot_dimension_numbers<[1], [1], [0], [0], [0, 0, 1, 0], [], []>} : vector<128x32xbf16>, vector<128x32xbf16>, vector<128x128xf32> -> vector<128x128xf32>
    %cst_35 = arith.constant dense<0xFF800000> : vector<128xf32>
    %92 = vector.multi_reduction <maximumf>, %91, %cst_35 [1] : vector<128x128xf32> to vector<128xf32>
    %93 = vector.shape_cast %92 : vector<128xf32> to vector<128x1xf32>
    %94 = vector.broadcast %93 : vector<128x1xf32> to vector<128x128xf32>
    %95 = arith.subf %91, %94 : vector<128x128xf32>
    %96 = math.exp %95 : vector<128x128xf32>
    %cst_36 = arith.constant dense<0.000000e+00> : vector<128xf32>
    %97 = vector.multi_reduction <add>, %96, %cst_36 [1] : vector<128x128xf32> to vector<128xf32>
    %98 = vector.shape_cast %97 : vector<128xf32> to vector<128x1xf32>
    %99 = tpu.reciprocal %98 {approx = true} : vector<128x1xf32> -> vector<128x1xf32>
    %100 = vector.broadcast %99 : vector<128x1xf32> to vector<128x128xf32>
    %101 = arith.mulf %96, %100 : vector<128x128xf32>
    %102 = arith.truncf %79 : vector<128x128xf32> to vector<128x128xbf16>
    %103 = arith.truncf %90 : vector<128x128xf32> to vector<128x128xbf16>
    %104 = arith.truncf %101 : vector<128x128xf32> to vector<128x128xbf16>
    %cst_37 = arith.constant dense<0.000000e+00> : vector<128x32xf32>
    %105 = tpu.matmul %104, %68, %cst_37 {dimension_numbers = #tpu.dot_dimension_numbers<[1], [0], [0], [1], [0, 0, 1, 1], [], []>} : vector<128x128xbf16>, vector<128x32xbf16>, vector<128x32xf32> -> vector<128x32xf32>
    %cst_38 = arith.constant dense<0.000000e+00> : vector<128x64xf32>
    %106 = tpu.matmul %102, %63, %cst_38 {dimension_numbers = #tpu.dot_dimension_numbers<[1], [0], [0], [1], [0, 0, 1, 1], [], []>} : vector<128x128xbf16>, vector<128x64xbf16>, vector<128x64xf32> -> vector<128x64xf32>
    %cst_39 = arith.constant dense<0.000000e+00> : vector<128x64xf32>
    %107 = tpu.matmul %103, %63, %cst_39 {dimension_numbers = #tpu.dot_dimension_numbers<[1], [0], [0], [1], [0, 0, 1, 1], [], []>} : vector<128x128xbf16>, vector<128x64xbf16>, vector<128x64xf32> -> vector<128x64xf32>
    %cst_40 = arith.constant dense<0.000000e+00> : vector<128xf32>
    %108 = vector.multi_reduction <add>, %79, %cst_40 [1] : vector<128x128xf32> to vector<128xf32>
    %109 = vector.shape_cast %108 : vector<128xf32> to vector<128x1xf32>
    %110 = math.rsqrt %109 : vector<128x1xf32>
    %cst_41 = arith.constant dense<0.000000e+00> : vector<128xf32>
    %111 = vector.multi_reduction <add>, %90, %cst_41 [1] : vector<128x128xf32> to vector<128xf32>
    %112 = vector.shape_cast %111 : vector<128xf32> to vector<128x1xf32>
    %113 = math.rsqrt %112 : vector<128x1xf32>
    %114 = arith.mulf %110, %113 : vector<128x1xf32>
    %115 = vector.broadcast %114 : vector<128x1xf32> to vector<128x128xf32>
    %116 = arith.mulf %79, %115 : vector<128x128xf32>
    %117 = arith.truncf %116 : vector<128x128xf32> to vector<128x128xbf16>
    %cst_42 = arith.constant dense<0.000000e+00> : vector<128x128xf32>
    %118 = tpu.matmul %117, %103, %cst_42 {dimension_numbers = #tpu.dot_dimension_numbers<[0], [0], [1], [1], [0, 1, 1, 1], [], []>} : vector<128x128xbf16>, vector<128x128xbf16>, vector<128x128xf32> -> vector<128x128xf32>
    %119 = arith.truncf %118 : vector<128x128xf32> to vector<128x128xbf16>
    %120 = arith.extf %65 : vector<128x32xbf16> to vector<128x32xf32>
    %121 = vector.broadcast %113 : vector<128x1xf32> to vector<128x32xf32>
    %122 = arith.mulf %121, %120 : vector<128x32xf32>
    %123 = arith.truncf %122 : vector<128x32xf32> to vector<128x32xbf16>
    %cst_43 = arith.constant dense<0.000000e+00> : vector<128x32xf32>
    %124 = tpu.matmul %119, %123, %cst_43 {dimension_numbers = #tpu.dot_dimension_numbers<[1], [0], [0], [1], [0, 0, 1, 1], [], []>} : vector<128x128xbf16>, vector<128x32xbf16>, vector<128x32xf32> -> vector<128x32xf32>
    %125 = vector.broadcast %110 : vector<128x1xf32> to vector<128x32xf32>
    %126 = arith.mulf %125, %124 : vector<128x32xf32>
    %127 = arith.extf %64 : vector<128x32xbf16> to vector<128x32xf32>
    %128 = vector.broadcast %110 : vector<128x1xf32> to vector<128x32xf32>
    %129 = arith.mulf %128, %127 : vector<128x32xf32>
    %130 = arith.truncf %129 : vector<128x32xf32> to vector<128x32xbf16>
    %cst_44 = arith.constant dense<0.000000e+00> : vector<128x32xf32>
    %131 = tpu.matmul %119, %130, %cst_44 {dimension_numbers = #tpu.dot_dimension_numbers<[0], [0], [1], [1], [0, 1, 1, 1], [], []>} : vector<128x128xbf16>, vector<128x32xbf16>, vector<128x32xf32> -> vector<128x32xf32>
    %132 = vector.broadcast %113 : vector<128x1xf32> to vector<128x32xf32>
    %133 = arith.mulf %132, %131 : vector<128x32xf32>
    %134 = arith.truncf %105 : vector<128x32xf32> to vector<128x32xbf16>
    %135 = arith.truncf %106 : vector<128x64xf32> to vector<128x64xbf16>
    %136 = arith.truncf %107 : vector<128x64xf32> to vector<128x64xbf16>
    %137 = arith.truncf %126 : vector<128x32xf32> to vector<128x32xbf16>
    %138 = arith.truncf %133 : vector<128x32xf32> to vector<128x32xbf16>
    %139 = vector.extract_strided_slice %53 {offsets = [0, 192], sizes = [128, 32], strides = [1, 1]} : vector<128x384xbf16> to vector<128x32xbf16>
    %140 = vector.extract_strided_slice %53 {offsets = [0, 224], sizes = [128, 32], strides = [1, 1]} : vector<128x384xbf16> to vector<128x32xbf16>
    %141 = vector.extract_strided_slice %53 {offsets = [0, 256], sizes = [128, 32], strides = [1, 1]} : vector<128x384xbf16> to vector<128x32xbf16>
    %142 = vector.extract_strided_slice %53 {offsets = [0, 288], sizes = [128, 32], strides = [1, 1]} : vector<128x384xbf16> to vector<128x32xbf16>
    %143 = vector.extract_strided_slice %53 {offsets = [0, 320], sizes = [128, 64], strides = [1, 1]} : vector<128x384xbf16> to vector<128x64xbf16>
    %144 = vector.extract_strided_slice %143 {offsets = [0, 0], sizes = [128, 32], strides = [1, 1]} : vector<128x64xbf16> to vector<128x32xbf16>
    %145 = vector.extract_strided_slice %143 {offsets = [0, 32], sizes = [128, 32], strides = [1, 1]} : vector<128x64xbf16> to vector<128x32xbf16>
    %146 = vector.extract_strided_slice %57 {offsets = [0, 96], sizes = [128, 32], strides = [1, 1]} : vector<128x192xbf16> to vector<128x32xbf16>
    %147 = vector.extract_strided_slice %57 {offsets = [0, 128], sizes = [128, 32], strides = [1, 1]} : vector<128x192xbf16> to vector<128x32xbf16>
    %148 = vector.extract_strided_slice %57 {offsets = [0, 160], sizes = [128, 32], strides = [1, 1]} : vector<128x192xbf16> to vector<128x32xbf16>
    %cst_45 = arith.constant dense<0.000000e+00> : vector<128x128xf32>
    %149 = tpu.matmul %139, %140, %cst_45 {dimension_numbers = #tpu.dot_dimension_numbers<[1], [1], [0], [0], [0, 0, 1, 0], [], []>} : vector<128x32xbf16>, vector<128x32xbf16>, vector<128x128xf32> -> vector<128x128xf32>
    %cst_46 = arith.constant dense<0xFF800000> : vector<128xf32>
    %150 = vector.multi_reduction <maximumf>, %149, %cst_46 [1] : vector<128x128xf32> to vector<128xf32>
    %151 = vector.shape_cast %150 : vector<128xf32> to vector<128x1xf32>
    %152 = vector.broadcast %151 : vector<128x1xf32> to vector<128x128xf32>
    %153 = arith.subf %149, %152 : vector<128x128xf32>
    %154 = math.exp %153 : vector<128x128xf32>
    %cst_47 = arith.constant dense<0.000000e+00> : vector<128xf32>
    %155 = vector.multi_reduction <add>, %154, %cst_47 [1] : vector<128x128xf32> to vector<128xf32>
    %156 = vector.shape_cast %155 : vector<128xf32> to vector<128x1xf32>
    %157 = tpu.reciprocal %156 {approx = true} : vector<128x1xf32> -> vector<128x1xf32>
    %158 = vector.broadcast %157 : vector<128x1xf32> to vector<128x128xf32>
    %159 = arith.mulf %154, %158 : vector<128x128xf32>
    %cst_48 = arith.constant dense<0.000000e+00> : vector<128x128xf32>
    %160 = tpu.matmul %141, %142, %cst_48 {dimension_numbers = #tpu.dot_dimension_numbers<[1], [1], [0], [0], [0, 0, 1, 0], [], []>} : vector<128x32xbf16>, vector<128x32xbf16>, vector<128x128xf32> -> vector<128x128xf32>
    %cst_49 = arith.constant dense<0xFF800000> : vector<128xf32>
    %161 = vector.multi_reduction <maximumf>, %160, %cst_49 [1] : vector<128x128xf32> to vector<128xf32>
    %162 = vector.shape_cast %161 : vector<128xf32> to vector<128x1xf32>
    %163 = vector.broadcast %162 : vector<128x1xf32> to vector<128x128xf32>
    %164 = arith.subf %160, %163 : vector<128x128xf32>
    %165 = math.exp %164 : vector<128x128xf32>
    %cst_50 = arith.constant dense<0.000000e+00> : vector<128xf32>
    %166 = vector.multi_reduction <add>, %165, %cst_50 [1] : vector<128x128xf32> to vector<128xf32>
    %167 = vector.shape_cast %166 : vector<128xf32> to vector<128x1xf32>
    %168 = tpu.reciprocal %167 {approx = true} : vector<128x1xf32> -> vector<128x1xf32>
    %169 = vector.broadcast %168 : vector<128x1xf32> to vector<128x128xf32>
    %170 = arith.mulf %165, %169 : vector<128x128xf32>
    %cst_51 = arith.constant dense<0.000000e+00> : vector<128x128xf32>
    %171 = tpu.matmul %146, %147, %cst_51 {dimension_numbers = #tpu.dot_dimension_numbers<[1], [1], [0], [0], [0, 0, 1, 0], [], []>} : vector<128x32xbf16>, vector<128x32xbf16>, vector<128x128xf32> -> vector<128x128xf32>
    %cst_52 = arith.constant dense<0xFF800000> : vector<128xf32>
    %172 = vector.multi_reduction <maximumf>, %171, %cst_52 [1] : vector<128x128xf32> to vector<128xf32>
    %173 = vector.shape_cast %172 : vector<128xf32> to vector<128x1xf32>
    %174 = vector.broadcast %173 : vector<128x1xf32> to vector<128x128xf32>
    %175 = arith.subf %171, %174 : vector<128x128xf32>
    %176 = math.exp %175 : vector<128x128xf32>
    %cst_53 = arith.constant dense<0.000000e+00> : vector<128xf32>
    %177 = vector.multi_reduction <add>, %176, %cst_53 [1] : vector<128x128xf32> to vector<128xf32>
    %178 = vector.shape_cast %177 : vector<128xf32> to vector<128x1xf32>
    %179 = tpu.reciprocal %178 {approx = true} : vector<128x1xf32> -> vector<128x1xf32>
    %180 = vector.broadcast %179 : vector<128x1xf32> to vector<128x128xf32>
    %181 = arith.mulf %176, %180 : vector<128x128xf32>
    %182 = arith.truncf %159 : vector<128x128xf32> to vector<128x128xbf16>
    %183 = arith.truncf %170 : vector<128x128xf32> to vector<128x128xbf16>
    %184 = arith.truncf %181 : vector<128x128xf32> to vector<128x128xbf16>
    %cst_54 = arith.constant dense<0.000000e+00> : vector<128x32xf32>
    %185 = tpu.matmul %184, %148, %cst_54 {dimension_numbers = #tpu.dot_dimension_numbers<[1], [0], [0], [1], [0, 0, 1, 1], [], []>} : vector<128x128xbf16>, vector<128x32xbf16>, vector<128x32xf32> -> vector<128x32xf32>
    %cst_55 = arith.constant dense<0.000000e+00> : vector<128x64xf32>
    %186 = tpu.matmul %182, %143, %cst_55 {dimension_numbers = #tpu.dot_dimension_numbers<[1], [0], [0], [1], [0, 0, 1, 1], [], []>} : vector<128x128xbf16>, vector<128x64xbf16>, vector<128x64xf32> -> vector<128x64xf32>
    %cst_56 = arith.constant dense<0.000000e+00> : vector<128x64xf32>
    %187 = tpu.matmul %183, %143, %cst_56 {dimension_numbers = #tpu.dot_dimension_numbers<[1], [0], [0], [1], [0, 0, 1, 1], [], []>} : vector<128x128xbf16>, vector<128x64xbf16>, vector<128x64xf32> -> vector<128x64xf32>
    %cst_57 = arith.constant dense<0.000000e+00> : vector<128xf32>
    %188 = vector.multi_reduction <add>, %159, %cst_57 [1] : vector<128x128xf32> to vector<128xf32>
    %189 = vector.shape_cast %188 : vector<128xf32> to vector<128x1xf32>
    %190 = math.rsqrt %189 : vector<128x1xf32>
    %cst_58 = arith.constant dense<0.000000e+00> : vector<128xf32>
    %191 = vector.multi_reduction <add>, %170, %cst_58 [1] : vector<128x128xf32> to vector<128xf32>
    %192 = vector.shape_cast %191 : vector<128xf32> to vector<128x1xf32>
    %193 = math.rsqrt %192 : vector<128x1xf32>
    %194 = arith.mulf %190, %193 : vector<128x1xf32>
    %195 = vector.broadcast %194 : vector<128x1xf32> to vector<128x128xf32>
    %196 = arith.mulf %159, %195 : vector<128x128xf32>
    %197 = arith.truncf %196 : vector<128x128xf32> to vector<128x128xbf16>
    %cst_59 = arith.constant dense<0.000000e+00> : vector<128x128xf32>
    %198 = tpu.matmul %197, %183, %cst_59 {dimension_numbers = #tpu.dot_dimension_numbers<[0], [0], [1], [1], [0, 1, 1, 1], [], []>} : vector<128x128xbf16>, vector<128x128xbf16>, vector<128x128xf32> -> vector<128x128xf32>
    %199 = arith.truncf %198 : vector<128x128xf32> to vector<128x128xbf16>
    %200 = arith.extf %145 : vector<128x32xbf16> to vector<128x32xf32>
    %201 = vector.broadcast %193 : vector<128x1xf32> to vector<128x32xf32>
    %202 = arith.mulf %201, %200 : vector<128x32xf32>
    %203 = arith.truncf %202 : vector<128x32xf32> to vector<128x32xbf16>
    %cst_60 = arith.constant dense<0.000000e+00> : vector<128x32xf32>
    %204 = tpu.matmul %199, %203, %cst_60 {dimension_numbers = #tpu.dot_dimension_numbers<[1], [0], [0], [1], [0, 0, 1, 1], [], []>} : vector<128x128xbf16>, vector<128x32xbf16>, vector<128x32xf32> -> vector<128x32xf32>
    %205 = vector.broadcast %190 : vector<128x1xf32> to vector<128x32xf32>
    %206 = arith.mulf %205, %204 : vector<128x32xf32>
    %207 = arith.extf %144 : vector<128x32xbf16> to vector<128x32xf32>
    %208 = vector.broadcast %190 : vector<128x1xf32> to vector<128x32xf32>
    %209 = arith.mulf %208, %207 : vector<128x32xf32>
    %210 = arith.truncf %209 : vector<128x32xf32> to vector<128x32xbf16>
    %cst_61 = arith.constant dense<0.000000e+00> : vector<128x32xf32>
    %211 = tpu.matmul %199, %210, %cst_61 {dimension_numbers = #tpu.dot_dimension_numbers<[0], [0], [1], [1], [0, 1, 1, 1], [], []>} : vector<128x128xbf16>, vector<128x32xbf16>, vector<128x32xf32> -> vector<128x32xf32>
    %212 = vector.broadcast %193 : vector<128x1xf32> to vector<128x32xf32>
    %213 = arith.mulf %212, %211 : vector<128x32xf32>
    %214 = arith.truncf %185 : vector<128x32xf32> to vector<128x32xbf16>
    %215 = arith.truncf %186 : vector<128x64xf32> to vector<128x64xbf16>
    %216 = arith.truncf %187 : vector<128x64xf32> to vector<128x64xbf16>
    %217 = arith.truncf %206 : vector<128x32xf32> to vector<128x32xbf16>
    %218 = arith.truncf %213 : vector<128x32xf32> to vector<128x32xbf16>
    %219 = tpu.concatenate %134, %135, %136, %137, %138, %214, %215, %216, %217, %218 in 1 : vector<128x32xbf16>, vector<128x64xbf16>, vector<128x64xbf16>, vector<128x32xbf16>, vector<128x32xbf16>, vector<128x32xbf16>, vector<128x64xbf16>, vector<128x64xbf16>, vector<128x32xbf16>, vector<128x32xbf16> -> vector<128x448xbf16>
    %cst_62 = arith.constant dense<0.000000e+00> : vector<128x64xf32>
    %220 = tpu.matmul %219, %58, %cst_62 {dimension_numbers = #tpu.dot_dimension_numbers<[1], [0], [0], [1], [0, 0, 1, 1], [], []>} : vector<128x448xbf16>, vector<448x64xbf16>, vector<128x64xf32> -> vector<128x64xf32>
    %c0_63 = arith.constant 0 : index
    %c0_64 = arith.constant 0 : index
    %221 = vector.load %arg10[%c0_63, %c0_64] : memref<1x64xf32, #tpu.memory_space<vmem>>, vector<1x64xf32>
    %222 = vector.broadcast %221 : vector<1x64xf32> to vector<128x64xf32>
    %223 = arith.addf %220, %222 : vector<128x64xf32>
    %224 = arith.addf %1, %223 : vector<128x64xf32>
    %c0_65 = arith.constant 0 : index
    %c0_66 = arith.constant 0 : index
    %225 = vector.load %arg11[%c0_65, %c0_66] : memref<1x64xf32, #tpu.memory_space<vmem>>, vector<1x64xf32>
    %c0_67 = arith.constant 0 : index
    %c0_68 = arith.constant 0 : index
    %226 = vector.load %arg12[%c0_67, %c0_68] : memref<1x64xf32, #tpu.memory_space<vmem>>, vector<1x64xf32>
    %cst_69 = arith.constant dense<0.000000e+00> : vector<128xf32>
    %227 = vector.multi_reduction <add>, %224, %cst_69 [1] : vector<128x64xf32> to vector<128xf32>
    %228 = vector.shape_cast %227 : vector<128xf32> to vector<128x1xf32>
    %cst_70 = arith.constant 6.400000e+01 : f32
    %229 = vector.broadcast %cst_70 : f32 to vector<128x1xf32>
    %230 = arith.divf %228, %229 : vector<128x1xf32>
    %231 = vector.broadcast %230 : vector<128x1xf32> to vector<128x64xf32>
    %232 = arith.subf %224, %231 : vector<128x64xf32>
    %233 = arith.mulf %232, %232 : vector<128x64xf32>
    %cst_71 = arith.constant dense<0.000000e+00> : vector<128xf32>
    %234 = vector.multi_reduction <add>, %233, %cst_71 [1] : vector<128x64xf32> to vector<128xf32>
    %235 = vector.shape_cast %234 : vector<128xf32> to vector<128x1xf32>
    %cst_72 = arith.constant 6.400000e+01 : f32
    %236 = vector.broadcast %cst_72 : f32 to vector<128x1xf32>
    %237 = arith.divf %235, %236 : vector<128x1xf32>
    %238 = vector.broadcast %230 : vector<128x1xf32> to vector<128x64xf32>
    %239 = arith.subf %224, %238 : vector<128x64xf32>
    %cst_73 = arith.constant 9.99999974E-6 : f32
    %240 = vector.broadcast %cst_73 : f32 to vector<128x1xf32>
    %241 = arith.addf %237, %240 : vector<128x1xf32>
    %242 = math.rsqrt %241 : vector<128x1xf32>
    %243 = vector.broadcast %242 : vector<128x1xf32> to vector<128x64xf32>
    %244 = arith.mulf %239, %243 : vector<128x64xf32>
    %245 = vector.broadcast %225 : vector<1x64xf32> to vector<128x64xf32>
    %246 = arith.mulf %244, %245 : vector<128x64xf32>
    %247 = vector.broadcast %226 : vector<1x64xf32> to vector<128x64xf32>
    %248 = arith.addf %246, %247 : vector<128x64xf32>
    %249 = arith.truncf %248 : vector<128x64xf32> to vector<128x64xbf16>
    %c0_74 = arith.constant 0 : index
    %c0_75 = arith.constant 0 : index
    %250 = vector.load %arg13[%c0_74, %c0_75] : memref<64x256xbf16, #tpu.memory_space<vmem>>, vector<64x256xbf16>
    %cst_76 = arith.constant dense<0.000000e+00> : vector<128x256xf32>
    %251 = tpu.matmul %249, %250, %cst_76 {dimension_numbers = #tpu.dot_dimension_numbers<[1], [0], [0], [1], [0, 0, 1, 1], [], []>} : vector<128x64xbf16>, vector<64x256xbf16>, vector<128x256xf32> -> vector<128x256xf32>
    %c0_77 = arith.constant 0 : index
    %c0_78 = arith.constant 0 : index
    %252 = vector.load %arg14[%c0_77, %c0_78] : memref<1x256xf32, #tpu.memory_space<vmem>>, vector<1x256xf32>
    %253 = vector.broadcast %252 : vector<1x256xf32> to vector<128x256xf32>
    %254 = arith.addf %251, %253 : vector<128x256xf32>
    %cst_79 = arith.constant 5.000000e-01 : f32
    %255 = vector.broadcast %cst_79 : f32 to vector<128x256xf32>
    %256 = arith.mulf %255, %254 : vector<128x256xf32>
    %cst_80 = arith.constant 4.471500e-02 : f32
    %257 = vector.broadcast %cst_80 : f32 to vector<128x256xf32>
    %258 = arith.mulf %257, %254 : vector<128x256xf32>
    %259 = arith.mulf %258, %254 : vector<128x256xf32>
    %260 = arith.mulf %259, %254 : vector<128x256xf32>
    %261 = arith.addf %254, %260 : vector<128x256xf32>
    %cst_81 = arith.constant 0.797884583 : f32
    %262 = vector.broadcast %cst_81 : f32 to vector<128x256xf32>
    %263 = arith.mulf %262, %261 : vector<128x256xf32>
    %264 = math.tanh %263 : vector<128x256xf32>
    %cst_82 = arith.constant 1.000000e+00 : f32
    %265 = vector.broadcast %cst_82 : f32 to vector<128x256xf32>
    %266 = arith.addf %265, %264 : vector<128x256xf32>
    %267 = arith.mulf %256, %266 : vector<128x256xf32>
    %268 = arith.truncf %267 : vector<128x256xf32> to vector<128x256xbf16>
    %c0_83 = arith.constant 0 : index
    %c0_84 = arith.constant 0 : index
    %269 = vector.load %arg15[%c0_83, %c0_84] : memref<256x64xbf16, #tpu.memory_space<vmem>>, vector<256x64xbf16>
    %cst_85 = arith.constant dense<0.000000e+00> : vector<128x64xf32>
    %270 = tpu.matmul %268, %269, %cst_85 {dimension_numbers = #tpu.dot_dimension_numbers<[1], [0], [0], [1], [0, 0, 1, 1], [], []>} : vector<128x256xbf16>, vector<256x64xbf16>, vector<128x64xf32> -> vector<128x64xf32>
    %c0_86 = arith.constant 0 : index
    %c0_87 = arith.constant 0 : index
    %271 = vector.load %arg16[%c0_86, %c0_87] : memref<1x64xf32, #tpu.memory_space<vmem>>, vector<1x64xf32>
    %272 = vector.broadcast %271 : vector<1x64xf32> to vector<128x64xf32>
    %273 = arith.addf %270, %272 : vector<128x64xf32>
    %274 = arith.addf %224, %273 : vector<128x64xf32>
    %275 = tpu.concatenate %274, %224 in 1 : vector<128x64xf32>, vector<128x64xf32> -> vector<128x128xf32>
    %c0_88 = arith.constant 0 : index
    %c0_89 = arith.constant 0 : index
    %276 = vector.load %arg17[%c0_88, %c0_89] : memref<128x128xf32, #tpu.memory_space<vmem>>, vector<128x128xf32>
    tpu.vector_store %arg17[%c0_88, %c0_89], %275 {strides = array<i32>} : memref<128x128xf32, #tpu.memory_space<vmem>>, vector<128x128xf32>,
    return
  }
  func.func @transform_0(%arg0: i32) -> (i32, i32) {
    %c0_i32 = arith.constant 0 : i32
    %c0_i32_0 = arith.constant 0 : i32
    return %arg0, %c0_i32 : i32, i32
  }
  func.func @transform_1(%arg0: i32) -> (i32, i32) {
    %c0_i32 = arith.constant 0 : i32
    %c0_i32_0 = arith.constant 0 : i32
    return %arg0, %c0_i32 : i32, i32
  }
  func.func @transform_2(%arg0: i32) -> (i32, i32) {
    %c0_i32 = arith.constant 0 : i32
    %c0_i32_0 = arith.constant 0 : i32
    %c0_i32_1 = arith.constant 0 : i32
    return %c0_i32, %c0_i32_0 : i32, i32
  }
  func.func @transform_3(%arg0: i32) -> (i32, i32) {
    %c0_i32 = arith.constant 0 : i32
    %c0_i32_0 = arith.constant 0 : i32
    %c0_i32_1 = arith.constant 0 : i32
    return %c0_i32, %c0_i32_0 : i32, i32
  }
  func.func @transform_4(%arg0: i32) -> (i32, i32) {
    %c0_i32 = arith.constant 0 : i32
    %c0_i32_0 = arith.constant 0 : i32
    %c0_i32_1 = arith.constant 0 : i32
    return %c0_i32, %c0_i32_0 : i32, i32
  }
  func.func @transform_5(%arg0: i32) -> (i32, i32) {
    %c0_i32 = arith.constant 0 : i32
    %c0_i32_0 = arith.constant 0 : i32
    %c0_i32_1 = arith.constant 0 : i32
    return %c0_i32, %c0_i32_0 : i32, i32
  }
  func.func @transform_6(%arg0: i32) -> (i32, i32) {
    %c0_i32 = arith.constant 0 : i32
    %c0_i32_0 = arith.constant 0 : i32
    %c0_i32_1 = arith.constant 0 : i32
    return %c0_i32, %c0_i32_0 : i32, i32
  }
  func.func @transform_7(%arg0: i32) -> (i32, i32) {
    %c0_i32 = arith.constant 0 : i32
    %c0_i32_0 = arith.constant 0 : i32
    %c0_i32_1 = arith.constant 0 : i32
    return %c0_i32, %c0_i32_0 : i32, i32
  }
  func.func @transform_8(%arg0: i32) -> (i32, i32) {
    %c0_i32 = arith.constant 0 : i32
    %c0_i32_0 = arith.constant 0 : i32
    %c0_i32_1 = arith.constant 0 : i32
    return %c0_i32, %c0_i32_0 : i32, i32
  }
  func.func @transform_9(%arg0: i32) -> (i32, i32) {
    %c0_i32 = arith.constant 0 : i32
    %c0_i32_0 = arith.constant 0 : i32
    %c0_i32_1 = arith.constant 0 : i32
    return %c0_i32, %c0_i32_0 : i32, i32
  }
  func.func @transform_10(%arg0: i32) -> (i32, i32) {
    %c0_i32 = arith.constant 0 : i32
    %c0_i32_0 = arith.constant 0 : i32
    %c0_i32_1 = arith.constant 0 : i32
    return %c0_i32, %c0_i32_0 : i32, i32
  }
  func.func @transform_11(%arg0: i32) -> (i32, i32) {
    %c0_i32 = arith.constant 0 : i32
    %c0_i32_0 = arith.constant 0 : i32
    %c0_i32_1 = arith.constant 0 : i32
    return %c0_i32, %c0_i32_0 : i32, i32
  }
  func.func @transform_12(%arg0: i32) -> (i32, i32) {
    %c0_i32 = arith.constant 0 : i32
    %c0_i32_0 = arith.constant 0 : i32
    %c0_i32_1 = arith.constant 0 : i32
    return %c0_i32, %c0_i32_0 : i32, i32
  }
  func.func @transform_13(%arg0: i32) -> (i32, i32) {
    %c0_i32 = arith.constant 0 : i32
    %c0_i32_0 = arith.constant 0 : i32
    %c0_i32_1 = arith.constant 0 : i32
    return %c0_i32, %c0_i32_0 : i32, i32
  }
  func.func @transform_14(%arg0: i32) -> (i32, i32) {
    %c0_i32 = arith.constant 0 : i32
    %c0_i32_0 = arith.constant 0 : i32
    %c0_i32_1 = arith.constant 0 : i32
    return %c0_i32, %c0_i32_0 : i32, i32
  }
  func.func @transform_15(%arg0: i32) -> (i32, i32) {
    %c0_i32 = arith.constant 0 : i32
    %c0_i32_0 = arith.constant 0 : i32
    %c0_i32_1 = arith.constant 0 : i32
    return %c0_i32, %c0_i32_0 : i32, i32
  }
  func.func @transform_16(%arg0: i32) -> (i32, i32) {
    %c0_i32 = arith.constant 0 : i32
    %c0_i32_0 = arith.constant 0 : i32
    return %arg0, %c0_i32 : i32, i32
  }
}

</mosaic_0001>

<llo_original>
// kernel: tpu_custom_call.1
$region0: #{tpu_custom_call.1}
  #allocation0 [shape = 'u32[]', space=smem, size = 0x4, offset = 0x4, fixed_abs, tag = 'smem constant byte address 0x4 - core index']
  #allocation1 [shape = 'u32[144,128]{1,0:T(1,128)}', space=vmem, size = 0x12000, scoped, tag = 'internal scratch']
  %s0 = inlined_call_operand.vmem [shape: f32[256,128], index: 0, kind: input, shape index: {}]
  %s1 = inlined_call_operand.vmem [shape: f32[256,64], index: 1, kind: input, shape index: {}]
  %s2 = inlined_call_operand.vmem [shape: f32[1,128], index: 2, kind: input, shape index: {}]
  %s3 = inlined_call_operand.vmem [shape: f32[1,128], index: 3, kind: input, shape index: {}]
  %s4 = inlined_call_operand.vmem [shape: f32[1,64], index: 4, kind: input, shape index: {}]
  %s5 = inlined_call_operand.vmem [shape: f32[1,64], index: 5, kind: input, shape index: {}]
  %s6 = inlined_call_operand.vmem [shape: bf16[128,384], index: 6, kind: input, shape index: {}]
  %s7 = inlined_call_operand.vmem [shape: bf16[64,192], index: 7, kind: input, shape index: {}]
  %s8 = inlined_call_operand.vmem [shape: bf16[448,64], index: 8, kind: input, shape index: {}]
  %s9 = inlined_call_operand.vmem [shape: f32[1,64], index: 9, kind: input, shape index: {}]
  %s10 = inlined_call_operand.vmem [shape: f32[1,64], index: 10, kind: input, shape index: {}]
  %s11 = inlined_call_operand.vmem [shape: f32[1,64], index: 11, kind: input, shape index: {}]
  %s12 = inlined_call_operand.vmem [shape: bf16[64,256], index: 12, kind: input, shape index: {}]
  %s13 = inlined_call_operand.vmem [shape: f32[1,256], index: 13, kind: input, shape index: {}]
  %s14 = inlined_call_operand.vmem [shape: bf16[256,64], index: 14, kind: input, shape index: {}]
  %s15 = inlined_call_operand.vmem [shape: f32[1,64], index: 15, kind: input, shape index: {}]
  %s16 = inlined_call_operand.hbm [shape: f32[256,128], index: 16, kind: output, shape index: {}]
  %s17 = sld [smem:[#allocation0]]
  $region97: #{tpu_custom_call.1} parent=0
    _
  %s19 = ssub.s32 1, %s17
  %s20 = scalar_select 0, %s19, %s17
  $region1: #{tpu_custom_call.1} parent=0
    #allocation2 [shape = 'u8[131072]{0}', space=vmem, size = 0x20000, scoped, tag = 'output window, operand 0']
    #allocation3 [shape = 's32[2]{0}', space=sflag, size = 0x8, scoped, tag = 'scoped memory for tpu_custom_call.1']
    %21 = vsyncpa [#allocation3], 0
    %s22 = scalar_lea.sflag [#allocation3], 1
    %23 = vsyncpa %s22, 0
    loop: start=0, step=1, limit=4
    $region2: #{tpu_custom_call.1} parent=1 // loop_pre_header
      _
    $region3: #{tpu_custom_call.1} parent=1 // loop_header
      %s25 = sphi 0, %s29
      %p26 = scmp.ge.s32.totalorder %s25, 4
      %s35 = sphi 0, %s37
      %s38 = sphi 0, %s35
      %s39 = sphi 0, %s38
      %s55 = sphi 0, %s39
      %s61 = sphi 0, %s63
      %s64 = sphi 0, %s61
      %s65 = sphi 0, %s64
      %s81 = sphi 0, %s65
      %s85 = sphi 0, %s85
      %s87 = sphi 0, %s85
      %s88 = sphi 0, %s87
      %s102 = sphi 0, %s88
      %s106 = sphi 0, %s106
      %s108 = sphi 0, %s106
      %s109 = sphi 0, %s108
      %s123 = sphi 0, %s109
      %s127 = sphi 0, %s127
      %s129 = sphi 0, %s127
      %s130 = sphi 0, %s129
      %s144 = sphi 0, %s130
      %s148 = sphi 0, %s148
      %s150 = sphi 0, %s148
      %s151 = sphi 0, %s150
      %s165 = sphi 0, %s151
      %s169 = sphi 0, %s169
      %s171 = sphi 0, %s169
      %s172 = sphi 0, %s171
      %s186 = sphi 0, %s172
      %s190 = sphi 0, %s190
      %s192 = sphi 0, %s190
      %s193 = sphi 0, %s192
      %s207 = sphi 0, %s193
      %s211 = sphi 0, %s211
      %s213 = sphi 0, %s211
      %s214 = sphi 0, %s213
      %s228 = sphi 0, %s214
      %s232 = sphi 0, %s232
      %s234 = sphi 0, %s232
      %s235 = sphi 0, %s234
      %s249 = sphi 0, %s235
      %s253 = sphi 0, %s253
      %s255 = sphi 0, %s253
      %s256 = sphi 0, %s255
      %s270 = sphi 0, %s256
      %s274 = sphi 0, %s274
      %s276 = sphi 0, %s274
      %s277 = sphi 0, %s276
      %s291 = sphi 0, %s277
      %s295 = sphi 0, %s295
      %s297 = sphi 0, %s295
      %s298 = sphi 0, %s297
      %s312 = sphi 0, %s298
      %s316 = sphi 0, %s316
      %s318 = sphi 0, %s316
      %s319 = sphi 0, %s318
      %s333 = sphi 0, %s319
      %s337 = sphi 0, %s337
      %s339 = sphi 0, %s337
      %s340 = sphi 0, %s339
      %s354 = sphi 0, %s340
      %s358 = sphi 0, %s358
      %s360 = sphi 0, %s358
      %s361 = sphi 0, %s360
      %s375 = sphi 0, %s361
      %s381 = sphi 0, %s383
      %s384 = sphi 0, %s381
      %s385 = sphi 0, %s384
      %s401 = sphi 0, %s385
    $region4: #{tpu_custom_call.1} parent=1 // loop_header_branch
      %28 = sbr.rel (%p26) target = $region8
    $region5: #{tpu_custom_call.1} parent=1 // loop_body
      %s30 = ssub.s32 %s25, 1
      %s31 = ssub.s32 %s25, 2
      %s32 = sadd.s32 %s25, 1
      %s33 = ssub.s32 %s25, %s32
      %p34 = scmp.eq.s32.totalorder %s33, 0
      %s36 = sadd.s32 %s35, 1
      %s37 = scalar_select %p34, %s35, %s36
      %p40 = pneg %p34
      %p41 = scmp.eq.s32.totalorder %s25, 1
      %p42 = por %p40, %p41
      %p43 = scmp.ne.s32.totalorder %s35, %s38
      %p44 = scmp.eq.s32.totalorder %s25, 0
      %p45 = por %p43, %p44
      %p46 = scmp.ne.s32.totalorder %s35, %s38
      %p47 = scmp.eq.s32.totalorder %s30, 1
      %p48 = por %p46, %p47
      %p49 = scmp.ne.s32.totalorder %s38, %s39
      %p50 = scmp.eq.s32.totalorder %s30, 0
      %p51 = por %p49, %p50
      %p52 = scmp.ne.s32.totalorder %s38, %s39
      %p53 = scmp.eq.s32.totalorder %s31, 1
      %p54 = por %p52, %p53
      %p56 = scmp.ne.s32.totalorder %s39, %s55
      %p57 = scmp.eq.s32.totalorder %s31, 0
      %p58 = por %p56, %p57
      %s59 = ssub.s32 %s25, %s32
      %p60 = scmp.eq.s32.totalorder %s59, 0
      %s62 = sadd.s32 %s61, 1
      %s63 = scalar_select %p60, %s61, %s62
      %p66 = pneg %p60
      %p67 = scmp.eq.s32.totalorder %s25, 1
      %p68 = por %p66, %p67
      %p69 = scmp.ne.s32.totalorder %s61, %s64
      %p70 = scmp.eq.s32.totalorder %s25, 0
      %p71 = por %p69, %p70
      %p72 = scmp.ne.s32.totalorder %s61, %s64
      %p73 = scmp.eq.s32.totalorder %s30, 1
      %p74 = por %p72, %p73
      %p75 = scmp.ne.s32.totalorder %s64, %s65
      %p76 = scmp.eq.s32.totalorder %s30, 0
      %p77 = por %p75, %p76
      %p78 = scmp.ne.s32.totalorder %s64, %s65
      %p79 = scmp.eq.s32.totalorder %s31, 1
      %p80 = por %p78, %p79
      %p82 = scmp.ne.s32.totalorder %s65, %s81
      %p83 = scmp.eq.s32.totalorder %s31, 0
      %p84 = por %p82, %p83
      %s86 = sadd.s32 %s85, 1
      %p89 = scmp.eq.s32.totalorder %s25, 1
      %p90 = scmp.ne.s32.totalorder %s85, %s87
      %p91 = scmp.eq.s32.totalorder %s25, 0
      %p92 = por %p90, %p91
      %p93 = scmp.ne.s32.totalorder %s85, %s87
      %p94 = scmp.eq.s32.totalorder %s30, 1
      %p95 = por %p93, %p94
      %p96 = scmp.ne.s32.totalorder %s87, %s88
      %p97 = scmp.eq.s32.totalorder %s30, 0
      %p98 = por %p96, %p97
      %p99 = scmp.ne.s32.totalorder %s87, %s88
      %p100 = scmp.eq.s32.totalorder %s31, 1
      %p101 = por %p99, %p100
      %p103 = scmp.ne.s32.totalorder %s88, %s102
      %p104 = scmp.eq.s32.totalorder %s31, 0
      %p105 = por %p103, %p104
      %s107 = sadd.s32 %s106, 1
      %p110 = scmp.eq.s32.totalorder %s25, 1
      %p111 = scmp.ne.s32.totalorder %s106, %s108
      %p112 = scmp.eq.s32.totalorder %s25, 0
      %p113 = por %p111, %p112
      %p114 = scmp.ne.s32.totalorder %s106, %s108
      %p115 = scmp.eq.s32.totalorder %s30, 1
      %p116 = por %p114, %p115
      %p117 = scmp.ne.s32.totalorder %s108, %s109
      %p118 = scmp.eq.s32.totalorder %s30, 0
      %p119 = por %p117, %p118
      %p120 = scmp.ne.s32.totalorder %s108, %s109
      %p121 = scmp.eq.s32.totalorder %s31, 1
      %p122 = por %p120, %p121
      %p124 = scmp.ne.s32.totalorder %s109, %s123
      %p125 = scmp.eq.s32.totalorder %s31, 0
      %p126 = por %p124, %p125
      %s128 = sadd.s32 %s127, 1
      %p131 = scmp.eq.s32.totalorder %s25, 1
      %p132 = scmp.ne.s32.totalorder %s127, %s129
      %p133 = scmp.eq.s32.totalorder %s25, 0
      %p134 = por %p132, %p133
      %p135 = scmp.ne.s32.totalorder %s127, %s129
      %p136 = scmp.eq.s32.totalorder %s30, 1
      %p137 = por %p135, %p136
      %p138 = scmp.ne.s32.totalorder %s129, %s130
      %p139 = scmp.eq.s32.totalorder %s30, 0
      %p140 = por %p138, %p139
      %p141 = scmp.ne.s32.totalorder %s129, %s130
      %p142 = scmp.eq.s32.totalorder %s31, 1
      %p143 = por %p141, %p142
      %p145 = scmp.ne.s32.totalorder %s130, %s144
      %p146 = scmp.eq.s32.totalorder %s31, 0
      %p147 = por %p145, %p146
      %s149 = sadd.s32 %s148, 1
      %p152 = scmp.eq.s32.totalorder %s25, 1
      %p153 = scmp.ne.s32.totalorder %s148, %s150
      %p154 = scmp.eq.s32.totalorder %s25, 0
      %p155 = por %p153, %p154
      %p156 = scmp.ne.s32.totalorder %s148, %s150
      %p157 = scmp.eq.s32.totalorder %s30, 1
      %p158 = por %p156, %p157
      %p159 = scmp.ne.s32.totalorder %s150, %s151
      %p160 = scmp.eq.s32.totalorder %s30, 0
      %p161 = por %p159, %p160
      %p162 = scmp.ne.s32.totalorder %s150, %s151
      %p163 = scmp.eq.s32.totalorder %s31, 1
      %p164 = por %p162, %p163
      %p166 = scmp.ne.s32.totalorder %s151, %s165
      %p167 = scmp.eq.s32.totalorder %s31, 0
      %p168 = por %p166, %p167
      %s170 = sadd.s32 %s169, 1
      %p173 = scmp.eq.s32.totalorder %s25, 1
      %p174 = scmp.ne.s32.totalorder %s169, %s171
      %p175 = scmp.eq.s32.totalorder %s25, 0
      %p176 = por %p174, %p175
      %p177 = scmp.ne.s32.totalorder %s169, %s171
      %p178 = scmp.eq.s32.totalorder %s30, 1
      %p179 = por %p177, %p178
      %p180 = scmp.ne.s32.totalorder %s171, %s172
      %p181 = scmp.eq.s32.totalorder %s30, 0
      %p182 = por %p180, %p181
      %p183 = scmp.ne.s32.totalorder %s171, %s172
      %p184 = scmp.eq.s32.totalorder %s31, 1
      %p185 = por %p183, %p184
      %p187 = scmp.ne.s32.totalorder %s172, %s186
      %p188 = scmp.eq.s32.totalorder %s31, 0
      %p189 = por %p187, %p188
      %s191 = sadd.s32 %s190, 1
      %p194 = scmp.eq.s32.totalorder %s25, 1
      %p195 = scmp.ne.s32.totalorder %s190, %s192
      %p196 = scmp.eq.s32.totalorder %s25, 0
      %p197 = por %p195, %p196
      %p198 = scmp.ne.s32.totalorder %s190, %s192
      %p199 = scmp.eq.s32.totalorder %s30, 1
      %p200 = por %p198, %p199
      %p201 = scmp.ne.s32.totalorder %s192, %s193
      %p202 = scmp.eq.s32.totalorder %s30, 0
      %p203 = por %p201, %p202
      %p204 = scmp.ne.s32.totalorder %s192, %s193
      %p205 = scmp.eq.s32.totalorder %s31, 1
      %p206 = por %p204, %p205
      %p208 = scmp.ne.s32.totalorder %s193, %s207
      %p209 = scmp.eq.s32.totalorder %s31, 0
      %p210 = por %p208, %p209
      %s212 = sadd.s32 %s211, 1
      %p215 = scmp.eq.s32.totalorder %s25, 1
      %p216 = scmp.ne.s32.totalorder %s211, %s213
      %p217 = scmp.eq.s32.totalorder %s25, 0
      %p218 = por %p216, %p217
      %p219 = scmp.ne.s32.totalorder %s211, %s213
      %p220 = scmp.eq.s32.totalorder %s30, 1
      %p221 = por %p219, %p220
      %p222 = scmp.ne.s32.totalorder %s213, %s214
      %p223 = scmp.eq.s32.totalorder %s30, 0
      %p224 = por %p222, %p223
      %p225 = scmp.ne.s32.totalorder %s213, %s214
      %p226 = scmp.eq.s32.totalorder %s31, 1
      %p227 = por %p225, %p226
      %p229 = scmp.ne.s32.totalorder %s214, %s228
      %p230 = scmp.eq.s32.totalorder %s31, 0
      %p231 = por %p229, %p230
      %s233 = sadd.s32 %s232, 1
      %p236 = scmp.eq.s32.totalorder %s25, 1
      %p237 = scmp.ne.s32.totalorder %s232, %s234
      %p238 = scmp.eq.s32.totalorder %s25, 0
      %p239 = por %p237, %p238
      %p240 = scmp.ne.s32.totalorder %s232, %s234
      %p241 = scmp.eq.s32.totalorder %s30, 1
      %p242 = por %p240, %p241
      %p243 = scmp.ne.s32.totalorder %s234, %s235
      %p244 = scmp.eq.s32.totalorder %s30, 0
      %p245 = por %p243, %p244
      %p246 = scmp.ne.s32.totalorder %s234, %s235
      %p247 = scmp.eq.s32.totalorder %s31, 1
      %p248 = por %p246, %p247
      %p250 = scmp.ne.s32.totalorder %s235, %s249
      %p251 = scmp.eq.s32.totalorder %s31, 0
      %p252 = por %p250, %p251
      %s254 = sadd.s32 %s253, 1
      %p257 = scmp.eq.s32.totalorder %s25, 1
      %p258 = scmp.ne.s32.totalorder %s253, %s255
      %p259 = scmp.eq.s32.totalorder %s25, 0
      %p260 = por %p258, %p259
      %p261 = scmp.ne.s32.totalorder %s253, %s255
      %p262 = scmp.eq.s32.totalorder %s30, 1
      %p263 = por %p261, %p262
      %p264 = scmp.ne.s32.totalorder %s255, %s256
      %p265 = scmp.eq.s32.totalorder %s30, 0
      %p266 = por %p264, %p265
      %p267 = scmp.ne.s32.totalorder %s255, %s256
      %p268 = scmp.eq.s32.totalorder %s31, 1
      %p269 = por %p267, %p268
      %p271 = scmp.ne.s32.totalorder %s256, %s270
      %p272 = scmp.eq.s32.totalorder %s31, 0
      %p273 = por %p271, %p272
      %s275 = sadd.s32 %s274, 1
      %p278 = scmp.eq.s32.totalorder %s25, 1
      %p279 = scmp.ne.s32.totalorder %s274, %s276
      %p280 = scmp.eq.s32.totalorder %s25, 0
      %p281 = por %p279, %p280
      %p282 = scmp.ne.s32.totalorder %s274, %s276
      %p283 = scmp.eq.s32.totalorder %s30, 1
      %p284 = por %p282, %p283
      %p285 = scmp.ne.s32.totalorder %s276, %s277
      %p286 = scmp.eq.s32.totalorder %s30, 0
      %p287 = por %p285, %p286
      %p288 = scmp.ne.s32.totalorder %s276, %s277
      %p289 = scmp.eq.s32.totalorder %s31, 1
      %p290 = por %p288, %p289
      %p292 = scmp.ne.s32.totalorder %s277, %s291
      %p293 = scmp.eq.s32.totalorder %s31, 0
      %p294 = por %p292, %p293
      %s296 = sadd.s32 %s295, 1
      %p299 = scmp.eq.s32.totalorder %s25, 1
      %p300 = scmp.ne.s32.totalorder %s295, %s297
      %p301 = scmp.eq.s32.totalorder %s25, 0
      %p302 = por %p300, %p301
      %p303 = scmp.ne.s32.totalorder %s295, %s297
      %p304 = scmp.eq.s32.totalorder %s30, 1
      %p305 = por %p303, %p304
      %p306 = scmp.ne.s32.totalorder %s297, %s298
      %p307 = scmp.eq.s32.totalorder %s30, 0
      %p308 = por %p306, %p307
      %p309 = scmp.ne.s32.totalorder %s297, %s298
      %p310 = scmp.eq.s32.totalorder %s31, 1
      %p311 = por %p309, %p310
      %p313 = scmp.ne.s32.totalorder %s298, %s312
      %p314 = scmp.eq.s32.totalorder %s31, 0
      %p315 = por %p313, %p314
      %s317 = sadd.s32 %s316, 1
      %p320 = scmp.eq.s32.totalorder %s25, 1
      %p321 = scmp.ne.s32.totalorder %s316, %s318
      %p322 = scmp.eq.s32.totalorder %s25, 0
      %p323 = por %p321, %p322
      %p324 = scmp.ne.s32.totalorder %s316, %s318
      %p325 = scmp.eq.s32.totalorder %s30, 1
      %p326 = por %p324, %p325
      %p327 = scmp.ne.s32.totalorder %s318, %s319
      %p328 = scmp.eq.s32.totalorder %s30, 0
      %p329 = por %p327, %p328
      %p330 = scmp.ne.s32.totalorder %s318, %s319
      %p331 = scmp.eq.s32.totalorder %s31, 1
      %p332 = por %p330, %p331
      %p334 = scmp.ne.s32.totalorder %s319, %s333
      %p335 = scmp.eq.s32.totalorder %s31, 0
      %p336 = por %p334, %p335
      %s338 = sadd.s32 %s337, 1
      %p341 = scmp.eq.s32.totalorder %s25, 1
      %p342 = scmp.ne.s32.totalorder %s337, %s339
      %p343 = scmp.eq.s32.totalorder %s25, 0
      %p344 = por %p342, %p343
      %p345 = scmp.ne.s32.totalorder %s337, %s339
      %p346 = scmp.eq.s32.totalorder %s30, 1
      %p347 = por %p345, %p346
      %p348 = scmp.ne.s32.totalorder %s339, %s340
      %p349 = scmp.eq.s32.totalorder %s30, 0
      %p350 = por %p348, %p349
      %p351 = scmp.ne.s32.totalorder %s339, %s340
      %p352 = scmp.eq.s32.totalorder %s31, 1
      %p353 = por %p351, %p352
      %p355 = scmp.ne.s32.totalorder %s340, %s354
      %p356 = scmp.eq.s32.totalorder %s31, 0
      %p357 = por %p355, %p356
      %s359 = sadd.s32 %s358, 1
      %p362 = scmp.eq.s32.totalorder %s25, 1
      %p363 = scmp.ne.s32.totalorder %s358, %s360
      %p364 = scmp.eq.s32.totalorder %s25, 0
      %p365 = por %p363, %p364
      %p366 = scmp.ne.s32.totalorder %s358, %s360
      %p367 = scmp.eq.s32.totalorder %s30, 1
      %p368 = por %p366, %p367
      %p369 = scmp.ne.s32.totalorder %s360, %s361
      %p370 = scmp.eq.s32.totalorder %s30, 0
      %p371 = por %p369, %p370
      %p372 = scmp.ne.s32.totalorder %s360, %s361
      %p373 = scmp.eq.s32.totalorder %s31, 1
      %p374 = por %p372, %p373
      %p376 = scmp.ne.s32.totalorder %s361, %s375
      %p377 = scmp.eq.s32.totalorder %s31, 0
      %p378 = por %p376, %p377
      %s379 = ssub.s32 %s25, %s32
      %p380 = scmp.eq.s32.totalorder %s379, 0
      %s382 = sadd.s32 %s381, 1
      %s383 = scalar_select %p380, %s381, %s382
      %p386 = pneg %p380
      %p387 = scmp.eq.s32.totalorder %s25, 1
      %p388 = por %p386, %p387
      %p389 = scmp.ne.s32.totalorder %s381, %s384
      %p390 = scmp.eq.s32.totalorder %s25, 0
      %p391 = por %p389, %p390
      %p392 = scmp.ne.s32.totalorder %s381, %s384
      %p393 = scmp.eq.s32.totalorder %s30, 1
      %p394 = por %p392, %p393
      %p395 = scmp.ne.s32.totalorder %s384, %s385
      %p396 = scmp.eq.s32.totalorder %s30, 0
      %p397 = por %p395, %p396
      %p398 = scmp.ne.s32.totalorder %s384, %s385
      %p399 = scmp.eq.s32.totalorder %s31, 1
      %p400 = por %p398, %p399
      %p402 = scmp.ne.s32.totalorder %s385, %s401
      %p403 = scmp.eq.s32.totalorder %s31, 0
      %p404 = por %p402, %p403
      %p405 = scmp.le.s32.totalorder 1, %s25
      %p406 = scmp.lt.s32.totalorder %s25, 3
      %p407 = pnand %p405, %p406
      %p408 = pneg %p407
      // Predicated region
      $region9: #{tpu_custom_call.1} parent=5 // pred_check
        _
      $region10: #{tpu_custom_call.1} parent=5 // pred_check_branch
        %410 = sbr.rel (%p407) target = $region12
      $region11: #{tpu_custom_call.1} parent=5 // pred_region
        %s411 = ssub.s32 %s25, 1
        // Predicated region
        $region13: #{tpu_custom_call.1} parent=11 // pred_check
          %p412 = pneg %p98
        $region14: #{tpu_custom_call.1} parent=11 // pred_check_branch
          %414 = sbr.rel (%p412) target = $region16
        $region15: #{tpu_custom_call.1} parent=11 // pred_region
          _
        $region16: #{tpu_custom_call.1} parent=11 // pred_fallthru
          _
        // Predicated region
        $region17: #{tpu_custom_call.1} parent=11 // pred_check
          %p415 = pneg %p119
        $region18: #{tpu_custom_call.1} parent=11 // pred_check_branch
          %417 = sbr.rel (%p415) target = $region20
        $region19: #{tpu_custom_call.1} parent=11 // pred_region
          _
        $region20: #{tpu_custom_call.1} parent=11 // pred_fallthru
          _
        // Predicated region
        $region21: #{tpu_custom_call.1} parent=11 // pred_check
          %p418 = pneg %p140
        $region22: #{tpu_custom_call.1} parent=11 // pred_check_branch
          %420 = sbr.rel (%p418) target = $region24
        $region23: #{tpu_custom_call.1} parent=11 // pred_region
          _
        $region24: #{tpu_custom_call.1} parent=11 // pred_fallthru
          _
        // Predicated region
        $region25: #{tpu_custom_call.1} parent=11 // pred_check
          %p421 = pneg %p161
        $region26: #{tpu_custom_call.1} parent=11 // pred_check_branch
          %423 = sbr.rel (%p421) target = $region28
        $region27: #{tpu_custom_call.1} parent=11 // pred_region
          _
        $region28: #{tpu_custom_call.1} parent=11 // pred_fallthru
          _
        // Predicated region
        $region29: #{tpu_custom_call.1} parent=11 // pred_check
          %p424 = pneg %p182
        $region30: #{tpu_custom_call.1} parent=11 // pred_check_branch
          %426 = sbr.rel (%p424) target = $region32
        $region31: #{tpu_custom_call.1} parent=11 // pred_region
          _
        $region32: #{tpu_custom_call.1} parent=11 // pred_fallthru
          _
        // Predicated region
        $region33: #{tpu_custom_call.1} parent=11 // pred_check
          %p427 = pneg %p203
        $region34: #{tpu_custom_call.1} parent=11 // pred_check_branch
          %429 = sbr.rel (%p427) target = $region36
        $region35: #{tpu_custom_call.1} parent=11 // pred_region
          _
        $region36: #{tpu_custom_call.1} parent=11 // pred_fallthru
          _
        // Predicated region
        $region37: #{tpu_custom_call.1} parent=11 // pred_check
          %p430 = pneg %p224
        $region38: #{tpu_custom_call.1} parent=11 // pred_check_branch
          %432 = sbr.rel (%p430) target = $region40
        $region39: #{tpu_custom_call.1} parent=11 // pred_region
          _
        $region40: #{tpu_custom_call.1} parent=11 // pred_fallthru
          _
        // Predicated region
        $region41: #{tpu_custom_call.1} parent=11 // pred_check
          %p433 = pneg %p245
        $region42: #{tpu_custom_call.1} parent=11 // pred_check_branch
          %435 = sbr.rel (%p433) target = $region44
        $region43: #{tpu_custom_call.1} parent=11 // pred_region
          _
        $region44: #{tpu_custom_call.1} parent=11 // pred_fallthru
          _
        // Predicated region
        $region45: #{tpu_custom_call.1} parent=11 // pred_check
          %p436 = pneg %p266
        $region46: #{tpu_custom_call.1} parent=11 // pred_check_branch
          %438 = sbr.rel (%p436) target = $region48
        $region47: #{tpu_custom_call.1} parent=11 // pred_region
          _
        $region48: #{tpu_custom_call.1} parent=11 // pred_fallthru
          _
        // Predicated region
        $region49: #{tpu_custom_call.1} parent=11 // pred_check
          %p439 = pneg %p287
        $region50: #{tpu_custom_call.1} parent=11 // pred_check_branch
          %441 = sbr.rel (%p439) target = $region52
        $region51: #{tpu_custom_call.1} parent=11 // pred_region
          _
        $region52: #{tpu_custom_call.1} parent=11 // pred_fallthru
          _
        // Predicated region
        $region53: #{tpu_custom_call.1} parent=11 // pred_check
          %p442 = pneg %p308
        $region54: #{tpu_custom_call.1} parent=11 // pred_check_branch
          %444 = sbr.rel (%p442) target = $region56
        $region55: #{tpu_custom_call.1} parent=11 // pred_region
          _
        $region56: #{tpu_custom_call.1} parent=11 // pred_fallthru
          _
        // Predicated region
        $region57: #{tpu_custom_call.1} parent=11 // pred_check
          %p445 = pneg %p329
        $region58: #{tpu_custom_call.1} parent=11 // pred_check_branch
          %447 = sbr.rel (%p445) target = $region60
        $region59: #{tpu_custom_call.1} parent=11 // pred_region
          _
        $region60: #{tpu_custom_call.1} parent=11 // pred_fallthru
          _
        // Predicated region
        $region61: #{tpu_custom_call.1} parent=11 // pred_check
          %p448 = pneg %p350
        $region62: #{tpu_custom_call.1} parent=11 // pred_check_branch
          %450 = sbr.rel (%p448) target = $region64
        $region63: #{tpu_custom_call.1} parent=11 // pred_region
          _
        $region64: #{tpu_custom_call.1} parent=11 // pred_fallthru
          _
        // Predicated region
        $region65: #{tpu_custom_call.1} parent=11 // pred_check
          %p451 = pneg %p371
        $region66: #{tpu_custom_call.1} parent=11 // pred_check_branch
          %453 = sbr.rel (%p451) target = $region68
        $region67: #{tpu_custom_call.1} parent=11 // pred_region
          _
        $region68: #{tpu_custom_call.1} parent=11 // pred_fallthru
          _
      $region12: #{tpu_custom_call.1} parent=5 // pred_fallthru
        _
      %p454 = scmp.lt.s32.totalorder %s25, 2
      // Predicated region
      $region69: #{tpu_custom_call.1} parent=5 // pred_check
        %p455 = pneg %p454
      $region70: #{tpu_custom_call.1} parent=5 // pred_check_branch
        %457 = sbr.rel (%p455) target = $region72
      $region71: #{tpu_custom_call.1} parent=5 // pred_region
        // Predicated region
        $region73: #{tpu_custom_call.1} parent=71 // pred_check
          %p458 = pneg %p45
        $region74: #{tpu_custom_call.1} parent=71 // pred_check_branch
          %460 = sbr.rel (%p458) target = $region76
        $region75: #{tpu_custom_call.1} parent=71 // pred_region
          %s461 = smul.u32 16, %s25
          %p462 = scmp.lt.s32.totalorder %s461, 31
          %s463 = scalar_select %p462, %s461, 31
          %s464 = smul.addr %s463, 8
          %s465 = scalar_lea.vmem %s0, %s464
          %s466 = smul.u32 16, %s25
        $region76: #{tpu_custom_call.1} parent=71 // pred_fallthru
          _
        // Predicated region
        $region77: #{tpu_custom_call.1} parent=71 // pred_check
          %p467 = pneg %p71
        $region78: #{tpu_custom_call.1} parent=71 // pred_check_branch
          %469 = sbr.rel (%p467) target = $region80
        $region79: #{tpu_custom_call.1} parent=71 // pred_region
          %s470 = smul.u32 16, %s25
          %p471 = scmp.lt.s32.totalorder %s470, 31
          %s472 = scalar_select %p471, %s470, 31
          %s473 = smul.addr %s472, 8
          %s474 = scalar_lea.vmem %s1, %s473
          %s475 = smul.u32 16, %s25
        $region80: #{tpu_custom_call.1} parent=71 // pred_fallthru
          _
      $region72: #{tpu_custom_call.1} parent=5 // pred_fallthru
        _
      %p476 = scmp.le.s32.totalorder 1, %s25
      %p477 = scmp.lt.s32.totalorder %s25, 3
      %p478 = pnand %p476, %p477
      %p479 = pneg %p478
      // Predicated region
      $region81: #{tpu_custom_call.1} parent=5 // pred_check
        _
      $region82: #{tpu_custom_call.1} parent=5 // pred_check_branch
        %481 = sbr.rel (%p478) target = $region84
      $region83: #{tpu_custom_call.1} parent=5 // pred_region
        %s482 = ssub.s32 %s25, 1
        %s483 = smul.u32 16, %s30
        %p484 = scmp.lt.s32.totalorder %s483, 31
        %s485 = scalar_select %p484, %s483, 31
        %s486 = smul.addr %s485, 8
        %s487 = scalar_lea.vmem %s0, %s486
        %p488 = pneg %p51
        %p489 = pneg %p48
        %s490 = smul.u32 16, %s30
        %p491 = scmp.lt.s32.totalorder %s490, 31
        %s492 = scalar_select %p491, %s490, 31
        %s493 = smul.addr %s492, 8
        %s494 = scalar_lea.vmem %s1, %s493
        %p495 = pneg %p77
        %p496 = pneg %p74
        %p497 = pneg %p98
        %p498 = pneg %p95
        %p499 = pneg %p119
        %p500 = pneg %p116
        %p501 = pneg %p140
        %p502 = pneg %p137
        %p503 = pneg %p161
        %p504 = pneg %p158
        %p505 = pneg %p182
        %p506 = pneg %p179
        %p507 = pneg %p203
        %p508 = pneg %p200
        %p509 = pneg %p224
        %p510 = pneg %p221
        %p511 = pneg %p245
        %p512 = pneg %p242
        %p513 = pneg %p266
        %p514 = pneg %p263
        %p515 = pneg %p287
        %p516 = pneg %p284
        %p517 = pneg %p308
        %p518 = pneg %p305
        %p519 = pneg %p329
        %p520 = pneg %p326
        %p521 = pneg %p350
        %p522 = pneg %p347
        %p523 = pneg %p371
        %p524 = pneg %p368
        %p525 = pneg %p397
        %p526 = pneg %p394
        %s527 = sand.u32 %s384, 1
        %s528 = scalar_lea.sflag [#allocation3], %s527
        %s529 = sand.u32 %s384, 1
        %s530 = smul.addr %s529, 128
        %s531 = scalar_lea.vmem [#allocation2], %s530
        %s532 = smul.u32 16, %s30
        %p533 = scmp.lt.s32.totalorder %s532, 31
        %s534 = scalar_select %p533, %s532, 31
        %s535 = smul.addr %s534, 8
        %s536 = scalar_lea.vmem %s0, %s535
        %s537 = smul.u32 16, %s30
        %s538 = smul.u32 16, %s30
        %p539 = scmp.lt.s32.totalorder %s538, 31
        %s540 = scalar_select %p539, %s538, 31
        %s541 = smul.addr %s540, 8
        %s542 = scalar_lea.vmem %s1, %s541
        %s543 = smul.u32 16, %s30
        %s544 = smul.u32 16, %s30
        %v546 = vld [vmem:[%s536] sm:$0xff]
        %v547 = vld [vmem:[%s536 + $0x8] sm:$0xff]
        %v548 = vld [vmem:[%s536 + $0x10] sm:$0xff]
        %v549 = vld [vmem:[%s536 + $0x18] sm:$0xff]
        %v550 = vld [vmem:[%s536 + $0x20] sm:$0xff]
        %v551 = vld [vmem:[%s536 + $0x28] sm:$0xff]
        %v552 = vld [vmem:[%s536 + $0x30] sm:$0xff]
        %v553 = vld [vmem:[%s536 + $0x38] sm:$0xff]
        %v554 = vld [vmem:[%s536 + $0x40] sm:$0xff]
        %v555 = vld [vmem:[%s536 + $0x48] sm:$0xff]
        %v556 = vld [vmem:[%s536 + $0x50] sm:$0xff]
        %v557 = vld [vmem:[%s536 + $0x58] sm:$0xff]
        %v558 = vld [vmem:[%s536 + $0x60] sm:$0xff]
        %v559 = vld [vmem:[%s536 + $0x68] sm:$0xff]
        %v560 = vld [vmem:[%s536 + $0x70] sm:$0xff]
        %v561 = vld [vmem:[%s536 + $0x78] sm:$0xff]
        %v562 = vld [vmem:[%s542] sm:$0xff]
        %v563 = vld [vmem:[%s542 + $0x8] sm:$0xff]
        %v564 = vld [vmem:[%s542 + $0x10] sm:$0xff]
        %v565 = vld [vmem:[%s542 + $0x18] sm:$0xff]
        %v566 = vld [vmem:[%s542 + $0x20] sm:$0xff]
        %v567 = vld [vmem:[%s542 + $0x28] sm:$0xff]
        %v568 = vld [vmem:[%s542 + $0x30] sm:$0xff]
        %v569 = vld [vmem:[%s542 + $0x38] sm:$0xff]
        %v570 = vld [vmem:[%s542 + $0x40] sm:$0xff]
        %v571 = vld [vmem:[%s542 + $0x48] sm:$0xff]
        %v572 = vld [vmem:[%s542 + $0x50] sm:$0xff]
        %v573 = vld [vmem:[%s542 + $0x58] sm:$0xff]
        %v574 = vld [vmem:[%s542 + $0x60] sm:$0xff]
        %v575 = vld [vmem:[%s542 + $0x68] sm:$0xff]
        %v576 = vld [vmem:[%s542 + $0x70] sm:$0xff]
        %v577 = vld [vmem:[%s542 + $0x78] sm:$0xff]
        %v578 = vld [vmem:[%s2] sm:$0x1]
        %v579 = vld [vmem:[%s3] sm:$0x1]
        %580 = vadd.xlane.f32.xlu0 %v546
        %v581 = vpop.xlane.xlu0 %580
        %582 = vadd.xlane.f32.xlu0 %v547
        %v583 = vpop.xlane.xlu0 %582
        %584 = vadd.xlane.f32.xlu0 %v548
        %v585 = vpop.xlane.xlu0 %584
        %586 = vadd.xlane.f32.xlu0 %v549
        %v587 = vpop.xlane.xlu0 %586
        %588 = vadd.xlane.f32.xlu0 %v550
        %v589 = vpop.xlane.xlu0 %588
        %590 = vadd.xlane.f32.xlu0 %v551
        %v591 = vpop.xlane.xlu0 %590
        %592 = vadd.xlane.f32.xlu0 %v552
        %v593 = vpop.xlane.xlu0 %592
        %594 = vadd.xlane.f32.xlu0 %v553
        %v595 = vpop.xlane.xlu0 %594
        %596 = vadd.xlane.f32.xlu0 %v554
        %v597 = vpop.xlane.xlu0 %596
        %598 = vadd.xlane.f32.xlu0 %v555
        %v599 = vpop.xlane.xlu0 %598
        %600 = vadd.xlane.f32.xlu0 %v556
        %v601 = vpop.xlane.xlu0 %600
        %602 = vadd.xlane.f32.xlu0 %v557
        %v603 = vpop.xlane.xlu0 %602
        %604 = vadd.xlane.f32.xlu0 %v558
        %v605 = vpop.xlane.xlu0 %604
        %606 = vadd.xlane.f32.xlu0 %v559
        %v607 = vpop.xlane.xlu0 %606
        %608 = vadd.xlane.f32.xlu0 %v560
        %v609 = vpop.xlane.xlu0 %608
        %610 = vadd.xlane.f32.xlu0 %v561
        %v611 = vpop.xlane.xlu0 %610
        %v612 = vrcp.pop 128.0
        %v613 = vmul.f32 %v581, %v612
        %v614 = vmul.f32 %v583, %v612
        %v615 = vmul.f32 %v585, %v612
        %v616 = vmul.f32 %v587, %v612
        %v617 = vmul.f32 %v589, %v612
        %v618 = vmul.f32 %v591, %v612
        %v619 = vmul.f32 %v593, %v612
        %v620 = vmul.f32 %v595, %v612
        %v621 = vmul.f32 %v597, %v612
        %v622 = vmul.f32 %v599, %v612
        %v623 = vmul.f32 %v601, %v612
        %v624 = vmul.f32 %v603, %v612
        %v625 = vmul.f32 %v605, %v612
        %v626 = vmul.f32 %v607, %v612
        %v627 = vmul.f32 %v609, %v612
        %v628 = vmul.f32 %v611, %v612
        %v629 = vsub.f32 %v546, %v613
        %v630 = vsub.f32 %v547, %v614
        %v631 = vsub.f32 %v548, %v615
        %v632 = vsub.f32 %v549, %v616
        %v633 = vsub.f32 %v550, %v617
        %v634 = vsub.f32 %v551, %v618
        %v635 = vsub.f32 %v552, %v619
        %v636 = vsub.f32 %v553, %v620
        %v637 = vsub.f32 %v554, %v621
        %v638 = vsub.f32 %v555, %v622
        %v639 = vsub.f32 %v556, %v623
        %v640 = vsub.f32 %v557, %v624
        %v641 = vsub.f32 %v558, %v625
        %v642 = vsub.f32 %v559, %v626
        %v643 = vsub.f32 %v560, %v627
        %v644 = vsub.f32 %v561, %v628
        %v645 = vmul.f32 %v629, %v629
        %v646 = vmul.f32 %v630, %v630
        %v647 = vmul.f32 %v631, %v631
        %v648 = vmul.f32 %v632, %v632
        %v649 = vmul.f32 %v633, %v633
        %v650 = vmul.f32 %v634, %v634
        %v651 = vmul.f32 %v635, %v635
        %v652 = vmul.f32 %v636, %v636
        %v653 = vmul.f32 %v637, %v637
        %v654 = vmul.f32 %v638, %v638
        %v655 = vmul.f32 %v639, %v639
        %v656 = vmul.f32 %v640, %v640
        %v657 = vmul.f32 %v641, %v641
        %v658 = vmul.f32 %v642, %v642
        %v659 = vmul.f32 %v643, %v643
        %v660 = vmul.f32 %v644, %v644
        %661 = vadd.xlane.f32.xlu0 %v645
        %v662 = vpop.xlane.xlu0 %661
        %663 = vadd.xlane.f32.xlu0 %v646
        %v664 = vpop.xlane.xlu0 %663
        %665 = vadd.xlane.f32.xlu0 %v647
        %v666 = vpop.xlane.xlu0 %665
        %667 = vadd.xlane.f32.xlu0 %v648
        %v668 = vpop.xlane.xlu0 %667
        %669 = vadd.xlane.f32.xlu0 %v649
        %v670 = vpop.xlane.xlu0 %669
        %671 = vadd.xlane.f32.xlu0 %v650
        %v672 = vpop.xlane.xlu0 %671
        %673 = vadd.xlane.f32.xlu0 %v651
        %v674 = vpop.xlane.xlu0 %673
        %675 = vadd.xlane.f32.xlu0 %v652
        %v676 = vpop.xlane.xlu0 %675
        %677 = vadd.xlane.f32.xlu0 %v653
        %v678 = vpop.xlane.xlu0 %677
        %679 = vadd.xlane.f32.xlu0 %v654
        %v680 = vpop.xlane.xlu0 %679
        %681 = vadd.xlane.f32.xlu0 %v655
        %v682 = vpop.xlane.xlu0 %681
        %683 = vadd.xlane.f32.xlu0 %v656
        %v684 = vpop.xlane.xlu0 %683
        %685 = vadd.xlane.f32.xlu0 %v657
        %v686 = vpop.xlane.xlu0 %685
        %687 = vadd.xlane.f32.xlu0 %v658
        %v688 = vpop.xlane.xlu0 %687
        %689 = vadd.xlane.f32.xlu0 %v659
        %v690 = vpop.xlane.xlu0 %689
        %691 = vadd.xlane.f32.xlu0 %v660
        %v692 = vpop.xlane.xlu0 %691
        %v693 = vmul.f32 %v662, %v612
        %v694 = vmul.f32 %v664, %v612
        %v695 = vmul.f32 %v666, %v612
        %v696 = vmul.f32 %v668, %v612
        %v697 = vmul.f32 %v670, %v612
        %v698 = vmul.f32 %v672, %v612
        %v699 = vmul.f32 %v674, %v612
        %v700 = vmul.f32 %v676, %v612
        %v701 = vmul.f32 %v678, %v612
        %v702 = vmul.f32 %v680, %v612
        %v703 = vmul.f32 %v682, %v612
        %v704 = vmul.f32 %v684, %v612
        %v705 = vmul.f32 %v686, %v612
        %v706 = vmul.f32 %v688, %v612
        %v707 = vmul.f32 %v690, %v612
        %v708 = vmul.f32 %v692, %v612
        %v709 = vadd.f32 %v693, 1e-05
        %v710 = vadd.f32 %v694, 1e-05
        %v711 = vadd.f32 %v695, 1e-05
        %v712 = vadd.f32 %v696, 1e-05
        %v713 = vadd.f32 %v697, 1e-05
        %v714 = vadd.f32 %v698, 1e-05
        %v715 = vadd.f32 %v699, 1e-05
        %v716 = vadd.f32 %v700, 1e-05
        %v717 = vadd.f32 %v701, 1e-05
        %v718 = vadd.f32 %v702, 1e-05
        %v719 = vadd.f32 %v703, 1e-05
        %v720 = vadd.f32 %v704, 1e-05
        %v721 = vadd.f32 %v705, 1e-05
        %v722 = vadd.f32 %v706, 1e-05
        %v723 = vadd.f32 %v707, 1e-05
        %v724 = vadd.f32 %v708, 1e-05
        %v725 = vrsqrt.pop %v709
        %v726 = vrsqrt.pop %v710
        %v727 = vrsqrt.pop %v711
        %v728 = vrsqrt.pop %v712
        %v729 = vrsqrt.pop %v713
        %v730 = vrsqrt.pop %v714
        %v731 = vrsqrt.pop %v715
        %v732 = vrsqrt.pop %v716
        %v733 = vrsqrt.pop %v717
        %v734 = vrsqrt.pop %v718
        %v735 = vrsqrt.pop %v719
        %v736 = vrsqrt.pop %v720
        %v737 = vrsqrt.pop %v721
        %v738 = vrsqrt.pop %v722
        %v739 = vrsqrt.pop %v723
        %v740 = vrsqrt.pop %v724
        %v741 = vmul.f32 %v629, %v725
        %v742 = vmul.f32 %v630, %v726
        %v743 = vmul.f32 %v631, %v727
        %v744 = vmul.f32 %v632, %v728
        %v745 = vmul.f32 %v633, %v729
        %v746 = vmul.f32 %v634, %v730
        %v747 = vmul.f32 %v635, %v731
        %v748 = vmul.f32 %v636, %v732
        %v749 = vmul.f32 %v637, %v733
        %v750 = vmul.f32 %v638, %v734
        %v751 = vmul.f32 %v639, %v735
        %v752 = vmul.f32 %v640, %v736
        %v753 = vmul.f32 %v641, %v737
        %v754 = vmul.f32 %v642, %v738
        %v755 = vmul.f32 %v643, %v739
        %v756 = vmul.f32 %v644, %v740
        %v758 = vlaneseq
        %v759 = vshrl.u32 %v758, 7
        %v760 = vsub.s32 0, %v759
        %v761 = vrot.slane %v578, %v760
        %v763 = vmul.f32 %v741, %v761
        %v764 = vmul.f32 %v742, %v761
        %v765 = vmul.f32 %v743, %v761
        %v766 = vmul.f32 %v744, %v761
        %v767 = vmul.f32 %v745, %v761
        %v768 = vmul.f32 %v746, %v761
        %v769 = vmul.f32 %v747, %v761
        %v770 = vmul.f32 %v748, %v761
        %v771 = vmul.f32 %v749, %v761
        %v772 = vmul.f32 %v750, %v761
        %v773 = vmul.f32 %v751, %v761
        %v774 = vmul.f32 %v752, %v761
        %v775 = vmul.f32 %v753, %v761
        %v776 = vmul.f32 %v754, %v761
        %v777 = vmul.f32 %v755, %v761
        %v778 = vmul.f32 %v756, %v761
        %v780 = vlaneseq
        %v781 = vshrl.u32 %v780, 7
        %v782 = vsub.s32 0, %v781
        %v783 = vrot.slane %v579, %v782
        %v785 = vadd.f32 %v763, %v783
        %v786 = vadd.f32 %v764, %v783
        %v787 = vadd.f32 %v765, %v783
        %v788 = vadd.f32 %v766, %v783
        %v789 = vadd.f32 %v767, %v783
        %v790 = vadd.f32 %v768, %v783
        %v791 = vadd.f32 %v769, %v783
        %v792 = vadd.f32 %v770, %v783
        %v793 = vadd.f32 %v771, %v783
        %v794 = vadd.f32 %v772, %v783
        %v795 = vadd.f32 %v773, %v783
        %v796 = vadd.f32 %v774, %v783
        %v797 = vadd.f32 %v775, %v783
        %v798 = vadd.f32 %v776, %v783
        %v799 = vadd.f32 %v777, %v783
        %v800 = vadd.f32 %v778, %v783
        %v801 = vld [vmem:[%s4] sm:$0x1]
        %v802 = vld [vmem:[%s5] sm:$0x1]
        %vm803 = vcmask 523264
        %v804 = vsel %vm803, %v562, 0.0
        %805 = vadd.xlane.f32.xlu0 %v804
        %v806 = vpop.xlane.xlu0 %805
        %v807 = vsel %vm803, %v563, 0.0
        %808 = vadd.xlane.f32.xlu0 %v807
        %v809 = vpop.xlane.xlu0 %808
        %v810 = vsel %vm803, %v564, 0.0
        %811 = vadd.xlane.f32.xlu0 %v810
        %v812 = vpop.xlane.xlu0 %811
        %v813 = vsel %vm803, %v565, 0.0
        %814 = vadd.xlane.f32.xlu0 %v813
        %v815 = vpop.xlane.xlu0 %814
        %v816 = vsel %vm803, %v566, 0.0
        %817 = vadd.xlane.f32.xlu0 %v816
        %v818 = vpop.xlane.xlu0 %817
        %v819 = vsel %vm803, %v567, 0.0
        %820 = vadd.xlane.f32.xlu0 %v819
        %v821 = vpop.xlane.xlu0 %820
        %v822 = vsel %vm803, %v568, 0.0
        %823 = vadd.xlane.f32.xlu0 %v822
        %v824 = vpop.xlane.xlu0 %823
        %v825 = vsel %vm803, %v569, 0.0
        %826 = vadd.xlane.f32.xlu0 %v825
        %v827 = vpop.xlane.xlu0 %826
        %v828 = vsel %vm803, %v570, 0.0
        %829 = vadd.xlane.f32.xlu0 %v828
        %v830 = vpop.xlane.xlu0 %829
        %v831 = vsel %vm803, %v571, 0.0
        %832 = vadd.xlane.f32.xlu0 %v831
        %v833 = vpop.xlane.xlu0 %832
        %v834 = vsel %vm803, %v572, 0.0
        %835 = vadd.xlane.f32.xlu0 %v834
        %v836 = vpop.xlane.xlu0 %835
        %v837 = vsel %vm803, %v573, 0.0
        %838 = vadd.xlane.f32.xlu0 %v837
        %v839 = vpop.xlane.xlu0 %838
        %v840 = vsel %vm803, %v574, 0.0
        %841 = vadd.xlane.f32.xlu0 %v840
        %v842 = vpop.xlane.xlu0 %841
        %v843 = vsel %vm803, %v575, 0.0
        %844 = vadd.xlane.f32.xlu0 %v843
        %v845 = vpop.xlane.xlu0 %844
        %v846 = vsel %vm803, %v576, 0.0
        %847 = vadd.xlane.f32.xlu0 %v846
        %v848 = vpop.xlane.xlu0 %847
        %v849 = vsel %vm803, %v577, 0.0
        %850 = vadd.xlane.f32.xlu0 %v849
        %v851 = vpop.xlane.xlu0 %850
        %v852 = vrcp.pop 64.0
        %v853 = vmul.f32 %v806, %v852
        %v854 = vmul.f32 %v809, %v852
        %v855 = vmul.f32 %v812, %v852
        %v856 = vmul.f32 %v815, %v852
        %v857 = vmul.f32 %v818, %v852
        %v858 = vmul.f32 %v821, %v852
        %v859 = vmul.f32 %v824, %v852
        %v860 = vmul.f32 %v827, %v852
        %v861 = vmul.f32 %v830, %v852
        %v862 = vmul.f32 %v833, %v852
        %v863 = vmul.f32 %v836, %v852
        %v864 = vmul.f32 %v839, %v852
        %v865 = vmul.f32 %v842, %v852
        %v866 = vmul.f32 %v845, %v852
        %v867 = vmul.f32 %v848, %v852
        %v868 = vmul.f32 %v851, %v852
        %v869 = vsub.f32 %v562, %v853
        %v870 = vsub.f32 %v563, %v854
        %v871 = vsub.f32 %v564, %v855
        %v872 = vsub.f32 %v565, %v856
        %v873 = vsub.f32 %v566, %v857
        %v874 = vsub.f32 %v567, %v858
        %v875 = vsub.f32 %v568, %v859
        %v876 = vsub.f32 %v569, %v860
        %v877 = vsub.f32 %v570, %v861
        %v878 = vsub.f32 %v571, %v862
        %v879 = vsub.f32 %v572, %v863
        %v880 = vsub.f32 %v573, %v864
        %v881 = vsub.f32 %v574, %v865
        %v882 = vsub.f32 %v575, %v866
        %v883 = vsub.f32 %v576, %v867
        %v884 = vsub.f32 %v577, %v868
        %v885 = vmul.f32 %v869, %v869
        %v886 = vmul.f32 %v870, %v870
        %v887 = vmul.f32 %v871, %v871
        %v888 = vmul.f32 %v872, %v872
        %v889 = vmul.f32 %v873, %v873
        %v890 = vmul.f32 %v874, %v874
        %v891 = vmul.f32 %v875, %v875
        %v892 = vmul.f32 %v876, %v876
        %v893 = vmul.f32 %v877, %v877
        %v894 = vmul.f32 %v878, %v878
        %v895 = vmul.f32 %v879, %v879
        %v896 = vmul.f32 %v880, %v880
        %v897 = vmul.f32 %v881, %v881
        %v898 = vmul.f32 %v882, %v882
        %v899 = vmul.f32 %v883, %v883
        %v900 = vmul.f32 %v884, %v884
        %v901 = vsel %vm803, %v885, 0.0
        %902 = vadd.xlane.f32.xlu0 %v901
        %v903 = vpop.xlane.xlu0 %902
        %v904 = vsel %vm803, %v886, 0.0
        %905 = vadd.xlane.f32.xlu0 %v904
        %v906 = vpop.xlane.xlu0 %905
        %v907 = vsel %vm803, %v887, 0.0
        %908 = vadd.xlane.f32.xlu0 %v907
        %v909 = vpop.xlane.xlu0 %908
        %v910 = vsel %vm803, %v888, 0.0
        %911 = vadd.xlane.f32.xlu0 %v910
        %v912 = vpop.xlane.xlu0 %911
        %v913 = vsel %vm803, %v889, 0.0
        %914 = vadd.xlane.f32.xlu0 %v913
        %v915 = vpop.xlane.xlu0 %914
        %v916 = vsel %vm803, %v890, 0.0
        %917 = vadd.xlane.f32.xlu0 %v916
        %v918 = vpop.xlane.xlu0 %917
        %v919 = vsel %vm803, %v891, 0.0
        %920 = vadd.xlane.f32.xlu0 %v919
        %v921 = vpop.xlane.xlu0 %920
        %v922 = vsel %vm803, %v892, 0.0
        %923 = vadd.xlane.f32.xlu0 %v922
        %v924 = vpop.xlane.xlu0 %923
        %v925 = vsel %vm803, %v893, 0.0
        %926 = vadd.xlane.f32.xlu0 %v925
        %v927 = vpop.xlane.xlu0 %926
        %v928 = vsel %vm803, %v894, 0.0
        %929 = vadd.xlane.f32.xlu0 %v928
        %v930 = vpop.xlane.xlu0 %929
        %v931 = vsel %vm803, %v895, 0.0
        %932 = vadd.xlane.f32.xlu0 %v931
        %v933 = vpop.xlane.xlu0 %932
        %v934 = vsel %vm803, %v896, 0.0
        %935 = vadd.xlane.f32.xlu0 %v934
        %v936 = vpop.xlane.xlu0 %935
        %v937 = vsel %vm803, %v897, 0.0
        %938 = vadd.xlane.f32.xlu0 %v937
        %v939 = vpop.xlane.xlu0 %938
        %v940 = vsel %vm803, %v898, 0.0
        %941 = vadd.xlane.f32.xlu0 %v940
        %v942 = vpop.xlane.xlu0 %941
        %v943 = vsel %vm803, %v899, 0.0
        %944 = vadd.xlane.f32.xlu0 %v943
        %v945 = vpop.xlane.xlu0 %944
        %v946 = vsel %vm803, %v900, 0.0
        %947 = vadd.xlane.f32.xlu0 %v946
        %v948 = vpop.xlane.xlu0 %947
        %v949 = vmul.f32 %v903, %v852
        %v950 = vmul.f32 %v906, %v852
        %v951 = vmul.f32 %v909, %v852
        %v952 = vmul.f32 %v912, %v852
        %v953 = vmul.f32 %v915, %v852
        %v954 = vmul.f32 %v918, %v852
        %v955 = vmul.f32 %v921, %v852
        %v956 = vmul.f32 %v924, %v852
        %v957 = vmul.f32 %v927, %v852
        %v958 = vmul.f32 %v930, %v852
        %v959 = vmul.f32 %v933, %v852
        %v960 = vmul.f32 %v936, %v852
        %v961 = vmul.f32 %v939, %v852
        %v962 = vmul.f32 %v942, %v852
        %v963 = vmul.f32 %v945, %v852
        %v964 = vmul.f32 %v948, %v852
        %v965 = vadd.f32 %v949, 1e-05
        %v966 = vadd.f32 %v950, 1e-05
        %v967 = vadd.f32 %v951, 1e-05
        %v968 = vadd.f32 %v952, 1e-05
        %v969 = vadd.f32 %v953, 1e-05
        %v970 = vadd.f32 %v954, 1e-05
        %v971 = vadd.f32 %v955, 1e-05
        %v972 = vadd.f32 %v956, 1e-05
        %v973 = vadd.f32 %v957, 1e-05
        %v974 = vadd.f32 %v958, 1e-05
        %v975 = vadd.f32 %v959, 1e-05
        %v976 = vadd.f32 %v960, 1e-05
        %v977 = vadd.f32 %v961, 1e-05
        %v978 = vadd.f32 %v962, 1e-05
        %v979 = vadd.f32 %v963, 1e-05
        %v980 = vadd.f32 %v964, 1e-05
        %v981 = vrsqrt.pop %v965
        %v982 = vrsqrt.pop %v966
        %v983 = vrsqrt.pop %v967
        %v984 = vrsqrt.pop %v968
        %v985 = vrsqrt.pop %v969
        %v986 = vrsqrt.pop %v970
        %v987 = vrsqrt.pop %v971
        %v988 = vrsqrt.pop %v972
        %v989 = vrsqrt.pop %v973
        %v990 = vrsqrt.pop %v974
        %v991 = vrsqrt.pop %v975
        %v992 = vrsqrt.pop %v976
        %v993 = vrsqrt.pop %v977
        %v994 = vrsqrt.pop %v978
        %v995 = vrsqrt.pop %v979
        %v996 = vrsqrt.pop %v980
        %v997 = vmul.f32 %v869, %v981
        %v998 = vmul.f32 %v870, %v982
        %v999 = vmul.f32 %v871, %v983
        %v1000 = vmul.f32 %v872, %v984
        %v1001 = vmul.f32 %v873, %v985
        %v1002 = vmul.f32 %v874, %v986
        %v1003 = vmul.f32 %v875, %v987
        %v1004 = vmul.f32 %v876, %v988
        %v1005 = vmul.f32 %v877, %v989
        %v1006 = vmul.f32 %v878, %v990
        %v1007 = vmul.f32 %v879, %v991
        %v1008 = vmul.f32 %v880, %v992
        %v1009 = vmul.f32 %v881, %v993
        %v1010 = vmul.f32 %v882, %v994
        %v1011 = vmul.f32 %v883, %v995
        %v1012 = vmul.f32 %v884, %v996
        %v1014 = vlaneseq
        %v1015 = vshrl.u32 %v1014, 7
        %v1016 = vsub.s32 0, %v1015
        %v1017 = vrot.slane %v801, %v1016
        %v1019 = vmul.f32 %v997, %v1017
        %v1020 = vmul.f32 %v998, %v1017
        %v1021 = vmul.f32 %v999, %v1017
        %v1022 = vmul.f32 %v1000, %v1017
        %v1023 = vmul.f32 %v1001, %v1017
        %v1024 = vmul.f32 %v1002, %v1017
        %v1025 = vmul.f32 %v1003, %v1017
        %v1026 = vmul.f32 %v1004, %v1017
        %v1027 = vmul.f32 %v1005, %v1017
        %v1028 = vmul.f32 %v1006, %v1017
        %v1029 = vmul.f32 %v1007, %v1017
        %v1030 = vmul.f32 %v1008, %v1017
        %v1031 = vmul.f32 %v1009, %v1017
        %v1032 = vmul.f32 %v1010, %v1017
        %v1033 = vmul.f32 %v1011, %v1017
        %v1034 = vmul.f32 %v1012, %v1017
        %v1036 = vlaneseq
        %v1037 = vshrl.u32 %v1036, 7
        %v1038 = vsub.s32 0, %v1037
        %v1039 = vrot.slane %v802, %v1038
        %v1041 = vadd.f32 %v1019, %v1039
        %v1042 = vadd.f32 %v1020, %v1039
        %v1043 = vadd.f32 %v1021, %v1039
        %v1044 = vadd.f32 %v1022, %v1039
        %v1045 = vadd.f32 %v1023, %v1039
        %v1046 = vadd.f32 %v1024, %v1039
        %v1047 = vadd.f32 %v1025, %v1039
        %v1048 = vadd.f32 %v1026, %v1039
        %v1049 = vadd.f32 %v1027, %v1039
        %v1050 = vadd.f32 %v1028, %v1039
        %v1051 = vadd.f32 %v1029, %v1039
        %v1052 = vadd.f32 %v1030, %v1039
        %v1053 = vadd.f32 %v1031, %v1039
        %v1054 = vadd.f32 %v1032, %v1039
        %v1055 = vadd.f32 %v1033, %v1039
        %v1056 = vadd.f32 %v1034, %v1039
        %v1057 = vpack.c.bf16 %v786, %v785
        %v1058 = vpack.c.bf16 %v788, %v787
        %v1059 = vpack.c.bf16 %v790, %v789
        %v1060 = vpack.c.bf16 %v792, %v791
        %v1061 = vpack.c.bf16 %v794, %v793
        %v1062 = vpack.c.bf16 %v796, %v795
        %v1063 = vpack.c.bf16 %v798, %v797
        %v1064 = vpack.c.bf16 %v800, %v799
        %v1065 = vld [vmem:[%s6] sm:$0xff]
        %v1066 = vld [vmem:[%s6 + $0x8] sm:$0xf]
        %v1067 = vld [vmem:[%s6 + $0xc] sm:$0xff]
        %v1068 = vld [vmem:[%s6 + $0x14] sm:$0xf]
        %v1069 = vld [vmem:[%s6 + $0x18] sm:$0xff]
        %v1070 = vld [vmem:[%s6 + $0x20] sm:$0xf]
        %v1071 = vld [vmem:[%s6 + $0x24] sm:$0xff]
        %v1072 = vld [vmem:[%s6 + $0x2c] sm:$0xf]
        %v1073 = vld [vmem:[%s6 + $0x30] sm:$0xff]
        %v1074 = vld [vmem:[%s6 + $0x38] sm:$0xf]
        %v1075 = vld [vmem:[%s6 + $0x3c] sm:$0xff]
        %v1076 = vld [vmem:[%s6 + $0x44] sm:$0xf]
        %v1077 = vld [vmem:[%s6 + $0x48] sm:$0xff]
        %v1078 = vld [vmem:[%s6 + $0x50] sm:$0xf]
        %v1079 = vld [vmem:[%s6 + $0x54] sm:$0xff]
        %v1080 = vld [vmem:[%s6 + $0x5c] sm:$0xf]
        %v1081 = vld [vmem:[%s6 + $0x60] sm:$0xff]
        %v1082 = vld [vmem:[%s6 + $0x68] sm:$0xf]
        %v1083 = vld [vmem:[%s6 + $0x6c] sm:$0xff]
        %v1084 = vld [vmem:[%s6 + $0x74] sm:$0xf]
        %v1085 = vld [vmem:[%s6 + $0x78] sm:$0xff]
        %v1086 = vld [vmem:[%s6 + $0x80] sm:$0xf]
        %v1087 = vld [vmem:[%s6 + $0x84] sm:$0xff]
        %v1088 = vld [vmem:[%s6 + $0x8c] sm:$0xf]
        %v1089 = vld [vmem:[%s6 + $0x90] sm:$0xff]
        %v1090 = vld [vmem:[%s6 + $0x98] sm:$0xf]
        %v1091 = vld [vmem:[%s6 + $0x9c] sm:$0xff]
        %v1092 = vld [vmem:[%s6 + $0xa4] sm:$0xf]
        %v1093 = vld [vmem:[%s6 + $0xa8] sm:$0xff]
        %v1094 = vld [vmem:[%s6 + $0xb0] sm:$0xf]
        %v1095 = vld [vmem:[%s6 + $0xb4] sm:$0xff]
        %v1096 = vld [vmem:[%s6 + $0xbc] sm:$0xf]
        %v1129 = vunpack.c.l.b16 %v1065
        %v1130 = vunpack.c.h.b16 %v1065
        %v1131 = vunpack.c.l.b16 %v1066
        %v1132 = vunpack.c.l.b16 %v1067
        %v1133 = vunpack.c.h.b16 %v1067
        %v1134 = vunpack.c.l.b16 %v1068
        %v1135 = vunpack.c.l.b16 %v1069
        %v1136 = vunpack.c.h.b16 %v1069
        %v1137 = vunpack.c.l.b16 %v1070
        %v1138 = vunpack.c.l.b16 %v1071
        %v1139 = vunpack.c.h.b16 %v1071
        %v1140 = vunpack.c.l.b16 %v1072
        %v1141 = vunpack.c.l.b16 %v1073
        %v1142 = vunpack.c.h.b16 %v1073
        %v1143 = vunpack.c.l.b16 %v1074
        %v1144 = vunpack.c.l.b16 %v1075
        %v1145 = vunpack.c.h.b16 %v1075
        %v1146 = vunpack.c.l.b16 %v1076
        %v1147 = vunpack.c.l.b16 %v1077
        %v1148 = vunpack.c.h.b16 %v1077
        %v1149 = vunpack.c.l.b16 %v1078
        %v1150 = vunpack.c.l.b16 %v1079
        %v1151 = vunpack.c.h.b16 %v1079
        %v1152 = vunpack.c.l.b16 %v1080
        %v1153 = vunpack.c.l.b16 %v1081
        %v1154 = vunpack.c.h.b16 %v1081
        %v1155 = vunpack.c.l.b16 %v1082
        %v1156 = vunpack.c.l.b16 %v1083
        %v1157 = vunpack.c.h.b16 %v1083
        %v1158 = vunpack.c.l.b16 %v1084
        %v1159 = vunpack.c.l.b16 %v1085
        %v1160 = vunpack.c.h.b16 %v1085
        %v1161 = vunpack.c.l.b16 %v1086
        %v1162 = vunpack.c.l.b16 %v1087
        %v1163 = vunpack.c.h.b16 %v1087
        %v1164 = vunpack.c.l.b16 %v1088
        %v1165 = vunpack.c.l.b16 %v1089
        %v1166 = vunpack.c.h.b16 %v1089
        %v1167 = vunpack.c.l.b16 %v1090
        %v1168 = vunpack.c.l.b16 %v1091
        %v1169 = vunpack.c.h.b16 %v1091
        %v1170 = vunpack.c.l.b16 %v1092
        %v1171 = vunpack.c.l.b16 %v1093
        %v1172 = vunpack.c.h.b16 %v1093
        %v1173 = vunpack.c.l.b16 %v1094
        %v1174 = vunpack.c.l.b16 %v1095
        %v1175 = vunpack.c.h.b16 %v1095
        %v1176 = vunpack.c.l.b16 %v1096
        %v1177 = vpack.c.b16 %v1132, %v1129
        %v1178 = vpack.c.b16 %v1133, %v1130
        %v1179 = vpack.c.b16 %v1134, %v1131
        %v1180 = vpack.c.b16 %v1138, %v1135
        %v1181 = vpack.c.b16 %v1139, %v1136
        %v1182 = vpack.c.b16 %v1140, %v1137
        %v1183 = vpack.c.b16 %v1144, %v1141
        %v1184 = vpack.c.b16 %v1145, %v1142
        %v1185 = vpack.c.b16 %v1146, %v1143
        %v1186 = vpack.c.b16 %v1150, %v1147
        %v1187 = vpack.c.b16 %v1151, %v1148
        %v1188 = vpack.c.b16 %v1152, %v1149
        %v1189 = vpack.c.b16 %v1156, %v1153
        %v1190 = vpack.c.b16 %v1157, %v1154
        %v1191 = vpack.c.b16 %v1158, %v1155
        %v1192 = vpack.c.b16 %v1162, %v1159
        %v1193 = vpack.c.b16 %v1163, %v1160
        %v1194 = vpack.c.b16 %v1164, %v1161
        %v1195 = vpack.c.b16 %v1168, %v1165
        %v1196 = vpack.c.b16 %v1169, %v1166
        %v1197 = vpack.c.b16 %v1170, %v1167
        %v1198 = vpack.c.b16 %v1174, %v1171
        %v1199 = vpack.c.b16 %v1175, %v1172
        %v1200 = vpack.c.b16 %v1176, %v1173
        %1225 = vmatprep.subr.bf16.mxu0 %v1199
        %1226 = vmatpush1.bf16.msra.mxu0 %v1198
        %1227 = vmatprep.subr.bf16.mxu0 %v1196
        %1228 = vmatpush1.bf16.msra.mxu0 %v1195
        %1229 = vmatprep.subr.bf16.mxu0 %v1193
        %1230 = vmatpush1.bf16.msra.mxu0 %v1192
        %1231 = vmatprep.subr.bf16.mxu0 %v1190
        %1232 = vmatpush1.bf16.msra.mxu0 %v1189
        %1233 = vmatprep.subr.bf16.mxu0 %v1187
        %1234 = vmatpush1.bf16.msra.mxu0 %v1186
        %1235 = vmatprep.subr.bf16.mxu0 %v1184
        %1236 = vmatpush1.bf16.msra.mxu0 %v1183
        %1237 = vmatprep.subr.bf16.mxu0 %v1181
        %1238 = vmatpush1.bf16.msra.mxu0 %v1180
        %1239 = vmatprep.subr.bf16.mxu0 %v1178
        %1240 = vmatpush1.bf16.msra.mxu0 %v1177
        %1241 = vmatprep.subr.bf16.mxu0 0
        %1242 = vmatpush2.bf16.msra.mxu0 0
        %1243 = vmatprep.subr.bf16.mxu0 0
        %1244 = vmatpush2.bf16.msra.mxu0 0
        %1245 = vmatprep.subr.bf16.mxu0 0
        %1246 = vmatpush2.bf16.msra.mxu0 0
        %1247 = vmatprep.subr.bf16.mxu0 0
        %1248 = vmatpush2.bf16.msra.mxu0 0
        %1249 = vmatprep.subr.bf16.mxu0 0
        %1250 = vmatpush2.bf16.msra.mxu0 0
        %1251 = vmatprep.subr.bf16.mxu0 0
        %1252 = vmatpush2.bf16.msra.mxu0 0
        %1253 = vmatprep.subr.bf16.mxu0 0
        %1254 = vmatpush2.bf16.msra.mxu0 0
        %1255 = vmatprep.subr.bf16.mxu0 0
        %1256 = vmatpush2.bf16.msra.mxu0 0
        %1257 = vmatprep.mubr.bf16.mxu0 0
        %1258 = vmatmul.mubr.bf16.gmra.mxu0 %v1057
        %v1259 = vpop.f32.mrf.mxu0
        %v1260 = vadd.f32 0.0, %v1259
        %v1261 = vpop.f32.mrf.mxu0
        %v1262 = vadd.f32 0.0, %v1261
        %v1263 = vpop.f32.mrf.mxu0
        %v1264 = vadd.f32 0.0, %v1263
        %v1265 = vpop.f32.mrf.mxu0
        %v1266 = vadd.f32 0.0, %v1265
        %1267 = vmatprep.mubr.bf16.mxu0 0
        %1268 = vmatmul.mubr.bf16.gmra.mxu0 %v1058
        %v1269 = vpop.f32.mrf.mxu0
        %v1270 = vadd.f32 0.0, %v1269
        %v1271 = vpop.f32.mrf.mxu0
        %v1272 = vadd.f32 0.0, %v1271
        %v1273 = vpop.f32.mrf.mxu0
        %v1274 = vadd.f32 0.0, %v1273
        %v1275 = vpop.f32.mrf.mxu0
        %v1276 = vadd.f32 0.0, %v1275
        %1277 = vmatprep.mubr.bf16.mxu0 0
        %1278 = vmatmul.mubr.bf16.gmra.mxu0 %v1059
        %v1279 = vpop.f32.mrf.mxu0
        %v1280 = vadd.f32 0.0, %v1279
        %v1281 = vpop.f32.mrf.mxu0
        %v1282 = vadd.f32 0.0, %v1281
        %v1283 = vpop.f32.mrf.mxu0
        %v1284 = vadd.f32 0.0, %v1283
        %v1285 = vpop.f32.mrf.mxu0
        %v1286 = vadd.f32 0.0, %v1285
        %1287 = vmatprep.mubr.bf16.mxu0 0
        %1288 = vmatmul.mubr.bf16.gmra.mxu0 %v1060
        %v1289 = vpop.f32.mrf.mxu0
        %v1290 = vadd.f32 0.0, %v1289
        %v1291 = vpop.f32.mrf.mxu0
        %v1292 = vadd.f32 0.0, %v1291
        %v1293 = vpop.f32.mrf.mxu0
        %v1294 = vadd.f32 0.0, %v1293
        %v1295 = vpop.f32.mrf.mxu0
        %v1296 = vadd.f32 0.0, %v1295
        %1297 = vmatprep.mubr.bf16.mxu0 0
        %1298 = vmatmul.mubr.bf16.gmra.mxu0 %v1061
        %v1299 = vpop.f32.mrf.mxu0
        %v1300 = vadd.f32 0.0, %v1299
        %v1301 = vpop.f32.mrf.mxu0
        %v1302 = vadd.f32 0.0, %v1301
        %v1303 = vpop.f32.mrf.mxu0
        %v1304 = vadd.f32 0.0, %v1303
        %v1305 = vpop.f32.mrf.mxu0
        %v1306 = vadd.f32 0.0, %v1305
        %1307 = vmatprep.mubr.bf16.mxu0 0
        %1308 = vmatmul.mubr.bf16.gmra.mxu0 %v1062
        %v1309 = vpop.f32.mrf.mxu0
        %v1310 = vadd.f32 0.0, %v1309
        %v1311 = vpop.f32.mrf.mxu0
        %v1312 = vadd.f32 0.0, %v1311
        %v1313 = vpop.f32.mrf.mxu0
        %v1314 = vadd.f32 0.0, %v1313
        %v1315 = vpop.f32.mrf.mxu0
        %v1316 = vadd.f32 0.0, %v1315
        %1317 = vmatprep.mubr.bf16.mxu0 0
        %1318 = vmatmul.mubr.bf16.gmra.mxu0 %v1063
        %v1319 = vpop.f32.mrf.mxu0
        %v1320 = vadd.f32 0.0, %v1319
        %v1321 = vpop.f32.mrf.mxu0
        %v1322 = vadd.f32 0.0, %v1321
        %v1323 = vpop.f32.mrf.mxu0
        %v1324 = vadd.f32 0.0, %v1323
        %v1325 = vpop.f32.mrf.mxu0
        %v1326 = vadd.f32 0.0, %v1325
        %1327 = vmatprep.mubr.bf16.mxu0 0
        %1328 = vmatmul.mubr.bf16.gmra.mxu0 %v1064
        %v1329 = vpop.f32.mrf.mxu0
        %v1330 = vadd.f32 0.0, %v1329
        %v1331 = vpop.f32.mrf.mxu0
        %v1332 = vadd.f32 0.0, %v1331
        %v1333 = vpop.f32.mrf.mxu0
        %v1334 = vadd.f32 0.0, %v1333
        %v1335 = vpop.f32.mrf.mxu0
        %v1336 = vadd.f32 0.0, %v1335
        %1337 = vdwg.mxu0
        %1338 = vmatprep.subr.bf16.mxu0 0
        %1339 = vmatpush1.bf16.msra.mxu0 %v1200
        %1340 = vmatprep.subr.bf16.mxu0 0
        %1341 = vmatpush1.bf16.msra.mxu0 %v1197
        %1342 = vmatprep.subr.bf16.mxu0 0
        %1343 = vmatpush1.bf16.msra.mxu0 %v1194
        %1344 = vmatprep.subr.bf16.mxu0 0
        %1345 = vmatpush1.bf16.msra.mxu0 %v1191
        %1346 = vmatprep.subr.bf16.mxu0 0
        %1347 = vmatpush1.bf16.msra.mxu0 %v1188
        %1348 = vmatprep.subr.bf16.mxu0 0
        %1349 = vmatpush1.bf16.msra.mxu0 %v1185
        %1350 = vmatprep.subr.bf16.mxu0 0
        %1351 = vmatpush1.bf16.msra.mxu0 %v1182
        %1352 = vmatprep.subr.bf16.mxu0 0
        %1353 = vmatpush1.bf16.msra.mxu0 %v1179
        %1354 = vmatprep.subr.bf16.mxu0 0
        %1355 = vmatpush2.bf16.msra.mxu0 0
        %1356 = vmatprep.subr.bf16.mxu0 0
        %1357 = vmatpush2.bf16.msra.mxu0 0
        %1358 = vmatprep.subr.bf16.mxu0 0
        %1359 = vmatpush2.bf16.msra.mxu0 0
        %1360 = vmatprep.subr.bf16.mxu0 0
        %1361 = vmatpush2.bf16.msra.mxu0 0
        %1362 = vmatprep.subr.bf16.mxu0 0
        %1363 = vmatpush2.bf16.msra.mxu0 0
        %1364 = vmatprep.subr.bf16.mxu0 0
        %1365 = vmatpush2.bf16.msra.mxu0 0
        %1366 = vmatprep.subr.bf16.mxu0 0
        %1367 = vmatpush2.bf16.msra.mxu0 0
        %1368 = vmatprep.subr.bf16.mxu0 0
        %1369 = vmatpush2.bf16.msra.mxu0 0
        %1370 = vmatprep.mubr.bf16.mxu0 0
        %1371 = vmatmul.mubr.bf16.gmra.mxu0 %v1057
        %v1372 = vpop.f32.mrf.mxu0
        %v1373 = vadd.f32 0.0, %v1372
        %v1374 = vpop.f32.mrf.mxu0
        %v1375 = vpop.f32.mrf.mxu0
        %v1376 = vadd.f32 0.0, %v1375
        %v1377 = vpop.f32.mrf.mxu0
        %1378 = vmatprep.mubr.bf16.mxu0 0
        %1379 = vmatmul.mubr.bf16.gmra.mxu0 %v1058
        %v1380 = vpop.f32.mrf.mxu0
        %v1381 = vadd.f32 0.0, %v1380
        %v1382 = vpop.f32.mrf.mxu0
        %v1383 = vpop.f32.mrf.mxu0
        %v1384 = vadd.f32 0.0, %v1383
        %v1385 = vpop.f32.mrf.mxu0
        %1386 = vmatprep.mubr.bf16.mxu0 0
        %1387 = vmatmul.mubr.bf16.gmra.mxu0 %v1059
        %v1388 = vpop.f32.mrf.mxu0
        %v1389 = vadd.f32 0.0, %v1388
        %v1390 = vpop.f32.mrf.mxu0
        %v1391 = vpop.f32.mrf.mxu0
        %v1392 = vadd.f32 0.0, %v1391
        %v1393 = vpop.f32.mrf.mxu0
        %1394 = vmatprep.mubr.bf16.mxu0 0
        %1395 = vmatmul.mubr.bf16.gmra.mxu0 %v1060
        %v1396 = vpop.f32.mrf.mxu0
        %v1397 = vadd.f32 0.0, %v1396
        %v1398 = vpop.f32.mrf.mxu0
        %v1399 = vpop.f32.mrf.mxu0
        %v1400 = vadd.f32 0.0, %v1399
        %v1401 = vpop.f32.mrf.mxu0
        %1402 = vmatprep.mubr.bf16.mxu0 0
        %1403 = vmatmul.mubr.bf16.gmra.mxu0 %v1061
        %v1404 = vpop.f32.mrf.mxu0
        %v1405 = vadd.f32 0.0, %v1404
        %v1406 = vpop.f32.mrf.mxu0
        %v1407 = vpop.f32.mrf.mxu0
        %v1408 = vadd.f32 0.0, %v1407
        %v1409 = vpop.f32.mrf.mxu0
        %1410 = vmatprep.mubr.bf16.mxu0 0
        %1411 = vmatmul.mubr.bf16.gmra.mxu0 %v1062
        %v1412 = vpop.f32.mrf.mxu0
        %v1413 = vadd.f32 0.0, %v1412
        %v1414 = vpop.f32.mrf.mxu0
        %v1415 = vpop.f32.mrf.mxu0
        %v1416 = vadd.f32 0.0, %v1415
        %v1417 = vpop.f32.mrf.mxu0
        %1418 = vmatprep.mubr.bf16.mxu0 0
        %1419 = vmatmul.mubr.bf16.gmra.mxu0 %v1063
        %v1420 = vpop.f32.mrf.mxu0
        %v1421 = vadd.f32 0.0, %v1420
        %v1422 = vpop.f32.mrf.mxu0
        %v1423 = vpop.f32.mrf.mxu0
        %v1424 = vadd.f32 0.0, %v1423
        %v1425 = vpop.f32.mrf.mxu0
        %1426 = vmatprep.mubr.bf16.mxu0 0
        %1427 = vmatmul.mubr.bf16.gmra.mxu0 %v1064
        %v1428 = vpop.f32.mrf.mxu0
        %v1429 = vadd.f32 0.0, %v1428
        %v1430 = vpop.f32.mrf.mxu0
        %v1431 = vpop.f32.mrf.mxu0
        %v1432 = vadd.f32 0.0, %v1431
        %v1433 = vpop.f32.mrf.mxu0
        %1434 = vdwg.mxu0
        %v1435 = vpack.c.bf16 %v1264, %v1260
        %v1436 = vpack.c.bf16 %v1266, %v1262
        %v1437 = vpack.c.bf16 %v1376, %v1373
        %v1438 = vpack.c.bf16 %v1274, %v1270
        %v1439 = vpack.c.bf16 %v1276, %v1272
        %v1440 = vpack.c.bf16 %v1384, %v1381
        %v1441 = vpack.c.bf16 %v1284, %v1280
        %v1442 = vpack.c.bf16 %v1286, %v1282
        %v1443 = vpack.c.bf16 %v1392, %v1389
        %v1444 = vpack.c.bf16 %v1294, %v1290
        %v1445 = vpack.c.bf16 %v1296, %v1292
        %v1446 = vpack.c.bf16 %v1400, %v1397
        %v1447 = vpack.c.bf16 %v1304, %v1300
        %v1448 = vpack.c.bf16 %v1306, %v1302
        %v1449 = vpack.c.bf16 %v1408, %v1405
        %v1450 = vpack.c.bf16 %v1314, %v1310
        %v1451 = vpack.c.bf16 %v1316, %v1312
        %v1452 = vpack.c.bf16 %v1416, %v1413
        %v1453 = vpack.c.bf16 %v1324, %v1320
        %v1454 = vpack.c.bf16 %v1326, %v1322
        %v1455 = vpack.c.bf16 %v1424, %v1421
        %v1456 = vpack.c.bf16 %v1334, %v1330
        %v1457 = vpack.c.bf16 %v1336, %v1332
        %v1458 = vpack.c.bf16 %v1432, %v1429
        %v1459 = vpack.c.bf16 %v1042, %v1041
        %v1460 = vpack.c.bf16 %v1044, %v1043
        %v1461 = vpack.c.bf16 %v1046, %v1045
        %v1462 = vpack.c.bf16 %v1048, %v1047
        %v1463 = vpack.c.bf16 %v1050, %v1049
        %v1464 = vpack.c.bf16 %v1052, %v1051
        %v1465 = vpack.c.bf16 %v1054, %v1053
        %v1466 = vpack.c.bf16 %v1056, %v1055
        %v1467 = vld [vmem:[%s7] sm:$0xff]
        %v1468 = vld [vmem:[%s7 + $0x8] sm:$0xff]
        %v1469 = vld [vmem:[%s7 + $0x10] sm:$0xff]
        %v1470 = vld [vmem:[%s7 + $0x18] sm:$0xff]
        %v1471 = vld [vmem:[%s7 + $0x20] sm:$0xff]
        %v1472 = vld [vmem:[%s7 + $0x28] sm:$0xff]
        %v1473 = vld [vmem:[%s7 + $0x30] sm:$0xff]
        %v1474 = vld [vmem:[%s7 + $0x38] sm:$0xff]
        %v1483 = vunpack.c.l.b16 %v1467
        %v1484 = vunpack.c.h.b16 %v1467
        %v1485 = vunpack.c.l.b16 %v1468
        %v1486 = vunpack.c.h.b16 %v1468
        %v1487 = vunpack.c.l.b16 %v1469
        %v1488 = vunpack.c.h.b16 %v1469
        %v1489 = vunpack.c.l.b16 %v1470
        %v1490 = vunpack.c.h.b16 %v1470
        %v1491 = vunpack.c.l.b16 %v1471
        %v1492 = vunpack.c.h.b16 %v1471
        %v1493 = vunpack.c.l.b16 %v1472
        %v1494 = vunpack.c.h.b16 %v1472
        %v1495 = vunpack.c.l.b16 %v1473
        %v1496 = vunpack.c.h.b16 %v1473
        %v1497 = vunpack.c.l.b16 %v1474
        %v1498 = vunpack.c.h.b16 %v1474
        %v1499 = vpack.c.b16 %v1485, %v1483
        %v1500 = vpack.c.b16 %v1486, %v1484
        %v1501 = vpack.c.b16 %v1489, %v1487
        %v1502 = vpack.c.b16 %v1490, %v1488
        %v1503 = vpack.c.b16 %v1493, %v1491
        %v1504 = vpack.c.b16 %v1494, %v1492
        %v1505 = vpack.c.b16 %v1497, %v1495
        %v1506 = vpack.c.b16 %v1498, %v1496
        %v1516 = vsel %vm803, %v1459, 0
        %v1519 = vsel %vm803, %v1460, 0
        %v1522 = vsel %vm803, %v1461, 0
        %v1525 = vsel %vm803, %v1462, 0
        %v1528 = vsel %vm803, %v1463, 0
        %v1531 = vsel %vm803, %v1464, 0
        %v1534 = vsel %vm803, %v1465, 0
        %v1537 = vsel %vm803, %v1466, 0
        %1539 = vmatprep.subr.bf16.mxu0 0
        %1540 = vmatpush1.bf16.msra.mxu0 0
        %1541 = vmatprep.subr.bf16.mxu0 0
        %1542 = vmatpush1.bf16.msra.mxu0 0
        %1543 = vmatprep.subr.bf16.mxu0 0
        %1544 = vmatpush1.bf16.msra.mxu0 0
        %1545 = vmatprep.subr.bf16.mxu0 0
        %1546 = vmatpush1.bf16.msra.mxu0 0
        %1547 = vmatprep.subr.bf16.mxu0 %v1506
        %1548 = vmatpush1.bf16.msra.mxu0 %v1505
        %1549 = vmatprep.subr.bf16.mxu0 %v1504
        %1550 = vmatpush1.bf16.msra.mxu0 %v1503
        %1551 = vmatprep.subr.bf16.mxu0 %v1502
        %1552 = vmatpush1.bf16.msra.mxu0 %v1501
        %1553 = vmatprep.subr.bf16.mxu0 %v1500
        %1554 = vmatpush1.bf16.msra.mxu0 %v1499
        %1555 = vmatprep.subr.bf16.mxu0 0
        %1556 = vmatpush2.bf16.msra.mxu0 0
        %1557 = vmatprep.subr.bf16.mxu0 0
        %1558 = vmatpush2.bf16.msra.mxu0 0
        %1559 = vmatprep.subr.bf16.mxu0 0
        %1560 = vmatpush2.bf16.msra.mxu0 0
        %1561 = vmatprep.subr.bf16.mxu0 0
        %1562 = vmatpush2.bf16.msra.mxu0 0
        %1563 = vmatprep.subr.bf16.mxu0 0
        %1564 = vmatpush2.bf16.msra.mxu0 0
        %1565 = vmatprep.subr.bf16.mxu0 0
        %1566 = vmatpush2.bf16.msra.mxu0 0
        %1567 = vmatprep.subr.bf16.mxu0 0
        %1568 = vmatpush2.bf16.msra.mxu0 0
        %1569 = vmatprep.subr.bf16.mxu0 0
        %1570 = vmatpush2.bf16.msra.mxu0 0
        %1571 = vmatprep.mubr.bf16.mxu0 0
        %1572 = vmatmul.mubr.bf16.gmra.mxu0 %v1516
        %v1573 = vpop.f32.mrf.mxu0
        %v1574 = vadd.f32 0.0, %v1573
        %v1575 = vpop.f32.mrf.mxu0
        %v1576 = vadd.f32 0.0, %v1575
        %v1577 = vpop.f32.mrf.mxu0
        %v1578 = vadd.f32 0.0, %v1577
        %v1579 = vpop.f32.mrf.mxu0
        %v1580 = vadd.f32 0.0, %v1579
        %1581 = vmatprep.mubr.bf16.mxu0 0
        %1582 = vmatmul.mubr.bf16.gmra.mxu0 %v1519
        %v1583 = vpop.f32.mrf.mxu0
        %v1584 = vadd.f32 0.0, %v1583
        %v1585 = vpop.f32.mrf.mxu0
        %v1586 = vadd.f32 0.0, %v1585
        %v1587 = vpop.f32.mrf.mxu0
        %v1588 = vadd.f32 0.0, %v1587
        %v1589 = vpop.f32.mrf.mxu0
        %v1590 = vadd.f32 0.0, %v1589
        %1591 = vmatprep.mubr.bf16.mxu0 0
        %1592 = vmatmul.mubr.bf16.gmra.mxu0 %v1522
        %v1593 = vpop.f32.mrf.mxu0
        %v1594 = vadd.f32 0.0, %v1593
        %v1595 = vpop.f32.mrf.mxu0
        %v1596 = vadd.f32 0.0, %v1595
        %v1597 = vpop.f32.mrf.mxu0
        %v1598 = vadd.f32 0.0, %v1597
        %v1599 = vpop.f32.mrf.mxu0
        %v1600 = vadd.f32 0.0, %v1599
        %1601 = vmatprep.mubr.bf16.mxu0 0
        %1602 = vmatmul.mubr.bf16.gmra.mxu0 %v1525
        %v1603 = vpop.f32.mrf.mxu0
        %v1604 = vadd.f32 0.0, %v1603
        %v1605 = vpop.f32.mrf.mxu0
        %v1606 = vadd.f32 0.0, %v1605
        %v1607 = vpop.f32.mrf.mxu0
        %v1608 = vadd.f32 0.0, %v1607
        %v1609 = vpop.f32.mrf.mxu0
        %v1610 = vadd.f32 0.0, %v1609
        %1611 = vmatprep.mubr.bf16.mxu0 0
        %1612 = vmatmul.mubr.bf16.gmra.mxu0 %v1528
        %v1613 = vpop.f32.mrf.mxu0
        %v1614 = vadd.f32 0.0, %v1613
        %v1615 = vpop.f32.mrf.mxu0
        %v1616 = vadd.f32 0.0, %v1615
        %v1617 = vpop.f32.mrf.mxu0
        %v1618 = vadd.f32 0.0, %v1617
        %v1619 = vpop.f32.mrf.mxu0
        %v1620 = vadd.f32 0.0, %v1619
        %1621 = vmatprep.mubr.bf16.mxu0 0
        %1622 = vmatmul.mubr.bf16.gmra.mxu0 %v1531
        %v1623 = vpop.f32.mrf.mxu0
        %v1624 = vadd.f32 0.0, %v1623
        %v1625 = vpop.f32.mrf.mxu0
        %v1626 = vadd.f32 0.0, %v1625
        %v1627 = vpop.f32.mrf.mxu0
        %v1628 = vadd.f32 0.0, %v1627
        %v1629 = vpop.f32.mrf.mxu0
        %v1630 = vadd.f32 0.0, %v1629
        %1631 = vmatprep.mubr.bf16.mxu0 0
        %1632 = vmatmul.mubr.bf16.gmra.mxu0 %v1534
        %v1633 = vpop.f32.mrf.mxu0
        %v1634 = vadd.f32 0.0, %v1633
        %v1635 = vpop.f32.mrf.mxu0
        %v1636 = vadd.f32 0.0, %v1635
        %v1637 = vpop.f32.mrf.mxu0
        %v1638 = vadd.f32 0.0, %v1637
        %v1639 = vpop.f32.mrf.mxu0
        %v1640 = vadd.f32 0.0, %v1639
        %1641 = vmatprep.mubr.bf16.mxu0 0
        %1642 = vmatmul.mubr.bf16.gmra.mxu0 %v1537
        %v1643 = vpop.f32.mrf.mxu0
        %v1644 = vadd.f32 0.0, %v1643
        %v1645 = vpop.f32.mrf.mxu0
        %v1646 = vadd.f32 0.0, %v1645
        %v1647 = vpop.f32.mrf.mxu0
        %v1648 = vadd.f32 0.0, %v1647
        %v1649 = vpop.f32.mrf.mxu0
        %v1650 = vadd.f32 0.0, %v1649
        %1651 = vdwg.mxu0
        %v1652 = vpack.c.bf16 %v1578, %v1574
        %v1653 = vpack.c.bf16 %v1580, %v1576
        %v1654 = vpack.c.bf16 %v1588, %v1584
        %v1655 = vpack.c.bf16 %v1590, %v1586
        %v1656 = vpack.c.bf16 %v1598, %v1594
        %v1657 = vpack.c.bf16 %v1600, %v1596
        %v1658 = vpack.c.bf16 %v1608, %v1604
        %v1659 = vpack.c.bf16 %v1610, %v1606
        %v1660 = vpack.c.bf16 %v1618, %v1614
        %v1661 = vpack.c.bf16 %v1620, %v1616
        %v1662 = vpack.c.bf16 %v1628, %v1624
        %v1663 = vpack.c.bf16 %v1630, %v1626
        %v1664 = vpack.c.bf16 %v1638, %v1634
        %v1665 = vpack.c.bf16 %v1640, %v1636
        %v1666 = vpack.c.bf16 %v1648, %v1644
        %v1667 = vpack.c.bf16 %v1650, %v1646
        %v1668 = vld [vmem:[%s8] sm:$0xf]
        %v1669 = vld [vmem:[%s8 + $0x4] sm:$0xf]
        %v1670 = vld [vmem:[%s8 + $0x8] sm:$0xf]
        %v1671 = vld [vmem:[%s8 + $0xc] sm:$0xf]
        %v1672 = vld [vmem:[%s8 + $0x10] sm:$0xf]
        %v1673 = vld [vmem:[%s8 + $0x14] sm:$0xf]
        %v1674 = vld [vmem:[%s8 + $0x18] sm:$0xf]
        %v1675 = vld [vmem:[%s8 + $0x1c] sm:$0xf]
        %v1676 = vld [vmem:[%s8 + $0x20] sm:$0xf]
        %v1677 = vld [vmem:[%s8 + $0x24] sm:$0xf]
        %v1678 = vld [vmem:[%s8 + $0x28] sm:$0xf]
        %v1679 = vld [vmem:[%s8 + $0x2c] sm:$0xf]
        %v1680 = vld [vmem:[%s8 + $0x30] sm:$0xf]
        %v1681 = vld [vmem:[%s8 + $0x34] sm:$0xf]
        %v1682 = vld [vmem:[%s8 + $0x38] sm:$0xf]
        %v1683 = vld [vmem:[%s8 + $0x3c] sm:$0xf]
        %v1684 = vld [vmem:[%s8 + $0x40] sm:$0xf]
        %v1685 = vld [vmem:[%s8 + $0x44] sm:$0xf]
        %v1686 = vld [vmem:[%s8 + $0x48] sm:$0xf]
        %v1687 = vld [vmem:[%s8 + $0x4c] sm:$0xf]
        %v1688 = vld [vmem:[%s8 + $0x50] sm:$0xf]
        %v1689 = vld [vmem:[%s8 + $0x54] sm:$0xf]
        %v1690 = vld [vmem:[%s8 + $0x58] sm:$0xf]
        %v1691 = vld [vmem:[%s8 + $0x5c] sm:$0xf]
        %v1692 = vld [vmem:[%s8 + $0x60] sm:$0xf]
        %v1693 = vld [vmem:[%s8 + $0x64] sm:$0xf]
        %v1694 = vld [vmem:[%s8 + $0x68] sm:$0xf]
        %v1695 = vld [vmem:[%s8 + $0x6c] sm:$0xf]
        %v1696 = vld [vmem:[%s8 + $0x70] sm:$0xf]
        %v1697 = vld [vmem:[%s8 + $0x74] sm:$0xf]
        %v1698 = vld [vmem:[%s8 + $0x78] sm:$0xf]
        %v1699 = vld [vmem:[%s8 + $0x7c] sm:$0xf]
        %v1700 = vld [vmem:[%s8 + $0x80] sm:$0xf]
        %v1701 = vld [vmem:[%s8 + $0x84] sm:$0xf]
        %v1702 = vld [vmem:[%s8 + $0x88] sm:$0xf]
        %v1703 = vld [vmem:[%s8 + $0x8c] sm:$0xf]
        %v1704 = vld [vmem:[%s8 + $0x90] sm:$0xf]
        %v1705 = vld [vmem:[%s8 + $0x94] sm:$0xf]
        %v1706 = vld [vmem:[%s8 + $0x98] sm:$0xf]
        %v1707 = vld [vmem:[%s8 + $0x9c] sm:$0xf]
        %v1708 = vld [vmem:[%s8 + $0xa0] sm:$0xf]
        %v1709 = vld [vmem:[%s8 + $0xa4] sm:$0xf]
        %v1710 = vld [vmem:[%s8 + $0xa8] sm:$0xf]
        %v1711 = vld [vmem:[%s8 + $0xac] sm:$0xf]
        %v1712 = vld [vmem:[%s8 + $0xb0] sm:$0xf]
        %v1713 = vld [vmem:[%s8 + $0xb4] sm:$0xf]
        %v1714 = vld [vmem:[%s8 + $0xb8] sm:$0xf]
        %v1715 = vld [vmem:[%s8 + $0xbc] sm:$0xf]
        %v1716 = vld [vmem:[%s8 + $0xc0] sm:$0xf]
        %v1717 = vld [vmem:[%s8 + $0xc4] sm:$0xf]
        %v1718 = vld [vmem:[%s8 + $0xc8] sm:$0xf]
        %v1719 = vld [vmem:[%s8 + $0xcc] sm:$0xf]
        %v1720 = vld [vmem:[%s8 + $0xd0] sm:$0xf]
        %v1721 = vld [vmem:[%s8 + $0xd4] sm:$0xf]
        %v1722 = vld [vmem:[%s8 + $0xd8] sm:$0xf]
        %v1723 = vld [vmem:[%s8 + $0xdc] sm:$0xf]
        %1732 = vrot.lane.b32.xlu0 %v1435, 96
        %v1733 = vpop.permute.xlu0 %1732
        %1734 = vrot.lane.b32.xlu0 %v1438, 96
        %v1735 = vpop.permute.xlu0 %1734
        %1736 = vrot.lane.b32.xlu0 %v1441, 96
        %v1737 = vpop.permute.xlu0 %1736
        %1738 = vrot.lane.b32.xlu0 %v1444, 96
        %v1739 = vpop.permute.xlu0 %1738
        %1740 = vrot.lane.b32.xlu0 %v1447, 96
        %v1741 = vpop.permute.xlu0 %1740
        %1742 = vrot.lane.b32.xlu0 %v1450, 96
        %v1743 = vpop.permute.xlu0 %1742
        %1744 = vrot.lane.b32.xlu0 %v1453, 96
        %v1745 = vpop.permute.xlu0 %1744
        %1746 = vrot.lane.b32.xlu0 %v1456, 96
        %v1747 = vpop.permute.xlu0 %1746
        %vm1748 = vcmask 261120
        %v1750 = vsel %vm1748, %v1435, 0
        %v1753 = vsel %vm1748, %v1438, 0
        %v1756 = vsel %vm1748, %v1441, 0
        %v1759 = vsel %vm1748, %v1444, 0
        %v1762 = vsel %vm1748, %v1447, 0
        %v1765 = vsel %vm1748, %v1450, 0
        %v1768 = vsel %vm1748, %v1453, 0
        %v1771 = vsel %vm1748, %v1456, 0
        %v1774 = vsel %vm1748, %v1733, 0
        %v1777 = vsel %vm1748, %v1735, 0
        %v1780 = vsel %vm1748, %v1737, 0
        %v1783 = vsel %vm1748, %v1739, 0
        %v1786 = vsel %vm1748, %v1741, 0
        %v1789 = vsel %vm1748, %v1743, 0
        %v1792 = vsel %vm1748, %v1745, 0
        %v1795 = vsel %vm1748, %v1747, 0
        %1797 = vmatprep.subr.bf16.mxu0 0
        %1798 = vmatpush1.bf16.xpose.msra.mxu0 %v1795
        %1799 = vmatprep.subr.bf16.mxu0 0
        %1800 = vmatpush1.bf16.xpose.msra.mxu0 %v1792
        %1801 = vmatprep.subr.bf16.mxu0 0
        %1802 = vmatpush1.bf16.xpose.msra.mxu0 %v1789
        %1803 = vmatprep.subr.bf16.mxu0 0
        %1804 = vmatpush1.bf16.xpose.msra.mxu0 %v1786
        %1805 = vmatprep.subr.bf16.mxu0 0
        %1806 = vmatpush1.bf16.xpose.msra.mxu0 %v1783
        %1807 = vmatprep.subr.bf16.mxu0 0
        %1808 = vmatpush1.bf16.xpose.msra.mxu0 %v1780
        %1809 = vmatprep.subr.bf16.mxu0 0
        %1810 = vmatpush1.bf16.xpose.msra.mxu0 %v1777
        %1811 = vmatprep.subr.bf16.mxu0 0
        %1812 = vmatpush1.bf16.xpose.msra.mxu0 %v1774
        %1813 = vmatprep.subr.bf16.mxu0 0
        %1814 = vmatpush2.bf16.xpose.msra.mxu0 0
        %1815 = vmatprep.subr.bf16.mxu0 0
        %1816 = vmatpush2.bf16.xpose.msra.mxu0 0
        %1817 = vmatprep.subr.bf16.mxu0 0
        %1818 = vmatpush2.bf16.xpose.msra.mxu0 0
        %1819 = vmatprep.subr.bf16.mxu0 0
        %1820 = vmatpush2.bf16.xpose.msra.mxu0 0
        %1821 = vmatprep.subr.bf16.mxu0 0
        %1822 = vmatpush2.bf16.xpose.msra.mxu0 0
        %1823 = vmatprep.subr.bf16.mxu0 0
        %1824 = vmatpush2.bf16.xpose.msra.mxu0 0
        %1825 = vmatprep.subr.bf16.mxu0 0
        %1826 = vmatpush2.bf16.xpose.msra.mxu0 0
        %1827 = vmatprep.subr.bf16.mxu0 0
        %1828 = vmatpush2.bf16.xpose.msra.mxu0 0
        %1829 = vmatprep.mubr.bf16.mxu0 0
        %1830 = vmatmul.mubr.bf16.gmra.mxu0 %v1750
        %v1831 = vpop.f32.mrf.mxu0
        %v1832 = vadd.f32 0.0, %v1831
        %v1833 = vpop.f32.mrf.mxu0
        %v1834 = vpop.f32.mrf.mxu0
        %v1835 = vadd.f32 0.0, %v1834
        %v1836 = vpop.f32.mrf.mxu0
        %1837 = vmatprep.mubr.bf16.mxu0 0
        %1838 = vmatmul.mubr.bf16.gmra.mxu0 %v1753
        %v1839 = vpop.f32.mrf.mxu0
        %v1840 = vadd.f32 0.0, %v1839
        %v1841 = vpop.f32.mrf.mxu0
        %v1842 = vpop.f32.mrf.mxu0
        %v1843 = vadd.f32 0.0, %v1842
        %v1844 = vpop.f32.mrf.mxu0
        %1845 = vmatprep.mubr.bf16.mxu0 0
        %1846 = vmatmul.mubr.bf16.gmra.mxu0 %v1756
        %v1847 = vpop.f32.mrf.mxu0
        %v1848 = vadd.f32 0.0, %v1847
        %v1849 = vpop.f32.mrf.mxu0
        %v1850 = vpop.f32.mrf.mxu0
        %v1851 = vadd.f32 0.0, %v1850
        %v1852 = vpop.f32.mrf.mxu0
        %1853 = vmatprep.mubr.bf16.mxu0 0
        %1854 = vmatmul.mubr.bf16.gmra.mxu0 %v1759
        %v1855 = vpop.f32.mrf.mxu0
        %v1856 = vadd.f32 0.0, %v1855
        %v1857 = vpop.f32.mrf.mxu0
        %v1858 = vpop.f32.mrf.mxu0
        %v1859 = vadd.f32 0.0, %v1858
        %v1860 = vpop.f32.mrf.mxu0
        %1861 = vmatprep.mubr.bf16.mxu0 0
        %1862 = vmatmul.mubr.bf16.gmra.mxu0 %v1762
        %v1863 = vpop.f32.mrf.mxu0
        %v1864 = vadd.f32 0.0, %v1863
        %v1865 = vpop.f32.mrf.mxu0
        %v1866 = vpop.f32.mrf.mxu0
        %v1867 = vadd.f32 0.0, %v1866
        %v1868 = vpop.f32.mrf.mxu0
        %1869 = vmatprep.mubr.bf16.mxu0 0
        %1870 = vmatmul.mubr.bf16.gmra.mxu0 %v1765
        %v1871 = vpop.f32.mrf.mxu0
        %v1872 = vadd.f32 0.0, %v1871
        %v1873 = vpop.f32.mrf.mxu0
        %v1874 = vpop.f32.mrf.mxu0
        %v1875 = vadd.f32 0.0, %v1874
        %v1876 = vpop.f32.mrf.mxu0
        %1877 = vmatprep.mubr.bf16.mxu0 0
        %1878 = vmatmul.mubr.bf16.gmra.mxu0 %v1768
        %v1879 = vpop.f32.mrf.mxu0
        %v1880 = vadd.f32 0.0, %v1879
        %v1881 = vpop.f32.mrf.mxu0
        %v1882 = vpop.f32.mrf.mxu0
        %v1883 = vadd.f32 0.0, %v1882
        %v1884 = vpop.f32.mrf.mxu0
        %1885 = vmatprep.mubr.bf16.mxu0 0
        %1886 = vmatmul.mubr.bf16.gmra.mxu0 %v1771
        %v1887 = vpop.f32.mrf.mxu0
        %v1888 = vadd.f32 0.0, %v1887
        %v1889 = vpop.f32.mrf.mxu0
        %v1890 = vpop.f32.mrf.mxu0
        %v1891 = vadd.f32 0.0, %v1890
        %v1892 = vpop.f32.mrf.mxu0
        %1893 = vdwg.mxu0
        %1894 = vmax.xlane.f32.xlu0 %v1832
        %v1895 = vpop.xlane.xlu0 %1894
        %1896 = vmax.xlane.f32.xlu0 %v1835
        %v1897 = vpop.xlane.xlu0 %1896
        %1898 = vmax.xlane.f32.xlu0 %v1840
        %v1899 = vpop.xlane.xlu0 %1898
        %1900 = vmax.xlane.f32.xlu0 %v1843
        %v1901 = vpop.xlane.xlu0 %1900
        %1902 = vmax.xlane.f32.xlu0 %v1848
        %v1903 = vpop.xlane.xlu0 %1902
        %1904 = vmax.xlane.f32.xlu0 %v1851
        %v1905 = vpop.xlane.xlu0 %1904
        %1906 = vmax.xlane.f32.xlu0 %v1856
        %v1907 = vpop.xlane.xlu0 %1906
        %1908 = vmax.xlane.f32.xlu0 %v1859
        %v1909 = vpop.xlane.xlu0 %1908
        %1910 = vmax.xlane.f32.xlu0 %v1864
        %v1911 = vpop.xlane.xlu0 %1910
        %1912 = vmax.xlane.f32.xlu0 %v1867
        %v1913 = vpop.xlane.xlu0 %1912
        %1914 = vmax.xlane.f32.xlu0 %v1872
        %v1915 = vpop.xlane.xlu0 %1914
        %1916 = vmax.xlane.f32.xlu0 %v1875
        %v1917 = vpop.xlane.xlu0 %1916
        %1918 = vmax.xlane.f32.xlu0 %v1880
        %v1919 = vpop.xlane.xlu0 %1918
        %1920 = vmax.xlane.f32.xlu0 %v1883
        %v1921 = vpop.xlane.xlu0 %1920
        %1922 = vmax.xlane.f32.xlu0 %v1888
        %v1923 = vpop.xlane.xlu0 %1922
        %1924 = vmax.xlane.f32.xlu0 %v1891
        %v1925 = vpop.xlane.xlu0 %1924
        %v1926 = vsub.f32 %v1832, %v1895
        %v1927 = vsub.f32 %v1835, %v1897
        %v1928 = vsub.f32 %v1840, %v1899
        %v1929 = vsub.f32 %v1843, %v1901
        %v1930 = vsub.f32 %v1848, %v1903
        %v1931 = vsub.f32 %v1851, %v1905
        %v1932 = vsub.f32 %v1856, %v1907
        %v1933 = vsub.f32 %v1859, %v1909
        %v1934 = vsub.f32 %v1864, %v1911
        %v1935 = vsub.f32 %v1867, %v1913
        %v1936 = vsub.f32 %v1872, %v1915
        %v1937 = vsub.f32 %v1875, %v1917
        %v1938 = vsub.f32 %v1880, %v1919
        %v1939 = vsub.f32 %v1883, %v1921
        %v1940 = vsub.f32 %v1888, %v1923
        %v1941 = vsub.f32 %v1891, %v1925
        %v1942 = vmul.f32 %v1926, 1.442695
        %v1943 = vpow.pop %v1942
        %v1944 = vmul.f32 %v1927, 1.442695
        %v1945 = vpow.pop %v1944
        %v1946 = vmul.f32 %v1928, 1.442695
        %v1947 = vpow.pop %v1946
        %v1948 = vmul.f32 %v1929, 1.442695
        %v1949 = vpow.pop %v1948
        %v1950 = vmul.f32 %v1930, 1.442695
        %v1951 = vpow.pop %v1950
        %v1952 = vmul.f32 %v1931, 1.442695
        %v1953 = vpow.pop %v1952
        %v1954 = vmul.f32 %v1932, 1.442695
        %v1955 = vpow.pop %v1954
        %v1956 = vmul.f32 %v1933, 1.442695
        %v1957 = vpow.pop %v1956
        %v1958 = vmul.f32 %v1934, 1.442695
        %v1959 = vpow.pop %v1958
        %v1960 = vmul.f32 %v1935, 1.442695
        %v1961 = vpow.pop %v1960
        %v1962 = vmul.f32 %v1936, 1.442695
        %v1963 = vpow.pop %v1962
        %v1964 = vmul.f32 %v1937, 1.442695
        %v1965 = vpow.pop %v1964
        %v1966 = vmul.f32 %v1938, 1.442695
        %v1967 = vpow.pop %v1966
        %v1968 = vmul.f32 %v1939, 1.442695
        %v1969 = vpow.pop %v1968
        %v1970 = vmul.f32 %v1940, 1.442695
        %v1971 = vpow.pop %v1970
        %v1972 = vmul.f32 %v1941, 1.442695
        %v1973 = vpow.pop %v1972
        %1974 = vadd.xlane.f32.xlu0 %v1943
        %v1975 = vpop.xlane.xlu0 %1974
        %1976 = vadd.xlane.f32.xlu0 %v1945
        %v1977 = vpop.xlane.xlu0 %1976
        %1978 = vadd.xlane.f32.xlu0 %v1947
        %v1979 = vpop.xlane.xlu0 %1978
        %1980 = vadd.xlane.f32.xlu0 %v1949
        %v1981 = vpop.xlane.xlu0 %1980
        %1982 = vadd.xlane.f32.xlu0 %v1951
        %v1983 = vpop.xlane.xlu0 %1982
        %1984 = vadd.xlane.f32.xlu0 %v1953
        %v1985 = vpop.xlane.xlu0 %1984
        %1986 = vadd.xlane.f32.xlu0 %v1955
        %v1987 = vpop.xlane.xlu0 %1986
        %1988 = vadd.xlane.f32.xlu0 %v1957
        %v1989 = vpop.xlane.xlu0 %1988
        %1990 = vadd.xlane.f32.xlu0 %v1959
        %v1991 = vpop.xlane.xlu0 %1990
        %1992 = vadd.xlane.f32.xlu0 %v1961
        %v1993 = vpop.xlane.xlu0 %1992
        %1994 = vadd.xlane.f32.xlu0 %v1963
        %v1995 = vpop.xlane.xlu0 %1994
        %1996 = vadd.xlane.f32.xlu0 %v1965
        %v1997 = vpop.xlane.xlu0 %1996
        %1998 = vadd.xlane.f32.xlu0 %v1967
        %v1999 = vpop.xlane.xlu0 %1998
        %2000 = vadd.xlane.f32.xlu0 %v1969
        %v2001 = vpop.xlane.xlu0 %2000
        %2002 = vadd.xlane.f32.xlu0 %v1971
        %v2003 = vpop.xlane.xlu0 %2002
        %2004 = vadd.xlane.f32.xlu0 %v1973
        %v2005 = vpop.xlane.xlu0 %2004
        %v2006 = vrcp.pop %v1975
        %v2007 = vrcp.pop %v1977
        %v2008 = vrcp.pop %v1979
        %v2009 = vrcp.pop %v1981
        %v2010 = vrcp.pop %v1983
        %v2011 = vrcp.pop %v1985
        %v2012 = vrcp.pop %v1987
        %v2013 = vrcp.pop %v1989
        %v2014 = vrcp.pop %v1991
        %v2015 = vrcp.pop %v1993
        %v2016 = vrcp.pop %v1995
        %v2017 = vrcp.pop %v1997
        %v2018 = vrcp.pop %v1999
        %v2019 = vrcp.pop %v2001
        %v2020 = vrcp.pop %v2003
        %v2021 = vrcp.pop %v2005
        %v2022 = vmul.f32 %v1943, %v2006
        %v2023 = vmul.f32 %v1945, %v2007
        %v2024 = vmul.f32 %v1947, %v2008
        %v2025 = vmul.f32 %v1949, %v2009
        %v2026 = vmul.f32 %v1951, %v2010
        %v2027 = vmul.f32 %v1953, %v2011
        %v2028 = vmul.f32 %v1955, %v2012
        %v2029 = vmul.f32 %v1957, %v2013
        %v2030 = vmul.f32 %v1959, %v2014
        %v2031 = vmul.f32 %v1961, %v2015
        %v2032 = vmul.f32 %v1963, %v2016
        %v2033 = vmul.f32 %v1965, %v2017
        %v2034 = vmul.f32 %v1967, %v2018
        %v2035 = vmul.f32 %v1969, %v2019
        %v2036 = vmul.f32 %v1971, %v2020
        %v2037 = vmul.f32 %v1973, %v2021
        %2038 = vrot.lane.b32.xlu0 %v1435, 64
        %v2039 = vpop.permute.xlu0 %2038
        %2040 = vrot.lane.b32.xlu0 %v1438, 64
        %v2041 = vpop.permute.xlu0 %2040
        %2042 = vrot.lane.b32.xlu0 %v1441, 64
        %v2043 = vpop.permute.xlu0 %2042
        %2044 = vrot.lane.b32.xlu0 %v1444, 64
        %v2045 = vpop.permute.xlu0 %2044
        %2046 = vrot.lane.b32.xlu0 %v1447, 64
        %v2047 = vpop.permute.xlu0 %2046
        %2048 = vrot.lane.b32.xlu0 %v1450, 64
        %v2049 = vpop.permute.xlu0 %2048
        %2050 = vrot.lane.b32.xlu0 %v1453, 64
        %v2051 = vpop.permute.xlu0 %2050
        %2052 = vrot.lane.b32.xlu0 %v1456, 64
        %v2053 = vpop.permute.xlu0 %2052
        %2054 = vrot.lane.b32.xlu0 %v1435, 32
        %v2055 = vpop.permute.xlu0 %2054
        %2056 = vrot.lane.b32.xlu0 %v1438, 32
        %v2057 = vpop.permute.xlu0 %2056
        %2058 = vrot.lane.b32.xlu0 %v1441, 32
        %v2059 = vpop.permute.xlu0 %2058
        %2060 = vrot.lane.b32.xlu0 %v1444, 32
        %v2061 = vpop.permute.xlu0 %2060
        %2062 = vrot.lane.b32.xlu0 %v1447, 32
        %v2063 = vpop.permute.xlu0 %2062
        %2064 = vrot.lane.b32.xlu0 %v1450, 32
        %v2065 = vpop.permute.xlu0 %2064
        %2066 = vrot.lane.b32.xlu0 %v1453, 32
        %v2067 = vpop.permute.xlu0 %2066
        %2068 = vrot.lane.b32.xlu0 %v1456, 32
        %v2069 = vpop.permute.xlu0 %2068
        %v2071 = vsel %vm1748, %v2039, 0
        %v2074 = vsel %vm1748, %v2041, 0
        %v2077 = vsel %vm1748, %v2043, 0
        %v2080 = vsel %vm1748, %v2045, 0
        %v2083 = vsel %vm1748, %v2047, 0
        %v2086 = vsel %vm1748, %v2049, 0
        %v2089 = vsel %vm1748, %v2051, 0
        %v2092 = vsel %vm1748, %v2053, 0
        %v2095 = vsel %vm1748, %v2055, 0
        %v2098 = vsel %vm1748, %v2057, 0
        %v2101 = vsel %vm1748, %v2059, 0
        %v2104 = vsel %vm1748, %v2061, 0
        %v2107 = vsel %vm1748, %v2063, 0
        %v2110 = vsel %vm1748, %v2065, 0
        %v2113 = vsel %vm1748, %v2067, 0
        %v2116 = vsel %vm1748, %v2069, 0
        %2118 = vmatprep.subr.bf16.mxu0 0
        %2119 = vmatpush1.bf16.xpose.msra.mxu0 %v2116
        %2120 = vmatprep.subr.bf16.mxu0 0
        %2121 = vmatpush1.bf16.xpose.msra.mxu0 %v2113
        %2122 = vmatprep.subr.bf16.mxu0 0
        %2123 = vmatpush1.bf16.xpose.msra.mxu0 %v2110
        %2124 = vmatprep.subr.bf16.mxu0 0
        %2125 = vmatpush1.bf16.xpose.msra.mxu0 %v2107
        %2126 = vmatprep.subr.bf16.mxu0 0
        %2127 = vmatpush1.bf16.xpose.msra.mxu0 %v2104
        %2128 = vmatprep.subr.bf16.mxu0 0
        %2129 = vmatpush1.bf16.xpose.msra.mxu0 %v2101
        %2130 = vmatprep.subr.bf16.mxu0 0
        %2131 = vmatpush1.bf16.xpose.msra.mxu0 %v2098
        %2132 = vmatprep.subr.bf16.mxu0 0
        %2133 = vmatpush1.bf16.xpose.msra.mxu0 %v2095
        %2134 = vmatprep.subr.bf16.mxu0 0
        %2135 = vmatpush2.bf16.xpose.msra.mxu0 0
        %2136 = vmatprep.subr.bf16.mxu0 0
        %2137 = vmatpush2.bf16.xpose.msra.mxu0 0
        %2138 = vmatprep.subr.bf16.mxu0 0
        %2139 = vmatpush2.bf16.xpose.msra.mxu0 0
        %2140 = vmatprep.subr.bf16.mxu0 0
        %2141 = vmatpush2.bf16.xpose.msra.mxu0 0
        %2142 = vmatprep.subr.bf16.mxu0 0
        %2143 = vmatpush2.bf16.xpose.msra.mxu0 0
        %2144 = vmatprep.subr.bf16.mxu0 0
        %2145 = vmatpush2.bf16.xpose.msra.mxu0 0
        %2146 = vmatprep.subr.bf16.mxu0 0
        %2147 = vmatpush2.bf16.xpose.msra.mxu0 0
        %2148 = vmatprep.subr.bf16.mxu0 0
        %2149 = vmatpush2.bf16.xpose.msra.mxu0 0
        %2150 = vmatprep.mubr.bf16.mxu0 0
        %2151 = vmatmul.mubr.bf16.gmra.mxu0 %v2071
        %v2152 = vpop.f32.mrf.mxu0
        %v2153 = vadd.f32 0.0, %v2152
        %v2154 = vpop.f32.mrf.mxu0
        %v2155 = vpop.f32.mrf.mxu0
        %v2156 = vadd.f32 0.0, %v2155
        %v2157 = vpop.f32.mrf.mxu0
        %2158 = vmatprep.mubr.bf16.mxu0 0
        %2159 = vmatmul.mubr.bf16.gmra.mxu0 %v2074
        %v2160 = vpop.f32.mrf.mxu0
        %v2161 = vadd.f32 0.0, %v2160
        %v2162 = vpop.f32.mrf.mxu0
        %v2163 = vpop.f32.mrf.mxu0
        %v2164 = vadd.f32 0.0, %v2163
        %v2165 = vpop.f32.mrf.mxu0
        %2166 = vmatprep.mubr.bf16.mxu0 0
        %2167 = vmatmul.mubr.bf16.gmra.mxu0 %v2077
        %v2168 = vpop.f32.mrf.mxu0
        %v2169 = vadd.f32 0.0, %v2168
        %v2170 = vpop.f32.mrf.mxu0
        %v2171 = vpop.f32.mrf.mxu0
        %v2172 = vadd.f32 0.0, %v2171
        %v2173 = vpop.f32.mrf.mxu0
        %2174 = vmatprep.mubr.bf16.mxu0 0
        %2175 = vmatmul.mubr.bf16.gmra.mxu0 %v2080
        %v2176 = vpop.f32.mrf.mxu0
        %v2177 = vadd.f32 0.0, %v2176
        %v2178 = vpop.f32.mrf.mxu0
        %v2179 = vpop.f32.mrf.mxu0
        %v2180 = vadd.f32 0.0, %v2179
        %v2181 = vpop.f32.mrf.mxu0
        %2182 = vmatprep.mubr.bf16.mxu0 0
        %2183 = vmatmul.mubr.bf16.gmra.mxu0 %v2083
        %v2184 = vpop.f32.mrf.mxu0
        %v2185 = vadd.f32 0.0, %v2184
        %v2186 = vpop.f32.mrf.mxu0
        %v2187 = vpop.f32.mrf.mxu0
        %v2188 = vadd.f32 0.0, %v2187
        %v2189 = vpop.f32.mrf.mxu0
        %2190 = vmatprep.mubr.bf16.mxu0 0
        %2191 = vmatmul.mubr.bf16.gmra.mxu0 %v2086
        %v2192 = vpop.f32.mrf.mxu0
        %v2193 = vadd.f32 0.0, %v2192
        %v2194 = vpop.f32.mrf.mxu0
        %v2195 = vpop.f32.mrf.mxu0
        %v2196 = vadd.f32 0.0, %v2195
        %v2197 = vpop.f32.mrf.mxu0
        %2198 = vmatprep.mubr.bf16.mxu0 0
        %2199 = vmatmul.mubr.bf16.gmra.mxu0 %v2089
        %v2200 = vpop.f32.mrf.mxu0
        %v2201 = vadd.f32 0.0, %v2200
        %v2202 = vpop.f32.mrf.mxu0
        %v2203 = vpop.f32.mrf.mxu0
        %v2204 = vadd.f32 0.0, %v2203
        %v2205 = vpop.f32.mrf.mxu0
        %2206 = vmatprep.mubr.bf16.mxu0 0
        %2207 = vmatmul.mubr.bf16.gmra.mxu0 %v2092
        %v2208 = vpop.f32.mrf.mxu0
        %v2209 = vadd.f32 0.0, %v2208
        %v2210 = vpop.f32.mrf.mxu0
        %v2211 = vpop.f32.mrf.mxu0
        %v2212 = vadd.f32 0.0, %v2211
        %v2213 = vpop.f32.mrf.mxu0
        %2214 = vdwg.mxu0
        %2215 = vmax.xlane.f32.xlu0 %v2153
        %v2216 = vpop.xlane.xlu0 %2215
        %2217 = vmax.xlane.f32.xlu0 %v2156
        %v2218 = vpop.xlane.xlu0 %2217
        %2219 = vmax.xlane.f32.xlu0 %v2161
        %v2220 = vpop.xlane.xlu0 %2219
        %2221 = vmax.xlane.f32.xlu0 %v2164
        %v2222 = vpop.xlane.xlu0 %2221
        %2223 = vmax.xlane.f32.xlu0 %v2169
        %v2224 = vpop.xlane.xlu0 %2223
        %2225 = vmax.xlane.f32.xlu0 %v2172
        %v2226 = vpop.xlane.xlu0 %2225
        %2227 = vmax.xlane.f32.xlu0 %v2177
        %v2228 = vpop.xlane.xlu0 %2227
        %2229 = vmax.xlane.f32.xlu0 %v2180
        %v2230 = vpop.xlane.xlu0 %2229
        %2231 = vmax.xlane.f32.xlu0 %v2185
        %v2232 = vpop.xlane.xlu0 %2231
        %2233 = vmax.xlane.f32.xlu0 %v2188
        %v2234 = vpop.xlane.xlu0 %2233
        %2235 = vmax.xlane.f32.xlu0 %v2193
        %v2236 = vpop.xlane.xlu0 %2235
        %2237 = vmax.xlane.f32.xlu0 %v2196
        %v2238 = vpop.xlane.xlu0 %2237
        %2239 = vmax.xlane.f32.xlu0 %v2201
        %v2240 = vpop.xlane.xlu0 %2239
        %2241 = vmax.xlane.f32.xlu0 %v2204
        %v2242 = vpop.xlane.xlu0 %2241
        %2243 = vmax.xlane.f32.xlu0 %v2209
        %v2244 = vpop.xlane.xlu0 %2243
        %2245 = vmax.xlane.f32.xlu0 %v2212
        %v2246 = vpop.xlane.xlu0 %2245
        %v2247 = vsub.f32 %v2153, %v2216
        %v2248 = vsub.f32 %v2156, %v2218
        %v2249 = vsub.f32 %v2161, %v2220
        %v2250 = vsub.f32 %v2164, %v2222
        %v2251 = vsub.f32 %v2169, %v2224
        %v2252 = vsub.f32 %v2172, %v2226
        %v2253 = vsub.f32 %v2177, %v2228
        %v2254 = vsub.f32 %v2180, %v2230
        %v2255 = vsub.f32 %v2185, %v2232
        %v2256 = vsub.f32 %v2188, %v2234
        %v2257 = vsub.f32 %v2193, %v2236
        %v2258 = vsub.f32 %v2196, %v2238
        %v2259 = vsub.f32 %v2201, %v2240
        %v2260 = vsub.f32 %v2204, %v2242
        %v2261 = vsub.f32 %v2209, %v2244
        %v2262 = vsub.f32 %v2212, %v2246
        %v2263 = vmul.f32 %v2247, 1.442695
        %v2264 = vpow.pop %v2263
        %v2265 = vmul.f32 %v2248, 1.442695
        %v2266 = vpow.pop %v2265
        %v2267 = vmul.f32 %v2249, 1.442695
        %v2268 = vpow.pop %v2267
        %v2269 = vmul.f32 %v2250, 1.442695
        %v2270 = vpow.pop %v2269
        %v2271 = vmul.f32 %v2251, 1.442695
        %v2272 = vpow.pop %v2271
        %v2273 = vmul.f32 %v2252, 1.442695
        %v2274 = vpow.pop %v2273
        %v2275 = vmul.f32 %v2253, 1.442695
        %v2276 = vpow.pop %v2275
        %v2277 = vmul.f32 %v2254, 1.442695
        %v2278 = vpow.pop %v2277
        %v2279 = vmul.f32 %v2255, 1.442695
        %v2280 = vpow.pop %v2279
        %v2281 = vmul.f32 %v2256, 1.442695
        %v2282 = vpow.pop %v2281
        %v2283 = vmul.f32 %v2257, 1.442695
        %v2284 = vpow.pop %v2283
        %v2285 = vmul.f32 %v2258, 1.442695
        %v2286 = vpow.pop %v2285
        %v2287 = vmul.f32 %v2259, 1.442695
        %v2288 = vpow.pop %v2287
        %v2289 = vmul.f32 %v2260, 1.442695
        %v2290 = vpow.pop %v2289
        %v2291 = vmul.f32 %v2261, 1.442695
        %v2292 = vpow.pop %v2291
        %v2293 = vmul.f32 %v2262, 1.442695
        %v2294 = vpow.pop %v2293
        %2295 = vadd.xlane.f32.xlu0 %v2264
        %v2296 = vpop.xlane.xlu0 %2295
        %2297 = vadd.xlane.f32.xlu0 %v2266
        %v2298 = vpop.xlane.xlu0 %2297
        %2299 = vadd.xlane.f32.xlu0 %v2268
        %v2300 = vpop.xlane.xlu0 %2299
        %2301 = vadd.xlane.f32.xlu0 %v2270
        %v2302 = vpop.xlane.xlu0 %2301
        %2303 = vadd.xlane.f32.xlu0 %v2272
        %v2304 = vpop.xlane.xlu0 %2303
        %2305 = vadd.xlane.f32.xlu0 %v2274
        %v2306 = vpop.xlane.xlu0 %2305
        %2307 = vadd.xlane.f32.xlu0 %v2276
        %v2308 = vpop.xlane.xlu0 %2307
        %2309 = vadd.xlane.f32.xlu0 %v2278
        %v2310 = vpop.xlane.xlu0 %2309
        %2311 = vadd.xlane.f32.xlu0 %v2280
        %v2312 = vpop.xlane.xlu0 %2311
        %2313 = vadd.xlane.f32.xlu0 %v2282
        %v2314 = vpop.xlane.xlu0 %2313
        %2315 = vadd.xlane.f32.xlu0 %v2284
        %v2316 = vpop.xlane.xlu0 %2315
        %2317 = vadd.xlane.f32.xlu0 %v2286
        %v2318 = vpop.xlane.xlu0 %2317
        %2319 = vadd.xlane.f32.xlu0 %v2288
        %v2320 = vpop.xlane.xlu0 %2319
        %2321 = vadd.xlane.f32.xlu0 %v2290
        %v2322 = vpop.xlane.xlu0 %2321
        %2323 = vadd.xlane.f32.xlu0 %v2292
        %v2324 = vpop.xlane.xlu0 %2323
        %2325 = vadd.xlane.f32.xlu0 %v2294
        %v2326 = vpop.xlane.xlu0 %2325
        %v2327 = vrcp.pop %v2296
        %v2328 = vrcp.pop %v2298
        %v2329 = vrcp.pop %v2300
        %v2330 = vrcp.pop %v2302
        %v2331 = vrcp.pop %v2304
        %v2332 = vrcp.pop %v2306
        %v2333 = vrcp.pop %v2308
        %v2334 = vrcp.pop %v2310
        %v2335 = vrcp.pop %v2312
        %v2336 = vrcp.pop %v2314
        %v2337 = vrcp.pop %v2316
        %v2338 = vrcp.pop %v2318
        %v2339 = vrcp.pop %v2320
        %v2340 = vrcp.pop %v2322
        %v2341 = vrcp.pop %v2324
        %v2342 = vrcp.pop %v2326
        %v2343 = vmul.f32 %v2264, %v2327
        %v2344 = vmul.f32 %v2266, %v2328
        %v2345 = vmul.f32 %v2268, %v2329
        %v2346 = vmul.f32 %v2270, %v2330
        %v2347 = vmul.f32 %v2272, %v2331
        %v2348 = vmul.f32 %v2274, %v2332
        %v2349 = vmul.f32 %v2276, %v2333
        %v2350 = vmul.f32 %v2278, %v2334
        %v2351 = vmul.f32 %v2280, %v2335
        %v2352 = vmul.f32 %v2282, %v2336
        %v2353 = vmul.f32 %v2284, %v2337
        %v2354 = vmul.f32 %v2286, %v2338
        %v2355 = vmul.f32 %v2288, %v2339
        %v2356 = vmul.f32 %v2290, %v2340
        %v2357 = vmul.f32 %v2292, %v2341
        %v2358 = vmul.f32 %v2294, %v2342
        %2367 = vrot.lane.b32.xlu0 %v1652, 96
        %v2368 = vpop.permute.xlu0 %2367
        %2369 = vrot.lane.b32.xlu0 %v1654, 96
        %v2370 = vpop.permute.xlu0 %2369
        %2371 = vrot.lane.b32.xlu0 %v1656, 96
        %v2372 = vpop.permute.xlu0 %2371
        %2373 = vrot.lane.b32.xlu0 %v1658, 96
        %v2374 = vpop.permute.xlu0 %2373
        %2375 = vrot.lane.b32.xlu0 %v1660, 96
        %v2376 = vpop.permute.xlu0 %2375
        %2377 = vrot.lane.b32.xlu0 %v1662, 96
        %v2378 = vpop.permute.xlu0 %2377
        %2379 = vrot.lane.b32.xlu0 %v1664, 96
        %v2380 = vpop.permute.xlu0 %2379
        %2381 = vrot.lane.b32.xlu0 %v1666, 96
        %v2382 = vpop.permute.xlu0 %2381
        %v2384 = vsel %vm1748, %v1652, 0
        %v2387 = vsel %vm1748, %v1654, 0
        %v2390 = vsel %vm1748, %v1656, 0
        %v2393 = vsel %vm1748, %v1658, 0
        %v2396 = vsel %vm1748, %v1660, 0
        %v2399 = vsel %vm1748, %v1662, 0
        %v2402 = vsel %vm1748, %v1664, 0
        %v2405 = vsel %vm1748, %v1666, 0
        %v2408 = vsel %vm1748, %v2368, 0
        %v2411 = vsel %vm1748, %v2370, 0
        %v2414 = vsel %vm1748, %v2372, 0
        %v2417 = vsel %vm1748, %v2374, 0
        %v2420 = vsel %vm1748, %v2376, 0
        %v2423 = vsel %vm1748, %v2378, 0
        %v2426 = vsel %vm1748, %v2380, 0
        %v2429 = vsel %vm1748, %v2382, 0
        %2431 = vmatprep.subr.bf16.mxu0 0
        %2432 = vmatpush1.bf16.xpose.msra.mxu0 %v2429
        %2433 = vmatprep.subr.bf16.mxu0 0
        %2434 = vmatpush1.bf16.xpose.msra.mxu0 %v2426
        %2435 = vmatprep.subr.bf16.mxu0 0
        %2436 = vmatpush1.bf16.xpose.msra.mxu0 %v2423
        %2437 = vmatprep.subr.bf16.mxu0 0
        %2438 = vmatpush1.bf16.xpose.msra.mxu0 %v2420
        %2439 = vmatprep.subr.bf16.mxu0 0
        %2440 = vmatpush1.bf16.xpose.msra.mxu0 %v2417
        %2441 = vmatprep.subr.bf16.mxu0 0
        %2442 = vmatpush1.bf16.xpose.msra.mxu0 %v2414
        %2443 = vmatprep.subr.bf16.mxu0 0
        %2444 = vmatpush1.bf16.xpose.msra.mxu0 %v2411
        %2445 = vmatprep.subr.bf16.mxu0 0
        %2446 = vmatpush1.bf16.xpose.msra.mxu0 %v2408
        %2447 = vmatprep.subr.bf16.mxu0 0
        %2448 = vmatpush2.bf16.xpose.msra.mxu0 0
        %2449 = vmatprep.subr.bf16.mxu0 0
        %2450 = vmatpush2.bf16.xpose.msra.mxu0 0
        %2451 = vmatprep.subr.bf16.mxu0 0
        %2452 = vmatpush2.bf16.xpose.msra.mxu0 0
        %2453 = vmatprep.subr.bf16.mxu0 0
        %2454 = vmatpush2.bf16.xpose.msra.mxu0 0
        %2455 = vmatprep.subr.bf16.mxu0 0
        %2456 = vmatpush2.bf16.xpose.msra.mxu0 0
        %2457 = vmatprep.subr.bf16.mxu0 0
        %2458 = vmatpush2.bf16.xpose.msra.mxu0 0
        %2459 = vmatprep.subr.bf16.mxu0 0
        %2460 = vmatpush2.bf16.xpose.msra.mxu0 0
        %2461 = vmatprep.subr.bf16.mxu0 0
        %2462 = vmatpush2.bf16.xpose.msra.mxu0 0
        %2463 = vmatprep.mubr.bf16.mxu0 0
        %2464 = vmatmul.mubr.bf16.gmra.mxu0 %v2384
        %v2465 = vpop.f32.mrf.mxu0
        %v2466 = vadd.f32 0.0, %v2465
        %v2467 = vpop.f32.mrf.mxu0
        %v2468 = vpop.f32.mrf.mxu0
        %v2469 = vadd.f32 0.0, %v2468
        %v2470 = vpop.f32.mrf.mxu0
        %2471 = vmatprep.mubr.bf16.mxu0 0
        %2472 = vmatmul.mubr.bf16.gmra.mxu0 %v2387
        %v2473 = vpop.f32.mrf.mxu0
        %v2474 = vadd.f32 0.0, %v2473
        %v2475 = vpop.f32.mrf.mxu0
        %v2476 = vpop.f32.mrf.mxu0
        %v2477 = vadd.f32 0.0, %v2476
        %v2478 = vpop.f32.mrf.mxu0
        %2479 = vmatprep.mubr.bf16.mxu0 0
        %2480 = vmatmul.mubr.bf16.gmra.mxu0 %v2390
        %v2481 = vpop.f32.mrf.mxu0
        %v2482 = vadd.f32 0.0, %v2481
        %v2483 = vpop.f32.mrf.mxu0
        %v2484 = vpop.f32.mrf.mxu0
        %v2485 = vadd.f32 0.0, %v2484
        %v2486 = vpop.f32.mrf.mxu0
        %2487 = vmatprep.mubr.bf16.mxu0 0
        %2488 = vmatmul.mubr.bf16.gmra.mxu0 %v2393
        %v2489 = vpop.f32.mrf.mxu0
        %v2490 = vadd.f32 0.0, %v2489
        %v2491 = vpop.f32.mrf.mxu0
        %v2492 = vpop.f32.mrf.mxu0
        %v2493 = vadd.f32 0.0, %v2492
        %v2494 = vpop.f32.mrf.mxu0
        %2495 = vmatprep.mubr.bf16.mxu0 0
        %2496 = vmatmul.mubr.bf16.gmra.mxu0 %v2396
        %v2497 = vpop.f32.mrf.mxu0
        %v2498 = vadd.f32 0.0, %v2497
        %v2499 = vpop.f32.mrf.mxu0
        %v2500 = vpop.f32.mrf.mxu0
        %v2501 = vadd.f32 0.0, %v2500
        %v2502 = vpop.f32.mrf.mxu0
        %2503 = vmatprep.mubr.bf16.mxu0 0
        %2504 = vmatmul.mubr.bf16.gmra.mxu0 %v2399
        %v2505 = vpop.f32.mrf.mxu0
        %v2506 = vadd.f32 0.0, %v2505
        %v2507 = vpop.f32.mrf.mxu0
        %v2508 = vpop.f32.mrf.mxu0
        %v2509 = vadd.f32 0.0, %v2508
        %v2510 = vpop.f32.mrf.mxu0
        %2511 = vmatprep.mubr.bf16.mxu0 0
        %2512 = vmatmul.mubr.bf16.gmra.mxu0 %v2402
        %v2513 = vpop.f32.mrf.mxu0
        %v2514 = vadd.f32 0.0, %v2513
        %v2515 = vpop.f32.mrf.mxu0
        %v2516 = vpop.f32.mrf.mxu0
        %v2517 = vadd.f32 0.0, %v2516
        %v2518 = vpop.f32.mrf.mxu0
        %2519 = vmatprep.mubr.bf16.mxu0 0
        %2520 = vmatmul.mubr.bf16.gmra.mxu0 %v2405
        %v2521 = vpop.f32.mrf.mxu0
        %v2522 = vadd.f32 0.0, %v2521
        %v2523 = vpop.f32.mrf.mxu0
        %v2524 = vpop.f32.mrf.mxu0
        %v2525 = vadd.f32 0.0, %v2524
        %v2526 = vpop.f32.mrf.mxu0
        %2527 = vdwg.mxu0
        %2528 = vmax.xlane.f32.xlu0 %v2466
        %v2529 = vpop.xlane.xlu0 %2528
        %2530 = vmax.xlane.f32.xlu0 %v2469
        %v2531 = vpop.xlane.xlu0 %2530
        %2532 = vmax.xlane.f32.xlu0 %v2474
        %v2533 = vpop.xlane.xlu0 %2532
        %2534 = vmax.xlane.f32.xlu0 %v2477
        %v2535 = vpop.xlane.xlu0 %2534
        %2536 = vmax.xlane.f32.xlu0 %v2482
        %v2537 = vpop.xlane.xlu0 %2536
        %2538 = vmax.xlane.f32.xlu0 %v2485
        %v2539 = vpop.xlane.xlu0 %2538
        %2540 = vmax.xlane.f32.xlu0 %v2490
        %v2541 = vpop.xlane.xlu0 %2540
        %2542 = vmax.xlane.f32.xlu0 %v2493
        %v2543 = vpop.xlane.xlu0 %2542
        %2544 = vmax.xlane.f32.xlu0 %v2498
        %v2545 = vpop.xlane.xlu0 %2544
        %2546 = vmax.xlane.f32.xlu0 %v2501
        %v2547 = vpop.xlane.xlu0 %2546
        %2548 = vmax.xlane.f32.xlu0 %v2506
        %v2549 = vpop.xlane.xlu0 %2548
        %2550 = vmax.xlane.f32.xlu0 %v2509
        %v2551 = vpop.xlane.xlu0 %2550
        %2552 = vmax.xlane.f32.xlu0 %v2514
        %v2553 = vpop.xlane.xlu0 %2552
        %2554 = vmax.xlane.f32.xlu0 %v2517
        %v2555 = vpop.xlane.xlu0 %2554
        %2556 = vmax.xlane.f32.xlu0 %v2522
        %v2557 = vpop.xlane.xlu0 %2556
        %2558 = vmax.xlane.f32.xlu0 %v2525
        %v2559 = vpop.xlane.xlu0 %2558
        %v2560 = vsub.f32 %v2466, %v2529
        %v2561 = vsub.f32 %v2469, %v2531
        %v2562 = vsub.f32 %v2474, %v2533
        %v2563 = vsub.f32 %v2477, %v2535
        %v2564 = vsub.f32 %v2482, %v2537
        %v2565 = vsub.f32 %v2485, %v2539
        %v2566 = vsub.f32 %v2490, %v2541
        %v2567 = vsub.f32 %v2493, %v2543
        %v2568 = vsub.f32 %v2498, %v2545
        %v2569 = vsub.f32 %v2501, %v2547
        %v2570 = vsub.f32 %v2506, %v2549
        %v2571 = vsub.f32 %v2509, %v2551
        %v2572 = vsub.f32 %v2514, %v2553
        %v2573 = vsub.f32 %v2517, %v2555
        %v2574 = vsub.f32 %v2522, %v2557
        %v2575 = vsub.f32 %v2525, %v2559
        %v2576 = vmul.f32 %v2560, 1.442695
        %v2577 = vpow.pop %v2576
        %v2578 = vmul.f32 %v2561, 1.442695
        %v2579 = vpow.pop %v2578
        %v2580 = vmul.f32 %v2562, 1.442695
        %v2581 = vpow.pop %v2580
        %v2582 = vmul.f32 %v2563, 1.442695
        %v2583 = vpow.pop %v2582
        %v2584 = vmul.f32 %v2564, 1.442695
        %v2585 = vpow.pop %v2584
        %v2586 = vmul.f32 %v2565, 1.442695
        %v2587 = vpow.pop %v2586
        %v2588 = vmul.f32 %v2566, 1.442695
        %v2589 = vpow.pop %v2588
        %v2590 = vmul.f32 %v2567, 1.442695
        %v2591 = vpow.pop %v2590
        %v2592 = vmul.f32 %v2568, 1.442695
        %v2593 = vpow.pop %v2592
        %v2594 = vmul.f32 %v2569, 1.442695
        %v2595 = vpow.pop %v2594
        %v2596 = vmul.f32 %v2570, 1.442695
        %v2597 = vpow.pop %v2596
        %v2598 = vmul.f32 %v2571, 1.442695
        %v2599 = vpow.pop %v2598
        %v2600 = vmul.f32 %v2572, 1.442695
        %v2601 = vpow.pop %v2600
        %v2602 = vmul.f32 %v2573, 1.442695
        %v2603 = vpow.pop %v2602
        %v2604 = vmul.f32 %v2574, 1.442695
        %v2605 = vpow.pop %v2604
        %v2606 = vmul.f32 %v2575, 1.442695
        %v2607 = vpow.pop %v2606
        %2608 = vadd.xlane.f32.xlu0 %v2577
        %v2609 = vpop.xlane.xlu0 %2608
        %2610 = vadd.xlane.f32.xlu0 %v2579
        %v2611 = vpop.xlane.xlu0 %2610
        %2612 = vadd.xlane.f32.xlu0 %v2581
        %v2613 = vpop.xlane.xlu0 %2612
        %2614 = vadd.xlane.f32.xlu0 %v2583
        %v2615 = vpop.xlane.xlu0 %2614
        %2616 = vadd.xlane.f32.xlu0 %v2585
        %v2617 = vpop.xlane.xlu0 %2616
        %2618 = vadd.xlane.f32.xlu0 %v2587
        %v2619 = vpop.xlane.xlu0 %2618
        %2620 = vadd.xlane.f32.xlu0 %v2589
        %v2621 = vpop.xlane.xlu0 %2620
        %2622 = vadd.xlane.f32.xlu0 %v2591
        %v2623 = vpop.xlane.xlu0 %2622
        %2624 = vadd.xlane.f32.xlu0 %v2593
        %v2625 = vpop.xlane.xlu0 %2624
        %2626 = vadd.xlane.f32.xlu0 %v2595
        %v2627 = vpop.xlane.xlu0 %2626
        %2628 = vadd.xlane.f32.xlu0 %v2597
        %v2629 = vpop.xlane.xlu0 %2628
        %2630 = vadd.xlane.f32.xlu0 %v2599
        %v2631 = vpop.xlane.xlu0 %2630
        %2632 = vadd.xlane.f32.xlu0 %v2601
        %v2633 = vpop.xlane.xlu0 %2632
        %2634 = vadd.xlane.f32.xlu0 %v2603
        %v2635 = vpop.xlane.xlu0 %2634
        %2636 = vadd.xlane.f32.xlu0 %v2605
        %v2637 = vpop.xlane.xlu0 %2636
        %2638 = vadd.xlane.f32.xlu0 %v2607
        %v2639 = vpop.xlane.xlu0 %2638
        %v2640 = vrcp.pop %v2609
        %v2641 = vrcp.pop %v2611
        %v2642 = vrcp.pop %v2613
        %v2643 = vrcp.pop %v2615
        %v2644 = vrcp.pop %v2617
        %v2645 = vrcp.pop %v2619
        %v2646 = vrcp.pop %v2621
        %v2647 = vrcp.pop %v2623
        %v2648 = vrcp.pop %v2625
        %v2649 = vrcp.pop %v2627
        %v2650 = vrcp.pop %v2629
        %v2651 = vrcp.pop %v2631
        %v2652 = vrcp.pop %v2633
        %v2653 = vrcp.pop %v2635
        %v2654 = vrcp.pop %v2637
        %v2655 = vrcp.pop %v2639
        %v2656 = vmul.f32 %v2577, %v2640
        %v2657 = vmul.f32 %v2579, %v2641
        %v2658 = vmul.f32 %v2581, %v2642
        %v2659 = vmul.f32 %v2583, %v2643
        %v2660 = vmul.f32 %v2585, %v2644
        %v2661 = vmul.f32 %v2587, %v2645
        %v2662 = vmul.f32 %v2589, %v2646
        %v2663 = vmul.f32 %v2591, %v2647
        %v2664 = vmul.f32 %v2593, %v2648
        %v2665 = vmul.f32 %v2595, %v2649
        %v2666 = vmul.f32 %v2597, %v2650
        %v2667 = vmul.f32 %v2599, %v2651
        %v2668 = vmul.f32 %v2601, %v2652
        %v2669 = vmul.f32 %v2603, %v2653
        %v2670 = vmul.f32 %v2605, %v2654
        %v2671 = vmul.f32 %v2607, %v2655
        %v2672 = vpack.c.bf16 %v2023, %v2022
        %v2673 = vpack.c.bf16 %v2025, %v2024
        %v2674 = vpack.c.bf16 %v2027, %v2026
        %v2675 = vpack.c.bf16 %v2029, %v2028
        %v2676 = vpack.c.bf16 %v2031, %v2030
        %v2677 = vpack.c.bf16 %v2033, %v2032
        %v2678 = vpack.c.bf16 %v2035, %v2034
        %v2679 = vpack.c.bf16 %v2037, %v2036
        %v2680 = vpack.c.bf16 %v2344, %v2343
        %v2681 = vpack.c.bf16 %v2346, %v2345
        %v2682 = vpack.c.bf16 %v2348, %v2347
        %v2683 = vpack.c.bf16 %v2350, %v2349
        %v2684 = vpack.c.bf16 %v2352, %v2351
        %v2685 = vpack.c.bf16 %v2354, %v2353
        %v2686 = vpack.c.bf16 %v2356, %v2355
        %v2687 = vpack.c.bf16 %v2358, %v2357
        %v2688 = vpack.c.bf16 %v2657, %v2656
        %v2689 = vpack.c.bf16 %v2659, %v2658
        %v2690 = vpack.c.bf16 %v2661, %v2660
        %v2691 = vpack.c.bf16 %v2663, %v2662
        %v2692 = vpack.c.bf16 %v2665, %v2664
        %v2693 = vpack.c.bf16 %v2667, %v2666
        %v2694 = vpack.c.bf16 %v2669, %v2668
        %v2695 = vpack.c.bf16 %v2671, %v2670
        %2696 = vrot.lane.b32.xlu0 %v1652, 64
        %v2697 = vpop.permute.xlu0 %2696
        %2698 = vrot.lane.b32.xlu0 %v1654, 64
        %v2699 = vpop.permute.xlu0 %2698
        %2700 = vrot.lane.b32.xlu0 %v1656, 64
        %v2701 = vpop.permute.xlu0 %2700
        %2702 = vrot.lane.b32.xlu0 %v1658, 64
        %v2703 = vpop.permute.xlu0 %2702
        %2704 = vrot.lane.b32.xlu0 %v1660, 64
        %v2705 = vpop.permute.xlu0 %2704
        %2706 = vrot.lane.b32.xlu0 %v1662, 64
        %v2707 = vpop.permute.xlu0 %2706
        %2708 = vrot.lane.b32.xlu0 %v1664, 64
        %v2709 = vpop.permute.xlu0 %2708
        %2710 = vrot.lane.b32.xlu0 %v1666, 64
        %v2711 = vpop.permute.xlu0 %2710
        %2720 = vmatprep.subr.bf16.mxu0 0
        %2721 = vmatpush1.bf16.msra.mxu0 %v2711
        %2722 = vmatprep.subr.bf16.mxu0 0
        %2723 = vmatpush1.bf16.msra.mxu0 %v2709
        %2724 = vmatprep.subr.bf16.mxu0 0
        %2725 = vmatpush1.bf16.msra.mxu0 %v2707
        %2726 = vmatprep.subr.bf16.mxu0 0
        %2727 = vmatpush1.bf16.msra.mxu0 %v2705
        %2728 = vmatprep.subr.bf16.mxu0 0
        %2729 = vmatpush1.bf16.msra.mxu0 %v2703
        %2730 = vmatprep.subr.bf16.mxu0 0
        %2731 = vmatpush1.bf16.msra.mxu0 %v2701
        %2732 = vmatprep.subr.bf16.mxu0 0
        %2733 = vmatpush1.bf16.msra.mxu0 %v2699
        %2734 = vmatprep.subr.bf16.mxu0 0
        %2735 = vmatpush1.bf16.msra.mxu0 %v2697
        %2736 = vmatprep.subr.bf16.mxu0 0
        %2737 = vmatpush2.bf16.msra.mxu0 0
        %2738 = vmatprep.subr.bf16.mxu0 0
        %2739 = vmatpush2.bf16.msra.mxu0 0
        %2740 = vmatprep.subr.bf16.mxu0 0
        %2741 = vmatpush2.bf16.msra.mxu0 0
        %2742 = vmatprep.subr.bf16.mxu0 0
        %2743 = vmatpush2.bf16.msra.mxu0 0
        %2744 = vmatprep.subr.bf16.mxu0 0
        %2745 = vmatpush2.bf16.msra.mxu0 0
        %2746 = vmatprep.subr.bf16.mxu0 0
        %2747 = vmatpush2.bf16.msra.mxu0 0
        %2748 = vmatprep.subr.bf16.mxu0 0
        %2749 = vmatpush2.bf16.msra.mxu0 0
        %2750 = vmatprep.subr.bf16.mxu0 0
        %2751 = vmatpush2.bf16.msra.mxu0 0
        %2752 = vmatprep.mubr.bf16.mxu0 0
        %2753 = vmatmul.mubr.bf16.gmra.mxu0 %v2688
        %v2754 = vpop.f32.mrf.mxu0
        %v2755 = vadd.f32 0.0, %v2754
        %v2756 = vpop.f32.mrf.mxu0
        %v2757 = vpop.f32.mrf.mxu0
        %v2758 = vadd.f32 0.0, %v2757
        %v2759 = vpop.f32.mrf.mxu0
        %2760 = vmatprep.mubr.bf16.mxu0 0
        %2761 = vmatmul.mubr.bf16.gmra.mxu0 %v2689
        %v2762 = vpop.f32.mrf.mxu0
        %v2763 = vadd.f32 0.0, %v2762
        %v2764 = vpop.f32.mrf.mxu0
        %v2765 = vpop.f32.mrf.mxu0
        %v2766 = vadd.f32 0.0, %v2765
        %v2767 = vpop.f32.mrf.mxu0
        %2768 = vmatprep.mubr.bf16.mxu0 0
        %2769 = vmatmul.mubr.bf16.gmra.mxu0 %v2690
        %v2770 = vpop.f32.mrf.mxu0
        %v2771 = vadd.f32 0.0, %v2770
        %v2772 = vpop.f32.mrf.mxu0
        %v2773 = vpop.f32.mrf.mxu0
        %v2774 = vadd.f32 0.0, %v2773
        %v2775 = vpop.f32.mrf.mxu0
        %2776 = vmatprep.mubr.bf16.mxu0 0
        %2777 = vmatmul.mubr.bf16.gmra.mxu0 %v2691
        %v2778 = vpop.f32.mrf.mxu0
        %v2779 = vadd.f32 0.0, %v2778
        %v2780 = vpop.f32.mrf.mxu0
        %v2781 = vpop.f32.mrf.mxu0
        %v2782 = vadd.f32 0.0, %v2781
        %v2783 = vpop.f32.mrf.mxu0
        %2784 = vmatprep.mubr.bf16.mxu0 0
        %2785 = vmatmul.mubr.bf16.gmra.mxu0 %v2692
        %v2786 = vpop.f32.mrf.mxu0
        %v2787 = vadd.f32 0.0, %v2786
        %v2788 = vpop.f32.mrf.mxu0
        %v2789 = vpop.f32.mrf.mxu0
        %v2790 = vadd.f32 0.0, %v2789
        %v2791 = vpop.f32.mrf.mxu0
        %2792 = vmatprep.mubr.bf16.mxu0 0
        %2793 = vmatmul.mubr.bf16.gmra.mxu0 %v2693
        %v2794 = vpop.f32.mrf.mxu0
        %v2795 = vadd.f32 0.0, %v2794
        %v2796 = vpop.f32.mrf.mxu0
        %v2797 = vpop.f32.mrf.mxu0
        %v2798 = vadd.f32 0.0, %v2797
        %v2799 = vpop.f32.mrf.mxu0
        %2800 = vmatprep.mubr.bf16.mxu0 0
        %2801 = vmatmul.mubr.bf16.gmra.mxu0 %v2694
        %v2802 = vpop.f32.mrf.mxu0
        %v2803 = vadd.f32 0.0, %v2802
        %v2804 = vpop.f32.mrf.mxu0
        %v2805 = vpop.f32.mrf.mxu0
        %v2806 = vadd.f32 0.0, %v2805
        %v2807 = vpop.f32.mrf.mxu0
        %2808 = vmatprep.mubr.bf16.mxu0 0
        %2809 = vmatmul.mubr.bf16.gmra.mxu0 %v2695
        %v2810 = vpop.f32.mrf.mxu0
        %v2811 = vadd.f32 0.0, %v2810
        %v2812 = vpop.f32.mrf.mxu0
        %v2813 = vpop.f32.mrf.mxu0
        %v2814 = vadd.f32 0.0, %v2813
        %v2815 = vpop.f32.mrf.mxu0
        %2816 = vdwg.mxu0
        %2817 = vmatprep.subr.bf16.mxu0 0
        %2818 = vmatpush1.bf16.msra.mxu0 %v1457
        %2819 = vmatprep.subr.bf16.mxu0 0
        %2820 = vmatpush1.bf16.msra.mxu0 %v1454
        %2821 = vmatprep.subr.bf16.mxu0 0
        %2822 = vmatpush1.bf16.msra.mxu0 %v1451
        %2823 = vmatprep.subr.bf16.mxu0 0
        %2824 = vmatpush1.bf16.msra.mxu0 %v1448
        %2825 = vmatprep.subr.bf16.mxu0 0
        %2826 = vmatpush1.bf16.msra.mxu0 %v1445
        %2827 = vmatprep.subr.bf16.mxu0 0
        %2828 = vmatpush1.bf16.msra.mxu0 %v1442
        %2829 = vmatprep.subr.bf16.mxu0 0
        %2830 = vmatpush1.bf16.msra.mxu0 %v1439
        %2831 = vmatprep.subr.bf16.mxu0 0
        %2832 = vmatpush1.bf16.msra.mxu0 %v1436
        %2833 = vmatprep.subr.bf16.mxu0 0
        %2834 = vmatpush2.bf16.msra.mxu0 0
        %2835 = vmatprep.subr.bf16.mxu0 0
        %2836 = vmatpush2.bf16.msra.mxu0 0
        %2837 = vmatprep.subr.bf16.mxu0 0
        %2838 = vmatpush2.bf16.msra.mxu0 0
        %2839 = vmatprep.subr.bf16.mxu0 0
        %2840 = vmatpush2.bf16.msra.mxu0 0
        %2841 = vmatprep.subr.bf16.mxu0 0
        %2842 = vmatpush2.bf16.msra.mxu0 0
        %2843 = vmatprep.subr.bf16.mxu0 0
        %2844 = vmatpush2.bf16.msra.mxu0 0
        %2845 = vmatprep.subr.bf16.mxu0 0
        %2846 = vmatpush2.bf16.msra.mxu0 0
        %2847 = vmatprep.subr.bf16.mxu0 0
        %2848 = vmatpush2.bf16.msra.mxu0 0
        %2849 = vmatprep.mubr.bf16.mxu0 0
        %2850 = vmatmul.mubr.bf16.gmra.mxu0 %v2672
        %v2851 = vpop.f32.mrf.mxu0
        %v2852 = vadd.f32 0.0, %v2851
        %v2853 = vpop.f32.mrf.mxu0
        %v2854 = vpop.f32.mrf.mxu0
        %v2855 = vadd.f32 0.0, %v2854
        %v2856 = vpop.f32.mrf.mxu0
        %2857 = vmatprep.mubr.bf16.mxu0 0
        %2858 = vmatmul.mubr.bf16.gmra.mxu0 %v2673
        %v2859 = vpop.f32.mrf.mxu0
        %v2860 = vadd.f32 0.0, %v2859
        %v2861 = vpop.f32.mrf.mxu0
        %v2862 = vpop.f32.mrf.mxu0
        %v2863 = vadd.f32 0.0, %v2862
        %v2864 = vpop.f32.mrf.mxu0
        %2865 = vmatprep.mubr.bf16.mxu0 0
        %2866 = vmatmul.mubr.bf16.gmra.mxu0 %v2674
        %v2867 = vpop.f32.mrf.mxu0
        %v2868 = vadd.f32 0.0, %v2867
        %v2869 = vpop.f32.mrf.mxu0
        %v2870 = vpop.f32.mrf.mxu0
        %v2871 = vadd.f32 0.0, %v2870
        %v2872 = vpop.f32.mrf.mxu0
        %2873 = vmatprep.mubr.bf16.mxu0 0
        %2874 = vmatmul.mubr.bf16.gmra.mxu0 %v2675
        %v2875 = vpop.f32.mrf.mxu0
        %v2876 = vadd.f32 0.0, %v2875
        %v2877 = vpop.f32.mrf.mxu0
        %v2878 = vpop.f32.mrf.mxu0
        %v2879 = vadd.f32 0.0, %v2878
        %v2880 = vpop.f32.mrf.mxu0
        %2881 = vmatprep.mubr.bf16.mxu0 0
        %2882 = vmatmul.mubr.bf16.gmra.mxu0 %v2676
        %v2883 = vpop.f32.mrf.mxu0
        %v2884 = vadd.f32 0.0, %v2883
        %v2885 = vpop.f32.mrf.mxu0
        %v2886 = vpop.f32.mrf.mxu0
        %v2887 = vadd.f32 0.0, %v2886
        %v2888 = vpop.f32.mrf.mxu0
        %2889 = vmatprep.mubr.bf16.mxu0 0
        %2890 = vmatmul.mubr.bf16.gmra.mxu0 %v2677
        %v2891 = vpop.f32.mrf.mxu0
        %v2892 = vadd.f32 0.0, %v2891
        %v2893 = vpop.f32.mrf.mxu0
        %v2894 = vpop.f32.mrf.mxu0
        %v2895 = vadd.f32 0.0, %v2894
        %v2896 = vpop.f32.mrf.mxu0
        %2897 = vmatprep.mubr.bf16.mxu0 0
        %2898 = vmatmul.mubr.bf16.gmra.mxu0 %v2678
        %v2899 = vpop.f32.mrf.mxu0
        %v2900 = vadd.f32 0.0, %v2899
        %v2901 = vpop.f32.mrf.mxu0
        %v2902 = vpop.f32.mrf.mxu0
        %v2903 = vadd.f32 0.0, %v2902
        %v2904 = vpop.f32.mrf.mxu0
        %2905 = vmatprep.mubr.bf16.mxu0 0
        %2906 = vmatmul.mubr.bf16.gmra.mxu0 %v2679
        %v2907 = vpop.f32.mrf.mxu0
        %v2908 = vadd.f32 0.0, %v2907
        %v2909 = vpop.f32.mrf.mxu0
        %v2910 = vpop.f32.mrf.mxu0
        %v2911 = vadd.f32 0.0, %v2910
        %v2912 = vpop.f32.mrf.mxu0
        %2913 = vdwg.mxu0
        %2914 = vmatprep.subr.bf16.mxu0 0
        %2915 = vmatpush1.bf16.msra.mxu0 %v1457
        %2916 = vmatprep.subr.bf16.mxu0 0
        %2917 = vmatpush1.bf16.msra.mxu0 %v1454
        %2918 = vmatprep.subr.bf16.mxu0 0
        %2919 = vmatpush1.bf16.msra.mxu0 %v1451
        %2920 = vmatprep.subr.bf16.mxu0 0
        %2921 = vmatpush1.bf16.msra.mxu0 %v1448
        %2922 = vmatprep.subr.bf16.mxu0 0
        %2923 = vmatpush1.bf16.msra.mxu0 %v1445
        %2924 = vmatprep.subr.bf16.mxu0 0
        %2925 = vmatpush1.bf16.msra.mxu0 %v1442
        %2926 = vmatprep.subr.bf16.mxu0 0
        %2927 = vmatpush1.bf16.msra.mxu0 %v1439
        %2928 = vmatprep.subr.bf16.mxu0 0
        %2929 = vmatpush1.bf16.msra.mxu0 %v1436
        %2930 = vmatprep.subr.bf16.mxu0 0
        %2931 = vmatpush2.bf16.msra.mxu0 0
        %2932 = vmatprep.subr.bf16.mxu0 0
        %2933 = vmatpush2.bf16.msra.mxu0 0
        %2934 = vmatprep.subr.bf16.mxu0 0
        %2935 = vmatpush2.bf16.msra.mxu0 0
        %2936 = vmatprep.subr.bf16.mxu0 0
        %2937 = vmatpush2.bf16.msra.mxu0 0
        %2938 = vmatprep.subr.bf16.mxu0 0
        %2939 = vmatpush2.bf16.msra.mxu0 0
        %2940 = vmatprep.subr.bf16.mxu0 0
        %2941 = vmatpush2.bf16.msra.mxu0 0
        %2942 = vmatprep.subr.bf16.mxu0 0
        %2943 = vmatpush2.bf16.msra.mxu0 0
        %2944 = vmatprep.subr.bf16.mxu0 0
        %2945 = vmatpush2.bf16.msra.mxu0 0
        %2946 = vmatprep.mubr.bf16.mxu0 0
        %2947 = vmatmul.mubr.bf16.gmra.mxu0 %v2680
        %v2948 = vpop.f32.mrf.mxu0
        %v2949 = vadd.f32 0.0, %v2948
        %v2950 = vpop.f32.mrf.mxu0
        %v2951 = vpop.f32.mrf.mxu0
        %v2952 = vadd.f32 0.0, %v2951
        %v2953 = vpop.f32.mrf.mxu0
        %2954 = vmatprep.mubr.bf16.mxu0 0
        %2955 = vmatmul.mubr.bf16.gmra.mxu0 %v2681
        %v2956 = vpop.f32.mrf.mxu0
        %v2957 = vadd.f32 0.0, %v2956
        %v2958 = vpop.f32.mrf.mxu0
        %v2959 = vpop.f32.mrf.mxu0
        %v2960 = vadd.f32 0.0, %v2959
        %v2961 = vpop.f32.mrf.mxu0
        %2962 = vmatprep.mubr.bf16.mxu0 0
        %2963 = vmatmul.mubr.bf16.gmra.mxu0 %v2682
        %v2964 = vpop.f32.mrf.mxu0
        %v2965 = vadd.f32 0.0, %v2964
        %v2966 = vpop.f32.mrf.mxu0
        %v2967 = vpop.f32.mrf.mxu0
        %v2968 = vadd.f32 0.0, %v2967
        %v2969 = vpop.f32.mrf.mxu0
        %2970 = vmatprep.mubr.bf16.mxu0 0
        %2971 = vmatmul.mubr.bf16.gmra.mxu0 %v2683
        %v2972 = vpop.f32.mrf.mxu0
        %v2973 = vadd.f32 0.0, %v2972
        %v2974 = vpop.f32.mrf.mxu0
        %v2975 = vpop.f32.mrf.mxu0
        %v2976 = vadd.f32 0.0, %v2975
        %v2977 = vpop.f32.mrf.mxu0
        %2978 = vmatprep.mubr.bf16.mxu0 0
        %2979 = vmatmul.mubr.bf16.gmra.mxu0 %v2684
        %v2980 = vpop.f32.mrf.mxu0
        %v2981 = vadd.f32 0.0, %v2980
        %v2982 = vpop.f32.mrf.mxu0
        %v2983 = vpop.f32.mrf.mxu0
        %v2984 = vadd.f32 0.0, %v2983
        %v2985 = vpop.f32.mrf.mxu0
        %2986 = vmatprep.mubr.bf16.mxu0 0
        %2987 = vmatmul.mubr.bf16.gmra.mxu0 %v2685
        %v2988 = vpop.f32.mrf.mxu0
        %v2989 = vadd.f32 0.0, %v2988
        %v2990 = vpop.f32.mrf.mxu0
        %v2991 = vpop.f32.mrf.mxu0
        %v2992 = vadd.f32 0.0, %v2991
        %v2993 = vpop.f32.mrf.mxu0
        %2994 = vmatprep.mubr.bf16.mxu0 0
        %2995 = vmatmul.mubr.bf16.gmra.mxu0 %v2686
        %v2996 = vpop.f32.mrf.mxu0
        %v2997 = vadd.f32 0.0, %v2996
        %v2998 = vpop.f32.mrf.mxu0
        %v2999 = vpop.f32.mrf.mxu0
        %v3000 = vadd.f32 0.0, %v2999
        %v3001 = vpop.f32.mrf.mxu0
        %3002 = vmatprep.mubr.bf16.mxu0 0
        %3003 = vmatmul.mubr.bf16.gmra.mxu0 %v2687
        %v3004 = vpop.f32.mrf.mxu0
        %v3005 = vadd.f32 0.0, %v3004
        %v3006 = vpop.f32.mrf.mxu0
        %v3007 = vpop.f32.mrf.mxu0
        %v3008 = vadd.f32 0.0, %v3007
        %v3009 = vpop.f32.mrf.mxu0
        %3010 = vdwg.mxu0
        %3011 = vadd.xlane.f32.xlu0 %v2022
        %v3012 = vpop.xlane.xlu0 %3011
        %3013 = vadd.xlane.f32.xlu0 %v2023
        %v3014 = vpop.xlane.xlu0 %3013
        %3015 = vadd.xlane.f32.xlu0 %v2024
        %v3016 = vpop.xlane.xlu0 %3015
        %3017 = vadd.xlane.f32.xlu0 %v2025
        %v3018 = vpop.xlane.xlu0 %3017
        %3019 = vadd.xlane.f32.xlu0 %v2026
        %v3020 = vpop.xlane.xlu0 %3019
        %3021 = vadd.xlane.f32.xlu0 %v2027
        %v3022 = vpop.xlane.xlu0 %3021
        %3023 = vadd.xlane.f32.xlu0 %v2028
        %v3024 = vpop.xlane.xlu0 %3023
        %3025 = vadd.xlane.f32.xlu0 %v2029
        %v3026 = vpop.xlane.xlu0 %3025
        %3027 = vadd.xlane.f32.xlu0 %v2030
        %v3028 = vpop.xlane.xlu0 %3027
        %3029 = vadd.xlane.f32.xlu0 %v2031
        %v3030 = vpop.xlane.xlu0 %3029
        %3031 = vadd.xlane.f32.xlu0 %v2032
        %v3032 = vpop.xlane.xlu0 %3031
        %3033 = vadd.xlane.f32.xlu0 %v2033
        %v3034 = vpop.xlane.xlu0 %3033
        %3035 = vadd.xlane.f32.xlu0 %v2034
        %v3036 = vpop.xlane.xlu0 %3035
        %3037 = vadd.xlane.f32.xlu0 %v2035
        %v3038 = vpop.xlane.xlu0 %3037
        %3039 = vadd.xlane.f32.xlu0 %v2036
        %v3040 = vpop.xlane.xlu0 %3039
        %3041 = vadd.xlane.f32.xlu0 %v2037
        %v3042 = vpop.xlane.xlu0 %3041
        %v3043 = vrsqrt.pop %v3012
        %v3044 = vrsqrt.pop %v3014
        %v3045 = vrsqrt.pop %v3016
        %v3046 = vrsqrt.pop %v3018
        %v3047 = vrsqrt.pop %v3020
        %v3048 = vrsqrt.pop %v3022
        %v3049 = vrsqrt.pop %v3024
        %v3050 = vrsqrt.pop %v3026
        %v3051 = vrsqrt.pop %v3028
        %v3052 = vrsqrt.pop %v3030
        %v3053 = vrsqrt.pop %v3032
        %v3054 = vrsqrt.pop %v3034
        %v3055 = vrsqrt.pop %v3036
        %v3056 = vrsqrt.pop %v3038
        %v3057 = vrsqrt.pop %v3040
        %v3058 = vrsqrt.pop %v3042
        %3059 = vadd.xlane.f32.xlu0 %v2343
        %v3060 = vpop.xlane.xlu0 %3059
        %3061 = vadd.xlane.f32.xlu0 %v2344
        %v3062 = vpop.xlane.xlu0 %3061
        %3063 = vadd.xlane.f32.xlu0 %v2345
        %v3064 = vpop.xlane.xlu0 %3063
        %3065 = vadd.xlane.f32.xlu0 %v2346
        %v3066 = vpop.xlane.xlu0 %3065
        %3067 = vadd.xlane.f32.xlu0 %v2347
        %v3068 = vpop.xlane.xlu0 %3067
        %3069 = vadd.xlane.f32.xlu0 %v2348
        %v3070 = vpop.xlane.xlu0 %3069
        %3071 = vadd.xlane.f32.xlu0 %v2349
        %v3072 = vpop.xlane.xlu0 %3071
        %3073 = vadd.xlane.f32.xlu0 %v2350
        %v3074 = vpop.xlane.xlu0 %3073
        %3075 = vadd.xlane.f32.xlu0 %v2351
        %v3076 = vpop.xlane.xlu0 %3075
        %3077 = vadd.xlane.f32.xlu0 %v2352
        %v3078 = vpop.xlane.xlu0 %3077
        %3079 = vadd.xlane.f32.xlu0 %v2353
        %v3080 = vpop.xlane.xlu0 %3079
        %3081 = vadd.xlane.f32.xlu0 %v2354
        %v3082 = vpop.xlane.xlu0 %3081
        %3083 = vadd.xlane.f32.xlu0 %v2355
        %v3084 = vpop.xlane.xlu0 %3083
        %3085 = vadd.xlane.f32.xlu0 %v2356
        %v3086 = vpop.xlane.xlu0 %3085
        %3087 = vadd.xlane.f32.xlu0 %v2357
        %v3088 = vpop.xlane.xlu0 %3087
        %3089 = vadd.xlane.f32.xlu0 %v2358
        %v3090 = vpop.xlane.xlu0 %3089
        %v3091 = vrsqrt.pop %v3060
        %v3092 = vrsqrt.pop %v3062
        %v3093 = vrsqrt.pop %v3064
        %v3094 = vrsqrt.pop %v3066
        %v3095 = vrsqrt.pop %v3068
        %v3096 = vrsqrt.pop %v3070
        %v3097 = vrsqrt.pop %v3072
        %v3098 = vrsqrt.pop %v3074
        %v3099 = vrsqrt.pop %v3076
        %v3100 = vrsqrt.pop %v3078
        %v3101 = vrsqrt.pop %v3080
        %v3102 = vrsqrt.pop %v3082
        %v3103 = vrsqrt.pop %v3084
        %v3104 = vrsqrt.pop %v3086
        %v3105 = vrsqrt.pop %v3088
        %v3106 = vrsqrt.pop %v3090
        %v3107 = vmul.f32 %v3043, %v3091
        %v3108 = vmul.f32 %v3044, %v3092
        %v3109 = vmul.f32 %v3045, %v3093
        %v3110 = vmul.f32 %v3046, %v3094
        %v3111 = vmul.f32 %v3047, %v3095
        %v3112 = vmul.f32 %v3048, %v3096
        %v3113 = vmul.f32 %v3049, %v3097
        %v3114 = vmul.f32 %v3050, %v3098
        %v3115 = vmul.f32 %v3051, %v3099
        %v3116 = vmul.f32 %v3052, %v3100
        %v3117 = vmul.f32 %v3053, %v3101
        %v3118 = vmul.f32 %v3054, %v3102
        %v3119 = vmul.f32 %v3055, %v3103
        %v3120 = vmul.f32 %v3056, %v3104
        %v3121 = vmul.f32 %v3057, %v3105
        %v3122 = vmul.f32 %v3058, %v3106
        %v3123 = vmul.f32 %v2022, %v3107
        %v3124 = vmul.f32 %v2023, %v3108
        %v3125 = vmul.f32 %v2024, %v3109
        %v3126 = vmul.f32 %v2025, %v3110
        %v3127 = vmul.f32 %v2026, %v3111
        %v3128 = vmul.f32 %v2027, %v3112
        %v3129 = vmul.f32 %v2028, %v3113
        %v3130 = vmul.f32 %v2029, %v3114
        %v3131 = vmul.f32 %v2030, %v3115
        %v3132 = vmul.f32 %v2031, %v3116
        %v3133 = vmul.f32 %v2032, %v3117
        %v3134 = vmul.f32 %v2033, %v3118
        %v3135 = vmul.f32 %v2034, %v3119
        %v3136 = vmul.f32 %v2035, %v3120
        %v3137 = vmul.f32 %v2036, %v3121
        %v3138 = vmul.f32 %v2037, %v3122
        %v3139 = vpack.c.bf16 %v3124, %v3123
        %v3140 = vpack.c.bf16 %v3126, %v3125
        %v3141 = vpack.c.bf16 %v3128, %v3127
        %v3142 = vpack.c.bf16 %v3130, %v3129
        %v3143 = vpack.c.bf16 %v3132, %v3131
        %v3144 = vpack.c.bf16 %v3134, %v3133
        %v3145 = vpack.c.bf16 %v3136, %v3135
        %v3146 = vpack.c.bf16 %v3138, %v3137
        %3147 = vxpose.xlu0.c.b16.start [1/8] %v3139, 128
        %3148 = vxpose.xlu0.c.b16.cont [2/8] %v3140, 128
        %3149 = vxpose.xlu0.c.b16.cont [3/8] %v3141, 128
        %3150 = vxpose.xlu0.c.b16.cont [4/8] %v3142, 128
        %3151 = vxpose.xlu0.c.b16.cont [5/8] %v3143, 128
        %3152 = vxpose.xlu0.c.b16.cont [6/8] %v3144, 128
        %3153 = vxpose.xlu0.c.b16.cont [7/8] %v3145, 128
        %3154 = vxpose.xlu0.c.b16.end [8/8] %v3146, 128
        %v3155 = vpop.trf.xlu0
        %v3156 = vpop.trf.xlu0
        %v3157 = vpop.trf.xlu0
        %v3158 = vpop.trf.xlu0
        %v3159 = vpop.trf.xlu0
        %v3160 = vpop.trf.xlu0
        %v3161 = vpop.trf.xlu0
        %v3162 = vpop.trf.xlu0
        %3163 = vmatprep.subr.bf16.mxu0 0
        %3164 = vmatpush1.bf16.msra.mxu0 %v2687
        %3165 = vmatprep.subr.bf16.mxu0 0
        %3166 = vmatpush1.bf16.msra.mxu0 %v2686
        %3167 = vmatprep.subr.bf16.mxu0 0
        %3168 = vmatpush1.bf16.msra.mxu0 %v2685
        %3169 = vmatprep.subr.bf16.mxu0 0
        %3170 = vmatpush1.bf16.msra.mxu0 %v2684
        %3171 = vmatprep.subr.bf16.mxu0 0
        %3172 = vmatpush1.bf16.msra.mxu0 %v2683
        %3173 = vmatprep.subr.bf16.mxu0 0
        %3174 = vmatpush1.bf16.msra.mxu0 %v2682
        %3175 = vmatprep.subr.bf16.mxu0 0
        %3176 = vmatpush1.bf16.msra.mxu0 %v2681
        %3177 = vmatprep.subr.bf16.mxu0 0
        %3178 = vmatpush1.bf16.msra.mxu0 %v2680
        %3179 = vmatprep.subr.bf16.mxu0 0
        %3180 = vmatpush2.bf16.msra.mxu0 0
        %3181 = vmatprep.subr.bf16.mxu0 0
        %3182 = vmatpush2.bf16.msra.mxu0 0
        %3183 = vmatprep.subr.bf16.mxu0 0
        %3184 = vmatpush2.bf16.msra.mxu0 0
        %3185 = vmatprep.subr.bf16.mxu0 0
        %3186 = vmatpush2.bf16.msra.mxu0 0
        %3187 = vmatprep.subr.bf16.mxu0 0
        %3188 = vmatpush2.bf16.msra.mxu0 0
        %3189 = vmatprep.subr.bf16.mxu0 0
        %3190 = vmatpush2.bf16.msra.mxu0 0
        %3191 = vmatprep.subr.bf16.mxu0 0
        %3192 = vmatpush2.bf16.msra.mxu0 0
        %3193 = vmatprep.subr.bf16.mxu0 0
        %3194 = vmatpush2.bf16.msra.mxu0 0
        %3195 = vmatprep.mubr.bf16.mxu0 0
        %3196 = vmatmul.mubr.bf16.gmra.mxu0 %v3155
        %v3197 = vpop.f32.mrf.mxu0
        %v3198 = vadd.f32 0.0, %v3197
        %v3199 = vpop.f32.mrf.mxu0
        %v3200 = vpop.f32.mrf.mxu0
        %v3201 = vadd.f32 0.0, %v3200
        %v3202 = vpop.f32.mrf.mxu0
        %3203 = vmatprep.mubr.bf16.mxu0 0
        %3204 = vmatmul.mubr.bf16.gmra.mxu0 %v3156
        %v3205 = vpop.f32.mrf.mxu0
        %v3206 = vadd.f32 0.0, %v3205
        %v3207 = vpop.f32.mrf.mxu0
        %v3208 = vpop.f32.mrf.mxu0
        %v3209 = vadd.f32 0.0, %v3208
        %v3210 = vpop.f32.mrf.mxu0
        %3211 = vmatprep.mubr.bf16.mxu0 0
        %3212 = vmatmul.mubr.bf16.gmra.mxu0 %v3157
        %v3213 = vpop.f32.mrf.mxu0
        %v3214 = vadd.f32 0.0, %v3213
        %v3215 = vpop.f32.mrf.mxu0
        %v3216 = vpop.f32.mrf.mxu0
        %v3217 = vadd.f32 0.0, %v3216
        %v3218 = vpop.f32.mrf.mxu0
        %3219 = vmatprep.mubr.bf16.mxu0 0
        %3220 = vmatmul.mubr.bf16.gmra.mxu0 %v3158
        %v3221 = vpop.f32.mrf.mxu0
        %v3222 = vadd.f32 0.0, %v3221
        %v3223 = vpop.f32.mrf.mxu0
        %v3224 = vpop.f32.mrf.mxu0
        %v3225 = vadd.f32 0.0, %v3224
        %v3226 = vpop.f32.mrf.mxu0
        %3227 = vmatprep.mubr.bf16.mxu0 0
        %3228 = vmatmul.mubr.bf16.gmra.mxu0 %v3159
        %v3229 = vpop.f32.mrf.mxu0
        %v3230 = vadd.f32 0.0, %v3229
        %v3231 = vpop.f32.mrf.mxu0
        %v3232 = vpop.f32.mrf.mxu0
        %v3233 = vadd.f32 0.0, %v3232
        %v3234 = vpop.f32.mrf.mxu0
        %3235 = vmatprep.mubr.bf16.mxu0 0
        %3236 = vmatmul.mubr.bf16.gmra.mxu0 %v3160
        %v3237 = vpop.f32.mrf.mxu0
        %v3238 = vadd.f32 0.0, %v3237
        %v3239 = vpop.f32.mrf.mxu0
        %v3240 = vpop.f32.mrf.mxu0
        %v3241 = vadd.f32 0.0, %v3240
        %v3242 = vpop.f32.mrf.mxu0
        %3243 = vmatprep.mubr.bf16.mxu0 0
        %3244 = vmatmul.mubr.bf16.gmra.mxu0 %v3161
        %v3245 = vpop.f32.mrf.mxu0
        %v3246 = vadd.f32 0.0, %v3245
        %v3247 = vpop.f32.mrf.mxu0
        %v3248 = vpop.f32.mrf.mxu0
        %v3249 = vadd.f32 0.0, %v3248
        %v3250 = vpop.f32.mrf.mxu0
        %3251 = vmatprep.mubr.bf16.mxu0 0
        %3252 = vmatmul.mubr.bf16.gmra.mxu0 %v3162
        %v3253 = vpop.f32.mrf.mxu0
        %v3254 = vadd.f32 0.0, %v3253
        %v3255 = vpop.f32.mrf.mxu0
        %v3256 = vpop.f32.mrf.mxu0
        %v3257 = vadd.f32 0.0, %v3256
        %v3258 = vpop.f32.mrf.mxu0
        %3259 = vdwg.mxu0
        %v3260 = vpack.c.bf16 %v3201, %v3198
        %v3261 = vpack.c.bf16 %v3209, %v3206
        %v3262 = vpack.c.bf16 %v3217, %v3214
        %v3263 = vpack.c.bf16 %v3225, %v3222
        %v3264 = vpack.c.bf16 %v3233, %v3230
        %v3265 = vpack.c.bf16 %v3241, %v3238
        %v3266 = vpack.c.bf16 %v3249, %v3246
        %v3267 = vpack.c.bf16 %v3257, %v3254
        %v3268 = vunpack.c.l.bf16 %v1436
        %v3269 = vunpack.c.h.bf16 %v1436
        %v3270 = vunpack.c.l.bf16 %v1439
        %v3271 = vunpack.c.h.bf16 %v1439
        %v3272 = vunpack.c.l.bf16 %v1442
        %v3273 = vunpack.c.h.bf16 %v1442
        %v3274 = vunpack.c.l.bf16 %v1445
        %v3275 = vunpack.c.h.bf16 %v1445
        %v3276 = vunpack.c.l.bf16 %v1448
        %v3277 = vunpack.c.h.bf16 %v1448
        %v3278 = vunpack.c.l.bf16 %v1451
        %v3279 = vunpack.c.h.bf16 %v1451
        %v3280 = vunpack.c.l.bf16 %v1454
        %v3281 = vunpack.c.h.bf16 %v1454
        %v3282 = vunpack.c.l.bf16 %v1457
        %v3283 = vunpack.c.h.bf16 %v1457
        %v3284 = vmul.f32 %v3091, %v3268
        %v3285 = vmul.f32 %v3092, %v3269
        %v3286 = vmul.f32 %v3093, %v3270
        %v3287 = vmul.f32 %v3094, %v3271
        %v3288 = vmul.f32 %v3095, %v3272
        %v3289 = vmul.f32 %v3096, %v3273
        %v3290 = vmul.f32 %v3097, %v3274
        %v3291 = vmul.f32 %v3098, %v3275
        %v3292 = vmul.f32 %v3099, %v3276
        %v3293 = vmul.f32 %v3100, %v3277
        %v3294 = vmul.f32 %v3101, %v3278
        %v3295 = vmul.f32 %v3102, %v3279
        %v3296 = vmul.f32 %v3103, %v3280
        %v3297 = vmul.f32 %v3104, %v3281
        %v3298 = vmul.f32 %v3105, %v3282
        %v3299 = vmul.f32 %v3106, %v3283
        %v3300 = vpack.c.bf16 %v3285, %v3284
        %v3301 = vpack.c.bf16 %v3287, %v3286
        %v3302 = vpack.c.bf16 %v3289, %v3288
        %v3303 = vpack.c.bf16 %v3291, %v3290
        %v3304 = vpack.c.bf16 %v3293, %v3292
        %v3305 = vpack.c.bf16 %v3295, %v3294
        %v3306 = vpack.c.bf16 %v3297, %v3296
        %v3307 = vpack.c.bf16 %v3299, %v3298
        %3316 = vrot.lane.b32.xlu0 %v3300, 96
        %v3317 = vpop.permute.xlu0 %3316
        %3318 = vrot.lane.b32.xlu0 %v3301, 96
        %v3319 = vpop.permute.xlu0 %3318
        %3320 = vrot.lane.b32.xlu0 %v3302, 96
        %v3321 = vpop.permute.xlu0 %3320
        %3322 = vrot.lane.b32.xlu0 %v3303, 96
        %v3323 = vpop.permute.xlu0 %3322
        %3324 = vrot.lane.b32.xlu0 %v3304, 96
        %v3325 = vpop.permute.xlu0 %3324
        %3326 = vrot.lane.b32.xlu0 %v3305, 96
        %v3327 = vpop.permute.xlu0 %3326
        %3328 = vrot.lane.b32.xlu0 %v3306, 96
        %v3329 = vpop.permute.xlu0 %3328
        %3330 = vrot.lane.b32.xlu0 %v3307, 96
        %v3331 = vpop.permute.xlu0 %3330
        %3340 = vmatprep.subr.bf16.mxu0 0
        %3341 = vmatpush1.bf16.msra.mxu0 %v3331
        %3342 = vmatprep.subr.bf16.mxu0 0
        %3343 = vmatpush1.bf16.msra.mxu0 %v3329
        %3344 = vmatprep.subr.bf16.mxu0 0
        %3345 = vmatpush1.bf16.msra.mxu0 %v3327
        %3346 = vmatprep.subr.bf16.mxu0 0
        %3347 = vmatpush1.bf16.msra.mxu0 %v3325
        %3348 = vmatprep.subr.bf16.mxu0 0
        %3349 = vmatpush1.bf16.msra.mxu0 %v3323
        %3350 = vmatprep.subr.bf16.mxu0 0
        %3351 = vmatpush1.bf16.msra.mxu0 %v3321
        %3352 = vmatprep.subr.bf16.mxu0 0
        %3353 = vmatpush1.bf16.msra.mxu0 %v3319
        %3354 = vmatprep.subr.bf16.mxu0 0
        %3355 = vmatpush1.bf16.msra.mxu0 %v3317
        %3356 = vmatprep.subr.bf16.mxu0 0
        %3357 = vmatpush2.bf16.msra.mxu0 0
        %3358 = vmatprep.subr.bf16.mxu0 0
        %3359 = vmatpush2.bf16.msra.mxu0 0
        %3360 = vmatprep.subr.bf16.mxu0 0
        %3361 = vmatpush2.bf16.msra.mxu0 0
        %3362 = vmatprep.subr.bf16.mxu0 0
        %3363 = vmatpush2.bf16.msra.mxu0 0
        %3364 = vmatprep.subr.bf16.mxu0 0
        %3365 = vmatpush2.bf16.msra.mxu0 0
        %3366 = vmatprep.subr.bf16.mxu0 0
        %3367 = vmatpush2.bf16.msra.mxu0 0
        %3368 = vmatprep.subr.bf16.mxu0 0
        %3369 = vmatpush2.bf16.msra.mxu0 0
        %3370 = vmatprep.subr.bf16.mxu0 0
        %3371 = vmatpush2.bf16.msra.mxu0 0
        %3372 = vmatprep.mubr.bf16.mxu0 0
        %3373 = vmatmul.mubr.bf16.gmra.mxu0 %v3260
        %v3374 = vpop.f32.mrf.mxu0
        %v3375 = vadd.f32 0.0, %v3374
        %v3376 = vpop.f32.mrf.mxu0
        %v3377 = vpop.f32.mrf.mxu0
        %v3378 = vadd.f32 0.0, %v3377
        %v3379 = vpop.f32.mrf.mxu0
        %3380 = vmatprep.mubr.bf16.mxu0 0
        %3381 = vmatmul.mubr.bf16.gmra.mxu0 %v3261
        %v3382 = vpop.f32.mrf.mxu0
        %v3383 = vadd.f32 0.0, %v3382
        %v3384 = vpop.f32.mrf.mxu0
        %v3385 = vpop.f32.mrf.mxu0
        %v3386 = vadd.f32 0.0, %v3385
        %v3387 = vpop.f32.mrf.mxu0
        %3388 = vmatprep.mubr.bf16.mxu0 0
        %3389 = vmatmul.mubr.bf16.gmra.mxu0 %v3262
        %v3390 = vpop.f32.mrf.mxu0
        %v3391 = vadd.f32 0.0, %v3390
        %v3392 = vpop.f32.mrf.mxu0
        %v3393 = vpop.f32.mrf.mxu0
        %v3394 = vadd.f32 0.0, %v3393
        %v3395 = vpop.f32.mrf.mxu0
        %3396 = vmatprep.mubr.bf16.mxu0 0
        %3397 = vmatmul.mubr.bf16.gmra.mxu0 %v3263
        %v3398 = vpop.f32.mrf.mxu0
        %v3399 = vadd.f32 0.0, %v3398
        %v3400 = vpop.f32.mrf.mxu0
        %v3401 = vpop.f32.mrf.mxu0
        %v3402 = vadd.f32 0.0, %v3401
        %v3403 = vpop.f32.mrf.mxu0
        %3404 = vmatprep.mubr.bf16.mxu0 0
        %3405 = vmatmul.mubr.bf16.gmra.mxu0 %v3264
        %v3406 = vpop.f32.mrf.mxu0
        %v3407 = vadd.f32 0.0, %v3406
        %v3408 = vpop.f32.mrf.mxu0
        %v3409 = vpop.f32.mrf.mxu0
        %v3410 = vadd.f32 0.0, %v3409
        %v3411 = vpop.f32.mrf.mxu0
        %3412 = vmatprep.mubr.bf16.mxu0 0
        %3413 = vmatmul.mubr.bf16.gmra.mxu0 %v3265
        %v3414 = vpop.f32.mrf.mxu0
        %v3415 = vadd.f32 0.0, %v3414
        %v3416 = vpop.f32.mrf.mxu0
        %v3417 = vpop.f32.mrf.mxu0
        %v3418 = vadd.f32 0.0, %v3417
        %v3419 = vpop.f32.mrf.mxu0
        %3420 = vmatprep.mubr.bf16.mxu0 0
        %3421 = vmatmul.mubr.bf16.gmra.mxu0 %v3266
        %v3422 = vpop.f32.mrf.mxu0
        %v3423 = vadd.f32 0.0, %v3422
        %v3424 = vpop.f32.mrf.mxu0
        %v3425 = vpop.f32.mrf.mxu0
        %v3426 = vadd.f32 0.0, %v3425
        %v3427 = vpop.f32.mrf.mxu0
        %3428 = vmatprep.mubr.bf16.mxu0 0
        %3429 = vmatmul.mubr.bf16.gmra.mxu0 %v3267
        %v3430 = vpop.f32.mrf.mxu0
        %v3431 = vadd.f32 0.0, %v3430
        %v3432 = vpop.f32.mrf.mxu0
        %v3433 = vpop.f32.mrf.mxu0
        %v3434 = vadd.f32 0.0, %v3433
        %v3435 = vpop.f32.mrf.mxu0
        %3436 = vdwg.mxu0
        %v3437 = vmul.f32 %v3043, %v3375
        %v3438 = vmul.f32 %v3044, %v3378
        %v3439 = vmul.f32 %v3045, %v3383
        %v3440 = vmul.f32 %v3046, %v3386
        %v3441 = vmul.f32 %v3047, %v3391
        %v3442 = vmul.f32 %v3048, %v3394
        %v3443 = vmul.f32 %v3049, %v3399
        %v3444 = vmul.f32 %v3050, %v3402
        %v3445 = vmul.f32 %v3051, %v3407
        %v3446 = vmul.f32 %v3052, %v3410
        %v3447 = vmul.f32 %v3053, %v3415
        %v3448 = vmul.f32 %v3054, %v3418
        %v3449 = vmul.f32 %v3055, %v3423
        %v3450 = vmul.f32 %v3056, %v3426
        %v3451 = vmul.f32 %v3057, %v3431
        %v3452 = vmul.f32 %v3058, %v3434
        %v3453 = vmul.f32 %v3043, %v3268
        %v3454 = vmul.f32 %v3044, %v3269
        %v3455 = vmul.f32 %v3045, %v3270
        %v3456 = vmul.f32 %v3046, %v3271
        %v3457 = vmul.f32 %v3047, %v3272
        %v3458 = vmul.f32 %v3048, %v3273
        %v3459 = vmul.f32 %v3049, %v3274
        %v3460 = vmul.f32 %v3050, %v3275
        %v3461 = vmul.f32 %v3051, %v3276
        %v3462 = vmul.f32 %v3052, %v3277
        %v3463 = vmul.f32 %v3053, %v3278
        %v3464 = vmul.f32 %v3054, %v3279
        %v3465 = vmul.f32 %v3055, %v3280
        %v3466 = vmul.f32 %v3056, %v3281
        %v3467 = vmul.f32 %v3057, %v3282
        %v3468 = vmul.f32 %v3058, %v3283
        %v3469 = vpack.c.bf16 %v3454, %v3453
        %v3470 = vpack.c.bf16 %v3456, %v3455
        %v3471 = vpack.c.bf16 %v3458, %v3457
        %v3472 = vpack.c.bf16 %v3460, %v3459
        %v3473 = vpack.c.bf16 %v3462, %v3461
        %v3474 = vpack.c.bf16 %v3464, %v3463
        %v3475 = vpack.c.bf16 %v3466, %v3465
        %v3476 = vpack.c.bf16 %v3468, %v3467
        %3477 = vxpose.xlu0.c.b16.start [1/8] %v3260, 128
        %3478 = vxpose.xlu0.c.b16.cont [2/8] %v3261, 128
        %3479 = vxpose.xlu0.c.b16.cont [3/8] %v3262, 128
        %3480 = vxpose.xlu0.c.b16.cont [4/8] %v3263, 128
        %3481 = vxpose.xlu0.c.b16.cont [5/8] %v3264, 128
        %3482 = vxpose.xlu0.c.b16.cont [6/8] %v3265, 128
        %3483 = vxpose.xlu0.c.b16.cont [7/8] %v3266, 128
        %3484 = vxpose.xlu0.c.b16.end [8/8] %v3267, 128
        %v3485 = vpop.trf.xlu0
        %v3486 = vpop.trf.xlu0
        %v3487 = vpop.trf.xlu0
        %v3488 = vpop.trf.xlu0
        %v3489 = vpop.trf.xlu0
        %v3490 = vpop.trf.xlu0
        %v3491 = vpop.trf.xlu0
        %v3492 = vpop.trf.xlu0
        %3493 = vmatprep.subr.bf16.mxu0 0
        %3494 = vmatpush1.bf16.msra.mxu0 %v3476
        %3495 = vmatprep.subr.bf16.mxu0 0
        %3496 = vmatpush1.bf16.msra.mxu0 %v3475
        %3497 = vmatprep.subr.bf16.mxu0 0
        %3498 = vmatpush1.bf16.msra.mxu0 %v3474
        %3499 = vmatprep.subr.bf16.mxu0 0
        %3500 = vmatpush1.bf16.msra.mxu0 %v3473
        %3501 = vmatprep.subr.bf16.mxu0 0
        %3502 = vmatpush1.bf16.msra.mxu0 %v3472
        %3503 = vmatprep.subr.bf16.mxu0 0
        %3504 = vmatpush1.bf16.msra.mxu0 %v3471
        %3505 = vmatprep.subr.bf16.mxu0 0
        %3506 = vmatpush1.bf16.msra.mxu0 %v3470
        %3507 = vmatprep.subr.bf16.mxu0 0
        %3508 = vmatpush1.bf16.msra.mxu0 %v3469
        %3509 = vmatprep.subr.bf16.mxu0 0
        %3510 = vmatpush2.bf16.msra.mxu0 0
        %3511 = vmatprep.subr.bf16.mxu0 0
        %3512 = vmatpush2.bf16.msra.mxu0 0
        %3513 = vmatprep.subr.bf16.mxu0 0
        %3514 = vmatpush2.bf16.msra.mxu0 0
        %3515 = vmatprep.subr.bf16.mxu0 0
        %3516 = vmatpush2.bf16.msra.mxu0 0
        %3517 = vmatprep.subr.bf16.mxu0 0
        %3518 = vmatpush2.bf16.msra.mxu0 0
        %3519 = vmatprep.subr.bf16.mxu0 0
        %3520 = vmatpush2.bf16.msra.mxu0 0
        %3521 = vmatprep.subr.bf16.mxu0 0
        %3522 = vmatpush2.bf16.msra.mxu0 0
        %3523 = vmatprep.subr.bf16.mxu0 0
        %3524 = vmatpush2.bf16.msra.mxu0 0
        %3525 = vmatprep.mubr.bf16.mxu0 0
        %3526 = vmatmul.mubr.bf16.gmra.mxu0 %v3485
        %v3527 = vpop.f32.mrf.mxu0
        %v3528 = vadd.f32 0.0, %v3527
        %v3529 = vpop.f32.mrf.mxu0
        %v3530 = vpop.f32.mrf.mxu0
        %v3531 = vadd.f32 0.0, %v3530
        %v3532 = vpop.f32.mrf.mxu0
        %3533 = vmatprep.mubr.bf16.mxu0 0
        %3534 = vmatmul.mubr.bf16.gmra.mxu0 %v3486
        %v3535 = vpop.f32.mrf.mxu0
        %v3536 = vadd.f32 0.0, %v3535
        %v3537 = vpop.f32.mrf.mxu0
        %v3538 = vpop.f32.mrf.mxu0
        %v3539 = vadd.f32 0.0, %v3538
        %v3540 = vpop.f32.mrf.mxu0
        %3541 = vmatprep.mubr.bf16.mxu0 0
        %3542 = vmatmul.mubr.bf16.gmra.mxu0 %v3487
        %v3543 = vpop.f32.mrf.mxu0
        %v3544 = vadd.f32 0.0, %v3543
        %v3545 = vpop.f32.mrf.mxu0
        %v3546 = vpop.f32.mrf.mxu0
        %v3547 = vadd.f32 0.0, %v3546
        %v3548 = vpop.f32.mrf.mxu0
        %3549 = vmatprep.mubr.bf16.mxu0 0
        %3550 = vmatmul.mubr.bf16.gmra.mxu0 %v3488
        %v3551 = vpop.f32.mrf.mxu0
        %v3552 = vadd.f32 0.0, %v3551
        %v3553 = vpop.f32.mrf.mxu0
        %v3554 = vpop.f32.mrf.mxu0
        %v3555 = vadd.f32 0.0, %v3554
        %v3556 = vpop.f32.mrf.mxu0
        %3557 = vmatprep.mubr.bf16.mxu0 0
        %3558 = vmatmul.mubr.bf16.gmra.mxu0 %v3489
        %v3559 = vpop.f32.mrf.mxu0
        %v3560 = vadd.f32 0.0, %v3559
        %v3561 = vpop.f32.mrf.mxu0
        %v3562 = vpop.f32.mrf.mxu0
        %v3563 = vadd.f32 0.0, %v3562
        %v3564 = vpop.f32.mrf.mxu0
        %3565 = vmatprep.mubr.bf16.mxu0 0
        %3566 = vmatmul.mubr.bf16.gmra.mxu0 %v3490
        %v3567 = vpop.f32.mrf.mxu0
        %v3568 = vadd.f32 0.0, %v3567
        %v3569 = vpop.f32.mrf.mxu0
        %v3570 = vpop.f32.mrf.mxu0
        %v3571 = vadd.f32 0.0, %v3570
        %v3572 = vpop.f32.mrf.mxu0
        %3573 = vmatprep.mubr.bf16.mxu0 0
        %3574 = vmatmul.mubr.bf16.gmra.mxu0 %v3491
        %v3575 = vpop.f32.mrf.mxu0
        %v3576 = vadd.f32 0.0, %v3575
        %v3577 = vpop.f32.mrf.mxu0
        %v3578 = vpop.f32.mrf.mxu0
        %v3579 = vadd.f32 0.0, %v3578
        %v3580 = vpop.f32.mrf.mxu0
        %3581 = vmatprep.mubr.bf16.mxu0 0
        %3582 = vmatmul.mubr.bf16.gmra.mxu0 %v3492
        %v3583 = vpop.f32.mrf.mxu0
        %v3584 = vadd.f32 0.0, %v3583
        %v3585 = vpop.f32.mrf.mxu0
        %v3586 = vpop.f32.mrf.mxu0
        %v3587 = vadd.f32 0.0, %v3586
        %v3588 = vpop.f32.mrf.mxu0
        %3589 = vdwg.mxu0
        %v3590 = vmul.f32 %v3091, %v3528
        %v3591 = vmul.f32 %v3092, %v3531
        %v3592 = vmul.f32 %v3093, %v3536
        %v3593 = vmul.f32 %v3094, %v3539
        %v3594 = vmul.f32 %v3095, %v3544
        %v3595 = vmul.f32 %v3096, %v3547
        %v3596 = vmul.f32 %v3097, %v3552
        %v3597 = vmul.f32 %v3098, %v3555
        %v3598 = vmul.f32 %v3099, %v3560
        %v3599 = vmul.f32 %v3100, %v3563
        %v3600 = vmul.f32 %v3101, %v3568
        %v3601 = vmul.f32 %v3102, %v3571
        %v3602 = vmul.f32 %v3103, %v3576
        %v3603 = vmul.f32 %v3104, %v3579
        %v3604 = vmul.f32 %v3105, %v3584
        %v3605 = vmul.f32 %v3106, %v3587
        %v3606 = vpack.c.bf16 %v2758, %v2755
        %v3607 = vpack.c.bf16 %v2766, %v2763
        %v3608 = vpack.c.bf16 %v2774, %v2771
        %v3609 = vpack.c.bf16 %v2782, %v2779
        %v3610 = vpack.c.bf16 %v2790, %v2787
        %v3611 = vpack.c.bf16 %v2798, %v2795
        %v3612 = vpack.c.bf16 %v2806, %v2803
        %v3613 = vpack.c.bf16 %v2814, %v2811
        %v3614 = vpack.c.bf16 %v2855, %v2852
        %v3615 = vpack.c.bf16 %v2863, %v2860
        %v3616 = vpack.c.bf16 %v2871, %v2868
        %v3617 = vpack.c.bf16 %v2879, %v2876
        %v3618 = vpack.c.bf16 %v2887, %v2884
        %v3619 = vpack.c.bf16 %v2895, %v2892
        %v3620 = vpack.c.bf16 %v2903, %v2900
        %v3621 = vpack.c.bf16 %v2911, %v2908
        %v3622 = vpack.c.bf16 %v2952, %v2949
        %v3623 = vpack.c.bf16 %v2960, %v2957
        %v3624 = vpack.c.bf16 %v2968, %v2965
        %v3625 = vpack.c.bf16 %v2976, %v2973
        %v3626 = vpack.c.bf16 %v2984, %v2981
        %v3627 = vpack.c.bf16 %v2992, %v2989
        %v3628 = vpack.c.bf16 %v3000, %v2997
        %v3629 = vpack.c.bf16 %v3008, %v3005
        %v3630 = vpack.c.bf16 %v3438, %v3437
        %v3631 = vpack.c.bf16 %v3440, %v3439
        %v3632 = vpack.c.bf16 %v3442, %v3441
        %v3633 = vpack.c.bf16 %v3444, %v3443
        %v3634 = vpack.c.bf16 %v3446, %v3445
        %v3635 = vpack.c.bf16 %v3448, %v3447
        %v3636 = vpack.c.bf16 %v3450, %v3449
        %v3637 = vpack.c.bf16 %v3452, %v3451
        %v3638 = vpack.c.bf16 %v3591, %v3590
        %v3639 = vpack.c.bf16 %v3593, %v3592
        %v3640 = vpack.c.bf16 %v3595, %v3594
        %v3641 = vpack.c.bf16 %v3597, %v3596
        %v3642 = vpack.c.bf16 %v3599, %v3598
        %v3643 = vpack.c.bf16 %v3601, %v3600
        %v3644 = vpack.c.bf16 %v3603, %v3602
        %v3645 = vpack.c.bf16 %v3605, %v3604
        %3654 = vrot.lane.b32.xlu0 %v1436, 64
        %v3655 = vpop.permute.xlu0 %3654
        %3656 = vrot.lane.b32.xlu0 %v1439, 64
        %v3657 = vpop.permute.xlu0 %3656
        %3658 = vrot.lane.b32.xlu0 %v1442, 64
        %v3659 = vpop.permute.xlu0 %3658
        %3660 = vrot.lane.b32.xlu0 %v1445, 64
        %v3661 = vpop.permute.xlu0 %3660
        %3662 = vrot.lane.b32.xlu0 %v1448, 64
        %v3663 = vpop.permute.xlu0 %3662
        %3664 = vrot.lane.b32.xlu0 %v1451, 64
        %v3665 = vpop.permute.xlu0 %3664
        %3666 = vrot.lane.b32.xlu0 %v1454, 64
        %v3667 = vpop.permute.xlu0 %3666
        %3668 = vrot.lane.b32.xlu0 %v1457, 64
        %v3669 = vpop.permute.xlu0 %3668
        %3670 = vrot.lane.b32.xlu0 %v1436, 32
        %v3671 = vpop.permute.xlu0 %3670
        %3672 = vrot.lane.b32.xlu0 %v1439, 32
        %v3673 = vpop.permute.xlu0 %3672
        %3674 = vrot.lane.b32.xlu0 %v1442, 32
        %v3675 = vpop.permute.xlu0 %3674
        %3676 = vrot.lane.b32.xlu0 %v1445, 32
        %v3677 = vpop.permute.xlu0 %3676
        %3678 = vrot.lane.b32.xlu0 %v1448, 32
        %v3679 = vpop.permute.xlu0 %3678
        %3680 = vrot.lane.b32.xlu0 %v1451, 32
        %v3681 = vpop.permute.xlu0 %3680
        %3682 = vrot.lane.b32.xlu0 %v1454, 32
        %v3683 = vpop.permute.xlu0 %3682
        %3684 = vrot.lane.b32.xlu0 %v1457, 32
        %v3685 = vpop.permute.xlu0 %3684
        %v3687 = vsel %vm1748, %v3655, 0
        %v3690 = vsel %vm1748, %v3657, 0
        %v3693 = vsel %vm1748, %v3659, 0
        %v3696 = vsel %vm1748, %v3661, 0
        %v3699 = vsel %vm1748, %v3663, 0
        %v3702 = vsel %vm1748, %v3665, 0
        %v3705 = vsel %vm1748, %v3667, 0
        %v3708 = vsel %vm1748, %v3669, 0
        %v3711 = vsel %vm1748, %v3671, 0
        %v3714 = vsel %vm1748, %v3673, 0
        %v3717 = vsel %vm1748, %v3675, 0
        %v3720 = vsel %vm1748, %v3677, 0
        %v3723 = vsel %vm1748, %v3679, 0
        %v3726 = vsel %vm1748, %v3681, 0
        %v3729 = vsel %vm1748, %v3683, 0
        %v3732 = vsel %vm1748, %v3685, 0
        %3734 = vmatprep.subr.bf16.mxu0 0
        %3735 = vmatpush1.bf16.xpose.msra.mxu0 %v3732
        %3736 = vmatprep.subr.bf16.mxu0 0
        %3737 = vmatpush1.bf16.xpose.msra.mxu0 %v3729
        %3738 = vmatprep.subr.bf16.mxu0 0
        %3739 = vmatpush1.bf16.xpose.msra.mxu0 %v3726
        %3740 = vmatprep.subr.bf16.mxu0 0
        %3741 = vmatpush1.bf16.xpose.msra.mxu0 %v3723
        %3742 = vmatprep.subr.bf16.mxu0 0
        %3743 = vmatpush1.bf16.xpose.msra.mxu0 %v3720
        %3744 = vmatprep.subr.bf16.mxu0 0
        %3745 = vmatpush1.bf16.xpose.msra.mxu0 %v3717
        %3746 = vmatprep.subr.bf16.mxu0 0
        %3747 = vmatpush1.bf16.xpose.msra.mxu0 %v3714
        %3748 = vmatprep.subr.bf16.mxu0 0
        %3749 = vmatpush1.bf16.xpose.msra.mxu0 %v3711
        %3750 = vmatprep.subr.bf16.mxu0 0
        %3751 = vmatpush2.bf16.xpose.msra.mxu0 0
        %3752 = vmatprep.subr.bf16.mxu0 0
        %3753 = vmatpush2.bf16.xpose.msra.mxu0 0
        %3754 = vmatprep.subr.bf16.mxu0 0
        %3755 = vmatpush2.bf16.xpose.msra.mxu0 0
        %3756 = vmatprep.subr.bf16.mxu0 0
        %3757 = vmatpush2.bf16.xpose.msra.mxu0 0
        %3758 = vmatprep.subr.bf16.mxu0 0
        %3759 = vmatpush2.bf16.xpose.msra.mxu0 0
        %3760 = vmatprep.subr.bf16.mxu0 0
        %3761 = vmatpush2.bf16.xpose.msra.mxu0 0
        %3762 = vmatprep.subr.bf16.mxu0 0
        %3763 = vmatpush2.bf16.xpose.msra.mxu0 0
        %3764 = vmatprep.subr.bf16.mxu0 0
        %3765 = vmatpush2.bf16.xpose.msra.mxu0 0
        %3766 = vmatprep.mubr.bf16.mxu0 0
        %3767 = vmatmul.mubr.bf16.gmra.mxu0 %v3687
        %v3768 = vpop.f32.mrf.mxu0
        %v3769 = vadd.f32 0.0, %v3768
        %v3770 = vpop.f32.mrf.mxu0
        %v3771 = vpop.f32.mrf.mxu0
        %v3772 = vadd.f32 0.0, %v3771
        %v3773 = vpop.f32.mrf.mxu0
        %3774 = vmatprep.mubr.bf16.mxu0 0
        %3775 = vmatmul.mubr.bf16.gmra.mxu0 %v3690
        %v3776 = vpop.f32.mrf.mxu0
        %v3777 = vadd.f32 0.0, %v3776
        %v3778 = vpop.f32.mrf.mxu0
        %v3779 = vpop.f32.mrf.mxu0
        %v3780 = vadd.f32 0.0, %v3779
        %v3781 = vpop.f32.mrf.mxu0
        %3782 = vmatprep.mubr.bf16.mxu0 0
        %3783 = vmatmul.mubr.bf16.gmra.mxu0 %v3693
        %v3784 = vpop.f32.mrf.mxu0
        %v3785 = vadd.f32 0.0, %v3784
        %v3786 = vpop.f32.mrf.mxu0
        %v3787 = vpop.f32.mrf.mxu0
        %v3788 = vadd.f32 0.0, %v3787
        %v3789 = vpop.f32.mrf.mxu0
        %3790 = vmatprep.mubr.bf16.mxu0 0
        %3791 = vmatmul.mubr.bf16.gmra.mxu0 %v3696
        %v3792 = vpop.f32.mrf.mxu0
        %v3793 = vadd.f32 0.0, %v3792
        %v3794 = vpop.f32.mrf.mxu0
        %v3795 = vpop.f32.mrf.mxu0
        %v3796 = vadd.f32 0.0, %v3795
        %v3797 = vpop.f32.mrf.mxu0
        %3798 = vmatprep.mubr.bf16.mxu0 0
        %3799 = vmatmul.mubr.bf16.gmra.mxu0 %v3699
        %v3800 = vpop.f32.mrf.mxu0
        %v3801 = vadd.f32 0.0, %v3800
        %v3802 = vpop.f32.mrf.mxu0
        %v3803 = vpop.f32.mrf.mxu0
        %v3804 = vadd.f32 0.0, %v3803
        %v3805 = vpop.f32.mrf.mxu0
        %3806 = vmatprep.mubr.bf16.mxu0 0
        %3807 = vmatmul.mubr.bf16.gmra.mxu0 %v3702
        %v3808 = vpop.f32.mrf.mxu0
        %v3809 = vadd.f32 0.0, %v3808
        %v3810 = vpop.f32.mrf.mxu0
        %v3811 = vpop.f32.mrf.mxu0
        %v3812 = vadd.f32 0.0, %v3811
        %v3813 = vpop.f32.mrf.mxu0
        %3814 = vmatprep.mubr.bf16.mxu0 0
        %3815 = vmatmul.mubr.bf16.gmra.mxu0 %v3705
        %v3816 = vpop.f32.mrf.mxu0
        %v3817 = vadd.f32 0.0, %v3816
        %v3818 = vpop.f32.mrf.mxu0
        %v3819 = vpop.f32.mrf.mxu0
        %v3820 = vadd.f32 0.0, %v3819
        %v3821 = vpop.f32.mrf.mxu0
        %3822 = vmatprep.mubr.bf16.mxu0 0
        %3823 = vmatmul.mubr.bf16.gmra.mxu0 %v3708
        %v3824 = vpop.f32.mrf.mxu0
        %v3825 = vadd.f32 0.0, %v3824
        %v3826 = vpop.f32.mrf.mxu0
        %v3827 = vpop.f32.mrf.mxu0
        %v3828 = vadd.f32 0.0, %v3827
        %v3829 = vpop.f32.mrf.mxu0
        %3830 = vdwg.mxu0
        %3831 = vmax.xlane.f32.xlu0 %v3769
        %v3832 = vpop.xlane.xlu0 %3831
        %3833 = vmax.xlane.f32.xlu0 %v3772
        %v3834 = vpop.xlane.xlu0 %3833
        %3835 = vmax.xlane.f32.xlu0 %v3777
        %v3836 = vpop.xlane.xlu0 %3835
        %3837 = vmax.xlane.f32.xlu0 %v3780
        %v3838 = vpop.xlane.xlu0 %3837
        %3839 = vmax.xlane.f32.xlu0 %v3785
        %v3840 = vpop.xlane.xlu0 %3839
        %3841 = vmax.xlane.f32.xlu0 %v3788
        %v3842 = vpop.xlane.xlu0 %3841
        %3843 = vmax.xlane.f32.xlu0 %v3793
        %v3844 = vpop.xlane.xlu0 %3843
        %3845 = vmax.xlane.f32.xlu0 %v3796
        %v3846 = vpop.xlane.xlu0 %3845
        %3847 = vmax.xlane.f32.xlu0 %v3801
        %v3848 = vpop.xlane.xlu0 %3847
        %3849 = vmax.xlane.f32.xlu0 %v3804
        %v3850 = vpop.xlane.xlu0 %3849
        %3851 = vmax.xlane.f32.xlu0 %v3809
        %v3852 = vpop.xlane.xlu0 %3851
        %3853 = vmax.xlane.f32.xlu0 %v3812
        %v3854 = vpop.xlane.xlu0 %3853
        %3855 = vmax.xlane.f32.xlu0 %v3817
        %v3856 = vpop.xlane.xlu0 %3855
        %3857 = vmax.xlane.f32.xlu0 %v3820
        %v3858 = vpop.xlane.xlu0 %3857
        %3859 = vmax.xlane.f32.xlu0 %v3825
        %v3860 = vpop.xlane.xlu0 %3859
        %3861 = vmax.xlane.f32.xlu0 %v3828
        %v3862 = vpop.xlane.xlu0 %3861
        %v3863 = vsub.f32 %v3769, %v3832
        %v3864 = vsub.f32 %v3772, %v3834
        %v3865 = vsub.f32 %v3777, %v3836
        %v3866 = vsub.f32 %v3780, %v3838
        %v3867 = vsub.f32 %v3785, %v3840
        %v3868 = vsub.f32 %v3788, %v3842
        %v3869 = vsub.f32 %v3793, %v3844
        %v3870 = vsub.f32 %v3796, %v3846
        %v3871 = vsub.f32 %v3801, %v3848
        %v3872 = vsub.f32 %v3804, %v3850
        %v3873 = vsub.f32 %v3809, %v3852
        %v3874 = vsub.f32 %v3812, %v3854
        %v3875 = vsub.f32 %v3817, %v3856
        %v3876 = vsub.f32 %v3820, %v3858
        %v3877 = vsub.f32 %v3825, %v3860
        %v3878 = vsub.f32 %v3828, %v3862
        %v3879 = vmul.f32 %v3863, 1.442695
        %v3880 = vpow.pop %v3879
        %v3881 = vmul.f32 %v3864, 1.442695
        %v3882 = vpow.pop %v3881
        %v3883 = vmul.f32 %v3865, 1.442695
        %v3884 = vpow.pop %v3883
        %v3885 = vmul.f32 %v3866, 1.442695
        %v3886 = vpow.pop %v3885
        %v3887 = vmul.f32 %v3867, 1.442695
        %v3888 = vpow.pop %v3887
        %v3889 = vmul.f32 %v3868, 1.442695
        %v3890 = vpow.pop %v3889
        %v3891 = vmul.f32 %v3869, 1.442695
        %v3892 = vpow.pop %v3891
        %v3893 = vmul.f32 %v3870, 1.442695
        %v3894 = vpow.pop %v3893
        %v3895 = vmul.f32 %v3871, 1.442695
        %v3896 = vpow.pop %v3895
        %v3897 = vmul.f32 %v3872, 1.442695
        %v3898 = vpow.pop %v3897
        %v3899 = vmul.f32 %v3873, 1.442695
        %v3900 = vpow.pop %v3899
        %v3901 = vmul.f32 %v3874, 1.442695
        %v3902 = vpow.pop %v3901
        %v3903 = vmul.f32 %v3875, 1.442695
        %v3904 = vpow.pop %v3903
        %v3905 = vmul.f32 %v3876, 1.442695
        %v3906 = vpow.pop %v3905
        %v3907 = vmul.f32 %v3877, 1.442695
        %v3908 = vpow.pop %v3907
        %v3909 = vmul.f32 %v3878, 1.442695
        %v3910 = vpow.pop %v3909
        %3911 = vadd.xlane.f32.xlu0 %v3880
        %v3912 = vpop.xlane.xlu0 %3911
        %3913 = vadd.xlane.f32.xlu0 %v3882
        %v3914 = vpop.xlane.xlu0 %3913
        %3915 = vadd.xlane.f32.xlu0 %v3884
        %v3916 = vpop.xlane.xlu0 %3915
        %3917 = vadd.xlane.f32.xlu0 %v3886
        %v3918 = vpop.xlane.xlu0 %3917
        %3919 = vadd.xlane.f32.xlu0 %v3888
        %v3920 = vpop.xlane.xlu0 %3919
        %3921 = vadd.xlane.f32.xlu0 %v3890
        %v3922 = vpop.xlane.xlu0 %3921
        %3923 = vadd.xlane.f32.xlu0 %v3892
        %v3924 = vpop.xlane.xlu0 %3923
        %3925 = vadd.xlane.f32.xlu0 %v3894
        %v3926 = vpop.xlane.xlu0 %3925
        %3927 = vadd.xlane.f32.xlu0 %v3896
        %v3928 = vpop.xlane.xlu0 %3927
        %3929 = vadd.xlane.f32.xlu0 %v3898
        %v3930 = vpop.xlane.xlu0 %3929
        %3931 = vadd.xlane.f32.xlu0 %v3900
        %v3932 = vpop.xlane.xlu0 %3931
        %3933 = vadd.xlane.f32.xlu0 %v3902
        %v3934 = vpop.xlane.xlu0 %3933
        %3935 = vadd.xlane.f32.xlu0 %v3904
        %v3936 = vpop.xlane.xlu0 %3935
        %3937 = vadd.xlane.f32.xlu0 %v3906
        %v3938 = vpop.xlane.xlu0 %3937
        %3939 = vadd.xlane.f32.xlu0 %v3908
        %v3940 = vpop.xlane.xlu0 %3939
        %3941 = vadd.xlane.f32.xlu0 %v3910
        %v3942 = vpop.xlane.xlu0 %3941
        %v3943 = vrcp.pop %v3912
        %v3944 = vrcp.pop %v3914
        %v3945 = vrcp.pop %v3916
        %v3946 = vrcp.pop %v3918
        %v3947 = vrcp.pop %v3920
        %v3948 = vrcp.pop %v3922
        %v3949 = vrcp.pop %v3924
        %v3950 = vrcp.pop %v3926
        %v3951 = vrcp.pop %v3928
        %v3952 = vrcp.pop %v3930
        %v3953 = vrcp.pop %v3932
        %v3954 = vrcp.pop %v3934
        %v3955 = vrcp.pop %v3936
        %v3956 = vrcp.pop %v3938
        %v3957 = vrcp.pop %v3940
        %v3958 = vrcp.pop %v3942
        %v3959 = vmul.f32 %v3880, %v3943
        %v3960 = vmul.f32 %v3882, %v3944
        %v3961 = vmul.f32 %v3884, %v3945
        %v3962 = vmul.f32 %v3886, %v3946
        %v3963 = vmul.f32 %v3888, %v3947
        %v3964 = vmul.f32 %v3890, %v3948
        %v3965 = vmul.f32 %v3892, %v3949
        %v3966 = vmul.f32 %v3894, %v3950
        %v3967 = vmul.f32 %v3896, %v3951
        %v3968 = vmul.f32 %v3898, %v3952
        %v3969 = vmul.f32 %v3900, %v3953
        %v3970 = vmul.f32 %v3902, %v3954
        %v3971 = vmul.f32 %v3904, %v3955
        %v3972 = vmul.f32 %v3906, %v3956
        %v3973 = vmul.f32 %v3908, %v3957
        %v3974 = vmul.f32 %v3910, %v3958
        %3983 = vrot.lane.b32.xlu0 %v1437, 96
        %v3984 = vpop.permute.xlu0 %3983
        %3985 = vrot.lane.b32.xlu0 %v1440, 96
        %v3986 = vpop.permute.xlu0 %3985
        %3987 = vrot.lane.b32.xlu0 %v1443, 96
        %v3988 = vpop.permute.xlu0 %3987
        %3989 = vrot.lane.b32.xlu0 %v1446, 96
        %v3990 = vpop.permute.xlu0 %3989
        %3991 = vrot.lane.b32.xlu0 %v1449, 96
        %v3992 = vpop.permute.xlu0 %3991
        %3993 = vrot.lane.b32.xlu0 %v1452, 96
        %v3994 = vpop.permute.xlu0 %3993
        %3995 = vrot.lane.b32.xlu0 %v1455, 96
        %v3996 = vpop.permute.xlu0 %3995
        %3997 = vrot.lane.b32.xlu0 %v1458, 96
        %v3998 = vpop.permute.xlu0 %3997
        %v4000 = vsel %vm1748, %v1437, 0
        %v4003 = vsel %vm1748, %v1440, 0
        %v4006 = vsel %vm1748, %v1443, 0
        %v4009 = vsel %vm1748, %v1446, 0
        %v4012 = vsel %vm1748, %v1449, 0
        %v4015 = vsel %vm1748, %v1452, 0
        %v4018 = vsel %vm1748, %v1455, 0
        %v4021 = vsel %vm1748, %v1458, 0
        %v4024 = vsel %vm1748, %v3984, 0
        %v4027 = vsel %vm1748, %v3986, 0
        %v4030 = vsel %vm1748, %v3988, 0
        %v4033 = vsel %vm1748, %v3990, 0
        %v4036 = vsel %vm1748, %v3992, 0
        %v4039 = vsel %vm1748, %v3994, 0
        %v4042 = vsel %vm1748, %v3996, 0
        %v4045 = vsel %vm1748, %v3998, 0
        %4047 = vmatprep.subr.bf16.mxu0 0
        %4048 = vmatpush1.bf16.xpose.msra.mxu0 %v4045
        %4049 = vmatprep.subr.bf16.mxu0 0
        %4050 = vmatpush1.bf16.xpose.msra.mxu0 %v4042
        %4051 = vmatprep.subr.bf16.mxu0 0
        %4052 = vmatpush1.bf16.xpose.msra.mxu0 %v4039
        %4053 = vmatprep.subr.bf16.mxu0 0
        %4054 = vmatpush1.bf16.xpose.msra.mxu0 %v4036
        %4055 = vmatprep.subr.bf16.mxu0 0
        %4056 = vmatpush1.bf16.xpose.msra.mxu0 %v4033
        %4057 = vmatprep.subr.bf16.mxu0 0
        %4058 = vmatpush1.bf16.xpose.msra.mxu0 %v4030
        %4059 = vmatprep.subr.bf16.mxu0 0
        %4060 = vmatpush1.bf16.xpose.msra.mxu0 %v4027
        %4061 = vmatprep.subr.bf16.mxu0 0
        %4062 = vmatpush1.bf16.xpose.msra.mxu0 %v4024
        %4063 = vmatprep.subr.bf16.mxu0 0
        %4064 = vmatpush2.bf16.xpose.msra.mxu0 0
        %4065 = vmatprep.subr.bf16.mxu0 0
        %4066 = vmatpush2.bf16.xpose.msra.mxu0 0
        %4067 = vmatprep.subr.bf16.mxu0 0
        %4068 = vmatpush2.bf16.xpose.msra.mxu0 0
        %4069 = vmatprep.subr.bf16.mxu0 0
        %4070 = vmatpush2.bf16.xpose.msra.mxu0 0
        %4071 = vmatprep.subr.bf16.mxu0 0
        %4072 = vmatpush2.bf16.xpose.msra.mxu0 0
        %4073 = vmatprep.subr.bf16.mxu0 0
        %4074 = vmatpush2.bf16.xpose.msra.mxu0 0
        %4075 = vmatprep.subr.bf16.mxu0 0
        %4076 = vmatpush2.bf16.xpose.msra.mxu0 0
        %4077 = vmatprep.subr.bf16.mxu0 0
        %4078 = vmatpush2.bf16.xpose.msra.mxu0 0
        %4079 = vmatprep.mubr.bf16.mxu0 0
        %4080 = vmatmul.mubr.bf16.gmra.mxu0 %v4000
        %v4081 = vpop.f32.mrf.mxu0
        %v4082 = vadd.f32 0.0, %v4081
        %v4083 = vpop.f32.mrf.mxu0
        %v4084 = vpop.f32.mrf.mxu0
        %v4085 = vadd.f32 0.0, %v4084
        %v4086 = vpop.f32.mrf.mxu0
        %4087 = vmatprep.mubr.bf16.mxu0 0
        %4088 = vmatmul.mubr.bf16.gmra.mxu0 %v4003
        %v4089 = vpop.f32.mrf.mxu0
        %v4090 = vadd.f32 0.0, %v4089
        %v4091 = vpop.f32.mrf.mxu0
        %v4092 = vpop.f32.mrf.mxu0
        %v4093 = vadd.f32 0.0, %v4092
        %v4094 = vpop.f32.mrf.mxu0
        %4095 = vmatprep.mubr.bf16.mxu0 0
        %4096 = vmatmul.mubr.bf16.gmra.mxu0 %v4006
        %v4097 = vpop.f32.mrf.mxu0
        %v4098 = vadd.f32 0.0, %v4097
        %v4099 = vpop.f32.mrf.mxu0
        %v4100 = vpop.f32.mrf.mxu0
        %v4101 = vadd.f32 0.0, %v4100
        %v4102 = vpop.f32.mrf.mxu0
        %4103 = vmatprep.mubr.bf16.mxu0 0
        %4104 = vmatmul.mubr.bf16.gmra.mxu0 %v4009
        %v4105 = vpop.f32.mrf.mxu0
        %v4106 = vadd.f32 0.0, %v4105
        %v4107 = vpop.f32.mrf.mxu0
        %v4108 = vpop.f32.mrf.mxu0
        %v4109 = vadd.f32 0.0, %v4108
        %v4110 = vpop.f32.mrf.mxu0
        %4111 = vmatprep.mubr.bf16.mxu0 0
        %4112 = vmatmul.mubr.bf16.gmra.mxu0 %v4012
        %v4113 = vpop.f32.mrf.mxu0
        %v4114 = vadd.f32 0.0, %v4113
        %v4115 = vpop.f32.mrf.mxu0
        %v4116 = vpop.f32.mrf.mxu0
        %v4117 = vadd.f32 0.0, %v4116
        %v4118 = vpop.f32.mrf.mxu0
        %4119 = vmatprep.mubr.bf16.mxu0 0
        %4120 = vmatmul.mubr.bf16.gmra.mxu0 %v4015
        %v4121 = vpop.f32.mrf.mxu0
        %v4122 = vadd.f32 0.0, %v4121
        %v4123 = vpop.f32.mrf.mxu0
        %v4124 = vpop.f32.mrf.mxu0
        %v4125 = vadd.f32 0.0, %v4124
        %v4126 = vpop.f32.mrf.mxu0
        %4127 = vmatprep.mubr.bf16.mxu0 0
        %4128 = vmatmul.mubr.bf16.gmra.mxu0 %v4018
        %v4129 = vpop.f32.mrf.mxu0
        %v4130 = vadd.f32 0.0, %v4129
        %v4131 = vpop.f32.mrf.mxu0
        %v4132 = vpop.f32.mrf.mxu0
        %v4133 = vadd.f32 0.0, %v4132
        %v4134 = vpop.f32.mrf.mxu0
        %4135 = vmatprep.mubr.bf16.mxu0 0
        %4136 = vmatmul.mubr.bf16.gmra.mxu0 %v4021
        %v4137 = vpop.f32.mrf.mxu0
        %v4138 = vadd.f32 0.0, %v4137
        %v4139 = vpop.f32.mrf.mxu0
        %v4140 = vpop.f32.mrf.mxu0
        %v4141 = vadd.f32 0.0, %v4140
        %v4142 = vpop.f32.mrf.mxu0
        %4143 = vdwg.mxu0
        %4144 = vmax.xlane.f32.xlu0 %v4082
        %v4145 = vpop.xlane.xlu0 %4144
        %4146 = vmax.xlane.f32.xlu0 %v4085
        %v4147 = vpop.xlane.xlu0 %4146
        %4148 = vmax.xlane.f32.xlu0 %v4090
        %v4149 = vpop.xlane.xlu0 %4148
        %4150 = vmax.xlane.f32.xlu0 %v4093
        %v4151 = vpop.xlane.xlu0 %4150
        %4152 = vmax.xlane.f32.xlu0 %v4098
        %v4153 = vpop.xlane.xlu0 %4152
        %4154 = vmax.xlane.f32.xlu0 %v4101
        %v4155 = vpop.xlane.xlu0 %4154
        %4156 = vmax.xlane.f32.xlu0 %v4106
        %v4157 = vpop.xlane.xlu0 %4156
        %4158 = vmax.xlane.f32.xlu0 %v4109
        %v4159 = vpop.xlane.xlu0 %4158
        %4160 = vmax.xlane.f32.xlu0 %v4114
        %v4161 = vpop.xlane.xlu0 %4160
        %4162 = vmax.xlane.f32.xlu0 %v4117
        %v4163 = vpop.xlane.xlu0 %4162
        %4164 = vmax.xlane.f32.xlu0 %v4122
        %v4165 = vpop.xlane.xlu0 %4164
        %4166 = vmax.xlane.f32.xlu0 %v4125
        %v4167 = vpop.xlane.xlu0 %4166
        %4168 = vmax.xlane.f32.xlu0 %v4130
        %v4169 = vpop.xlane.xlu0 %4168
        %4170 = vmax.xlane.f32.xlu0 %v4133
        %v4171 = vpop.xlane.xlu0 %4170
        %4172 = vmax.xlane.f32.xlu0 %v4138
        %v4173 = vpop.xlane.xlu0 %4172
        %4174 = vmax.xlane.f32.xlu0 %v4141
        %v4175 = vpop.xlane.xlu0 %4174
        %v4176 = vsub.f32 %v4082, %v4145
        %v4177 = vsub.f32 %v4085, %v4147
        %v4178 = vsub.f32 %v4090, %v4149
        %v4179 = vsub.f32 %v4093, %v4151
        %v4180 = vsub.f32 %v4098, %v4153
        %v4181 = vsub.f32 %v4101, %v4155
        %v4182 = vsub.f32 %v4106, %v4157
        %v4183 = vsub.f32 %v4109, %v4159
        %v4184 = vsub.f32 %v4114, %v4161
        %v4185 = vsub.f32 %v4117, %v4163
        %v4186 = vsub.f32 %v4122, %v4165
        %v4187 = vsub.f32 %v4125, %v4167
        %v4188 = vsub.f32 %v4130, %v4169
        %v4189 = vsub.f32 %v4133, %v4171
        %v4190 = vsub.f32 %v4138, %v4173
        %v4191 = vsub.f32 %v4141, %v4175
        %v4192 = vmul.f32 %v4176, 1.442695
        %v4193 = vpow.pop %v4192
        %v4194 = vmul.f32 %v4177, 1.442695
        %v4195 = vpow.pop %v4194
        %v4196 = vmul.f32 %v4178, 1.442695
        %v4197 = vpow.pop %v4196
        %v4198 = vmul.f32 %v4179, 1.442695
        %v4199 = vpow.pop %v4198
        %v4200 = vmul.f32 %v4180, 1.442695
        %v4201 = vpow.pop %v4200
        %v4202 = vmul.f32 %v4181, 1.442695
        %v4203 = vpow.pop %v4202
        %v4204 = vmul.f32 %v4182, 1.442695
        %v4205 = vpow.pop %v4204
        %v4206 = vmul.f32 %v4183, 1.442695
        %v4207 = vpow.pop %v4206
        %v4208 = vmul.f32 %v4184, 1.442695
        %v4209 = vpow.pop %v4208
        %v4210 = vmul.f32 %v4185, 1.442695
        %v4211 = vpow.pop %v4210
        %v4212 = vmul.f32 %v4186, 1.442695
        %v4213 = vpow.pop %v4212
        %v4214 = vmul.f32 %v4187, 1.442695
        %v4215 = vpow.pop %v4214
        %v4216 = vmul.f32 %v4188, 1.442695
        %v4217 = vpow.pop %v4216
        %v4218 = vmul.f32 %v4189, 1.442695
        %v4219 = vpow.pop %v4218
        %v4220 = vmul.f32 %v4190, 1.442695
        %v4221 = vpow.pop %v4220
        %v4222 = vmul.f32 %v4191, 1.442695
        %v4223 = vpow.pop %v4222
        %4224 = vadd.xlane.f32.xlu0 %v4193
        %v4225 = vpop.xlane.xlu0 %4224
        %4226 = vadd.xlane.f32.xlu0 %v4195
        %v4227 = vpop.xlane.xlu0 %4226
        %4228 = vadd.xlane.f32.xlu0 %v4197
        %v4229 = vpop.xlane.xlu0 %4228
        %4230 = vadd.xlane.f32.xlu0 %v4199
        %v4231 = vpop.xlane.xlu0 %4230
        %4232 = vadd.xlane.f32.xlu0 %v4201
        %v4233 = vpop.xlane.xlu0 %4232
        %4234 = vadd.xlane.f32.xlu0 %v4203
        %v4235 = vpop.xlane.xlu0 %4234
        %4236 = vadd.xlane.f32.xlu0 %v4205
        %v4237 = vpop.xlane.xlu0 %4236
        %4238 = vadd.xlane.f32.xlu0 %v4207
        %v4239 = vpop.xlane.xlu0 %4238
        %4240 = vadd.xlane.f32.xlu0 %v4209
        %v4241 = vpop.xlane.xlu0 %4240
        %4242 = vadd.xlane.f32.xlu0 %v4211
        %v4243 = vpop.xlane.xlu0 %4242
        %4244 = vadd.xlane.f32.xlu0 %v4213
        %v4245 = vpop.xlane.xlu0 %4244
        %4246 = vadd.xlane.f32.xlu0 %v4215
        %v4247 = vpop.xlane.xlu0 %4246
        %4248 = vadd.xlane.f32.xlu0 %v4217
        %v4249 = vpop.xlane.xlu0 %4248
        %4250 = vadd.xlane.f32.xlu0 %v4219
        %v4251 = vpop.xlane.xlu0 %4250
        %4252 = vadd.xlane.f32.xlu0 %v4221
        %v4253 = vpop.xlane.xlu0 %4252
        %4254 = vadd.xlane.f32.xlu0 %v4223
        %v4255 = vpop.xlane.xlu0 %4254
        %v4256 = vrcp.pop %v4225
        %v4257 = vrcp.pop %v4227
        %v4258 = vrcp.pop %v4229
        %v4259 = vrcp.pop %v4231
        %v4260 = vrcp.pop %v4233
        %v4261 = vrcp.pop %v4235
        %v4262 = vrcp.pop %v4237
        %v4263 = vrcp.pop %v4239
        %v4264 = vrcp.pop %v4241
        %v4265 = vrcp.pop %v4243
        %v4266 = vrcp.pop %v4245
        %v4267 = vrcp.pop %v4247
        %v4268 = vrcp.pop %v4249
        %v4269 = vrcp.pop %v4251
        %v4270 = vrcp.pop %v4253
        %v4271 = vrcp.pop %v4255
        %v4272 = vmul.f32 %v4193, %v4256
        %v4273 = vmul.f32 %v4195, %v4257
        %v4274 = vmul.f32 %v4197, %v4258
        %v4275 = vmul.f32 %v4199, %v4259
        %v4276 = vmul.f32 %v4201, %v4260
        %v4277 = vmul.f32 %v4203, %v4261
        %v4278 = vmul.f32 %v4205, %v4262
        %v4279 = vmul.f32 %v4207, %v4263
        %v4280 = vmul.f32 %v4209, %v4264
        %v4281 = vmul.f32 %v4211, %v4265
        %v4282 = vmul.f32 %v4213, %v4266
        %v4283 = vmul.f32 %v4215, %v4267
        %v4284 = vmul.f32 %v4217, %v4268
        %v4285 = vmul.f32 %v4219, %v4269
        %v4286 = vmul.f32 %v4221, %v4270
        %v4287 = vmul.f32 %v4223, %v4271
        %4288 = vrot.lane.b32.xlu0 %v1652, 32
        %v4289 = vpop.permute.xlu0 %4288
        %4290 = vrot.lane.b32.xlu0 %v1654, 32
        %v4291 = vpop.permute.xlu0 %4290
        %4292 = vrot.lane.b32.xlu0 %v1656, 32
        %v4293 = vpop.permute.xlu0 %4292
        %4294 = vrot.lane.b32.xlu0 %v1658, 32
        %v4295 = vpop.permute.xlu0 %4294
        %4296 = vrot.lane.b32.xlu0 %v1660, 32
        %v4297 = vpop.permute.xlu0 %4296
        %4298 = vrot.lane.b32.xlu0 %v1662, 32
        %v4299 = vpop.permute.xlu0 %4298
        %4300 = vrot.lane.b32.xlu0 %v1664, 32
        %v4301 = vpop.permute.xlu0 %4300
        %4302 = vrot.lane.b32.xlu0 %v1666, 32
        %v4303 = vpop.permute.xlu0 %4302
        %v4305 = vsel %vm1748, %v4289, 0
        %v4308 = vsel %vm1748, %v4291, 0
        %v4311 = vsel %vm1748, %v4293, 0
        %v4314 = vsel %vm1748, %v4295, 0
        %v4317 = vsel %vm1748, %v4297, 0
        %v4320 = vsel %vm1748, %v4299, 0
        %v4323 = vsel %vm1748, %v4301, 0
        %v4326 = vsel %vm1748, %v4303, 0
        %v4329 = vsel %vm1748, %v1653, 0
        %v4332 = vsel %vm1748, %v1655, 0
        %v4335 = vsel %vm1748, %v1657, 0
        %v4338 = vsel %vm1748, %v1659, 0
        %v4341 = vsel %vm1748, %v1661, 0
        %v4344 = vsel %vm1748, %v1663, 0
        %v4347 = vsel %vm1748, %v1665, 0
        %v4350 = vsel %vm1748, %v1667, 0
        %4352 = vmatprep.subr.bf16.mxu0 0
        %4353 = vmatpush1.bf16.xpose.msra.mxu0 %v4350
        %4354 = vmatprep.subr.bf16.mxu0 0
        %4355 = vmatpush1.bf16.xpose.msra.mxu0 %v4347
        %4356 = vmatprep.subr.bf16.mxu0 0
        %4357 = vmatpush1.bf16.xpose.msra.mxu0 %v4344
        %4358 = vmatprep.subr.bf16.mxu0 0
        %4359 = vmatpush1.bf16.xpose.msra.mxu0 %v4341
        %4360 = vmatprep.subr.bf16.mxu0 0
        %4361 = vmatpush1.bf16.xpose.msra.mxu0 %v4338
        %4362 = vmatprep.subr.bf16.mxu0 0
        %4363 = vmatpush1.bf16.xpose.msra.mxu0 %v4335
        %4364 = vmatprep.subr.bf16.mxu0 0
        %4365 = vmatpush1.bf16.xpose.msra.mxu0 %v4332
        %4366 = vmatprep.subr.bf16.mxu0 0
        %4367 = vmatpush1.bf16.xpose.msra.mxu0 %v4329
        %4368 = vmatprep.subr.bf16.mxu0 0
        %4369 = vmatpush2.bf16.xpose.msra.mxu0 0
        %4370 = vmatprep.subr.bf16.mxu0 0
        %4371 = vmatpush2.bf16.xpose.msra.mxu0 0
        %4372 = vmatprep.subr.bf16.mxu0 0
        %4373 = vmatpush2.bf16.xpose.msra.mxu0 0
        %4374 = vmatprep.subr.bf16.mxu0 0
        %4375 = vmatpush2.bf16.xpose.msra.mxu0 0
        %4376 = vmatprep.subr.bf16.mxu0 0
        %4377 = vmatpush2.bf16.xpose.msra.mxu0 0
        %4378 = vmatprep.subr.bf16.mxu0 0
        %4379 = vmatpush2.bf16.xpose.msra.mxu0 0
        %4380 = vmatprep.subr.bf16.mxu0 0
        %4381 = vmatpush2.bf16.xpose.msra.mxu0 0
        %4382 = vmatprep.subr.bf16.mxu0 0
        %4383 = vmatpush2.bf16.xpose.msra.mxu0 0
        %4384 = vmatprep.mubr.bf16.mxu0 0
        %4385 = vmatmul.mubr.bf16.gmra.mxu0 %v4305
        %v4386 = vpop.f32.mrf.mxu0
        %v4387 = vadd.f32 0.0, %v4386
        %v4388 = vpop.f32.mrf.mxu0
        %v4389 = vpop.f32.mrf.mxu0
        %v4390 = vadd.f32 0.0, %v4389
        %v4391 = vpop.f32.mrf.mxu0
        %4392 = vmatprep.mubr.bf16.mxu0 0
        %4393 = vmatmul.mubr.bf16.gmra.mxu0 %v4308
        %v4394 = vpop.f32.mrf.mxu0
        %v4395 = vadd.f32 0.0, %v4394
        %v4396 = vpop.f32.mrf.mxu0
        %v4397 = vpop.f32.mrf.mxu0
        %v4398 = vadd.f32 0.0, %v4397
        %v4399 = vpop.f32.mrf.mxu0
        %4400 = vmatprep.mubr.bf16.mxu0 0
        %4401 = vmatmul.mubr.bf16.gmra.mxu0 %v4311
        %v4402 = vpop.f32.mrf.mxu0
        %v4403 = vadd.f32 0.0, %v4402
        %v4404 = vpop.f32.mrf.mxu0
        %v4405 = vpop.f32.mrf.mxu0
        %v4406 = vadd.f32 0.0, %v4405
        %v4407 = vpop.f32.mrf.mxu0
        %4408 = vmatprep.mubr.bf16.mxu0 0
        %4409 = vmatmul.mubr.bf16.gmra.mxu0 %v4314
        %v4410 = vpop.f32.mrf.mxu0
        %v4411 = vadd.f32 0.0, %v4410
        %v4412 = vpop.f32.mrf.mxu0
        %v4413 = vpop.f32.mrf.mxu0
        %v4414 = vadd.f32 0.0, %v4413
        %v4415 = vpop.f32.mrf.mxu0
        %4416 = vmatprep.mubr.bf16.mxu0 0
        %4417 = vmatmul.mubr.bf16.gmra.mxu0 %v4317
        %v4418 = vpop.f32.mrf.mxu0
        %v4419 = vadd.f32 0.0, %v4418
        %v4420 = vpop.f32.mrf.mxu0
        %v4421 = vpop.f32.mrf.mxu0
        %v4422 = vadd.f32 0.0, %v4421
        %v4423 = vpop.f32.mrf.mxu0
        %4424 = vmatprep.mubr.bf16.mxu0 0
        %4425 = vmatmul.mubr.bf16.gmra.mxu0 %v4320
        %v4426 = vpop.f32.mrf.mxu0
        %v4427 = vadd.f32 0.0, %v4426
        %v4428 = vpop.f32.mrf.mxu0
        %v4429 = vpop.f32.mrf.mxu0
        %v4430 = vadd.f32 0.0, %v4429
        %v4431 = vpop.f32.mrf.mxu0
        %4432 = vmatprep.mubr.bf16.mxu0 0
        %4433 = vmatmul.mubr.bf16.gmra.mxu0 %v4323
        %v4434 = vpop.f32.mrf.mxu0
        %v4435 = vadd.f32 0.0, %v4434
        %v4436 = vpop.f32.mrf.mxu0
        %v4437 = vpop.f32.mrf.mxu0
        %v4438 = vadd.f32 0.0, %v4437
        %v4439 = vpop.f32.mrf.mxu0
        %4440 = vmatprep.mubr.bf16.mxu0 0
        %4441 = vmatmul.mubr.bf16.gmra.mxu0 %v4326
        %v4442 = vpop.f32.mrf.mxu0
        %v4443 = vadd.f32 0.0, %v4442
        %v4444 = vpop.f32.mrf.mxu0
        %v4445 = vpop.f32.mrf.mxu0
        %v4446 = vadd.f32 0.0, %v4445
        %v4447 = vpop.f32.mrf.mxu0
        %4448 = vdwg.mxu0
        %4449 = vmax.xlane.f32.xlu0 %v4387
        %v4450 = vpop.xlane.xlu0 %4449
        %4451 = vmax.xlane.f32.xlu0 %v4390
        %v4452 = vpop.xlane.xlu0 %4451
        %4453 = vmax.xlane.f32.xlu0 %v4395
        %v4454 = vpop.xlane.xlu0 %4453
        %4455 = vmax.xlane.f32.xlu0 %v4398
        %v4456 = vpop.xlane.xlu0 %4455
        %4457 = vmax.xlane.f32.xlu0 %v4403
        %v4458 = vpop.xlane.xlu0 %4457
        %4459 = vmax.xlane.f32.xlu0 %v4406
        %v4460 = vpop.xlane.xlu0 %4459
        %4461 = vmax.xlane.f32.xlu0 %v4411
        %v4462 = vpop.xlane.xlu0 %4461
        %4463 = vmax.xlane.f32.xlu0 %v4414
        %v4464 = vpop.xlane.xlu0 %4463
        %4465 = vmax.xlane.f32.xlu0 %v4419
        %v4466 = vpop.xlane.xlu0 %4465
        %4467 = vmax.xlane.f32.xlu0 %v4422
        %v4468 = vpop.xlane.xlu0 %4467
        %4469 = vmax.xlane.f32.xlu0 %v4427
        %v4470 = vpop.xlane.xlu0 %4469
        %4471 = vmax.xlane.f32.xlu0 %v4430
        %v4472 = vpop.xlane.xlu0 %4471
        %4473 = vmax.xlane.f32.xlu0 %v4435
        %v4474 = vpop.xlane.xlu0 %4473
        %4475 = vmax.xlane.f32.xlu0 %v4438
        %v4476 = vpop.xlane.xlu0 %4475
        %4477 = vmax.xlane.f32.xlu0 %v4443
        %v4478 = vpop.xlane.xlu0 %4477
        %4479 = vmax.xlane.f32.xlu0 %v4446
        %v4480 = vpop.xlane.xlu0 %4479
        %v4481 = vsub.f32 %v4387, %v4450
        %v4482 = vsub.f32 %v4390, %v4452
        %v4483 = vsub.f32 %v4395, %v4454
        %v4484 = vsub.f32 %v4398, %v4456
        %v4485 = vsub.f32 %v4403, %v4458
        %v4486 = vsub.f32 %v4406, %v4460
        %v4487 = vsub.f32 %v4411, %v4462
        %v4488 = vsub.f32 %v4414, %v4464
        %v4489 = vsub.f32 %v4419, %v4466
        %v4490 = vsub.f32 %v4422, %v4468
        %v4491 = vsub.f32 %v4427, %v4470
        %v4492 = vsub.f32 %v4430, %v4472
        %v4493 = vsub.f32 %v4435, %v4474
        %v4494 = vsub.f32 %v4438, %v4476
        %v4495 = vsub.f32 %v4443, %v4478
        %v4496 = vsub.f32 %v4446, %v4480
        %v4497 = vmul.f32 %v4481, 1.442695
        %v4498 = vpow.pop %v4497
        %v4499 = vmul.f32 %v4482, 1.442695
        %v4500 = vpow.pop %v4499
        %v4501 = vmul.f32 %v4483, 1.442695
        %v4502 = vpow.pop %v4501
        %v4503 = vmul.f32 %v4484, 1.442695
        %v4504 = vpow.pop %v4503
        %v4505 = vmul.f32 %v4485, 1.442695
        %v4506 = vpow.pop %v4505
        %v4507 = vmul.f32 %v4486, 1.442695
        %v4508 = vpow.pop %v4507
        %v4509 = vmul.f32 %v4487, 1.442695
        %v4510 = vpow.pop %v4509
        %v4511 = vmul.f32 %v4488, 1.442695
        %v4512 = vpow.pop %v4511
        %v4513 = vmul.f32 %v4489, 1.442695
        %v4514 = vpow.pop %v4513
        %v4515 = vmul.f32 %v4490, 1.442695
        %v4516 = vpow.pop %v4515
        %v4517 = vmul.f32 %v4491, 1.442695
        %v4518 = vpow.pop %v4517
        %v4519 = vmul.f32 %v4492, 1.442695
        %v4520 = vpow.pop %v4519
        %v4521 = vmul.f32 %v4493, 1.442695
        %v4522 = vpow.pop %v4521
        %v4523 = vmul.f32 %v4494, 1.442695
        %v4524 = vpow.pop %v4523
        %v4525 = vmul.f32 %v4495, 1.442695
        %v4526 = vpow.pop %v4525
        %v4527 = vmul.f32 %v4496, 1.442695
        %v4528 = vpow.pop %v4527
        %4529 = vadd.xlane.f32.xlu0 %v4498
        %v4530 = vpop.xlane.xlu0 %4529
        %4531 = vadd.xlane.f32.xlu0 %v4500
        %v4532 = vpop.xlane.xlu0 %4531
        %4533 = vadd.xlane.f32.xlu0 %v4502
        %v4534 = vpop.xlane.xlu0 %4533
        %4535 = vadd.xlane.f32.xlu0 %v4504
        %v4536 = vpop.xlane.xlu0 %4535
        %4537 = vadd.xlane.f32.xlu0 %v4506
        %v4538 = vpop.xlane.xlu0 %4537
        %4539 = vadd.xlane.f32.xlu0 %v4508
        %v4540 = vpop.xlane.xlu0 %4539
        %4541 = vadd.xlane.f32.xlu0 %v4510
        %v4542 = vpop.xlane.xlu0 %4541
        %4543 = vadd.xlane.f32.xlu0 %v4512
        %v4544 = vpop.xlane.xlu0 %4543
        %4545 = vadd.xlane.f32.xlu0 %v4514
        %v4546 = vpop.xlane.xlu0 %4545
        %4547 = vadd.xlane.f32.xlu0 %v4516
        %v4548 = vpop.xlane.xlu0 %4547
        %4549 = vadd.xlane.f32.xlu0 %v4518
        %v4550 = vpop.xlane.xlu0 %4549
        %4551 = vadd.xlane.f32.xlu0 %v4520
        %v4552 = vpop.xlane.xlu0 %4551
        %4553 = vadd.xlane.f32.xlu0 %v4522
        %v4554 = vpop.xlane.xlu0 %4553
        %4555 = vadd.xlane.f32.xlu0 %v4524
        %v4556 = vpop.xlane.xlu0 %4555
        %4557 = vadd.xlane.f32.xlu0 %v4526
        %v4558 = vpop.xlane.xlu0 %4557
        %4559 = vadd.xlane.f32.xlu0 %v4528
        %v4560 = vpop.xlane.xlu0 %4559
        %v4561 = vrcp.pop %v4530
        %v4562 = vrcp.pop %v4532
        %v4563 = vrcp.pop %v4534
        %v4564 = vrcp.pop %v4536
        %v4565 = vrcp.pop %v4538
        %v4566 = vrcp.pop %v4540
        %v4567 = vrcp.pop %v4542
        %v4568 = vrcp.pop %v4544
        %v4569 = vrcp.pop %v4546
        %v4570 = vrcp.pop %v4548
        %v4571 = vrcp.pop %v4550
        %v4572 = vrcp.pop %v4552
        %v4573 = vrcp.pop %v4554
        %v4574 = vrcp.pop %v4556
        %v4575 = vrcp.pop %v4558
        %v4576 = vrcp.pop %v4560
        %v4577 = vmul.f32 %v4498, %v4561
        %v4578 = vmul.f32 %v4500, %v4562
        %v4579 = vmul.f32 %v4502, %v4563
        %v4580 = vmul.f32 %v4504, %v4564
        %v4581 = vmul.f32 %v4506, %v4565
        %v4582 = vmul.f32 %v4508, %v4566
        %v4583 = vmul.f32 %v4510, %v4567
        %v4584 = vmul.f32 %v4512, %v4568
        %v4585 = vmul.f32 %v4514, %v4569
        %v4586 = vmul.f32 %v4516, %v4570
        %v4587 = vmul.f32 %v4518, %v4571
        %v4588 = vmul.f32 %v4520, %v4572
        %v4589 = vmul.f32 %v4522, %v4573
        %v4590 = vmul.f32 %v4524, %v4574
        %v4591 = vmul.f32 %v4526, %v4575
        %v4592 = vmul.f32 %v4528, %v4576
        %v4593 = vpack.c.bf16 %v3960, %v3959
        %v4594 = vpack.c.bf16 %v3962, %v3961
        %v4595 = vpack.c.bf16 %v3964, %v3963
        %v4596 = vpack.c.bf16 %v3966, %v3965
        %v4597 = vpack.c.bf16 %v3968, %v3967
        %v4598 = vpack.c.bf16 %v3970, %v3969
        %v4599 = vpack.c.bf16 %v3972, %v3971
        %v4600 = vpack.c.bf16 %v3974, %v3973
        %v4601 = vpack.c.bf16 %v4273, %v4272
        %v4602 = vpack.c.bf16 %v4275, %v4274
        %v4603 = vpack.c.bf16 %v4277, %v4276
        %v4604 = vpack.c.bf16 %v4279, %v4278
        %v4605 = vpack.c.bf16 %v4281, %v4280
        %v4606 = vpack.c.bf16 %v4283, %v4282
        %v4607 = vpack.c.bf16 %v4285, %v4284
        %v4608 = vpack.c.bf16 %v4287, %v4286
        %v4609 = vpack.c.bf16 %v4578, %v4577
        %v4610 = vpack.c.bf16 %v4580, %v4579
        %v4611 = vpack.c.bf16 %v4582, %v4581
        %v4612 = vpack.c.bf16 %v4584, %v4583
        %v4613 = vpack.c.bf16 %v4586, %v4585
        %v4614 = vpack.c.bf16 %v4588, %v4587
        %v4615 = vpack.c.bf16 %v4590, %v4589
        %v4616 = vpack.c.bf16 %v4592, %v4591
        %4625 = vrot.lane.b32.xlu0 %v1653, 96
        %v4626 = vpop.permute.xlu0 %4625
        %4627 = vrot.lane.b32.xlu0 %v1655, 96
        %v4628 = vpop.permute.xlu0 %4627
        %4629 = vrot.lane.b32.xlu0 %v1657, 96
        %v4630 = vpop.permute.xlu0 %4629
        %4631 = vrot.lane.b32.xlu0 %v1659, 96
        %v4632 = vpop.permute.xlu0 %4631
        %4633 = vrot.lane.b32.xlu0 %v1661, 96
        %v4634 = vpop.permute.xlu0 %4633
        %4635 = vrot.lane.b32.xlu0 %v1663, 96
        %v4636 = vpop.permute.xlu0 %4635
        %4637 = vrot.lane.b32.xlu0 %v1665, 96
        %v4638 = vpop.permute.xlu0 %4637
        %4639 = vrot.lane.b32.xlu0 %v1667, 96
        %v4640 = vpop.permute.xlu0 %4639
        %4649 = vmatprep.subr.bf16.mxu0 0
        %4650 = vmatpush1.bf16.msra.mxu0 %v4640
        %4651 = vmatprep.subr.bf16.mxu0 0
        %4652 = vmatpush1.bf16.msra.mxu0 %v4638
        %4653 = vmatprep.subr.bf16.mxu0 0
        %4654 = vmatpush1.bf16.msra.mxu0 %v4636
        %4655 = vmatprep.subr.bf16.mxu0 0
        %4656 = vmatpush1.bf16.msra.mxu0 %v4634
        %4657 = vmatprep.subr.bf16.mxu0 0
        %4658 = vmatpush1.bf16.msra.mxu0 %v4632
        %4659 = vmatprep.subr.bf16.mxu0 0
        %4660 = vmatpush1.bf16.msra.mxu0 %v4630
        %4661 = vmatprep.subr.bf16.mxu0 0
        %4662 = vmatpush1.bf16.msra.mxu0 %v4628
        %4663 = vmatprep.subr.bf16.mxu0 0
        %4664 = vmatpush1.bf16.msra.mxu0 %v4626
        %4665 = vmatprep.subr.bf16.mxu0 0
        %4666 = vmatpush2.bf16.msra.mxu0 0
        %4667 = vmatprep.subr.bf16.mxu0 0
        %4668 = vmatpush2.bf16.msra.mxu0 0
        %4669 = vmatprep.subr.bf16.mxu0 0
        %4670 = vmatpush2.bf16.msra.mxu0 0
        %4671 = vmatprep.subr.bf16.mxu0 0
        %4672 = vmatpush2.bf16.msra.mxu0 0
        %4673 = vmatprep.subr.bf16.mxu0 0
        %4674 = vmatpush2.bf16.msra.mxu0 0
        %4675 = vmatprep.subr.bf16.mxu0 0
        %4676 = vmatpush2.bf16.msra.mxu0 0
        %4677 = vmatprep.subr.bf16.mxu0 0
        %4678 = vmatpush2.bf16.msra.mxu0 0
        %4679 = vmatprep.subr.bf16.mxu0 0
        %4680 = vmatpush2.bf16.msra.mxu0 0
        %4681 = vmatprep.mubr.bf16.mxu0 0
        %4682 = vmatmul.mubr.bf16.gmra.mxu0 %v4609
        %v4683 = vpop.f32.mrf.mxu0
        %v4684 = vadd.f32 0.0, %v4683
        %v4685 = vpop.f32.mrf.mxu0
        %v4686 = vpop.f32.mrf.mxu0
        %v4687 = vadd.f32 0.0, %v4686
        %v4688 = vpop.f32.mrf.mxu0
        %4689 = vmatprep.mubr.bf16.mxu0 0
        %4690 = vmatmul.mubr.bf16.gmra.mxu0 %v4610
        %v4691 = vpop.f32.mrf.mxu0
        %v4692 = vadd.f32 0.0, %v4691
        %v4693 = vpop.f32.mrf.mxu0
        %v4694 = vpop.f32.mrf.mxu0
        %v4695 = vadd.f32 0.0, %v4694
        %v4696 = vpop.f32.mrf.mxu0
        %4697 = vmatprep.mubr.bf16.mxu0 0
        %4698 = vmatmul.mubr.bf16.gmra.mxu0 %v4611
        %v4699 = vpop.f32.mrf.mxu0
        %v4700 = vadd.f32 0.0, %v4699
        %v4701 = vpop.f32.mrf.mxu0
        %v4702 = vpop.f32.mrf.mxu0
        %v4703 = vadd.f32 0.0, %v4702
        %v4704 = vpop.f32.mrf.mxu0
        %4705 = vmatprep.mubr.bf16.mxu0 0
        %4706 = vmatmul.mubr.bf16.gmra.mxu0 %v4612
        %v4707 = vpop.f32.mrf.mxu0
        %v4708 = vadd.f32 0.0, %v4707
        %v4709 = vpop.f32.mrf.mxu0
        %v4710 = vpop.f32.mrf.mxu0
        %v4711 = vadd.f32 0.0, %v4710
        %v4712 = vpop.f32.mrf.mxu0
        %4713 = vmatprep.mubr.bf16.mxu0 0
        %4714 = vmatmul.mubr.bf16.gmra.mxu0 %v4613
        %v4715 = vpop.f32.mrf.mxu0
        %v4716 = vadd.f32 0.0, %v4715
        %v4717 = vpop.f32.mrf.mxu0
        %v4718 = vpop.f32.mrf.mxu0
        %v4719 = vadd.f32 0.0, %v4718
        %v4720 = vpop.f32.mrf.mxu0
        %4721 = vmatprep.mubr.bf16.mxu0 0
        %4722 = vmatmul.mubr.bf16.gmra.mxu0 %v4614
        %v4723 = vpop.f32.mrf.mxu0
        %v4724 = vadd.f32 0.0, %v4723
        %v4725 = vpop.f32.mrf.mxu0
        %v4726 = vpop.f32.mrf.mxu0
        %v4727 = vadd.f32 0.0, %v4726
        %v4728 = vpop.f32.mrf.mxu0
        %4729 = vmatprep.mubr.bf16.mxu0 0
        %4730 = vmatmul.mubr.bf16.gmra.mxu0 %v4615
        %v4731 = vpop.f32.mrf.mxu0
        %v4732 = vadd.f32 0.0, %v4731
        %v4733 = vpop.f32.mrf.mxu0
        %v4734 = vpop.f32.mrf.mxu0
        %v4735 = vadd.f32 0.0, %v4734
        %v4736 = vpop.f32.mrf.mxu0
        %4737 = vmatprep.mubr.bf16.mxu0 0
        %4738 = vmatmul.mubr.bf16.gmra.mxu0 %v4616
        %v4739 = vpop.f32.mrf.mxu0
        %v4740 = vadd.f32 0.0, %v4739
        %v4741 = vpop.f32.mrf.mxu0
        %v4742 = vpop.f32.mrf.mxu0
        %v4743 = vadd.f32 0.0, %v4742
        %v4744 = vpop.f32.mrf.mxu0
        %4745 = vdwg.mxu0
        %4746 = vrot.lane.b32.xlu0 %v1437, 64
        %v4747 = vpop.permute.xlu0 %4746
        %4748 = vrot.lane.b32.xlu0 %v1440, 64
        %v4749 = vpop.permute.xlu0 %4748
        %4750 = vrot.lane.b32.xlu0 %v1443, 64
        %v4751 = vpop.permute.xlu0 %4750
        %4752 = vrot.lane.b32.xlu0 %v1446, 64
        %v4753 = vpop.permute.xlu0 %4752
        %4754 = vrot.lane.b32.xlu0 %v1449, 64
        %v4755 = vpop.permute.xlu0 %4754
        %4756 = vrot.lane.b32.xlu0 %v1452, 64
        %v4757 = vpop.permute.xlu0 %4756
        %4758 = vrot.lane.b32.xlu0 %v1455, 64
        %v4759 = vpop.permute.xlu0 %4758
        %4760 = vrot.lane.b32.xlu0 %v1458, 64
        %v4761 = vpop.permute.xlu0 %4760
        %4770 = vmatprep.subr.bf16.mxu0 0
        %4771 = vmatpush1.bf16.msra.mxu0 %v4761
        %4772 = vmatprep.subr.bf16.mxu0 0
        %4773 = vmatpush1.bf16.msra.mxu0 %v4759
        %4774 = vmatprep.subr.bf16.mxu0 0
        %4775 = vmatpush1.bf16.msra.mxu0 %v4757
        %4776 = vmatprep.subr.bf16.mxu0 0
        %4777 = vmatpush1.bf16.msra.mxu0 %v4755
        %4778 = vmatprep.subr.bf16.mxu0 0
        %4779 = vmatpush1.bf16.msra.mxu0 %v4753
        %4780 = vmatprep.subr.bf16.mxu0 0
        %4781 = vmatpush1.bf16.msra.mxu0 %v4751
        %4782 = vmatprep.subr.bf16.mxu0 0
        %4783 = vmatpush1.bf16.msra.mxu0 %v4749
        %4784 = vmatprep.subr.bf16.mxu0 0
        %4785 = vmatpush1.bf16.msra.mxu0 %v4747
        %4786 = vmatprep.subr.bf16.mxu0 0
        %4787 = vmatpush2.bf16.msra.mxu0 0
        %4788 = vmatprep.subr.bf16.mxu0 0
        %4789 = vmatpush2.bf16.msra.mxu0 0
        %4790 = vmatprep.subr.bf16.mxu0 0
        %4791 = vmatpush2.bf16.msra.mxu0 0
        %4792 = vmatprep.subr.bf16.mxu0 0
        %4793 = vmatpush2.bf16.msra.mxu0 0
        %4794 = vmatprep.subr.bf16.mxu0 0
        %4795 = vmatpush2.bf16.msra.mxu0 0
        %4796 = vmatprep.subr.bf16.mxu0 0
        %4797 = vmatpush2.bf16.msra.mxu0 0
        %4798 = vmatprep.subr.bf16.mxu0 0
        %4799 = vmatpush2.bf16.msra.mxu0 0
        %4800 = vmatprep.subr.bf16.mxu0 0
        %4801 = vmatpush2.bf16.msra.mxu0 0
        %4802 = vmatprep.mubr.bf16.mxu0 0
        %4803 = vmatmul.mubr.bf16.gmra.mxu0 %v4593
        %v4804 = vpop.f32.mrf.mxu0
        %v4805 = vadd.f32 0.0, %v4804
        %v4806 = vpop.f32.mrf.mxu0
        %v4807 = vpop.f32.mrf.mxu0
        %v4808 = vadd.f32 0.0, %v4807
        %v4809 = vpop.f32.mrf.mxu0
        %4810 = vmatprep.mubr.bf16.mxu0 0
        %4811 = vmatmul.mubr.bf16.gmra.mxu0 %v4594
        %v4812 = vpop.f32.mrf.mxu0
        %v4813 = vadd.f32 0.0, %v4812
        %v4814 = vpop.f32.mrf.mxu0
        %v4815 = vpop.f32.mrf.mxu0
        %v4816 = vadd.f32 0.0, %v4815
        %v4817 = vpop.f32.mrf.mxu0
        %4818 = vmatprep.mubr.bf16.mxu0 0
        %4819 = vmatmul.mubr.bf16.gmra.mxu0 %v4595
        %v4820 = vpop.f32.mrf.mxu0
        %v4821 = vadd.f32 0.0, %v4820
        %v4822 = vpop.f32.mrf.mxu0
        %v4823 = vpop.f32.mrf.mxu0
        %v4824 = vadd.f32 0.0, %v4823
        %v4825 = vpop.f32.mrf.mxu0
        %4826 = vmatprep.mubr.bf16.mxu0 0
        %4827 = vmatmul.mubr.bf16.gmra.mxu0 %v4596
        %v4828 = vpop.f32.mrf.mxu0
        %v4829 = vadd.f32 0.0, %v4828
        %v4830 = vpop.f32.mrf.mxu0
        %v4831 = vpop.f32.mrf.mxu0
        %v4832 = vadd.f32 0.0, %v4831
        %v4833 = vpop.f32.mrf.mxu0
        %4834 = vmatprep.mubr.bf16.mxu0 0
        %4835 = vmatmul.mubr.bf16.gmra.mxu0 %v4597
        %v4836 = vpop.f32.mrf.mxu0
        %v4837 = vadd.f32 0.0, %v4836
        %v4838 = vpop.f32.mrf.mxu0
        %v4839 = vpop.f32.mrf.mxu0
        %v4840 = vadd.f32 0.0, %v4839
        %v4841 = vpop.f32.mrf.mxu0
        %4842 = vmatprep.mubr.bf16.mxu0 0
        %4843 = vmatmul.mubr.bf16.gmra.mxu0 %v4598
        %v4844 = vpop.f32.mrf.mxu0
        %v4845 = vadd.f32 0.0, %v4844
        %v4846 = vpop.f32.mrf.mxu0
        %v4847 = vpop.f32.mrf.mxu0
        %v4848 = vadd.f32 0.0, %v4847
        %v4849 = vpop.f32.mrf.mxu0
        %4850 = vmatprep.mubr.bf16.mxu0 0
        %4851 = vmatmul.mubr.bf16.gmra.mxu0 %v4599
        %v4852 = vpop.f32.mrf.mxu0
        %v4853 = vadd.f32 0.0, %v4852
        %v4854 = vpop.f32.mrf.mxu0
        %v4855 = vpop.f32.mrf.mxu0
        %v4856 = vadd.f32 0.0, %v4855
        %v4857 = vpop.f32.mrf.mxu0
        %4858 = vmatprep.mubr.bf16.mxu0 0
        %4859 = vmatmul.mubr.bf16.gmra.mxu0 %v4600
        %v4860 = vpop.f32.mrf.mxu0
        %v4861 = vadd.f32 0.0, %v4860
        %v4862 = vpop.f32.mrf.mxu0
        %v4863 = vpop.f32.mrf.mxu0
        %v4864 = vadd.f32 0.0, %v4863
        %v4865 = vpop.f32.mrf.mxu0
        %4866 = vdwg.mxu0
        %4867 = vmatprep.subr.bf16.mxu0 0
        %4868 = vmatpush1.bf16.msra.mxu0 %v4761
        %4869 = vmatprep.subr.bf16.mxu0 0
        %4870 = vmatpush1.bf16.msra.mxu0 %v4759
        %4871 = vmatprep.subr.bf16.mxu0 0
        %4872 = vmatpush1.bf16.msra.mxu0 %v4757
        %4873 = vmatprep.subr.bf16.mxu0 0
        %4874 = vmatpush1.bf16.msra.mxu0 %v4755
        %4875 = vmatprep.subr.bf16.mxu0 0
        %4876 = vmatpush1.bf16.msra.mxu0 %v4753
        %4877 = vmatprep.subr.bf16.mxu0 0
        %4878 = vmatpush1.bf16.msra.mxu0 %v4751
        %4879 = vmatprep.subr.bf16.mxu0 0
        %4880 = vmatpush1.bf16.msra.mxu0 %v4749
        %4881 = vmatprep.subr.bf16.mxu0 0
        %4882 = vmatpush1.bf16.msra.mxu0 %v4747
        %4883 = vmatprep.subr.bf16.mxu0 0
        %4884 = vmatpush2.bf16.msra.mxu0 0
        %4885 = vmatprep.subr.bf16.mxu0 0
        %4886 = vmatpush2.bf16.msra.mxu0 0
        %4887 = vmatprep.subr.bf16.mxu0 0
        %4888 = vmatpush2.bf16.msra.mxu0 0
        %4889 = vmatprep.subr.bf16.mxu0 0
        %4890 = vmatpush2.bf16.msra.mxu0 0
        %4891 = vmatprep.subr.bf16.mxu0 0
        %4892 = vmatpush2.bf16.msra.mxu0 0
        %4893 = vmatprep.subr.bf16.mxu0 0
        %4894 = vmatpush2.bf16.msra.mxu0 0
        %4895 = vmatprep.subr.bf16.mxu0 0
        %4896 = vmatpush2.bf16.msra.mxu0 0
        %4897 = vmatprep.subr.bf16.mxu0 0
        %4898 = vmatpush2.bf16.msra.mxu0 0
        %4899 = vmatprep.mubr.bf16.mxu0 0
        %4900 = vmatmul.mubr.bf16.gmra.mxu0 %v4601
        %v4901 = vpop.f32.mrf.mxu0
        %v4902 = vadd.f32 0.0, %v4901
        %v4903 = vpop.f32.mrf.mxu0
        %v4904 = vpop.f32.mrf.mxu0
        %v4905 = vadd.f32 0.0, %v4904
        %v4906 = vpop.f32.mrf.mxu0
        %4907 = vmatprep.mubr.bf16.mxu0 0
        %4908 = vmatmul.mubr.bf16.gmra.mxu0 %v4602
        %v4909 = vpop.f32.mrf.mxu0
        %v4910 = vadd.f32 0.0, %v4909
        %v4911 = vpop.f32.mrf.mxu0
        %v4912 = vpop.f32.mrf.mxu0
        %v4913 = vadd.f32 0.0, %v4912
        %v4914 = vpop.f32.mrf.mxu0
        %4915 = vmatprep.mubr.bf16.mxu0 0
        %4916 = vmatmul.mubr.bf16.gmra.mxu0 %v4603
        %v4917 = vpop.f32.mrf.mxu0
        %v4918 = vadd.f32 0.0, %v4917
        %v4919 = vpop.f32.mrf.mxu0
        %v4920 = vpop.f32.mrf.mxu0
        %v4921 = vadd.f32 0.0, %v4920
        %v4922 = vpop.f32.mrf.mxu0
        %4923 = vmatprep.mubr.bf16.mxu0 0
        %4924 = vmatmul.mubr.bf16.gmra.mxu0 %v4604
        %v4925 = vpop.f32.mrf.mxu0
        %v4926 = vadd.f32 0.0, %v4925
        %v4927 = vpop.f32.mrf.mxu0
        %v4928 = vpop.f32.mrf.mxu0
        %v4929 = vadd.f32 0.0, %v4928
        %v4930 = vpop.f32.mrf.mxu0
        %4931 = vmatprep.mubr.bf16.mxu0 0
        %4932 = vmatmul.mubr.bf16.gmra.mxu0 %v4605
        %v4933 = vpop.f32.mrf.mxu0
        %v4934 = vadd.f32 0.0, %v4933
        %v4935 = vpop.f32.mrf.mxu0
        %v4936 = vpop.f32.mrf.mxu0
        %v4937 = vadd.f32 0.0, %v4936
        %v4938 = vpop.f32.mrf.mxu0
        %4939 = vmatprep.mubr.bf16.mxu0 0
        %4940 = vmatmul.mubr.bf16.gmra.mxu0 %v4606
        %v4941 = vpop.f32.mrf.mxu0
        %v4942 = vadd.f32 0.0, %v4941
        %v4943 = vpop.f32.mrf.mxu0
        %v4944 = vpop.f32.mrf.mxu0
        %v4945 = vadd.f32 0.0, %v4944
        %v4946 = vpop.f32.mrf.mxu0
        %4947 = vmatprep.mubr.bf16.mxu0 0
        %4948 = vmatmul.mubr.bf16.gmra.mxu0 %v4607
        %v4949 = vpop.f32.mrf.mxu0
        %v4950 = vadd.f32 0.0, %v4949
        %v4951 = vpop.f32.mrf.mxu0
        %v4952 = vpop.f32.mrf.mxu0
        %v4953 = vadd.f32 0.0, %v4952
        %v4954 = vpop.f32.mrf.mxu0
        %4955 = vmatprep.mubr.bf16.mxu0 0
        %4956 = vmatmul.mubr.bf16.gmra.mxu0 %v4608
        %v4957 = vpop.f32.mrf.mxu0
        %v4958 = vadd.f32 0.0, %v4957
        %v4959 = vpop.f32.mrf.mxu0
        %v4960 = vpop.f32.mrf.mxu0
        %v4961 = vadd.f32 0.0, %v4960
        %v4962 = vpop.f32.mrf.mxu0
        %4963 = vdwg.mxu0
        %4964 = vadd.xlane.f32.xlu0 %v3959
        %v4965 = vpop.xlane.xlu0 %4964
        %4966 = vadd.xlane.f32.xlu0 %v3960
        %v4967 = vpop.xlane.xlu0 %4966
        %4968 = vadd.xlane.f32.xlu0 %v3961
        %v4969 = vpop.xlane.xlu0 %4968
        %4970 = vadd.xlane.f32.xlu0 %v3962
        %v4971 = vpop.xlane.xlu0 %4970
        %4972 = vadd.xlane.f32.xlu0 %v3963
        %v4973 = vpop.xlane.xlu0 %4972
        %4974 = vadd.xlane.f32.xlu0 %v3964
        %v4975 = vpop.xlane.xlu0 %4974
        %4976 = vadd.xlane.f32.xlu0 %v3965
        %v4977 = vpop.xlane.xlu0 %4976
        %4978 = vadd.xlane.f32.xlu0 %v3966
        %v4979 = vpop.xlane.xlu0 %4978
        %4980 = vadd.xlane.f32.xlu0 %v3967
        %v4981 = vpop.xlane.xlu0 %4980
        %4982 = vadd.xlane.f32.xlu0 %v3968
        %v4983 = vpop.xlane.xlu0 %4982
        %4984 = vadd.xlane.f32.xlu0 %v3969
        %v4985 = vpop.xlane.xlu0 %4984
        %4986 = vadd.xlane.f32.xlu0 %v3970
        %v4987 = vpop.xlane.xlu0 %4986
        %4988 = vadd.xlane.f32.xlu0 %v3971
        %v4989 = vpop.xlane.xlu0 %4988
        %4990 = vadd.xlane.f32.xlu0 %v3972
        %v4991 = vpop.xlane.xlu0 %4990
        %4992 = vadd.xlane.f32.xlu0 %v3973
        %v4993 = vpop.xlane.xlu0 %4992
        %4994 = vadd.xlane.f32.xlu0 %v3974
        %v4995 = vpop.xlane.xlu0 %4994
        %v4996 = vrsqrt.pop %v4965
        %v4997 = vrsqrt.pop %v4967
        %v4998 = vrsqrt.pop %v4969
        %v4999 = vrsqrt.pop %v4971
        %v5000 = vrsqrt.pop %v4973
        %v5001 = vrsqrt.pop %v4975
        %v5002 = vrsqrt.pop %v4977
        %v5003 = vrsqrt.pop %v4979
        %v5004 = vrsqrt.pop %v4981
        %v5005 = vrsqrt.pop %v4983
        %v5006 = vrsqrt.pop %v4985
        %v5007 = vrsqrt.pop %v4987
        %v5008 = vrsqrt.pop %v4989
        %v5009 = vrsqrt.pop %v4991
        %v5010 = vrsqrt.pop %v4993
        %v5011 = vrsqrt.pop %v4995
        %5012 = vadd.xlane.f32.xlu0 %v4272
        %v5013 = vpop.xlane.xlu0 %5012
        %5014 = vadd.xlane.f32.xlu0 %v4273
        %v5015 = vpop.xlane.xlu0 %5014
        %5016 = vadd.xlane.f32.xlu0 %v4274
        %v5017 = vpop.xlane.xlu0 %5016
        %5018 = vadd.xlane.f32.xlu0 %v4275
        %v5019 = vpop.xlane.xlu0 %5018
        %5020 = vadd.xlane.f32.xlu0 %v4276
        %v5021 = vpop.xlane.xlu0 %5020
        %5022 = vadd.xlane.f32.xlu0 %v4277
        %v5023 = vpop.xlane.xlu0 %5022
        %5024 = vadd.xlane.f32.xlu0 %v4278
        %v5025 = vpop.xlane.xlu0 %5024
        %5026 = vadd.xlane.f32.xlu0 %v4279
        %v5027 = vpop.xlane.xlu0 %5026
        %5028 = vadd.xlane.f32.xlu0 %v4280
        %v5029 = vpop.xlane.xlu0 %5028
        %5030 = vadd.xlane.f32.xlu0 %v4281
        %v5031 = vpop.xlane.xlu0 %5030
        %5032 = vadd.xlane.f32.xlu0 %v4282
        %v5033 = vpop.xlane.xlu0 %5032
        %5034 = vadd.xlane.f32.xlu0 %v4283
        %v5035 = vpop.xlane.xlu0 %5034
        %5036 = vadd.xlane.f32.xlu0 %v4284
        %v5037 = vpop.xlane.xlu0 %5036
        %5038 = vadd.xlane.f32.xlu0 %v4285
        %v5039 = vpop.xlane.xlu0 %5038
        %5040 = vadd.xlane.f32.xlu0 %v4286
        %v5041 = vpop.xlane.xlu0 %5040
        %5042 = vadd.xlane.f32.xlu0 %v4287
        %v5043 = vpop.xlane.xlu0 %5042
        %v5044 = vrsqrt.pop %v5013
        %v5045 = vrsqrt.pop %v5015
        %v5046 = vrsqrt.pop %v5017
        %v5047 = vrsqrt.pop %v5019
        %v5048 = vrsqrt.pop %v5021
        %v5049 = vrsqrt.pop %v5023
        %v5050 = vrsqrt.pop %v5025
        %v5051 = vrsqrt.pop %v5027
        %v5052 = vrsqrt.pop %v5029
        %v5053 = vrsqrt.pop %v5031
        %v5054 = vrsqrt.pop %v5033
        %v5055 = vrsqrt.pop %v5035
        %v5056 = vrsqrt.pop %v5037
        %v5057 = vrsqrt.pop %v5039
        %v5058 = vrsqrt.pop %v5041
        %v5059 = vrsqrt.pop %v5043
        %v5060 = vmul.f32 %v4996, %v5044
        %v5061 = vmul.f32 %v4997, %v5045
        %v5062 = vmul.f32 %v4998, %v5046
        %v5063 = vmul.f32 %v4999, %v5047
        %v5064 = vmul.f32 %v5000, %v5048
        %v5065 = vmul.f32 %v5001, %v5049
        %v5066 = vmul.f32 %v5002, %v5050
        %v5067 = vmul.f32 %v5003, %v5051
        %v5068 = vmul.f32 %v5004, %v5052
        %v5069 = vmul.f32 %v5005, %v5053
        %v5070 = vmul.f32 %v5006, %v5054
        %v5071 = vmul.f32 %v5007, %v5055
        %v5072 = vmul.f32 %v5008, %v5056
        %v5073 = vmul.f32 %v5009, %v5057
        %v5074 = vmul.f32 %v5010, %v5058
        %v5075 = vmul.f32 %v5011, %v5059
        %v5076 = vmul.f32 %v3959, %v5060
        %v5077 = vmul.f32 %v3960, %v5061
        %v5078 = vmul.f32 %v3961, %v5062
        %v5079 = vmul.f32 %v3962, %v5063
        %v5080 = vmul.f32 %v3963, %v5064
        %v5081 = vmul.f32 %v3964, %v5065
        %v5082 = vmul.f32 %v3965, %v5066
        %v5083 = vmul.f32 %v3966, %v5067
        %v5084 = vmul.f32 %v3967, %v5068
        %v5085 = vmul.f32 %v3968, %v5069
        %v5086 = vmul.f32 %v3969, %v5070
        %v5087 = vmul.f32 %v3970, %v5071
        %v5088 = vmul.f32 %v3971, %v5072
        %v5089 = vmul.f32 %v3972, %v5073
        %v5090 = vmul.f32 %v3973, %v5074
        %v5091 = vmul.f32 %v3974, %v5075
        %v5092 = vpack.c.bf16 %v5077, %v5076
        %v5093 = vpack.c.bf16 %v5079, %v5078
        %v5094 = vpack.c.bf16 %v5081, %v5080
        %v5095 = vpack.c.bf16 %v5083, %v5082
        %v5096 = vpack.c.bf16 %v5085, %v5084
        %v5097 = vpack.c.bf16 %v5087, %v5086
        %v5098 = vpack.c.bf16 %v5089, %v5088
        %v5099 = vpack.c.bf16 %v5091, %v5090
        %5100 = vxpose.xlu0.c.b16.start [1/8] %v5092, 128
        %5101 = vxpose.xlu0.c.b16.cont [2/8] %v5093, 128
        %5102 = vxpose.xlu0.c.b16.cont [3/8] %v5094, 128
        %5103 = vxpose.xlu0.c.b16.cont [4/8] %v5095, 128
        %5104 = vxpose.xlu0.c.b16.cont [5/8] %v5096, 128
        %5105 = vxpose.xlu0.c.b16.cont [6/8] %v5097, 128
        %5106 = vxpose.xlu0.c.b16.cont [7/8] %v5098, 128
        %5107 = vxpose.xlu0.c.b16.end [8/8] %v5099, 128
        %v5108 = vpop.trf.xlu0
        %v5109 = vpop.trf.xlu0
        %v5110 = vpop.trf.xlu0
        %v5111 = vpop.trf.xlu0
        %v5112 = vpop.trf.xlu0
        %v5113 = vpop.trf.xlu0
        %v5114 = vpop.trf.xlu0
        %v5115 = vpop.trf.xlu0
        %5116 = vmatprep.subr.bf16.mxu0 0
        %5117 = vmatpush1.bf16.msra.mxu0 %v4608
        %5118 = vmatprep.subr.bf16.mxu0 0
        %5119 = vmatpush1.bf16.msra.mxu0 %v4607
        %5120 = vmatprep.subr.bf16.mxu0 0
        %5121 = vmatpush1.bf16.msra.mxu0 %v4606
        %5122 = vmatprep.subr.bf16.mxu0 0
        %5123 = vmatpush1.bf16.msra.mxu0 %v4605
        %5124 = vmatprep.subr.bf16.mxu0 0
        %5125 = vmatpush1.bf16.msra.mxu0 %v4604
        %5126 = vmatprep.subr.bf16.mxu0 0
        %5127 = vmatpush1.bf16.msra.mxu0 %v4603
        %5128 = vmatprep.subr.bf16.mxu0 0
        %5129 = vmatpush1.bf16.msra.mxu0 %v4602
        %5130 = vmatprep.subr.bf16.mxu0 0
        %5131 = vmatpush1.bf16.msra.mxu0 %v4601
        %5132 = vmatprep.subr.bf16.mxu0 0
        %5133 = vmatpush2.bf16.msra.mxu0 0
        %5134 = vmatprep.subr.bf16.mxu0 0
        %5135 = vmatpush2.bf16.msra.mxu0 0
        %5136 = vmatprep.subr.bf16.mxu0 0
        %5137 = vmatpush2.bf16.msra.mxu0 0
        %5138 = vmatprep.subr.bf16.mxu0 0
        %5139 = vmatpush2.bf16.msra.mxu0 0
        %5140 = vmatprep.subr.bf16.mxu0 0
        %5141 = vmatpush2.bf16.msra.mxu0 0
        %5142 = vmatprep.subr.bf16.mxu0 0
        %5143 = vmatpush2.bf16.msra.mxu0 0
        %5144 = vmatprep.subr.bf16.mxu0 0
        %5145 = vmatpush2.bf16.msra.mxu0 0
        %5146 = vmatprep.subr.bf16.mxu0 0
        %5147 = vmatpush2.bf16.msra.mxu0 0
        %5148 = vmatprep.mubr.bf16.mxu0 0
        %5149 = vmatmul.mubr.bf16.gmra.mxu0 %v5108
        %v5150 = vpop.f32.mrf.mxu0
        %v5151 = vadd.f32 0.0, %v5150
        %v5152 = vpop.f32.mrf.mxu0
        %v5153 = vpop.f32.mrf.mxu0
        %v5154 = vadd.f32 0.0, %v5153
        %v5155 = vpop.f32.mrf.mxu0
        %5156 = vmatprep.mubr.bf16.mxu0 0
        %5157 = vmatmul.mubr.bf16.gmra.mxu0 %v5109
        %v5158 = vpop.f32.mrf.mxu0
        %v5159 = vadd.f32 0.0, %v5158
        %v5160 = vpop.f32.mrf.mxu0
        %v5161 = vpop.f32.mrf.mxu0
        %v5162 = vadd.f32 0.0, %v5161
        %v5163 = vpop.f32.mrf.mxu0
        %5164 = vmatprep.mubr.bf16.mxu0 0
        %5165 = vmatmul.mubr.bf16.gmra.mxu0 %v5110
        %v5166 = vpop.f32.mrf.mxu0
        %v5167 = vadd.f32 0.0, %v5166
        %v5168 = vpop.f32.mrf.mxu0
        %v5169 = vpop.f32.mrf.mxu0
        %v5170 = vadd.f32 0.0, %v5169
        %v5171 = vpop.f32.mrf.mxu0
        %5172 = vmatprep.mubr.bf16.mxu0 0
        %5173 = vmatmul.mubr.bf16.gmra.mxu0 %v5111
        %v5174 = vpop.f32.mrf.mxu0
        %v5175 = vadd.f32 0.0, %v5174
        %v5176 = vpop.f32.mrf.mxu0
        %v5177 = vpop.f32.mrf.mxu0
        %v5178 = vadd.f32 0.0, %v5177
        %v5179 = vpop.f32.mrf.mxu0
        %5180 = vmatprep.mubr.bf16.mxu0 0
        %5181 = vmatmul.mubr.bf16.gmra.mxu0 %v5112
        %v5182 = vpop.f32.mrf.mxu0
        %v5183 = vadd.f32 0.0, %v5182
        %v5184 = vpop.f32.mrf.mxu0
        %v5185 = vpop.f32.mrf.mxu0
        %v5186 = vadd.f32 0.0, %v5185
        %v5187 = vpop.f32.mrf.mxu0
        %5188 = vmatprep.mubr.bf16.mxu0 0
        %5189 = vmatmul.mubr.bf16.gmra.mxu0 %v5113
        %v5190 = vpop.f32.mrf.mxu0
        %v5191 = vadd.f32 0.0, %v5190
        %v5192 = vpop.f32.mrf.mxu0
        %v5193 = vpop.f32.mrf.mxu0
        %v5194 = vadd.f32 0.0, %v5193
        %v5195 = vpop.f32.mrf.mxu0
        %5196 = vmatprep.mubr.bf16.mxu0 0
        %5197 = vmatmul.mubr.bf16.gmra.mxu0 %v5114
        %v5198 = vpop.f32.mrf.mxu0
        %v5199 = vadd.f32 0.0, %v5198
        %v5200 = vpop.f32.mrf.mxu0
        %v5201 = vpop.f32.mrf.mxu0
        %v5202 = vadd.f32 0.0, %v5201
        %v5203 = vpop.f32.mrf.mxu0
        %5204 = vmatprep.mubr.bf16.mxu0 0
        %5205 = vmatmul.mubr.bf16.gmra.mxu0 %v5115
        %v5206 = vpop.f32.mrf.mxu0
        %v5207 = vadd.f32 0.0, %v5206
        %v5208 = vpop.f32.mrf.mxu0
        %v5209 = vpop.f32.mrf.mxu0
        %v5210 = vadd.f32 0.0, %v5209
        %v5211 = vpop.f32.mrf.mxu0
        %5212 = vdwg.mxu0
        %v5213 = vpack.c.bf16 %v5154, %v5151
        %v5214 = vpack.c.bf16 %v5162, %v5159
        %v5215 = vpack.c.bf16 %v5170, %v5167
        %v5216 = vpack.c.bf16 %v5178, %v5175
        %v5217 = vpack.c.bf16 %v5186, %v5183
        %v5218 = vpack.c.bf16 %v5194, %v5191
        %v5219 = vpack.c.bf16 %v5202, %v5199
        %v5220 = vpack.c.bf16 %v5210, %v5207
        %v5221 = vunpack.c.l.bf16 %v1437
        %v5222 = vunpack.c.h.bf16 %v1437
        %v5223 = vunpack.c.l.bf16 %v1440
        %v5224 = vunpack.c.h.bf16 %v1440
        %v5225 = vunpack.c.l.bf16 %v1443
        %v5226 = vunpack.c.h.bf16 %v1443
        %v5227 = vunpack.c.l.bf16 %v1446
        %v5228 = vunpack.c.h.bf16 %v1446
        %v5229 = vunpack.c.l.bf16 %v1449
        %v5230 = vunpack.c.h.bf16 %v1449
        %v5231 = vunpack.c.l.bf16 %v1452
        %v5232 = vunpack.c.h.bf16 %v1452
        %v5233 = vunpack.c.l.bf16 %v1455
        %v5234 = vunpack.c.h.bf16 %v1455
        %v5235 = vunpack.c.l.bf16 %v1458
        %v5236 = vunpack.c.h.bf16 %v1458
        %v5237 = vmul.f32 %v5044, %v5221
        %v5238 = vmul.f32 %v5045, %v5222
        %v5239 = vmul.f32 %v5046, %v5223
        %v5240 = vmul.f32 %v5047, %v5224
        %v5241 = vmul.f32 %v5048, %v5225
        %v5242 = vmul.f32 %v5049, %v5226
        %v5243 = vmul.f32 %v5050, %v5227
        %v5244 = vmul.f32 %v5051, %v5228
        %v5245 = vmul.f32 %v5052, %v5229
        %v5246 = vmul.f32 %v5053, %v5230
        %v5247 = vmul.f32 %v5054, %v5231
        %v5248 = vmul.f32 %v5055, %v5232
        %v5249 = vmul.f32 %v5056, %v5233
        %v5250 = vmul.f32 %v5057, %v5234
        %v5251 = vmul.f32 %v5058, %v5235
        %v5252 = vmul.f32 %v5059, %v5236
        %v5253 = vpack.c.bf16 %v5238, %v5237
        %v5254 = vpack.c.bf16 %v5240, %v5239
        %v5255 = vpack.c.bf16 %v5242, %v5241
        %v5256 = vpack.c.bf16 %v5244, %v5243
        %v5257 = vpack.c.bf16 %v5246, %v5245
        %v5258 = vpack.c.bf16 %v5248, %v5247
        %v5259 = vpack.c.bf16 %v5250, %v5249
        %v5260 = vpack.c.bf16 %v5252, %v5251
        %5269 = vrot.lane.b32.xlu0 %v5253, 32
        %v5270 = vpop.permute.xlu0 %5269
        %5271 = vrot.lane.b32.xlu0 %v5254, 32
        %v5272 = vpop.permute.xlu0 %5271
        %5273 = vrot.lane.b32.xlu0 %v5255, 32
        %v5274 = vpop.permute.xlu0 %5273
        %5275 = vrot.lane.b32.xlu0 %v5256, 32
        %v5276 = vpop.permute.xlu0 %5275
        %5277 = vrot.lane.b32.xlu0 %v5257, 32
        %v5278 = vpop.permute.xlu0 %5277
        %5279 = vrot.lane.b32.xlu0 %v5258, 32
        %v5280 = vpop.permute.xlu0 %5279
        %5281 = vrot.lane.b32.xlu0 %v5259, 32
        %v5282 = vpop.permute.xlu0 %5281
        %5283 = vrot.lane.b32.xlu0 %v5260, 32
        %v5284 = vpop.permute.xlu0 %5283
        %5293 = vmatprep.subr.bf16.mxu0 0
        %5294 = vmatpush1.bf16.msra.mxu0 %v5284
        %5295 = vmatprep.subr.bf16.mxu0 0
        %5296 = vmatpush1.bf16.msra.mxu0 %v5282
        %5297 = vmatprep.subr.bf16.mxu0 0
        %5298 = vmatpush1.bf16.msra.mxu0 %v5280
        %5299 = vmatprep.subr.bf16.mxu0 0
        %5300 = vmatpush1.bf16.msra.mxu0 %v5278
        %5301 = vmatprep.subr.bf16.mxu0 0
        %5302 = vmatpush1.bf16.msra.mxu0 %v5276
        %5303 = vmatprep.subr.bf16.mxu0 0
        %5304 = vmatpush1.bf16.msra.mxu0 %v5274
        %5305 = vmatprep.subr.bf16.mxu0 0
        %5306 = vmatpush1.bf16.msra.mxu0 %v5272
        %5307 = vmatprep.subr.bf16.mxu0 0
        %5308 = vmatpush1.bf16.msra.mxu0 %v5270
        %5309 = vmatprep.subr.bf16.mxu0 0
        %5310 = vmatpush2.bf16.msra.mxu0 0
        %5311 = vmatprep.subr.bf16.mxu0 0
        %5312 = vmatpush2.bf16.msra.mxu0 0
        %5313 = vmatprep.subr.bf16.mxu0 0
        %5314 = vmatpush2.bf16.msra.mxu0 0
        %5315 = vmatprep.subr.bf16.mxu0 0
        %5316 = vmatpush2.bf16.msra.mxu0 0
        %5317 = vmatprep.subr.bf16.mxu0 0
        %5318 = vmatpush2.bf16.msra.mxu0 0
        %5319 = vmatprep.subr.bf16.mxu0 0
        %5320 = vmatpush2.bf16.msra.mxu0 0
        %5321 = vmatprep.subr.bf16.mxu0 0
        %5322 = vmatpush2.bf16.msra.mxu0 0
        %5323 = vmatprep.subr.bf16.mxu0 0
        %5324 = vmatpush2.bf16.msra.mxu0 0
        %5325 = vmatprep.mubr.bf16.mxu0 0
        %5326 = vmatmul.mubr.bf16.gmra.mxu0 %v5213
        %v5327 = vpop.f32.mrf.mxu0
        %v5328 = vadd.f32 0.0, %v5327
        %v5329 = vpop.f32.mrf.mxu0
        %v5330 = vpop.f32.mrf.mxu0
        %v5331 = vadd.f32 0.0, %v5330
        %v5332 = vpop.f32.mrf.mxu0
        %5333 = vmatprep.mubr.bf16.mxu0 0
        %5334 = vmatmul.mubr.bf16.gmra.mxu0 %v5214
        %v5335 = vpop.f32.mrf.mxu0
        %v5336 = vadd.f32 0.0, %v5335
        %v5337 = vpop.f32.mrf.mxu0
        %v5338 = vpop.f32.mrf.mxu0
        %v5339 = vadd.f32 0.0, %v5338
        %v5340 = vpop.f32.mrf.mxu0
        %5341 = vmatprep.mubr.bf16.mxu0 0
        %5342 = vmatmul.mubr.bf16.gmra.mxu0 %v5215
        %v5343 = vpop.f32.mrf.mxu0
        %v5344 = vadd.f32 0.0, %v5343
        %v5345 = vpop.f32.mrf.mxu0
        %v5346 = vpop.f32.mrf.mxu0
        %v5347 = vadd.f32 0.0, %v5346
        %v5348 = vpop.f32.mrf.mxu0
        %5349 = vmatprep.mubr.bf16.mxu0 0
        %5350 = vmatmul.mubr.bf16.gmra.mxu0 %v5216
        %v5351 = vpop.f32.mrf.mxu0
        %v5352 = vadd.f32 0.0, %v5351
        %v5353 = vpop.f32.mrf.mxu0
        %v5354 = vpop.f32.mrf.mxu0
        %v5355 = vadd.f32 0.0, %v5354
        %v5356 = vpop.f32.mrf.mxu0
        %5357 = vmatprep.mubr.bf16.mxu0 0
        %5358 = vmatmul.mubr.bf16.gmra.mxu0 %v5217
        %v5359 = vpop.f32.mrf.mxu0
        %v5360 = vadd.f32 0.0, %v5359
        %v5361 = vpop.f32.mrf.mxu0
        %v5362 = vpop.f32.mrf.mxu0
        %v5363 = vadd.f32 0.0, %v5362
        %v5364 = vpop.f32.mrf.mxu0
        %5365 = vmatprep.mubr.bf16.mxu0 0
        %5366 = vmatmul.mubr.bf16.gmra.mxu0 %v5218
        %v5367 = vpop.f32.mrf.mxu0
        %v5368 = vadd.f32 0.0, %v5367
        %v5369 = vpop.f32.mrf.mxu0
        %v5370 = vpop.f32.mrf.mxu0
        %v5371 = vadd.f32 0.0, %v5370
        %v5372 = vpop.f32.mrf.mxu0
        %5373 = vmatprep.mubr.bf16.mxu0 0
        %5374 = vmatmul.mubr.bf16.gmra.mxu0 %v5219
        %v5375 = vpop.f32.mrf.mxu0
        %v5376 = vadd.f32 0.0, %v5375
        %v5377 = vpop.f32.mrf.mxu0
        %v5378 = vpop.f32.mrf.mxu0
        %v5379 = vadd.f32 0.0, %v5378
        %v5380 = vpop.f32.mrf.mxu0
        %5381 = vmatprep.mubr.bf16.mxu0 0
        %5382 = vmatmul.mubr.bf16.gmra.mxu0 %v5220
        %v5383 = vpop.f32.mrf.mxu0
        %v5384 = vadd.f32 0.0, %v5383
        %v5385 = vpop.f32.mrf.mxu0
        %v5386 = vpop.f32.mrf.mxu0
        %v5387 = vadd.f32 0.0, %v5386
        %v5388 = vpop.f32.mrf.mxu0
        %5389 = vdwg.mxu0
        %v5390 = vmul.f32 %v4996, %v5328
        %v5391 = vmul.f32 %v4997, %v5331
        %v5392 = vmul.f32 %v4998, %v5336
        %v5393 = vmul.f32 %v4999, %v5339
        %v5394 = vmul.f32 %v5000, %v5344
        %v5395 = vmul.f32 %v5001, %v5347
        %v5396 = vmul.f32 %v5002, %v5352
        %v5397 = vmul.f32 %v5003, %v5355
        %v5398 = vmul.f32 %v5004, %v5360
        %v5399 = vmul.f32 %v5005, %v5363
        %v5400 = vmul.f32 %v5006, %v5368
        %v5401 = vmul.f32 %v5007, %v5371
        %v5402 = vmul.f32 %v5008, %v5376
        %v5403 = vmul.f32 %v5009, %v5379
        %v5404 = vmul.f32 %v5010, %v5384
        %v5405 = vmul.f32 %v5011, %v5387
        %v5406 = vmul.f32 %v4996, %v5221
        %v5407 = vmul.f32 %v4997, %v5222
        %v5408 = vmul.f32 %v4998, %v5223
        %v5409 = vmul.f32 %v4999, %v5224
        %v5410 = vmul.f32 %v5000, %v5225
        %v5411 = vmul.f32 %v5001, %v5226
        %v5412 = vmul.f32 %v5002, %v5227
        %v5413 = vmul.f32 %v5003, %v5228
        %v5414 = vmul.f32 %v5004, %v5229
        %v5415 = vmul.f32 %v5005, %v5230
        %v5416 = vmul.f32 %v5006, %v5231
        %v5417 = vmul.f32 %v5007, %v5232
        %v5418 = vmul.f32 %v5008, %v5233
        %v5419 = vmul.f32 %v5009, %v5234
        %v5420 = vmul.f32 %v5010, %v5235
        %v5421 = vmul.f32 %v5011, %v5236
        %v5422 = vpack.c.bf16 %v5407, %v5406
        %v5423 = vpack.c.bf16 %v5409, %v5408
        %v5424 = vpack.c.bf16 %v5411, %v5410
        %v5425 = vpack.c.bf16 %v5413, %v5412
        %v5426 = vpack.c.bf16 %v5415, %v5414
        %v5427 = vpack.c.bf16 %v5417, %v5416
        %v5428 = vpack.c.bf16 %v5419, %v5418
        %v5429 = vpack.c.bf16 %v5421, %v5420
        %5430 = vxpose.xlu0.c.b16.start [1/8] %v5213, 128
        %5431 = vxpose.xlu0.c.b16.cont [2/8] %v5214, 128
        %5432 = vxpose.xlu0.c.b16.cont [3/8] %v5215, 128
        %5433 = vxpose.xlu0.c.b16.cont [4/8] %v5216, 128
        %5434 = vxpose.xlu0.c.b16.cont [5/8] %v5217, 128
        %5435 = vxpose.xlu0.c.b16.cont [6/8] %v5218, 128
        %5436 = vxpose.xlu0.c.b16.cont [7/8] %v5219, 128
        %5437 = vxpose.xlu0.c.b16.end [8/8] %v5220, 128
        %v5438 = vpop.trf.xlu0
        %v5439 = vpop.trf.xlu0
        %v5440 = vpop.trf.xlu0
        %v5441 = vpop.trf.xlu0
        %v5442 = vpop.trf.xlu0
        %v5443 = vpop.trf.xlu0
        %v5444 = vpop.trf.xlu0
        %v5445 = vpop.trf.xlu0
        %5454 = vrot.lane.b32.xlu0 %v5422, 64
        %v5455 = vpop.permute.xlu0 %5454
        %5456 = vrot.lane.b32.xlu0 %v5423, 64
        %v5457 = vpop.permute.xlu0 %5456
        %5458 = vrot.lane.b32.xlu0 %v5424, 64
        %v5459 = vpop.permute.xlu0 %5458
        %5460 = vrot.lane.b32.xlu0 %v5425, 64
        %v5461 = vpop.permute.xlu0 %5460
        %5462 = vrot.lane.b32.xlu0 %v5426, 64
        %v5463 = vpop.permute.xlu0 %5462
        %5464 = vrot.lane.b32.xlu0 %v5427, 64
        %v5465 = vpop.permute.xlu0 %5464
        %5466 = vrot.lane.b32.xlu0 %v5428, 64
        %v5467 = vpop.permute.xlu0 %5466
        %5468 = vrot.lane.b32.xlu0 %v5429, 64
        %v5469 = vpop.permute.xlu0 %5468
        %5478 = vmatprep.subr.bf16.mxu0 0
        %5479 = vmatpush1.bf16.msra.mxu0 %v5469
        %5480 = vmatprep.subr.bf16.mxu0 0
        %5481 = vmatpush1.bf16.msra.mxu0 %v5467
        %5482 = vmatprep.subr.bf16.mxu0 0
        %5483 = vmatpush1.bf16.msra.mxu0 %v5465
        %5484 = vmatprep.subr.bf16.mxu0 0
        %5485 = vmatpush1.bf16.msra.mxu0 %v5463
        %5486 = vmatprep.subr.bf16.mxu0 0
        %5487 = vmatpush1.bf16.msra.mxu0 %v5461
        %5488 = vmatprep.subr.bf16.mxu0 0
        %5489 = vmatpush1.bf16.msra.mxu0 %v5459
        %5490 = vmatprep.subr.bf16.mxu0 0
        %5491 = vmatpush1.bf16.msra.mxu0 %v5457
        %5492 = vmatprep.subr.bf16.mxu0 0
        %5493 = vmatpush1.bf16.msra.mxu0 %v5455
        %5494 = vmatprep.subr.bf16.mxu0 0
        %5495 = vmatpush2.bf16.msra.mxu0 0
        %5496 = vmatprep.subr.bf16.mxu0 0
        %5497 = vmatpush2.bf16.msra.mxu0 0
        %5498 = vmatprep.subr.bf16.mxu0 0
        %5499 = vmatpush2.bf16.msra.mxu0 0
        %5500 = vmatprep.subr.bf16.mxu0 0
        %5501 = vmatpush2.bf16.msra.mxu0 0
        %5502 = vmatprep.subr.bf16.mxu0 0
        %5503 = vmatpush2.bf16.msra.mxu0 0
        %5504 = vmatprep.subr.bf16.mxu0 0
        %5505 = vmatpush2.bf16.msra.mxu0 0
        %5506 = vmatprep.subr.bf16.mxu0 0
        %5507 = vmatpush2.bf16.msra.mxu0 0
        %5508 = vmatprep.subr.bf16.mxu0 0
        %5509 = vmatpush2.bf16.msra.mxu0 0
        %5510 = vmatprep.mubr.bf16.mxu0 0
        %5511 = vmatmul.mubr.bf16.gmra.mxu0 %v5438
        %v5512 = vpop.f32.mrf.mxu0
        %v5513 = vadd.f32 0.0, %v5512
        %v5514 = vpop.f32.mrf.mxu0
        %v5515 = vpop.f32.mrf.mxu0
        %v5516 = vadd.f32 0.0, %v5515
        %v5517 = vpop.f32.mrf.mxu0
        %5518 = vmatprep.mubr.bf16.mxu0 0
        %5519 = vmatmul.mubr.bf16.gmra.mxu0 %v5439
        %v5520 = vpop.f32.mrf.mxu0
        %v5521 = vadd.f32 0.0, %v5520
        %v5522 = vpop.f32.mrf.mxu0
        %v5523 = vpop.f32.mrf.mxu0
        %v5524 = vadd.f32 0.0, %v5523
        %v5525 = vpop.f32.mrf.mxu0
        %5526 = vmatprep.mubr.bf16.mxu0 0
        %5527 = vmatmul.mubr.bf16.gmra.mxu0 %v5440
        %v5528 = vpop.f32.mrf.mxu0
        %v5529 = vadd.f32 0.0, %v5528
        %v5530 = vpop.f32.mrf.mxu0
        %v5531 = vpop.f32.mrf.mxu0
        %v5532 = vadd.f32 0.0, %v5531
        %v5533 = vpop.f32.mrf.mxu0
        %5534 = vmatprep.mubr.bf16.mxu0 0
        %5535 = vmatmul.mubr.bf16.gmra.mxu0 %v5441
        %v5536 = vpop.f32.mrf.mxu0
        %v5537 = vadd.f32 0.0, %v5536
        %v5538 = vpop.f32.mrf.mxu0
        %v5539 = vpop.f32.mrf.mxu0
        %v5540 = vadd.f32 0.0, %v5539
        %v5541 = vpop.f32.mrf.mxu0
        %5542 = vmatprep.mubr.bf16.mxu0 0
        %5543 = vmatmul.mubr.bf16.gmra.mxu0 %v5442
        %v5544 = vpop.f32.mrf.mxu0
        %v5545 = vadd.f32 0.0, %v5544
        %v5546 = vpop.f32.mrf.mxu0
        %v5547 = vpop.f32.mrf.mxu0
        %v5548 = vadd.f32 0.0, %v5547
        %v5549 = vpop.f32.mrf.mxu0
        %5550 = vmatprep.mubr.bf16.mxu0 0
        %5551 = vmatmul.mubr.bf16.gmra.mxu0 %v5443
        %v5552 = vpop.f32.mrf.mxu0
        %v5553 = vadd.f32 0.0, %v5552
        %v5554 = vpop.f32.mrf.mxu0
        %v5555 = vpop.f32.mrf.mxu0
        %v5556 = vadd.f32 0.0, %v5555
        %v5557 = vpop.f32.mrf.mxu0
        %5558 = vmatprep.mubr.bf16.mxu0 0
        %5559 = vmatmul.mubr.bf16.gmra.mxu0 %v5444
        %v5560 = vpop.f32.mrf.mxu0
        %v5561 = vadd.f32 0.0, %v5560
        %v5562 = vpop.f32.mrf.mxu0
        %v5563 = vpop.f32.mrf.mxu0
        %v5564 = vadd.f32 0.0, %v5563
        %v5565 = vpop.f32.mrf.mxu0
        %5566 = vmatprep.mubr.bf16.mxu0 0
        %5567 = vmatmul.mubr.bf16.gmra.mxu0 %v5445
        %v5568 = vpop.f32.mrf.mxu0
        %v5569 = vadd.f32 0.0, %v5568
        %v5570 = vpop.f32.mrf.mxu0
        %v5571 = vpop.f32.mrf.mxu0
        %v5572 = vadd.f32 0.0, %v5571
        %v5573 = vpop.f32.mrf.mxu0
        %5574 = vdwg.mxu0
        %v5575 = vmul.f32 %v5044, %v5513
        %v5576 = vmul.f32 %v5045, %v5516
        %v5577 = vmul.f32 %v5046, %v5521
        %v5578 = vmul.f32 %v5047, %v5524
        %v5579 = vmul.f32 %v5048, %v5529
        %v5580 = vmul.f32 %v5049, %v5532
        %v5581 = vmul.f32 %v5050, %v5537
        %v5582 = vmul.f32 %v5051, %v5540
        %v5583 = vmul.f32 %v5052, %v5545
        %v5584 = vmul.f32 %v5053, %v5548
        %v5585 = vmul.f32 %v5054, %v5553
        %v5586 = vmul.f32 %v5055, %v5556
        %v5587 = vmul.f32 %v5056, %v5561
        %v5588 = vmul.f32 %v5057, %v5564
        %v5589 = vmul.f32 %v5058, %v5569
        %v5590 = vmul.f32 %v5059, %v5572
        %v5591 = vpack.c.bf16 %v4687, %v4684
        %v5592 = vpack.c.bf16 %v4695, %v4692
        %v5593 = vpack.c.bf16 %v4703, %v4700
        %v5594 = vpack.c.bf16 %v4711, %v4708
        %v5595 = vpack.c.bf16 %v4719, %v4716
        %v5596 = vpack.c.bf16 %v4727, %v4724
        %v5597 = vpack.c.bf16 %v4735, %v4732
        %v5598 = vpack.c.bf16 %v4743, %v4740
        %v5599 = vpack.c.bf16 %v4808, %v4805
        %v5600 = vpack.c.bf16 %v4816, %v4813
        %v5601 = vpack.c.bf16 %v4824, %v4821
        %v5602 = vpack.c.bf16 %v4832, %v4829
        %v5603 = vpack.c.bf16 %v4840, %v4837
        %v5604 = vpack.c.bf16 %v4848, %v4845
        %v5605 = vpack.c.bf16 %v4856, %v4853
        %v5606 = vpack.c.bf16 %v4864, %v4861
        %v5607 = vpack.c.bf16 %v4905, %v4902
        %v5608 = vpack.c.bf16 %v4913, %v4910
        %v5609 = vpack.c.bf16 %v4921, %v4918
        %v5610 = vpack.c.bf16 %v4929, %v4926
        %v5611 = vpack.c.bf16 %v4937, %v4934
        %v5612 = vpack.c.bf16 %v4945, %v4942
        %v5613 = vpack.c.bf16 %v4953, %v4950
        %v5614 = vpack.c.bf16 %v4961, %v4958
        %v5615 = vpack.c.bf16 %v5391, %v5390
        %v5616 = vpack.c.bf16 %v5393, %v5392
        %v5617 = vpack.c.bf16 %v5395, %v5394
        %v5618 = vpack.c.bf16 %v5397, %v5396
        %v5619 = vpack.c.bf16 %v5399, %v5398
        %v5620 = vpack.c.bf16 %v5401, %v5400
        %v5621 = vpack.c.bf16 %v5403, %v5402
        %v5622 = vpack.c.bf16 %v5405, %v5404
        %v5623 = vpack.c.bf16 %v5576, %v5575
        %v5624 = vpack.c.bf16 %v5578, %v5577
        %v5625 = vpack.c.bf16 %v5580, %v5579
        %v5626 = vpack.c.bf16 %v5582, %v5581
        %v5627 = vpack.c.bf16 %v5584, %v5583
        %v5628 = vpack.c.bf16 %v5586, %v5585
        %v5629 = vpack.c.bf16 %v5588, %v5587
        %v5630 = vpack.c.bf16 %v5590, %v5589
        %5639 = vrot.lane.b32.xlu0 %v3614, 32
        %v5640 = vpop.permute.xlu0 %5639
        %5641 = vrot.lane.b32.xlu0 %v3615, 32
        %v5642 = vpop.permute.xlu0 %5641
        %5643 = vrot.lane.b32.xlu0 %v3616, 32
        %v5644 = vpop.permute.xlu0 %5643
        %5645 = vrot.lane.b32.xlu0 %v3617, 32
        %v5646 = vpop.permute.xlu0 %5645
        %5647 = vrot.lane.b32.xlu0 %v3618, 32
        %v5648 = vpop.permute.xlu0 %5647
        %5649 = vrot.lane.b32.xlu0 %v3619, 32
        %v5650 = vpop.permute.xlu0 %5649
        %5651 = vrot.lane.b32.xlu0 %v3620, 32
        %v5652 = vpop.permute.xlu0 %5651
        %5653 = vrot.lane.b32.xlu0 %v3621, 32
        %v5654 = vpop.permute.xlu0 %5653
        %5663 = vrot.lane.b32.xlu0 %v3622, 96
        %v5664 = vpop.permute.xlu0 %5663
        %5665 = vrot.lane.b32.xlu0 %v3623, 96
        %v5666 = vpop.permute.xlu0 %5665
        %5667 = vrot.lane.b32.xlu0 %v3624, 96
        %v5668 = vpop.permute.xlu0 %5667
        %5669 = vrot.lane.b32.xlu0 %v3625, 96
        %v5670 = vpop.permute.xlu0 %5669
        %5671 = vrot.lane.b32.xlu0 %v3626, 96
        %v5672 = vpop.permute.xlu0 %5671
        %5673 = vrot.lane.b32.xlu0 %v3627, 96
        %v5674 = vpop.permute.xlu0 %5673
        %5675 = vrot.lane.b32.xlu0 %v3628, 96
        %v5676 = vpop.permute.xlu0 %5675
        %5677 = vrot.lane.b32.xlu0 %v3629, 96
        %v5678 = vpop.permute.xlu0 %5677
        %5687 = vrot.lane.b32.xlu0 %v3630, 32
        %v5688 = vpop.permute.xlu0 %5687
        %5689 = vrot.lane.b32.xlu0 %v3631, 32
        %v5690 = vpop.permute.xlu0 %5689
        %5691 = vrot.lane.b32.xlu0 %v3632, 32
        %v5692 = vpop.permute.xlu0 %5691
        %5693 = vrot.lane.b32.xlu0 %v3633, 32
        %v5694 = vpop.permute.xlu0 %5693
        %5695 = vrot.lane.b32.xlu0 %v3634, 32
        %v5696 = vpop.permute.xlu0 %5695
        %5697 = vrot.lane.b32.xlu0 %v3635, 32
        %v5698 = vpop.permute.xlu0 %5697
        %5699 = vrot.lane.b32.xlu0 %v3636, 32
        %v5700 = vpop.permute.xlu0 %5699
        %5701 = vrot.lane.b32.xlu0 %v3637, 32
        %v5702 = vpop.permute.xlu0 %5701
        %5711 = vrot.lane.b32.xlu0 %v3638, 64
        %v5712 = vpop.permute.xlu0 %5711
        %5713 = vrot.lane.b32.xlu0 %v3639, 64
        %v5714 = vpop.permute.xlu0 %5713
        %5715 = vrot.lane.b32.xlu0 %v3640, 64
        %v5716 = vpop.permute.xlu0 %5715
        %5717 = vrot.lane.b32.xlu0 %v3641, 64
        %v5718 = vpop.permute.xlu0 %5717
        %5719 = vrot.lane.b32.xlu0 %v3642, 64
        %v5720 = vpop.permute.xlu0 %5719
        %5721 = vrot.lane.b32.xlu0 %v3643, 64
        %v5722 = vpop.permute.xlu0 %5721
        %5723 = vrot.lane.b32.xlu0 %v3644, 64
        %v5724 = vpop.permute.xlu0 %5723
        %5725 = vrot.lane.b32.xlu0 %v3645, 64
        %v5726 = vpop.permute.xlu0 %5725
        %5735 = vrot.lane.b32.xlu0 %v5591, 96
        %v5736 = vpop.permute.xlu0 %5735
        %5737 = vrot.lane.b32.xlu0 %v5592, 96
        %v5738 = vpop.permute.xlu0 %5737
        %5739 = vrot.lane.b32.xlu0 %v5593, 96
        %v5740 = vpop.permute.xlu0 %5739
        %5741 = vrot.lane.b32.xlu0 %v5594, 96
        %v5742 = vpop.permute.xlu0 %5741
        %5743 = vrot.lane.b32.xlu0 %v5595, 96
        %v5744 = vpop.permute.xlu0 %5743
        %5745 = vrot.lane.b32.xlu0 %v5596, 96
        %v5746 = vpop.permute.xlu0 %5745
        %5747 = vrot.lane.b32.xlu0 %v5597, 96
        %v5748 = vpop.permute.xlu0 %5747
        %5749 = vrot.lane.b32.xlu0 %v5598, 96
        %v5750 = vpop.permute.xlu0 %5749
        %5759 = vrot.lane.b32.xlu0 %v5607, 64
        %v5760 = vpop.permute.xlu0 %5759
        %5761 = vrot.lane.b32.xlu0 %v5608, 64
        %v5762 = vpop.permute.xlu0 %5761
        %5763 = vrot.lane.b32.xlu0 %v5609, 64
        %v5764 = vpop.permute.xlu0 %5763
        %5765 = vrot.lane.b32.xlu0 %v5610, 64
        %v5766 = vpop.permute.xlu0 %5765
        %5767 = vrot.lane.b32.xlu0 %v5611, 64
        %v5768 = vpop.permute.xlu0 %5767
        %5769 = vrot.lane.b32.xlu0 %v5612, 64
        %v5770 = vpop.permute.xlu0 %5769
        %5771 = vrot.lane.b32.xlu0 %v5613, 64
        %v5772 = vpop.permute.xlu0 %5771
        %5773 = vrot.lane.b32.xlu0 %v5614, 64
        %v5774 = vpop.permute.xlu0 %5773
        %5783 = vrot.lane.b32.xlu0 %v5623, 32
        %v5784 = vpop.permute.xlu0 %5783
        %5785 = vrot.lane.b32.xlu0 %v5624, 32
        %v5786 = vpop.permute.xlu0 %5785
        %5787 = vrot.lane.b32.xlu0 %v5625, 32
        %v5788 = vpop.permute.xlu0 %5787
        %5789 = vrot.lane.b32.xlu0 %v5626, 32
        %v5790 = vpop.permute.xlu0 %5789
        %5791 = vrot.lane.b32.xlu0 %v5627, 32
        %v5792 = vpop.permute.xlu0 %5791
        %5793 = vrot.lane.b32.xlu0 %v5628, 32
        %v5794 = vpop.permute.xlu0 %5793
        %5795 = vrot.lane.b32.xlu0 %v5629, 32
        %v5796 = vpop.permute.xlu0 %5795
        %5797 = vrot.lane.b32.xlu0 %v5630, 32
        %v5798 = vpop.permute.xlu0 %5797
        %v5801 = vsel %vm1748, %v3606, %v5640
        %v5804 = vsel %vm1748, %v3607, %v5642
        %v5807 = vsel %vm1748, %v3608, %v5644
        %v5810 = vsel %vm1748, %v3609, %v5646
        %v5813 = vsel %vm1748, %v3610, %v5648
        %v5816 = vsel %vm1748, %v3611, %v5650
        %v5819 = vsel %vm1748, %v3612, %v5652
        %v5822 = vsel %vm1748, %v3613, %v5654
        %vm5823 = vcmask 785408
        %v5825 = vsel %vm5823, %v5801, %v5664
        %v5828 = vsel %vm5823, %v5804, %v5666
        %v5831 = vsel %vm5823, %v5807, %v5668
        %v5834 = vsel %vm5823, %v5810, %v5670
        %v5837 = vsel %vm5823, %v5813, %v5672
        %v5840 = vsel %vm5823, %v5816, %v5674
        %v5843 = vsel %vm5823, %v5819, %v5676
        %v5846 = vsel %vm5823, %v5822, %v5678
        %v5849 = vsel %vm1748, %v5664, %v5688
        %v5851 = vsel %vm1748, %v5666, %v5690
        %v5853 = vsel %vm1748, %v5668, %v5692
        %v5855 = vsel %vm1748, %v5670, %v5694
        %v5857 = vsel %vm1748, %v5672, %v5696
        %v5859 = vsel %vm1748, %v5674, %v5698
        %v5861 = vsel %vm1748, %v5676, %v5700
        %v5863 = vsel %vm1748, %v5678, %v5702
        %v5865 = vsel %vm803, %v5849, %v5712
        %v5867 = vsel %vm803, %v5851, %v5714
        %v5869 = vsel %vm803, %v5853, %v5716
        %v5871 = vsel %vm803, %v5855, %v5718
        %v5873 = vsel %vm803, %v5857, %v5720
        %v5875 = vsel %vm803, %v5859, %v5722
        %v5877 = vsel %vm803, %v5861, %v5724
        %v5879 = vsel %vm803, %v5863, %v5726
        %v5881 = vsel %vm5823, %v5865, %v5736
        %v5884 = vsel %vm5823, %v5867, %v5738
        %v5887 = vsel %vm5823, %v5869, %v5740
        %v5890 = vsel %vm5823, %v5871, %v5742
        %v5893 = vsel %vm5823, %v5873, %v5744
        %v5896 = vsel %vm5823, %v5875, %v5746
        %v5899 = vsel %vm5823, %v5877, %v5748
        %v5902 = vsel %vm5823, %v5879, %v5750
        %v5906 = vsel %vm803, %v5599, %v5760
        %v5910 = vsel %vm803, %v5600, %v5762
        %v5914 = vsel %vm803, %v5601, %v5764
        %v5918 = vsel %vm803, %v5602, %v5766
        %v5922 = vsel %vm803, %v5603, %v5768
        %v5926 = vsel %vm803, %v5604, %v5770
        %v5930 = vsel %vm803, %v5605, %v5772
        %v5934 = vsel %vm803, %v5606, %v5774
        %v5938 = vsel %vm1748, %v5615, %v5784
        %v5941 = vsel %vm1748, %v5616, %v5786
        %v5944 = vsel %vm1748, %v5617, %v5788
        %v5947 = vsel %vm1748, %v5618, %v5790
        %v5950 = vsel %vm1748, %v5619, %v5792
        %v5953 = vsel %vm1748, %v5620, %v5794
        %v5956 = vsel %vm1748, %v5621, %v5796
        %v5959 = vsel %vm1748, %v5622, %v5798
        %v5960 = vld [vmem:[%s9] sm:$0x1]
        %v5962 = vlaneseq
        %v5963 = vshrl.u32 %v5962, 7
        %v5964 = vsub.s32 0, %v5963
        %v5965 = vrot.slane %v5960, %v5964
        %v6023 = vunpack.c.l.b16 %v1668
        %v6024 = vunpack.c.l.b16 %v1669
        %v6025 = vunpack.c.l.b16 %v1670
        %v6026 = vunpack.c.l.b16 %v1671
        %v6027 = vunpack.c.l.b16 %v1672
        %v6028 = vunpack.c.l.b16 %v1673
        %v6029 = vunpack.c.l.b16 %v1674
        %v6030 = vunpack.c.l.b16 %v1675
        %v6031 = vunpack.c.l.b16 %v1676
        %v6032 = vunpack.c.l.b16 %v1677
        %v6033 = vunpack.c.l.b16 %v1678
        %v6034 = vunpack.c.l.b16 %v1679
        %v6035 = vunpack.c.l.b16 %v1680
        %v6036 = vunpack.c.l.b16 %v1681
        %v6037 = vunpack.c.l.b16 %v1682
        %v6038 = vunpack.c.l.b16 %v1683
        %v6039 = vunpack.c.l.b16 %v1684
        %v6040 = vunpack.c.l.b16 %v1685
        %v6041 = vunpack.c.l.b16 %v1686
        %v6042 = vunpack.c.l.b16 %v1687
        %v6043 = vunpack.c.l.b16 %v1688
        %v6044 = vunpack.c.l.b16 %v1689
        %v6045 = vunpack.c.l.b16 %v1690
        %v6046 = vunpack.c.l.b16 %v1691
        %v6047 = vunpack.c.l.b16 %v1692
        %v6048 = vunpack.c.l.b16 %v1693
        %v6049 = vunpack.c.l.b16 %v1694
        %v6050 = vunpack.c.l.b16 %v1695
        %v6051 = vunpack.c.l.b16 %v1696
        %v6052 = vunpack.c.l.b16 %v1697
        %v6053 = vunpack.c.l.b16 %v1698
        %v6054 = vunpack.c.l.b16 %v1699
        %v6055 = vunpack.c.l.b16 %v1700
        %v6056 = vunpack.c.l.b16 %v1701
        %v6057 = vunpack.c.l.b16 %v1702
        %v6058 = vunpack.c.l.b16 %v1703
        %v6059 = vunpack.c.l.b16 %v1704
        %v6060 = vunpack.c.l.b16 %v1705
        %v6061 = vunpack.c.l.b16 %v1706
        %v6062 = vunpack.c.l.b16 %v1707
        %v6063 = vunpack.c.l.b16 %v1708
        %v6064 = vunpack.c.l.b16 %v1709
        %v6065 = vunpack.c.l.b16 %v1710
        %v6066 = vunpack.c.l.b16 %v1711
        %v6067 = vunpack.c.l.b16 %v1712
        %v6068 = vunpack.c.l.b16 %v1713
        %v6069 = vunpack.c.l.b16 %v1714
        %v6070 = vunpack.c.l.b16 %v1715
        %v6071 = vunpack.c.l.b16 %v1716
        %v6072 = vunpack.c.l.b16 %v1717
        %v6073 = vunpack.c.l.b16 %v1718
        %v6074 = vunpack.c.l.b16 %v1719
        %v6075 = vunpack.c.l.b16 %v1720
        %v6076 = vunpack.c.l.b16 %v1721
        %v6077 = vunpack.c.l.b16 %v1722
        %v6078 = vunpack.c.l.b16 %v1723
        %v6079 = vpack.c.b16 %v6024, %v6023
        %v6080 = vpack.c.b16 %v6026, %v6025
        %v6081 = vpack.c.b16 %v6028, %v6027
        %v6082 = vpack.c.b16 %v6030, %v6029
        %v6083 = vpack.c.b16 %v6032, %v6031
        %v6084 = vpack.c.b16 %v6034, %v6033
        %v6085 = vpack.c.b16 %v6036, %v6035
        %v6086 = vpack.c.b16 %v6038, %v6037
        %v6087 = vpack.c.b16 %v6040, %v6039
        %v6088 = vpack.c.b16 %v6042, %v6041
        %v6089 = vpack.c.b16 %v6044, %v6043
        %v6090 = vpack.c.b16 %v6046, %v6045
        %v6091 = vpack.c.b16 %v6048, %v6047
        %v6092 = vpack.c.b16 %v6050, %v6049
        %v6093 = vpack.c.b16 %v6052, %v6051
        %v6094 = vpack.c.b16 %v6054, %v6053
        %v6095 = vpack.c.b16 %v6056, %v6055
        %v6096 = vpack.c.b16 %v6058, %v6057
        %v6097 = vpack.c.b16 %v6060, %v6059
        %v6098 = vpack.c.b16 %v6062, %v6061
        %v6099 = vpack.c.b16 %v6064, %v6063
        %v6100 = vpack.c.b16 %v6066, %v6065
        %v6101 = vpack.c.b16 %v6068, %v6067
        %v6102 = vpack.c.b16 %v6070, %v6069
        %v6103 = vpack.c.b16 %v6072, %v6071
        %v6104 = vpack.c.b16 %v6074, %v6073
        %v6105 = vpack.c.b16 %v6076, %v6075
        %v6106 = vpack.c.b16 %v6078, %v6077
        %v6135 = vsel %vm803, %v5938, 0
        %v6137 = vsel %vm803, %v5941, 0
        %v6139 = vsel %vm803, %v5944, 0
        %v6141 = vsel %vm803, %v5947, 0
        %v6143 = vsel %vm803, %v5950, 0
        %v6145 = vsel %vm803, %v5953, 0
        %v6147 = vsel %vm803, %v5956, 0
        %v6149 = vsel %vm803, %v5959, 0
        %6151 = vmatprep.subr.bf16.mxu0 0
        %6152 = vmatpush1.bf16.msra.mxu0 %v6086
        %6153 = vmatprep.subr.bf16.mxu0 0
        %6154 = vmatpush1.bf16.msra.mxu0 %v6085
        %6155 = vmatprep.subr.bf16.mxu0 0
        %6156 = vmatpush1.bf16.msra.mxu0 %v6084
        %6157 = vmatprep.subr.bf16.mxu0 0
        %6158 = vmatpush1.bf16.msra.mxu0 %v6083
        %6159 = vmatprep.subr.bf16.mxu0 0
        %6160 = vmatpush1.bf16.msra.mxu0 %v6082
        %6161 = vmatprep.subr.bf16.mxu0 0
        %6162 = vmatpush1.bf16.msra.mxu0 %v6081
        %6163 = vmatprep.subr.bf16.mxu0 0
        %6164 = vmatpush1.bf16.msra.mxu0 %v6080
        %6165 = vmatprep.subr.bf16.mxu0 0
        %6166 = vmatpush1.bf16.msra.mxu0 %v6079
        %6167 = vmatprep.subr.bf16.mxu0 0
        %6168 = vmatpush2.bf16.msra.mxu0 %v6094
        %6169 = vmatprep.subr.bf16.mxu0 0
        %6170 = vmatpush2.bf16.msra.mxu0 %v6093
        %6171 = vmatprep.subr.bf16.mxu0 0
        %6172 = vmatpush2.bf16.msra.mxu0 %v6092
        %6173 = vmatprep.subr.bf16.mxu0 0
        %6174 = vmatpush2.bf16.msra.mxu0 %v6091
        %6175 = vmatprep.subr.bf16.mxu0 0
        %6176 = vmatpush2.bf16.msra.mxu0 %v6090
        %6177 = vmatprep.subr.bf16.mxu0 0
        %6178 = vmatpush2.bf16.msra.mxu0 %v6089
        %6179 = vmatprep.subr.bf16.mxu0 0
        %6180 = vmatpush2.bf16.msra.mxu0 %v6088
        %6181 = vmatprep.subr.bf16.mxu0 0
        %6182 = vmatpush2.bf16.msra.mxu0 %v6087
        %6183 = vmatprep.mubr.bf16.mxu0 %v5881
        %6184 = vmatmul.mubr.bf16.gmra.mxu0 %v5825
        %v6185 = vpop.f32.mrf.mxu0
        %v6186 = vadd.f32 %v5965, %v6185
        %v6187 = vpop.f32.mrf.mxu0
        %v6188 = vpop.f32.mrf.mxu0
        %v6189 = vadd.f32 %v5965, %v6188
        %v6190 = vpop.f32.mrf.mxu0
        %6191 = vmatprep.mubr.bf16.mxu0 %v5884
        %6192 = vmatmul.mubr.bf16.gmra.mxu0 %v5828
        %v6193 = vpop.f32.mrf.mxu0
        %v6194 = vadd.f32 %v5965, %v6193
        %v6195 = vpop.f32.mrf.mxu0
        %v6196 = vpop.f32.mrf.mxu0
        %v6197 = vadd.f32 %v5965, %v6196
        %v6198 = vpop.f32.mrf.mxu0
        %6199 = vmatprep.mubr.bf16.mxu0 %v5887
        %6200 = vmatmul.mubr.bf16.gmra.mxu0 %v5831
        %v6201 = vpop.f32.mrf.mxu0
        %v6202 = vadd.f32 %v5965, %v6201
        %v6203 = vpop.f32.mrf.mxu0
        %v6204 = vpop.f32.mrf.mxu0
        %v6205 = vadd.f32 %v5965, %v6204
        %v6206 = vpop.f32.mrf.mxu0
        %6207 = vmatprep.mubr.bf16.mxu0 %v5890
        %6208 = vmatmul.mubr.bf16.gmra.mxu0 %v5834
        %v6209 = vpop.f32.mrf.mxu0
        %v6210 = vadd.f32 %v5965, %v6209
        %v6211 = vpop.f32.mrf.mxu0
        %v6212 = vpop.f32.mrf.mxu0
        %v6213 = vadd.f32 %v5965, %v6212
        %v6214 = vpop.f32.mrf.mxu0
        %6215 = vmatprep.mubr.bf16.mxu0 %v5893
        %6216 = vmatmul.mubr.bf16.gmra.mxu0 %v5837
        %v6217 = vpop.f32.mrf.mxu0
        %v6218 = vadd.f32 %v5965, %v6217
        %v6219 = vpop.f32.mrf.mxu0
        %v6220 = vpop.f32.mrf.mxu0
        %v6221 = vadd.f32 %v5965, %v6220
        %v6222 = vpop.f32.mrf.mxu0
        %6223 = vmatprep.mubr.bf16.mxu0 %v5896
        %6224 = vmatmul.mubr.bf16.gmra.mxu0 %v5840
        %v6225 = vpop.f32.mrf.mxu0
        %v6226 = vadd.f32 %v5965, %v6225
        %v6227 = vpop.f32.mrf.mxu0
        %v6228 = vpop.f32.mrf.mxu0
        %v6229 = vadd.f32 %v5965, %v6228
        %v6230 = vpop.f32.mrf.mxu0
        %6231 = vmatprep.mubr.bf16.mxu0 %v5899
        %6232 = vmatmul.mubr.bf16.gmra.mxu0 %v5843
        %v6233 = vpop.f32.mrf.mxu0
        %v6234 = vadd.f32 %v5965, %v6233
        %v6235 = vpop.f32.mrf.mxu0
        %v6236 = vpop.f32.mrf.mxu0
        %v6237 = vadd.f32 %v5965, %v6236
        %v6238 = vpop.f32.mrf.mxu0
        %6239 = vmatprep.mubr.bf16.mxu0 %v5902
        %6240 = vmatmul.mubr.bf16.gmra.mxu0 %v5846
        %v6241 = vpop.f32.mrf.mxu0
        %v6242 = vadd.f32 %v5965, %v6241
        %v6243 = vpop.f32.mrf.mxu0
        %v6244 = vpop.f32.mrf.mxu0
        %v6245 = vadd.f32 %v5965, %v6244
        %v6246 = vpop.f32.mrf.mxu0
        %6247 = vdwg.mxu0
        %6248 = vmatprep.subr.bf16.mxu0 0
        %6249 = vmatpush1.bf16.msra.mxu0 %v6102
        %6250 = vmatprep.subr.bf16.mxu0 0
        %6251 = vmatpush1.bf16.msra.mxu0 %v6101
        %6252 = vmatprep.subr.bf16.mxu0 0
        %6253 = vmatpush1.bf16.msra.mxu0 %v6100
        %6254 = vmatprep.subr.bf16.mxu0 0
        %6255 = vmatpush1.bf16.msra.mxu0 %v6099
        %6256 = vmatprep.subr.bf16.mxu0 0
        %6257 = vmatpush1.bf16.msra.mxu0 %v6098
        %6258 = vmatprep.subr.bf16.mxu0 0
        %6259 = vmatpush1.bf16.msra.mxu0 %v6097
        %6260 = vmatprep.subr.bf16.mxu0 0
        %6261 = vmatpush1.bf16.msra.mxu0 %v6096
        %6262 = vmatprep.subr.bf16.mxu0 0
        %6263 = vmatpush1.bf16.msra.mxu0 %v6095
        %6264 = vmatprep.subr.bf16.mxu0 0
        %6265 = vmatpush2.bf16.msra.mxu0 0
        %6266 = vmatprep.subr.bf16.mxu0 0
        %6267 = vmatpush2.bf16.msra.mxu0 0
        %6268 = vmatprep.subr.bf16.mxu0 0
        %6269 = vmatpush2.bf16.msra.mxu0 0
        %6270 = vmatprep.subr.bf16.mxu0 0
        %6271 = vmatpush2.bf16.msra.mxu0 0
        %6272 = vmatprep.subr.bf16.mxu0 0
        %6273 = vmatpush2.bf16.msra.mxu0 %v6106
        %6274 = vmatprep.subr.bf16.mxu0 0
        %6275 = vmatpush2.bf16.msra.mxu0 %v6105
        %6276 = vmatprep.subr.bf16.mxu0 0
        %6277 = vmatpush2.bf16.msra.mxu0 %v6104
        %6278 = vmatprep.subr.bf16.mxu0 0
        %6279 = vmatpush2.bf16.msra.mxu0 %v6103
        %6280 = vmatprep.mubr.bf16.mxu0 %v6135
        %6281 = vmatmul.mubr.bf16.gmra.mxu0 %v5906
        %v6282 = vpop.f32.mrf.mxu0
        %v6283 = vadd.f32 %v6186, %v6282
        %v6284 = vpop.f32.mrf.mxu0
        %v6285 = vpop.f32.mrf.mxu0
        %v6286 = vadd.f32 %v6189, %v6285
        %v6287 = vpop.f32.mrf.mxu0
        %6288 = vmatprep.mubr.bf16.mxu0 %v6137
        %6289 = vmatmul.mubr.bf16.gmra.mxu0 %v5910
        %v6290 = vpop.f32.mrf.mxu0
        %v6291 = vadd.f32 %v6194, %v6290
        %v6292 = vpop.f32.mrf.mxu0
        %v6293 = vpop.f32.mrf.mxu0
        %v6294 = vadd.f32 %v6197, %v6293
        %v6295 = vpop.f32.mrf.mxu0
        %6296 = vmatprep.mubr.bf16.mxu0 %v6139
        %6297 = vmatmul.mubr.bf16.gmra.mxu0 %v5914
        %v6298 = vpop.f32.mrf.mxu0
        %v6299 = vadd.f32 %v6202, %v6298
        %v6300 = vpop.f32.mrf.mxu0
        %v6301 = vpop.f32.mrf.mxu0
        %v6302 = vadd.f32 %v6205, %v6301
        %v6303 = vpop.f32.mrf.mxu0
        %6304 = vmatprep.mubr.bf16.mxu0 %v6141
        %6305 = vmatmul.mubr.bf16.gmra.mxu0 %v5918
        %v6306 = vpop.f32.mrf.mxu0
        %v6307 = vadd.f32 %v6210, %v6306
        %v6308 = vpop.f32.mrf.mxu0
        %v6309 = vpop.f32.mrf.mxu0
        %v6310 = vadd.f32 %v6213, %v6309
        %v6311 = vpop.f32.mrf.mxu0
        %6312 = vmatprep.mubr.bf16.mxu0 %v6143
        %6313 = vmatmul.mubr.bf16.gmra.mxu0 %v5922
        %v6314 = vpop.f32.mrf.mxu0
        %v6315 = vadd.f32 %v6218, %v6314
        %v6316 = vpop.f32.mrf.mxu0
        %v6317 = vpop.f32.mrf.mxu0
        %v6318 = vadd.f32 %v6221, %v6317
        %v6319 = vpop.f32.mrf.mxu0
        %6320 = vmatprep.mubr.bf16.mxu0 %v6145
        %6321 = vmatmul.mubr.bf16.gmra.mxu0 %v5926
        %v6322 = vpop.f32.mrf.mxu0
        %v6323 = vadd.f32 %v6226, %v6322
        %v6324 = vpop.f32.mrf.mxu0
        %v6325 = vpop.f32.mrf.mxu0
        %v6326 = vadd.f32 %v6229, %v6325
        %v6327 = vpop.f32.mrf.mxu0
        %6328 = vmatprep.mubr.bf16.mxu0 %v6147
        %6329 = vmatmul.mubr.bf16.gmra.mxu0 %v5930
        %v6330 = vpop.f32.mrf.mxu0
        %v6331 = vadd.f32 %v6234, %v6330
        %v6332 = vpop.f32.mrf.mxu0
        %v6333 = vpop.f32.mrf.mxu0
        %v6334 = vadd.f32 %v6237, %v6333
        %v6335 = vpop.f32.mrf.mxu0
        %6336 = vmatprep.mubr.bf16.mxu0 %v6149
        %6337 = vmatmul.mubr.bf16.gmra.mxu0 %v5934
        %v6338 = vpop.f32.mrf.mxu0
        %v6339 = vadd.f32 %v6242, %v6338
        %v6340 = vpop.f32.mrf.mxu0
        %v6341 = vpop.f32.mrf.mxu0
        %v6342 = vadd.f32 %v6245, %v6341
        %v6343 = vpop.f32.mrf.mxu0
        %6344 = vdwg.mxu0
        %v6345 = vadd.f32 %v562, %v6283
        %v6346 = vadd.f32 %v563, %v6286
        %v6347 = vadd.f32 %v564, %v6291
        %v6348 = vadd.f32 %v565, %v6294
        %v6349 = vadd.f32 %v566, %v6299
        %v6350 = vadd.f32 %v567, %v6302
        %v6351 = vadd.f32 %v568, %v6307
        %v6352 = vadd.f32 %v569, %v6310
        %v6353 = vadd.f32 %v570, %v6315
        %v6354 = vadd.f32 %v571, %v6318
        %v6355 = vadd.f32 %v572, %v6323
        %v6356 = vadd.f32 %v573, %v6326
        %v6357 = vadd.f32 %v574, %v6331
        %v6358 = vadd.f32 %v575, %v6334
        %v6359 = vadd.f32 %v576, %v6339
        %v6360 = vadd.f32 %v577, %v6342
        %v6361 = vld [vmem:[%s10] sm:$0x1]
        %v6362 = vld [vmem:[%s11] sm:$0x1]
        %v6363 = vsel %vm803, %v6345, 0.0
        %6364 = vadd.xlane.f32.xlu0 %v6363
        %v6365 = vpop.xlane.xlu0 %6364
        %v6366 = vsel %vm803, %v6346, 0.0
        %6367 = vadd.xlane.f32.xlu0 %v6366
        %v6368 = vpop.xlane.xlu0 %6367
        %v6369 = vsel %vm803, %v6347, 0.0
        %6370 = vadd.xlane.f32.xlu0 %v6369
        %v6371 = vpop.xlane.xlu0 %6370
        %v6372 = vsel %vm803, %v6348, 0.0
        %6373 = vadd.xlane.f32.xlu0 %v6372
        %v6374 = vpop.xlane.xlu0 %6373
        %v6375 = vsel %vm803, %v6349, 0.0
        %6376 = vadd.xlane.f32.xlu0 %v6375
        %v6377 = vpop.xlane.xlu0 %6376
        %v6378 = vsel %vm803, %v6350, 0.0
        %6379 = vadd.xlane.f32.xlu0 %v6378
        %v6380 = vpop.xlane.xlu0 %6379
        %v6381 = vsel %vm803, %v6351, 0.0
        %6382 = vadd.xlane.f32.xlu0 %v6381
        %v6383 = vpop.xlane.xlu0 %6382
        %v6384 = vsel %vm803, %v6352, 0.0
        %6385 = vadd.xlane.f32.xlu0 %v6384
        %v6386 = vpop.xlane.xlu0 %6385
        %v6387 = vsel %vm803, %v6353, 0.0
        %6388 = vadd.xlane.f32.xlu0 %v6387
        %v6389 = vpop.xlane.xlu0 %6388
        %v6390 = vsel %vm803, %v6354, 0.0
        %6391 = vadd.xlane.f32.xlu0 %v6390
        %v6392 = vpop.xlane.xlu0 %6391
        %v6393 = vsel %vm803, %v6355, 0.0
        %6394 = vadd.xlane.f32.xlu0 %v6393
        %v6395 = vpop.xlane.xlu0 %6394
        %v6396 = vsel %vm803, %v6356, 0.0
        %6397 = vadd.xlane.f32.xlu0 %v6396
        %v6398 = vpop.xlane.xlu0 %6397
        %v6399 = vsel %vm803, %v6357, 0.0
        %6400 = vadd.xlane.f32.xlu0 %v6399
        %v6401 = vpop.xlane.xlu0 %6400
        %v6402 = vsel %vm803, %v6358, 0.0
        %6403 = vadd.xlane.f32.xlu0 %v6402
        %v6404 = vpop.xlane.xlu0 %6403
        %v6405 = vsel %vm803, %v6359, 0.0
        %6406 = vadd.xlane.f32.xlu0 %v6405
        %v6407 = vpop.xlane.xlu0 %6406
        %v6408 = vsel %vm803, %v6360, 0.0
        %6409 = vadd.xlane.f32.xlu0 %v6408
        %v6410 = vpop.xlane.xlu0 %6409
        %v6411 = vmul.f32 %v6365, %v852
        %v6412 = vmul.f32 %v6368, %v852
        %v6413 = vmul.f32 %v6371, %v852
        %v6414 = vmul.f32 %v6374, %v852
        %v6415 = vmul.f32 %v6377, %v852
        %v6416 = vmul.f32 %v6380, %v852
        %v6417 = vmul.f32 %v6383, %v852
        %v6418 = vmul.f32 %v6386, %v852
        %v6419 = vmul.f32 %v6389, %v852
        %v6420 = vmul.f32 %v6392, %v852
        %v6421 = vmul.f32 %v6395, %v852
        %v6422 = vmul.f32 %v6398, %v852
        %v6423 = vmul.f32 %v6401, %v852
        %v6424 = vmul.f32 %v6404, %v852
        %v6425 = vmul.f32 %v6407, %v852
        %v6426 = vmul.f32 %v6410, %v852
        %v6427 = vsub.f32 %v6345, %v6411
        %v6428 = vsub.f32 %v6346, %v6412
        %v6429 = vsub.f32 %v6347, %v6413
        %v6430 = vsub.f32 %v6348, %v6414
        %v6431 = vsub.f32 %v6349, %v6415
        %v6432 = vsub.f32 %v6350, %v6416
        %v6433 = vsub.f32 %v6351, %v6417
        %v6434 = vsub.f32 %v6352, %v6418
        %v6435 = vsub.f32 %v6353, %v6419
        %v6436 = vsub.f32 %v6354, %v6420
        %v6437 = vsub.f32 %v6355, %v6421
        %v6438 = vsub.f32 %v6356, %v6422
        %v6439 = vsub.f32 %v6357, %v6423
        %v6440 = vsub.f32 %v6358, %v6424
        %v6441 = vsub.f32 %v6359, %v6425
        %v6442 = vsub.f32 %v6360, %v6426
        %v6443 = vmul.f32 %v6427, %v6427
        %v6444 = vmul.f32 %v6428, %v6428
        %v6445 = vmul.f32 %v6429, %v6429
        %v6446 = vmul.f32 %v6430, %v6430
        %v6447 = vmul.f32 %v6431, %v6431
        %v6448 = vmul.f32 %v6432, %v6432
        %v6449 = vmul.f32 %v6433, %v6433
        %v6450 = vmul.f32 %v6434, %v6434
        %v6451 = vmul.f32 %v6435, %v6435
        %v6452 = vmul.f32 %v6436, %v6436
        %v6453 = vmul.f32 %v6437, %v6437
        %v6454 = vmul.f32 %v6438, %v6438
        %v6455 = vmul.f32 %v6439, %v6439
        %v6456 = vmul.f32 %v6440, %v6440
        %v6457 = vmul.f32 %v6441, %v6441
        %v6458 = vmul.f32 %v6442, %v6442
        %v6459 = vsel %vm803, %v6443, 0.0
        %6460 = vadd.xlane.f32.xlu0 %v6459
        %v6461 = vpop.xlane.xlu0 %6460
        %v6462 = vsel %vm803, %v6444, 0.0
        %6463 = vadd.xlane.f32.xlu0 %v6462
        %v6464 = vpop.xlane.xlu0 %6463
        %v6465 = vsel %vm803, %v6445, 0.0
        %6466 = vadd.xlane.f32.xlu0 %v6465
        %v6467 = vpop.xlane.xlu0 %6466
        %v6468 = vsel %vm803, %v6446, 0.0
        %6469 = vadd.xlane.f32.xlu0 %v6468
        %v6470 = vpop.xlane.xlu0 %6469
        %v6471 = vsel %vm803, %v6447, 0.0
        %6472 = vadd.xlane.f32.xlu0 %v6471
        %v6473 = vpop.xlane.xlu0 %6472
        %v6474 = vsel %vm803, %v6448, 0.0
        %6475 = vadd.xlane.f32.xlu0 %v6474
        %v6476 = vpop.xlane.xlu0 %6475
        %v6477 = vsel %vm803, %v6449, 0.0
        %6478 = vadd.xlane.f32.xlu0 %v6477
        %v6479 = vpop.xlane.xlu0 %6478
        %v6480 = vsel %vm803, %v6450, 0.0
        %6481 = vadd.xlane.f32.xlu0 %v6480
        %v6482 = vpop.xlane.xlu0 %6481
        %v6483 = vsel %vm803, %v6451, 0.0
        %6484 = vadd.xlane.f32.xlu0 %v6483
        %v6485 = vpop.xlane.xlu0 %6484
        %v6486 = vsel %vm803, %v6452, 0.0
        %6487 = vadd.xlane.f32.xlu0 %v6486
        %v6488 = vpop.xlane.xlu0 %6487
        %v6489 = vsel %vm803, %v6453, 0.0
        %6490 = vadd.xlane.f32.xlu0 %v6489
        %v6491 = vpop.xlane.xlu0 %6490
        %v6492 = vsel %vm803, %v6454, 0.0
        %6493 = vadd.xlane.f32.xlu0 %v6492
        %v6494 = vpop.xlane.xlu0 %6493
        %v6495 = vsel %vm803, %v6455, 0.0
        %6496 = vadd.xlane.f32.xlu0 %v6495
        %v6497 = vpop.xlane.xlu0 %6496
        %v6498 = vsel %vm803, %v6456, 0.0
        %6499 = vadd.xlane.f32.xlu0 %v6498
        %v6500 = vpop.xlane.xlu0 %6499
        %v6501 = vsel %vm803, %v6457, 0.0
        %6502 = vadd.xlane.f32.xlu0 %v6501
        %v6503 = vpop.xlane.xlu0 %6502
        %v6504 = vsel %vm803, %v6458, 0.0
        %6505 = vadd.xlane.f32.xlu0 %v6504
        %v6506 = vpop.xlane.xlu0 %6505
        %v6507 = vmul.f32 %v6461, %v852
        %v6508 = vmul.f32 %v6464, %v852
        %v6509 = vmul.f32 %v6467, %v852
        %v6510 = vmul.f32 %v6470, %v852
        %v6511 = vmul.f32 %v6473, %v852
        %v6512 = vmul.f32 %v6476, %v852
        %v6513 = vmul.f32 %v6479, %v852
        %v6514 = vmul.f32 %v6482, %v852
        %v6515 = vmul.f32 %v6485, %v852
        %v6516 = vmul.f32 %v6488, %v852
        %v6517 = vmul.f32 %v6491, %v852
        %v6518 = vmul.f32 %v6494, %v852
        %v6519 = vmul.f32 %v6497, %v852
        %v6520 = vmul.f32 %v6500, %v852
        %v6521 = vmul.f32 %v6503, %v852
        %v6522 = vmul.f32 %v6506, %v852
        %v6523 = vadd.f32 %v6507, 1e-05
        %v6524 = vadd.f32 %v6508, 1e-05
        %v6525 = vadd.f32 %v6509, 1e-05
        %v6526 = vadd.f32 %v6510, 1e-05
        %v6527 = vadd.f32 %v6511, 1e-05
        %v6528 = vadd.f32 %v6512, 1e-05
        %v6529 = vadd.f32 %v6513, 1e-05
        %v6530 = vadd.f32 %v6514, 1e-05
        %v6531 = vadd.f32 %v6515, 1e-05
        %v6532 = vadd.f32 %v6516, 1e-05
        %v6533 = vadd.f32 %v6517, 1e-05
        %v6534 = vadd.f32 %v6518, 1e-05
        %v6535 = vadd.f32 %v6519, 1e-05
        %v6536 = vadd.f32 %v6520, 1e-05
        %v6537 = vadd.f32 %v6521, 1e-05
        %v6538 = vadd.f32 %v6522, 1e-05
        %v6539 = vrsqrt.pop %v6523
        %v6540 = vrsqrt.pop %v6524
        %v6541 = vrsqrt.pop %v6525
        %v6542 = vrsqrt.pop %v6526
        %v6543 = vrsqrt.pop %v6527
        %v6544 = vrsqrt.pop %v6528
        %v6545 = vrsqrt.pop %v6529
        %v6546 = vrsqrt.pop %v6530
        %v6547 = vrsqrt.pop %v6531
        %v6548 = vrsqrt.pop %v6532
        %v6549 = vrsqrt.pop %v6533
        %v6550 = vrsqrt.pop %v6534
        %v6551 = vrsqrt.pop %v6535
        %v6552 = vrsqrt.pop %v6536
        %v6553 = vrsqrt.pop %v6537
        %v6554 = vrsqrt.pop %v6538
        %v6555 = vmul.f32 %v6427, %v6539
        %v6556 = vmul.f32 %v6428, %v6540
        %v6557 = vmul.f32 %v6429, %v6541
        %v6558 = vmul.f32 %v6430, %v6542
        %v6559 = vmul.f32 %v6431, %v6543
        %v6560 = vmul.f32 %v6432, %v6544
        %v6561 = vmul.f32 %v6433, %v6545
        %v6562 = vmul.f32 %v6434, %v6546
        %v6563 = vmul.f32 %v6435, %v6547
        %v6564 = vmul.f32 %v6436, %v6548
        %v6565 = vmul.f32 %v6437, %v6549
        %v6566 = vmul.f32 %v6438, %v6550
        %v6567 = vmul.f32 %v6439, %v6551
        %v6568 = vmul.f32 %v6440, %v6552
        %v6569 = vmul.f32 %v6441, %v6553
        %v6570 = vmul.f32 %v6442, %v6554
        %v6572 = vlaneseq
        %v6573 = vshrl.u32 %v6572, 7
        %v6574 = vsub.s32 0, %v6573
        %v6575 = vrot.slane %v6361, %v6574
        %v6577 = vmul.f32 %v6555, %v6575
        %v6578 = vmul.f32 %v6556, %v6575
        %v6579 = vmul.f32 %v6557, %v6575
        %v6580 = vmul.f32 %v6558, %v6575
        %v6581 = vmul.f32 %v6559, %v6575
        %v6582 = vmul.f32 %v6560, %v6575
        %v6583 = vmul.f32 %v6561, %v6575
        %v6584 = vmul.f32 %v6562, %v6575
        %v6585 = vmul.f32 %v6563, %v6575
        %v6586 = vmul.f32 %v6564, %v6575
        %v6587 = vmul.f32 %v6565, %v6575
        %v6588 = vmul.f32 %v6566, %v6575
        %v6589 = vmul.f32 %v6567, %v6575
        %v6590 = vmul.f32 %v6568, %v6575
        %v6591 = vmul.f32 %v6569, %v6575
        %v6592 = vmul.f32 %v6570, %v6575
        %v6594 = vlaneseq
        %v6595 = vshrl.u32 %v6594, 7
        %v6596 = vsub.s32 0, %v6595
        %v6597 = vrot.slane %v6362, %v6596
        %v6599 = vadd.f32 %v6577, %v6597
        %v6600 = vadd.f32 %v6578, %v6597
        %v6601 = vadd.f32 %v6579, %v6597
        %v6602 = vadd.f32 %v6580, %v6597
        %v6603 = vadd.f32 %v6581, %v6597
        %v6604 = vadd.f32 %v6582, %v6597
        %v6605 = vadd.f32 %v6583, %v6597
        %v6606 = vadd.f32 %v6584, %v6597
        %v6607 = vadd.f32 %v6585, %v6597
        %v6608 = vadd.f32 %v6586, %v6597
        %v6609 = vadd.f32 %v6587, %v6597
        %v6610 = vadd.f32 %v6588, %v6597
        %v6611 = vadd.f32 %v6589, %v6597
        %v6612 = vadd.f32 %v6590, %v6597
        %v6613 = vadd.f32 %v6591, %v6597
        %v6614 = vadd.f32 %v6592, %v6597
        %v6615 = vpack.c.bf16 %v6600, %v6599
        %v6616 = vpack.c.bf16 %v6602, %v6601
        %v6617 = vpack.c.bf16 %v6604, %v6603
        %v6618 = vpack.c.bf16 %v6606, %v6605
        %v6619 = vpack.c.bf16 %v6608, %v6607
        %v6620 = vpack.c.bf16 %v6610, %v6609
        %v6621 = vpack.c.bf16 %v6612, %v6611
        %v6622 = vpack.c.bf16 %v6614, %v6613
        %v6623 = vld [vmem:[%s12] sm:$0xff]
        %v6624 = vld [vmem:[%s12 + $0x8] sm:$0xff]
        %v6625 = vld [vmem:[%s12 + $0x10] sm:$0xff]
        %v6626 = vld [vmem:[%s12 + $0x18] sm:$0xff]
        %v6627 = vld [vmem:[%s12 + $0x20] sm:$0xff]
        %v6628 = vld [vmem:[%s12 + $0x28] sm:$0xff]
        %v6629 = vld [vmem:[%s12 + $0x30] sm:$0xff]
        %v6630 = vld [vmem:[%s12 + $0x38] sm:$0xff]
        %v6631 = vld [vmem:[%s13] sm:$0x3]
        %v6633 = vlaneseq
        %v6634 = vshrl.u32 %v6633, 7
        %v6635 = vsub.s32 0, %v6634
        %v6636 = vrot.slane %v6631, %v6635
        %v6637 = vlaneseq
        %v6638 = vshrl.u32 %v6637, 7
        %v6639 = vsub.s32 1, %v6638
        %v6640 = vrot.slane %v6631, %v6639
        %v6651 = vunpack.c.l.b16 %v6623
        %v6652 = vunpack.c.h.b16 %v6623
        %v6653 = vunpack.c.l.b16 %v6624
        %v6654 = vunpack.c.h.b16 %v6624
        %v6655 = vunpack.c.l.b16 %v6625
        %v6656 = vunpack.c.h.b16 %v6625
        %v6657 = vunpack.c.l.b16 %v6626
        %v6658 = vunpack.c.h.b16 %v6626
        %v6659 = vunpack.c.l.b16 %v6627
        %v6660 = vunpack.c.h.b16 %v6627
        %v6661 = vunpack.c.l.b16 %v6628
        %v6662 = vunpack.c.h.b16 %v6628
        %v6663 = vunpack.c.l.b16 %v6629
        %v6664 = vunpack.c.h.b16 %v6629
        %v6665 = vunpack.c.l.b16 %v6630
        %v6666 = vunpack.c.h.b16 %v6630
        %v6667 = vpack.c.b16 %v6653, %v6651
        %v6668 = vpack.c.b16 %v6654, %v6652
        %v6669 = vpack.c.b16 %v6657, %v6655
        %v6670 = vpack.c.b16 %v6658, %v6656
        %v6671 = vpack.c.b16 %v6661, %v6659
        %v6672 = vpack.c.b16 %v6662, %v6660
        %v6673 = vpack.c.b16 %v6665, %v6663
        %v6674 = vpack.c.b16 %v6666, %v6664
        %v6684 = vsel %vm803, %v6615, 0
        %v6687 = vsel %vm803, %v6616, 0
        %v6690 = vsel %vm803, %v6617, 0
        %v6693 = vsel %vm803, %v6618, 0
        %v6696 = vsel %vm803, %v6619, 0
        %v6699 = vsel %vm803, %v6620, 0
        %v6702 = vsel %vm803, %v6621, 0
        %v6705 = vsel %vm803, %v6622, 0
        %6707 = vmatprep.subr.bf16.mxu0 0
        %6708 = vmatpush1.bf16.msra.mxu0 0
        %6709 = vmatprep.subr.bf16.mxu0 0
        %6710 = vmatpush1.bf16.msra.mxu0 0
        %6711 = vmatprep.subr.bf16.mxu0 0
        %6712 = vmatpush1.bf16.msra.mxu0 0
        %6713 = vmatprep.subr.bf16.mxu0 0
        %6714 = vmatpush1.bf16.msra.mxu0 0
        %6715 = vmatprep.subr.bf16.mxu0 %v6674
        %6716 = vmatpush1.bf16.msra.mxu0 %v6673
        %6717 = vmatprep.subr.bf16.mxu0 %v6672
        %6718 = vmatpush1.bf16.msra.mxu0 %v6671
        %6719 = vmatprep.subr.bf16.mxu0 %v6670
        %6720 = vmatpush1.bf16.msra.mxu0 %v6669
        %6721 = vmatprep.subr.bf16.mxu0 %v6668
        %6722 = vmatpush1.bf16.msra.mxu0 %v6667
        %6723 = vmatprep.subr.bf16.mxu0 0
        %6724 = vmatpush2.bf16.msra.mxu0 0
        %6725 = vmatprep.subr.bf16.mxu0 0
        %6726 = vmatpush2.bf16.msra.mxu0 0
        %6727 = vmatprep.subr.bf16.mxu0 0
        %6728 = vmatpush2.bf16.msra.mxu0 0
        %6729 = vmatprep.subr.bf16.mxu0 0
        %6730 = vmatpush2.bf16.msra.mxu0 0
        %6731 = vmatprep.subr.bf16.mxu0 0
        %6732 = vmatpush2.bf16.msra.mxu0 0
        %6733 = vmatprep.subr.bf16.mxu0 0
        %6734 = vmatpush2.bf16.msra.mxu0 0
        %6735 = vmatprep.subr.bf16.mxu0 0
        %6736 = vmatpush2.bf16.msra.mxu0 0
        %6737 = vmatprep.subr.bf16.mxu0 0
        %6738 = vmatpush2.bf16.msra.mxu0 0
        %6739 = vmatprep.mubr.bf16.mxu0 0
        %6740 = vmatmul.mubr.bf16.gmra.mxu0 %v6684
        %v6741 = vpop.f32.mrf.mxu0
        %v6742 = vadd.f32 %v6636, %v6741
        %v6743 = vpop.f32.mrf.mxu0
        %v6744 = vadd.f32 %v6640, %v6743
        %v6745 = vpop.f32.mrf.mxu0
        %v6746 = vadd.f32 %v6636, %v6745
        %v6747 = vpop.f32.mrf.mxu0
        %v6748 = vadd.f32 %v6640, %v6747
        %6749 = vmatprep.mubr.bf16.mxu0 0
        %6750 = vmatmul.mubr.bf16.gmra.mxu0 %v6687
        %v6751 = vpop.f32.mrf.mxu0
        %v6752 = vadd.f32 %v6636, %v6751
        %v6753 = vpop.f32.mrf.mxu0
        %v6754 = vadd.f32 %v6640, %v6753
        %v6755 = vpop.f32.mrf.mxu0
        %v6756 = vadd.f32 %v6636, %v6755
        %v6757 = vpop.f32.mrf.mxu0
        %v6758 = vadd.f32 %v6640, %v6757
        %6759 = vmatprep.mubr.bf16.mxu0 0
        %6760 = vmatmul.mubr.bf16.gmra.mxu0 %v6690
        %v6761 = vpop.f32.mrf.mxu0
        %v6762 = vadd.f32 %v6636, %v6761
        %v6763 = vpop.f32.mrf.mxu0
        %v6764 = vadd.f32 %v6640, %v6763
        %v6765 = vpop.f32.mrf.mxu0
        %v6766 = vadd.f32 %v6636, %v6765
        %v6767 = vpop.f32.mrf.mxu0
        %v6768 = vadd.f32 %v6640, %v6767
        %6769 = vmatprep.mubr.bf16.mxu0 0
        %6770 = vmatmul.mubr.bf16.gmra.mxu0 %v6693
        %v6771 = vpop.f32.mrf.mxu0
        %v6772 = vadd.f32 %v6636, %v6771
        %v6773 = vpop.f32.mrf.mxu0
        %v6774 = vadd.f32 %v6640, %v6773
        %v6775 = vpop.f32.mrf.mxu0
        %v6776 = vadd.f32 %v6636, %v6775
        %v6777 = vpop.f32.mrf.mxu0
        %v6778 = vadd.f32 %v6640, %v6777
        %6779 = vmatprep.mubr.bf16.mxu0 0
        %6780 = vmatmul.mubr.bf16.gmra.mxu0 %v6696
        %v6781 = vpop.f32.mrf.mxu0
        %v6782 = vadd.f32 %v6636, %v6781
        %v6783 = vpop.f32.mrf.mxu0
        %v6784 = vadd.f32 %v6640, %v6783
        %v6785 = vpop.f32.mrf.mxu0
        %v6786 = vadd.f32 %v6636, %v6785
        %v6787 = vpop.f32.mrf.mxu0
        %v6788 = vadd.f32 %v6640, %v6787
        %6789 = vmatprep.mubr.bf16.mxu0 0
        %6790 = vmatmul.mubr.bf16.gmra.mxu0 %v6699
        %v6791 = vpop.f32.mrf.mxu0
        %v6792 = vadd.f32 %v6636, %v6791
        %v6793 = vpop.f32.mrf.mxu0
        %v6794 = vadd.f32 %v6640, %v6793
        %v6795 = vpop.f32.mrf.mxu0
        %v6796 = vadd.f32 %v6636, %v6795
        %v6797 = vpop.f32.mrf.mxu0
        %v6798 = vadd.f32 %v6640, %v6797
        %6799 = vmatprep.mubr.bf16.mxu0 0
        %6800 = vmatmul.mubr.bf16.gmra.mxu0 %v6702
        %v6801 = vpop.f32.mrf.mxu0
        %v6802 = vadd.f32 %v6636, %v6801
        %v6803 = vpop.f32.mrf.mxu0
        %v6804 = vadd.f32 %v6640, %v6803
        %v6805 = vpop.f32.mrf.mxu0
        %v6806 = vadd.f32 %v6636, %v6805
        %v6807 = vpop.f32.mrf.mxu0
        %v6808 = vadd.f32 %v6640, %v6807
        %6809 = vmatprep.mubr.bf16.mxu0 0
        %6810 = vmatmul.mubr.bf16.gmra.mxu0 %v6705
        %v6811 = vpop.f32.mrf.mxu0
        %v6812 = vadd.f32 %v6636, %v6811
        %v6813 = vpop.f32.mrf.mxu0
        %v6814 = vadd.f32 %v6640, %v6813
        %v6815 = vpop.f32.mrf.mxu0
        %v6816 = vadd.f32 %v6636, %v6815
        %v6817 = vpop.f32.mrf.mxu0
        %v6818 = vadd.f32 %v6640, %v6817
        %6819 = vdwg.mxu0
        %v6820 = vmul.f32 %v6742, 0.5
        %v6821 = vmul.f32 %v6744, 0.5
        %v6822 = vmul.f32 %v6746, 0.5
        %v6823 = vmul.f32 %v6748, 0.5
        %v6824 = vmul.f32 %v6752, 0.5
        %v6825 = vmul.f32 %v6754, 0.5
        %v6826 = vmul.f32 %v6756, 0.5
        %v6827 = vmul.f32 %v6758, 0.5
        %v6828 = vmul.f32 %v6762, 0.5
        %v6829 = vmul.f32 %v6764, 0.5
        %v6830 = vmul.f32 %v6766, 0.5
        %v6831 = vmul.f32 %v6768, 0.5
        %v6832 = vmul.f32 %v6772, 0.5
        %v6833 = vmul.f32 %v6774, 0.5
        %v6834 = vmul.f32 %v6776, 0.5
        %v6835 = vmul.f32 %v6778, 0.5
        %v6836 = vmul.f32 %v6782, 0.5
        %v6837 = vmul.f32 %v6784, 0.5
        %v6838 = vmul.f32 %v6786, 0.5
        %v6839 = vmul.f32 %v6788, 0.5
        %v6840 = vmul.f32 %v6792, 0.5
        %v6841 = vmul.f32 %v6794, 0.5
        %v6842 = vmul.f32 %v6796, 0.5
        %v6843 = vmul.f32 %v6798, 0.5
        %v6844 = vmul.f32 %v6802, 0.5
        %v6845 = vmul.f32 %v6804, 0.5
        %v6846 = vmul.f32 %v6806, 0.5
        %v6847 = vmul.f32 %v6808, 0.5
        %v6848 = vmul.f32 %v6812, 0.5
        %v6849 = vmul.f32 %v6814, 0.5
        %v6850 = vmul.f32 %v6816, 0.5
        %v6851 = vmul.f32 %v6818, 0.5
        %v6852 = vmul.f32 %v6742, 0.044715
        %v6853 = vmul.f32 %v6744, 0.044715
        %v6854 = vmul.f32 %v6746, 0.044715
        %v6855 = vmul.f32 %v6748, 0.044715
        %v6856 = vmul.f32 %v6752, 0.044715
        %v6857 = vmul.f32 %v6754, 0.044715
        %v6858 = vmul.f32 %v6756, 0.044715
        %v6859 = vmul.f32 %v6758, 0.044715
        %v6860 = vmul.f32 %v6762, 0.044715
        %v6861 = vmul.f32 %v6764, 0.044715
        %v6862 = vmul.f32 %v6766, 0.044715
        %v6863 = vmul.f32 %v6768, 0.044715
        %v6864 = vmul.f32 %v6772, 0.044715
        %v6865 = vmul.f32 %v6774, 0.044715
        %v6866 = vmul.f32 %v6776, 0.044715
        %v6867 = vmul.f32 %v6778, 0.044715
        %v6868 = vmul.f32 %v6782, 0.044715
        %v6869 = vmul.f32 %v6784, 0.044715
        %v6870 = vmul.f32 %v6786, 0.044715
        %v6871 = vmul.f32 %v6788, 0.044715
        %v6872 = vmul.f32 %v6792, 0.044715
        %v6873 = vmul.f32 %v6794, 0.044715
        %v6874 = vmul.f32 %v6796, 0.044715
        %v6875 = vmul.f32 %v6798, 0.044715
        %v6876 = vmul.f32 %v6802, 0.044715
        %v6877 = vmul.f32 %v6804, 0.044715
        %v6878 = vmul.f32 %v6806, 0.044715
        %v6879 = vmul.f32 %v6808, 0.044715
        %v6880 = vmul.f32 %v6812, 0.044715
        %v6881 = vmul.f32 %v6814, 0.044715
        %v6882 = vmul.f32 %v6816, 0.044715
        %v6883 = vmul.f32 %v6818, 0.044715
        %v6884 = vmul.f32 %v6852, %v6742
        %v6885 = vmul.f32 %v6853, %v6744
        %v6886 = vmul.f32 %v6854, %v6746
        %v6887 = vmul.f32 %v6855, %v6748
        %v6888 = vmul.f32 %v6856, %v6752
        %v6889 = vmul.f32 %v6857, %v6754
        %v6890 = vmul.f32 %v6858, %v6756
        %v6891 = vmul.f32 %v6859, %v6758
        %v6892 = vmul.f32 %v6860, %v6762
        %v6893 = vmul.f32 %v6861, %v6764
        %v6894 = vmul.f32 %v6862, %v6766
        %v6895 = vmul.f32 %v6863, %v6768
        %v6896 = vmul.f32 %v6864, %v6772
        %v6897 = vmul.f32 %v6865, %v6774
        %v6898 = vmul.f32 %v6866, %v6776
        %v6899 = vmul.f32 %v6867, %v6778
        %v6900 = vmul.f32 %v6868, %v6782
        %v6901 = vmul.f32 %v6869, %v6784
        %v6902 = vmul.f32 %v6870, %v6786
        %v6903 = vmul.f32 %v6871, %v6788
        %v6904 = vmul.f32 %v6872, %v6792
        %v6905 = vmul.f32 %v6873, %v6794
        %v6906 = vmul.f32 %v6874, %v6796
        %v6907 = vmul.f32 %v6875, %v6798
        %v6908 = vmul.f32 %v6876, %v6802
        %v6909 = vmul.f32 %v6877, %v6804
        %v6910 = vmul.f32 %v6878, %v6806
        %v6911 = vmul.f32 %v6879, %v6808
        %v6912 = vmul.f32 %v6880, %v6812
        %v6913 = vmul.f32 %v6881, %v6814
        %v6914 = vmul.f32 %v6882, %v6816
        %v6915 = vmul.f32 %v6883, %v6818
        %v6916 = vmul.f32 %v6884, %v6742
        %v6917 = vmul.f32 %v6885, %v6744
        %v6918 = vmul.f32 %v6886, %v6746
        %v6919 = vmul.f32 %v6887, %v6748
        %v6920 = vmul.f32 %v6888, %v6752
        %v6921 = vmul.f32 %v6889, %v6754
        %v6922 = vmul.f32 %v6890, %v6756
        %v6923 = vmul.f32 %v6891, %v6758
        %v6924 = vmul.f32 %v6892, %v6762
        %v6925 = vmul.f32 %v6893, %v6764
        %v6926 = vmul.f32 %v6894, %v6766
        %v6927 = vmul.f32 %v6895, %v6768
        %v6928 = vmul.f32 %v6896, %v6772
        %v6929 = vmul.f32 %v6897, %v6774
        %v6930 = vmul.f32 %v6898, %v6776
        %v6931 = vmul.f32 %v6899, %v6778
        %v6932 = vmul.f32 %v6900, %v6782
        %v6933 = vmul.f32 %v6901, %v6784
        %v6934 = vmul.f32 %v6902, %v6786
        %v6935 = vmul.f32 %v6903, %v6788
        %v6936 = vmul.f32 %v6904, %v6792
        %v6937 = vmul.f32 %v6905, %v6794
        %v6938 = vmul.f32 %v6906, %v6796
        %v6939 = vmul.f32 %v6907, %v6798
        %v6940 = vmul.f32 %v6908, %v6802
        %v6941 = vmul.f32 %v6909, %v6804
        %v6942 = vmul.f32 %v6910, %v6806
        %v6943 = vmul.f32 %v6911, %v6808
        %v6944 = vmul.f32 %v6912, %v6812
        %v6945 = vmul.f32 %v6913, %v6814
        %v6946 = vmul.f32 %v6914, %v6816
        %v6947 = vmul.f32 %v6915, %v6818
        %v6948 = vadd.f32 %v6742, %v6916
        %v6949 = vadd.f32 %v6744, %v6917
        %v6950 = vadd.f32 %v6746, %v6918
        %v6951 = vadd.f32 %v6748, %v6919
        %v6952 = vadd.f32 %v6752, %v6920
        %v6953 = vadd.f32 %v6754, %v6921
        %v6954 = vadd.f32 %v6756, %v6922
        %v6955 = vadd.f32 %v6758, %v6923
        %v6956 = vadd.f32 %v6762, %v6924
        %v6957 = vadd.f32 %v6764, %v6925
        %v6958 = vadd.f32 %v6766, %v6926
        %v6959 = vadd.f32 %v6768, %v6927
        %v6960 = vadd.f32 %v6772, %v6928
        %v6961 = vadd.f32 %v6774, %v6929
        %v6962 = vadd.f32 %v6776, %v6930
        %v6963 = vadd.f32 %v6778, %v6931
        %v6964 = vadd.f32 %v6782, %v6932
        %v6965 = vadd.f32 %v6784, %v6933
        %v6966 = vadd.f32 %v6786, %v6934
        %v6967 = vadd.f32 %v6788, %v6935
        %v6968 = vadd.f32 %v6792, %v6936
        %v6969 = vadd.f32 %v6794, %v6937
        %v6970 = vadd.f32 %v6796, %v6938
        %v6971 = vadd.f32 %v6798, %v6939
        %v6972 = vadd.f32 %v6802, %v6940
        %v6973 = vadd.f32 %v6804, %v6941
        %v6974 = vadd.f32 %v6806, %v6942
        %v6975 = vadd.f32 %v6808, %v6943
        %v6976 = vadd.f32 %v6812, %v6944
        %v6977 = vadd.f32 %v6814, %v6945
        %v6978 = vadd.f32 %v6816, %v6946
        %v6979 = vadd.f32 %v6818, %v6947
        %v6980 = vmul.f32 %v6948, 0.7978846
        %v6981 = vmul.f32 %v6949, 0.7978846
        %v6982 = vmul.f32 %v6950, 0.7978846
        %v6983 = vmul.f32 %v6951, 0.7978846
        %v6984 = vmul.f32 %v6952, 0.7978846
        %v6985 = vmul.f32 %v6953, 0.7978846
        %v6986 = vmul.f32 %v6954, 0.7978846
        %v6987 = vmul.f32 %v6955, 0.7978846
        %v6988 = vmul.f32 %v6956, 0.7978846
        %v6989 = vmul.f32 %v6957, 0.7978846
        %v6990 = vmul.f32 %v6958, 0.7978846
        %v6991 = vmul.f32 %v6959, 0.7978846
        %v6992 = vmul.f32 %v6960, 0.7978846
        %v6993 = vmul.f32 %v6961, 0.7978846
        %v6994 = vmul.f32 %v6962, 0.7978846
        %v6995 = vmul.f32 %v6963, 0.7978846
        %v6996 = vmul.f32 %v6964, 0.7978846
        %v6997 = vmul.f32 %v6965, 0.7978846
        %v6998 = vmul.f32 %v6966, 0.7978846
        %v6999 = vmul.f32 %v6967, 0.7978846
        %v7000 = vmul.f32 %v6968, 0.7978846
        %v7001 = vmul.f32 %v6969, 0.7978846
        %v7002 = vmul.f32 %v6970, 0.7978846
        %v7003 = vmul.f32 %v6971, 0.7978846
        %v7004 = vmul.f32 %v6972, 0.7978846
        %v7005 = vmul.f32 %v6973, 0.7978846
        %v7006 = vmul.f32 %v6974, 0.7978846
        %v7007 = vmul.f32 %v6975, 0.7978846
        %v7008 = vmul.f32 %v6976, 0.7978846
        %v7009 = vmul.f32 %v6977, 0.7978846
        %v7010 = vmul.f32 %v6978, 0.7978846
        %v7011 = vmul.f32 %v6979, 0.7978846
        %v7012 = vtanh.pop %v6980
        %v7013 = vtanh.pop %v6981
        %v7014 = vtanh.pop %v6982
        %v7015 = vtanh.pop %v6983
        %v7016 = vtanh.pop %v6984
        %v7017 = vtanh.pop %v6985
        %v7018 = vtanh.pop %v6986
        %v7019 = vtanh.pop %v6987
        %v7020 = vtanh.pop %v6988
        %v7021 = vtanh.pop %v6989
        %v7022 = vtanh.pop %v6990
        %v7023 = vtanh.pop %v6991
        %v7024 = vtanh.pop %v6992
        %v7025 = vtanh.pop %v6993
        %v7026 = vtanh.pop %v6994
        %v7027 = vtanh.pop %v6995
        %v7028 = vtanh.pop %v6996
        %v7029 = vtanh.pop %v6997
        %v7030 = vtanh.pop %v6998
        %v7031 = vtanh.pop %v6999
        %v7032 = vtanh.pop %v7000
        %v7033 = vtanh.pop %v7001
        %v7034 = vtanh.pop %v7002
        %v7035 = vtanh.pop %v7003
        %v7036 = vtanh.pop %v7004
        %v7037 = vtanh.pop %v7005
        %v7038 = vtanh.pop %v7006
        %v7039 = vtanh.pop %v7007
        %v7040 = vtanh.pop %v7008
        %v7041 = vtanh.pop %v7009
        %v7042 = vtanh.pop %v7010
        %v7043 = vtanh.pop %v7011
        %v7044 = vadd.f32 %v7012, 1.0
        %v7045 = vadd.f32 %v7013, 1.0
        %v7046 = vadd.f32 %v7014, 1.0
        %v7047 = vadd.f32 %v7015, 1.0
        %v7048 = vadd.f32 %v7016, 1.0
        %v7049 = vadd.f32 %v7017, 1.0
        %v7050 = vadd.f32 %v7018, 1.0
        %v7051 = vadd.f32 %v7019, 1.0
        %v7052 = vadd.f32 %v7020, 1.0
        %v7053 = vadd.f32 %v7021, 1.0
        %v7054 = vadd.f32 %v7022, 1.0
        %v7055 = vadd.f32 %v7023, 1.0
        %v7056 = vadd.f32 %v7024, 1.0
        %v7057 = vadd.f32 %v7025, 1.0
        %v7058 = vadd.f32 %v7026, 1.0
        %v7059 = vadd.f32 %v7027, 1.0
        %v7060 = vadd.f32 %v7028, 1.0
        %v7061 = vadd.f32 %v7029, 1.0
        %v7062 = vadd.f32 %v7030, 1.0
        %v7063 = vadd.f32 %v7031, 1.0
        %v7064 = vadd.f32 %v7032, 1.0
        %v7065 = vadd.f32 %v7033, 1.0
        %v7066 = vadd.f32 %v7034, 1.0
        %v7067 = vadd.f32 %v7035, 1.0
        %v7068 = vadd.f32 %v7036, 1.0
        %v7069 = vadd.f32 %v7037, 1.0
        %v7070 = vadd.f32 %v7038, 1.0
        %v7071 = vadd.f32 %v7039, 1.0
        %v7072 = vadd.f32 %v7040, 1.0
        %v7073 = vadd.f32 %v7041, 1.0
        %v7074 = vadd.f32 %v7042, 1.0
        %v7075 = vadd.f32 %v7043, 1.0
        %v7076 = vmul.f32 %v6820, %v7044
        %v7077 = vmul.f32 %v6821, %v7045
        %v7078 = vmul.f32 %v6822, %v7046
        %v7079 = vmul.f32 %v6823, %v7047
        %v7080 = vmul.f32 %v6824, %v7048
        %v7081 = vmul.f32 %v6825, %v7049
        %v7082 = vmul.f32 %v6826, %v7050
        %v7083 = vmul.f32 %v6827, %v7051
        %v7084 = vmul.f32 %v6828, %v7052
        %v7085 = vmul.f32 %v6829, %v7053
        %v7086 = vmul.f32 %v6830, %v7054
        %v7087 = vmul.f32 %v6831, %v7055
        %v7088 = vmul.f32 %v6832, %v7056
        %v7089 = vmul.f32 %v6833, %v7057
        %v7090 = vmul.f32 %v6834, %v7058
        %v7091 = vmul.f32 %v6835, %v7059
        %v7092 = vmul.f32 %v6836, %v7060
        %v7093 = vmul.f32 %v6837, %v7061
        %v7094 = vmul.f32 %v6838, %v7062
        %v7095 = vmul.f32 %v6839, %v7063
        %v7096 = vmul.f32 %v6840, %v7064
        %v7097 = vmul.f32 %v6841, %v7065
        %v7098 = vmul.f32 %v6842, %v7066
        %v7099 = vmul.f32 %v6843, %v7067
        %v7100 = vmul.f32 %v6844, %v7068
        %v7101 = vmul.f32 %v6845, %v7069
        %v7102 = vmul.f32 %v6846, %v7070
        %v7103 = vmul.f32 %v6847, %v7071
        %v7104 = vmul.f32 %v6848, %v7072
        %v7105 = vmul.f32 %v6849, %v7073
        %v7106 = vmul.f32 %v6850, %v7074
        %v7107 = vmul.f32 %v6851, %v7075
        %v7108 = vpack.c.bf16 %v7078, %v7076
        %v7109 = vpack.c.bf16 %v7079, %v7077
        %v7110 = vpack.c.bf16 %v7082, %v7080
        %v7111 = vpack.c.bf16 %v7083, %v7081
        %v7112 = vpack.c.bf16 %v7086, %v7084
        %v7113 = vpack.c.bf16 %v7087, %v7085
        %v7114 = vpack.c.bf16 %v7090, %v7088
        %v7115 = vpack.c.bf16 %v7091, %v7089
        %v7116 = vpack.c.bf16 %v7094, %v7092
        %v7117 = vpack.c.bf16 %v7095, %v7093
        %v7118 = vpack.c.bf16 %v7098, %v7096
        %v7119 = vpack.c.bf16 %v7099, %v7097
        %v7120 = vpack.c.bf16 %v7102, %v7100
        %v7121 = vpack.c.bf16 %v7103, %v7101
        %v7122 = vpack.c.bf16 %v7106, %v7104
        %v7123 = vpack.c.bf16 %v7107, %v7105
        %v7124 = vld [vmem:[%s14] sm:$0xf]
        %v7125 = vld [vmem:[%s14 + $0x4] sm:$0xf]
        %v7126 = vld [vmem:[%s14 + $0x8] sm:$0xf]
        %v7127 = vld [vmem:[%s14 + $0xc] sm:$0xf]
        %v7128 = vld [vmem:[%s14 + $0x10] sm:$0xf]
        %v7129 = vld [vmem:[%s14 + $0x14] sm:$0xf]
        %v7130 = vld [vmem:[%s14 + $0x18] sm:$0xf]
        %v7131 = vld [vmem:[%s14 + $0x1c] sm:$0xf]
        %v7132 = vld [vmem:[%s14 + $0x20] sm:$0xf]
        %v7133 = vld [vmem:[%s14 + $0x24] sm:$0xf]
        %v7134 = vld [vmem:[%s14 + $0x28] sm:$0xf]
        %v7135 = vld [vmem:[%s14 + $0x2c] sm:$0xf]
        %v7136 = vld [vmem:[%s14 + $0x30] sm:$0xf]
        %v7137 = vld [vmem:[%s14 + $0x34] sm:$0xf]
        %v7138 = vld [vmem:[%s14 + $0x38] sm:$0xf]
        %v7139 = vld [vmem:[%s14 + $0x3c] sm:$0xf]
        %v7140 = vld [vmem:[%s14 + $0x40] sm:$0xf]
        %v7141 = vld [vmem:[%s14 + $0x44] sm:$0xf]
        %v7142 = vld [vmem:[%s14 + $0x48] sm:$0xf]
        %v7143 = vld [vmem:[%s14 + $0x4c] sm:$0xf]
        %v7144 = vld [vmem:[%s14 + $0x50] sm:$0xf]
        %v7145 = vld [vmem:[%s14 + $0x54] sm:$0xf]
        %v7146 = vld [vmem:[%s14 + $0x58] sm:$0xf]
        %v7147 = vld [vmem:[%s14 + $0x5c] sm:$0xf]
        %v7148 = vld [vmem:[%s14 + $0x60] sm:$0xf]
        %v7149 = vld [vmem:[%s14 + $0x64] sm:$0xf]
        %v7150 = vld [vmem:[%s14 + $0x68] sm:$0xf]
        %v7151 = vld [vmem:[%s14 + $0x6c] sm:$0xf]
        %v7152 = vld [vmem:[%s14 + $0x70] sm:$0xf]
        %v7153 = vld [vmem:[%s14 + $0x74] sm:$0xf]
        %v7154 = vld [vmem:[%s14 + $0x78] sm:$0xf]
        %v7155 = vld [vmem:[%s14 + $0x7c] sm:$0xf]
        %v7156 = vld [vmem:[%s15] sm:$0x1]
        %v7158 = vlaneseq
        %v7159 = vshrl.u32 %v7158, 7
        %v7160 = vsub.s32 0, %v7159
        %v7161 = vrot.slane %v7156, %v7160
        %v7195 = vunpack.c.l.b16 %v7124
        %v7196 = vunpack.c.l.b16 %v7125
        %v7197 = vunpack.c.l.b16 %v7126
        %v7198 = vunpack.c.l.b16 %v7127
        %v7199 = vunpack.c.l.b16 %v7128
        %v7200 = vunpack.c.l.b16 %v7129
        %v7201 = vunpack.c.l.b16 %v7130
        %v7202 = vunpack.c.l.b16 %v7131
        %v7203 = vunpack.c.l.b16 %v7132
        %v7204 = vunpack.c.l.b16 %v7133
        %v7205 = vunpack.c.l.b16 %v7134
        %v7206 = vunpack.c.l.b16 %v7135
        %v7207 = vunpack.c.l.b16 %v7136
        %v7208 = vunpack.c.l.b16 %v7137
        %v7209 = vunpack.c.l.b16 %v7138
        %v7210 = vunpack.c.l.b16 %v7139
        %v7211 = vunpack.c.l.b16 %v7140
        %v7212 = vunpack.c.l.b16 %v7141
        %v7213 = vunpack.c.l.b16 %v7142
        %v7214 = vunpack.c.l.b16 %v7143
        %v7215 = vunpack.c.l.b16 %v7144
        %v7216 = vunpack.c.l.b16 %v7145
        %v7217 = vunpack.c.l.b16 %v7146
        %v7218 = vunpack.c.l.b16 %v7147
        %v7219 = vunpack.c.l.b16 %v7148
        %v7220 = vunpack.c.l.b16 %v7149
        %v7221 = vunpack.c.l.b16 %v7150
        %v7222 = vunpack.c.l.b16 %v7151
        %v7223 = vunpack.c.l.b16 %v7152
        %v7224 = vunpack.c.l.b16 %v7153
        %v7225 = vunpack.c.l.b16 %v7154
        %v7226 = vunpack.c.l.b16 %v7155
        %v7227 = vpack.c.b16 %v7196, %v7195
        %v7228 = vpack.c.b16 %v7198, %v7197
        %v7229 = vpack.c.b16 %v7200, %v7199
        %v7230 = vpack.c.b16 %v7202, %v7201
        %v7231 = vpack.c.b16 %v7204, %v7203
        %v7232 = vpack.c.b16 %v7206, %v7205
        %v7233 = vpack.c.b16 %v7208, %v7207
        %v7234 = vpack.c.b16 %v7210, %v7209
        %v7235 = vpack.c.b16 %v7212, %v7211
        %v7236 = vpack.c.b16 %v7214, %v7213
        %v7237 = vpack.c.b16 %v7216, %v7215
        %v7238 = vpack.c.b16 %v7218, %v7217
        %v7239 = vpack.c.b16 %v7220, %v7219
        %v7240 = vpack.c.b16 %v7222, %v7221
        %v7241 = vpack.c.b16 %v7224, %v7223
        %v7242 = vpack.c.b16 %v7226, %v7225
        %7259 = vmatprep.subr.bf16.mxu0 0
        %7260 = vmatpush1.bf16.msra.mxu0 %v7234
        %7261 = vmatprep.subr.bf16.mxu0 0
        %7262 = vmatpush1.bf16.msra.mxu0 %v7233
        %7263 = vmatprep.subr.bf16.mxu0 0
        %7264 = vmatpush1.bf16.msra.mxu0 %v7232
        %7265 = vmatprep.subr.bf16.mxu0 0
        %7266 = vmatpush1.bf16.msra.mxu0 %v7231
        %7267 = vmatprep.subr.bf16.mxu0 0
        %7268 = vmatpush1.bf16.msra.mxu0 %v7230
        %7269 = vmatprep.subr.bf16.mxu0 0
        %7270 = vmatpush1.bf16.msra.mxu0 %v7229
        %7271 = vmatprep.subr.bf16.mxu0 0
        %7272 = vmatpush1.bf16.msra.mxu0 %v7228
        %7273 = vmatprep.subr.bf16.mxu0 0
        %7274 = vmatpush1.bf16.msra.mxu0 %v7227
        %7275 = vmatprep.subr.bf16.mxu0 0
        %7276 = vmatpush2.bf16.msra.mxu0 %v7242
        %7277 = vmatprep.subr.bf16.mxu0 0
        %7278 = vmatpush2.bf16.msra.mxu0 %v7241
        %7279 = vmatprep.subr.bf16.mxu0 0
        %7280 = vmatpush2.bf16.msra.mxu0 %v7240
        %7281 = vmatprep.subr.bf16.mxu0 0
        %7282 = vmatpush2.bf16.msra.mxu0 %v7239
        %7283 = vmatprep.subr.bf16.mxu0 0
        %7284 = vmatpush2.bf16.msra.mxu0 %v7238
        %7285 = vmatprep.subr.bf16.mxu0 0
        %7286 = vmatpush2.bf16.msra.mxu0 %v7237
        %7287 = vmatprep.subr.bf16.mxu0 0
        %7288 = vmatpush2.bf16.msra.mxu0 %v7236
        %7289 = vmatprep.subr.bf16.mxu0 0
        %7290 = vmatpush2.bf16.msra.mxu0 %v7235
        %7291 = vmatprep.mubr.bf16.mxu0 %v7109
        %7292 = vmatmul.mubr.bf16.gmra.mxu0 %v7108
        %v7293 = vpop.f32.mrf.mxu0
        %v7294 = vadd.f32 %v7161, %v7293
        %v7295 = vpop.f32.mrf.mxu0
        %v7296 = vpop.f32.mrf.mxu0
        %v7297 = vadd.f32 %v7161, %v7296
        %v7298 = vpop.f32.mrf.mxu0
        %7299 = vmatprep.mubr.bf16.mxu0 %v7111
        %7300 = vmatmul.mubr.bf16.gmra.mxu0 %v7110
        %v7301 = vpop.f32.mrf.mxu0
        %v7302 = vadd.f32 %v7161, %v7301
        %v7303 = vpop.f32.mrf.mxu0
        %v7304 = vpop.f32.mrf.mxu0
        %v7305 = vadd.f32 %v7161, %v7304
        %v7306 = vpop.f32.mrf.mxu0
        %7307 = vmatprep.mubr.bf16.mxu0 %v7113
        %7308 = vmatmul.mubr.bf16.gmra.mxu0 %v7112
        %v7309 = vpop.f32.mrf.mxu0
        %v7310 = vadd.f32 %v7161, %v7309
        %v7311 = vpop.f32.mrf.mxu0
        %v7312 = vpop.f32.mrf.mxu0
        %v7313 = vadd.f32 %v7161, %v7312
        %v7314 = vpop.f32.mrf.mxu0
        %7315 = vmatprep.mubr.bf16.mxu0 %v7115
        %7316 = vmatmul.mubr.bf16.gmra.mxu0 %v7114
        %v7317 = vpop.f32.mrf.mxu0
        %v7318 = vadd.f32 %v7161, %v7317
        %v7319 = vpop.f32.mrf.mxu0
        %v7320 = vpop.f32.mrf.mxu0
        %v7321 = vadd.f32 %v7161, %v7320
        %v7322 = vpop.f32.mrf.mxu0
        %7323 = vmatprep.mubr.bf16.mxu0 %v7117
        %7324 = vmatmul.mubr.bf16.gmra.mxu0 %v7116
        %v7325 = vpop.f32.mrf.mxu0
        %v7326 = vadd.f32 %v7161, %v7325
        %v7327 = vpop.f32.mrf.mxu0
        %v7328 = vpop.f32.mrf.mxu0
        %v7329 = vadd.f32 %v7161, %v7328
        %v7330 = vpop.f32.mrf.mxu0
        %7331 = vmatprep.mubr.bf16.mxu0 %v7119
        %7332 = vmatmul.mubr.bf16.gmra.mxu0 %v7118
        %v7333 = vpop.f32.mrf.mxu0
        %v7334 = vadd.f32 %v7161, %v7333
        %v7335 = vpop.f32.mrf.mxu0
        %v7336 = vpop.f32.mrf.mxu0
        %v7337 = vadd.f32 %v7161, %v7336
        %v7338 = vpop.f32.mrf.mxu0
        %7339 = vmatprep.mubr.bf16.mxu0 %v7121
        %7340 = vmatmul.mubr.bf16.gmra.mxu0 %v7120
        %v7341 = vpop.f32.mrf.mxu0
        %v7342 = vadd.f32 %v7161, %v7341
        %v7343 = vpop.f32.mrf.mxu0
        %v7344 = vpop.f32.mrf.mxu0
        %v7345 = vadd.f32 %v7161, %v7344
        %v7346 = vpop.f32.mrf.mxu0
        %7347 = vmatprep.mubr.bf16.mxu0 %v7123
        %7348 = vmatmul.mubr.bf16.gmra.mxu0 %v7122
        %v7349 = vpop.f32.mrf.mxu0
        %v7350 = vadd.f32 %v7161, %v7349
        %v7351 = vpop.f32.mrf.mxu0
        %v7352 = vpop.f32.mrf.mxu0
        %v7353 = vadd.f32 %v7161, %v7352
        %v7354 = vpop.f32.mrf.mxu0
        %7355 = vdwg.mxu0
        %v7356 = vadd.f32 %v6345, %v7294
        %v7357 = vadd.f32 %v6346, %v7297
        %v7358 = vadd.f32 %v6347, %v7302
        %v7359 = vadd.f32 %v6348, %v7305
        %v7360 = vadd.f32 %v6349, %v7310
        %v7361 = vadd.f32 %v6350, %v7313
        %v7362 = vadd.f32 %v6351, %v7318
        %v7363 = vadd.f32 %v6352, %v7321
        %v7364 = vadd.f32 %v6353, %v7326
        %v7365 = vadd.f32 %v6354, %v7329
        %v7366 = vadd.f32 %v6355, %v7334
        %v7367 = vadd.f32 %v6356, %v7337
        %v7368 = vadd.f32 %v6357, %v7342
        %v7369 = vadd.f32 %v6358, %v7345
        %v7370 = vadd.f32 %v6359, %v7350
        %v7371 = vadd.f32 %v6360, %v7353
        %7388 = vrot.lane.b32.xlu0 %v6345, 64
        %v7389 = vpop.permute.xlu0 %7388
        %7390 = vrot.lane.b32.xlu0 %v6346, 64
        %v7391 = vpop.permute.xlu0 %7390
        %7392 = vrot.lane.b32.xlu0 %v6347, 64
        %v7393 = vpop.permute.xlu0 %7392
        %7394 = vrot.lane.b32.xlu0 %v6348, 64
        %v7395 = vpop.permute.xlu0 %7394
        %7396 = vrot.lane.b32.xlu0 %v6349, 64
        %v7397 = vpop.permute.xlu0 %7396
        %7398 = vrot.lane.b32.xlu0 %v6350, 64
        %v7399 = vpop.permute.xlu0 %7398
        %7400 = vrot.lane.b32.xlu0 %v6351, 64
        %v7401 = vpop.permute.xlu0 %7400
        %7402 = vrot.lane.b32.xlu0 %v6352, 64
        %v7403 = vpop.permute.xlu0 %7402
        %7404 = vrot.lane.b32.xlu0 %v6353, 64
        %v7405 = vpop.permute.xlu0 %7404
        %7406 = vrot.lane.b32.xlu0 %v6354, 64
        %v7407 = vpop.permute.xlu0 %7406
        %7408 = vrot.lane.b32.xlu0 %v6355, 64
        %v7409 = vpop.permute.xlu0 %7408
        %7410 = vrot.lane.b32.xlu0 %v6356, 64
        %v7411 = vpop.permute.xlu0 %7410
        %7412 = vrot.lane.b32.xlu0 %v6357, 64
        %v7413 = vpop.permute.xlu0 %7412
        %7414 = vrot.lane.b32.xlu0 %v6358, 64
        %v7415 = vpop.permute.xlu0 %7414
        %7416 = vrot.lane.b32.xlu0 %v6359, 64
        %v7417 = vpop.permute.xlu0 %7416
        %7418 = vrot.lane.b32.xlu0 %v6360, 64
        %v7419 = vpop.permute.xlu0 %7418
        %v7436 = vsel %vm803, %v7356, %v7389
        %v7437 = vsel %vm803, %v7357, %v7391
        %v7438 = vsel %vm803, %v7358, %v7393
        %v7439 = vsel %vm803, %v7359, %v7395
        %v7440 = vsel %vm803, %v7360, %v7397
        %v7441 = vsel %vm803, %v7361, %v7399
        %v7442 = vsel %vm803, %v7362, %v7401
        %v7443 = vsel %vm803, %v7363, %v7403
        %v7444 = vsel %vm803, %v7364, %v7405
        %v7445 = vsel %vm803, %v7365, %v7407
        %v7446 = vsel %vm803, %v7366, %v7409
        %v7447 = vsel %vm803, %v7367, %v7411
        %v7448 = vsel %vm803, %v7368, %v7413
        %v7449 = vsel %vm803, %v7369, %v7415
        %v7450 = vsel %vm803, %v7370, %v7417
        %v7451 = vsel %vm803, %v7371, %v7419
        %7452 = vst [vmem:[%s531] sm:$0xff] %v7436
        %7453 = vst [vmem:[%s531 + $0x8] sm:$0xff] %v7437
        %7454 = vst [vmem:[%s531 + $0x10] sm:$0xff] %v7438
        %7455 = vst [vmem:[%s531 + $0x18] sm:$0xff] %v7439
        %7456 = vst [vmem:[%s531 + $0x20] sm:$0xff] %v7440
        %7457 = vst [vmem:[%s531 + $0x28] sm:$0xff] %v7441
        %7458 = vst [vmem:[%s531 + $0x30] sm:$0xff] %v7442
        %7459 = vst [vmem:[%s531 + $0x38] sm:$0xff] %v7443
        %7460 = vst [vmem:[%s531 + $0x40] sm:$0xff] %v7444
        %7461 = vst [vmem:[%s531 + $0x48] sm:$0xff] %v7445
        %7462 = vst [vmem:[%s531 + $0x50] sm:$0xff] %v7446
        %7463 = vst [vmem:[%s531 + $0x58] sm:$0xff] %v7447
        %7464 = vst [vmem:[%s531 + $0x60] sm:$0xff] %v7448
        %7465 = vst [vmem:[%s531 + $0x68] sm:$0xff] %v7449
        %7466 = vst [vmem:[%s531 + $0x70] sm:$0xff] %v7450
        %7467 = vst [vmem:[%s531 + $0x78] sm:$0xff] %v7451
        %s7468 = sand.u32 %s384, 1
        %s7469 = scalar_lea.sflag [#allocation3], %s7468
        %s7470 = sand.u32 %s384, 1
        %s7471 = smul.addr %s7470, 128
        %s7472 = scalar_lea.vmem [#allocation2], %s7471
        // Predicated region
        $region85: #{tpu_custom_call.1} parent=83 // pred_check
          %p7473 = pneg %p394
        $region86: #{tpu_custom_call.1} parent=83 // pred_check_branch
          %7475 = sbr.rel (%p7473) target = $region88
        $region87: #{tpu_custom_call.1} parent=83 // pred_region
          %s7476 = smul.u32 16, %s30
          %s7478 = ssub.s32 2048, 2048
          %7479 = vsyncadd %s7469, %s7478
          %s7480 = smul.addr %s7476, 128
          %s7481 = scalar_lea.hbm %s16, %s7480
          %s7482 = sshll.u32 %s7472, 4
          %s7483 = int_to_ptr.vmem [resolvable:$true] %s7482
          %7488 = dma.vmem_to_hbm [thread:$0]  %s7483, 2048, %s7481, %s7469, 128, 128, 8
        $region88: #{tpu_custom_call.1} parent=83 // pred_fallthru
          _
      $region84: #{tpu_custom_call.1} parent=5 // pred_fallthru
        _
      %p7489 = scmp.le.s32.totalorder 2, %s25
      // Predicated region
      $region89: #{tpu_custom_call.1} parent=5 // pred_check
        %p7490 = pneg %p7489
      $region90: #{tpu_custom_call.1} parent=5 // pred_check_branch
        %7492 = sbr.rel (%p7490) target = $region92
      $region91: #{tpu_custom_call.1} parent=5 // pred_region
        %s7493 = ssub.s32 %s25, 2
        // Predicated region
        $region93: #{tpu_custom_call.1} parent=91 // pred_check
          %p7494 = pneg %p400
        $region94: #{tpu_custom_call.1} parent=91 // pred_check_branch
          %7496 = sbr.rel (%p7494) target = $region96
        $region95: #{tpu_custom_call.1} parent=91 // pred_region
          %s7497 = sand.u32 %s385, 1
          %s7498 = scalar_lea.sflag [#allocation3], %s7497
          %s7499 = sand.u32 %s385, 1
          %s7500 = smul.addr %s7499, 128
          %s7501 = scalar_lea.vmem [#allocation2], %s7500
          %7502 = dma.done %s7498, 2048
        $region96: #{tpu_custom_call.1} parent=91 // pred_fallthru
          _
      $region92: #{tpu_custom_call.1} parent=5 // pred_fallthru
        _
    $region6: #{tpu_custom_call.1} parent=1 // loop_footer
      %s29 = sadd.s32 1, %s25
    $region7: #{tpu_custom_call.1} parent=1 // loop_footer_branch
      %24 = sbr.rel target = $region3
    $region8: #{tpu_custom_call.1} parent=1 // loop_exit
      _
    %7503 = vsyncpa [#allocation3], 1
    %s7504 = scalar_lea.sflag [#allocation3], 1
    %7505 = vsyncpa %s7504, 1

</llo_original>
